<compile_context>
chip_gen: v7x
topology: tpu7x:2x2x1
jax: 0.10.0
libtpu: 0.0.40
codegen_flags: <defaults>
</compile_context>

<pallas_src>
import jax
import jax.numpy as jnp
import numpy as np
from jax.experimental import pallas as pl
from jax.experimental.pallas import tpu as pltpu

INPUT_DIM = 784
HIDDEN_DIM = 100
OUTPUT_DIM = 10
LAYER_DIM = 2        # number of stacked LSTM layers

HIDDEN_PAD = 128     # hidden dim padded to the 128-lane vreg width
OUT_PAD = 128        # output dim padded for lane-dense stores
GATES = 4 * HIDDEN_PAD


# ----------------------------------------------------------------------------
# Pallas kernel.
# Packed, lane-padded weight layout (Hp = 128):
#   wih0 : (784, 4*Hp)    whh0 : (Hp, 4*Hp)     b0 : (1, 4*Hp)   (b_ih + b_hh)
#   w1   : (2*Hp, 4*Hp)   = vstack([wih1_packed, whh1_packed])
#   b1   : (1, 4*Hp)
#   wout : (Hp, OUT_PAD)  bout : (1, OUT_PAD)
# Gate g occupies lanes [g*Hp, g*Hp + 100); lanes [g*Hp + 100, (g+1)*Hp) are 0.
# ----------------------------------------------------------------------------
def lstm_kernel(x_ref,                         # (T, 784)               VMEM
                wih0_ref, whh0_ref, b0_ref,    # layer 0                VMEM
                w1_hbm, b1_hbm,                # fused layer 1          HBM (ANY)
                wout_hbm, bout_hbm,            # output Linear          HBM (ANY)
                val_ref, hn_ref, cn_ref,       # outputs
                g_s, h1_s,                     # VMEM scratch (T,4Hp), (T,Hp)
                w1_s, b1_s, wout_s, bout_s,    # VMEM landing buffers for manual DMA
                sem):                          # DMA semaphores (4,)
    T = x_ref.shape[0]
    Hp = HIDDEN_PAD

    # ---- kick off the layer-1 / output weight DMAs; they hide behind layer-0 ----
    cp_w1 = pltpu.make_async_copy(w1_hbm, w1_s, sem.at[0]); cp_w1.start()
    cp_b1 = pltpu.make_async_copy(b1_hbm, b1_s, sem.at[1]); cp_b1.start()
    cp_wo = pltpu.make_async_copy(wout_hbm, wout_s, sem.at[2]); cp_wo.start()
    cp_bo = pltpu.make_async_copy(bout_hbm, bout_s, sem.at[3]); cp_bo.start()

    def lstm_cell(gates, c):
        i_g = jax.nn.sigmoid(gates[:, 0 * Hp:1 * Hp])
        f_g = jax.nn.sigmoid(gates[:, 1 * Hp:2 * Hp])
        g_g = jnp.tanh(gates[:, 2 * Hp:3 * Hp])
        o_g = jax.nn.sigmoid(gates[:, 3 * Hp:4 * Hp])
        c_new = f_g * c + i_g * g_g
        h_new = o_g * jnp.tanh(c_new)
        return h_new, c_new

    # ---- layer 0: hoisted input projection (one lane-dense matmul) ----
    g_s[...] = jnp.dot(x_ref[...], wih0_ref[...],
                       preferred_element_type=jnp.float32) + b0_ref[...]

    h0 = jnp.zeros((1, Hp), jnp.float32)
    c0 = jnp.zeros((1, Hp), jnp.float32)
    h1 = jnp.zeros((1, Hp), jnp.float32)
    c1 = jnp.zeros((1, Hp), jnp.float32)

    # ---- wavefront recurrence: step s = layer-0 step s + layer-1 step s-1 ----
    # T is static -> fully unrolled; h/c live in vregs the whole time.
    for s in range(T + 1):
        h0_prev = h0                           # h0_{s-1}, the layer-1 input
        if s < T:
            gates0 = g_s[pl.ds(s, 1), :] + jnp.dot(
                h0, whh0_ref[...], preferred_element_type=jnp.float32)
            h0, c0 = lstm_cell(gates0, c0)
        if s == 1:
            # layer-1 weights are first needed here; wait for their DMAs.
            cp_w1.wait()
            cp_b1.wait()
        if s >= 1:
            # fused K=256 matmul: [h0_{s-1} | h1_{s-2}] @ [Wih1; Whh1]
            xin = jnp.concatenate([h0_prev, h1], axis=-1)      # (1, 2*Hp)
            gates1 = jnp.dot(xin, w1_s[...],
                             preferred_element_type=jnp.float32) + b1_s[...]
            h1, c1 = lstm_cell(gates1, c1)
            h1_s[pl.ds(s - 1, 1), :] = h1      # off the dependency chain

    # ---- output Linear, batched over all timesteps (one matmul, one store) ----
    cp_wo.wait()
    cp_bo.wait()
    val_ref[...] = jnp.dot(h1_s[...], wout_s[...],
                           preferred_element_type=jnp.float32) + bout_s[...]

    hn_ref[pl.ds(0, 1), :] = h0
    hn_ref[pl.ds(1, 1), :] = h1
    cn_ref[pl.ds(0, 1), :] = c0
    cn_ref[pl.ds(1, 1), :] = c1


# ----------------------------------------------------------------------------
# Parameter construction (deterministic, PyTorch-shaped).
# ----------------------------------------------------------------------------
def init_params(key):
    k = 1.0 / np.sqrt(HIDDEN_DIM)
    keys = jax.random.split(key, 12)

    def u(key, shape):
        return jax.random.uniform(key, shape, jnp.float32, minval=-k, maxval=k)

    params = {}
    in_dims = [INPUT_DIM, HIDDEN_DIM]
    for l in range(LAYER_DIM):
        base = 5 * l
        params[f"weight_ih_l{l}"] = u(keys[base + 0], (4 * HIDDEN_DIM, in_dims[l]))
        params[f"weight_hh_l{l}"] = u(keys[base + 1], (4 * HIDDEN_DIM, HIDDEN_DIM))
        params[f"bias_ih_l{l}"] = u(keys[base + 2], (4 * HIDDEN_DIM,))
        params[f"bias_hh_l{l}"] = u(keys[base + 3], (4 * HIDDEN_DIM,))
    params["out_weight"] = u(keys[10], (OUTPUT_DIM, HIDDEN_DIM))
    params["out_bias"] = u(keys[11], (OUTPUT_DIM,))
    return params


# ----------------------------------------------------------------------------
# One-time repack (outside the jitted forward): PyTorch (4H, in) layout ->
# fused, lane-padded layouts; layer-1 ih/hh weights stacked for the K=256 matmul.
# ----------------------------------------------------------------------------
def pack_params(params):
    H, Hp = HIDDEN_DIM, HIDDEN_PAD

    def gate_pack(w, in_dim, in_pad):
        w = np.asarray(w, np.float32)                      # (4H, in_dim)
        out = np.zeros((in_pad, 4 * Hp), np.float32)
        for g in range(4):
            out[:in_dim, g * Hp:g * Hp + H] = w[g * H:(g + 1) * H, :].T
        return out

    def bias_pack(b):
        b = np.asarray(b, np.float32)                      # (4H,)
        out = np.zeros((1, 4 * Hp), np.float32)
        for g in range(4):
            out[0, g * Hp:g * Hp + H] = b[g * H:(g + 1) * H]
        return out

    wih0 = gate_pack(params["weight_ih_l0"], INPUT_DIM, INPUT_DIM)
    whh0 = gate_pack(params["weight_hh_l0"], H, Hp)
    b0 = bias_pack(np.asarray(params["bias_ih_l0"]) + np.asarray(params["bias_hh_l0"]))

    wih1 = gate_pack(params["weight_ih_l1"], H, Hp)
    whh1 = gate_pack(params["weight_hh_l1"], H, Hp)
    w1 = np.concatenate([wih1, whh1], axis=0)              # (2*Hp, 4*Hp)
    b1 = bias_pack(np.asarray(params["bias_ih_l1"]) + np.asarray(params["bias_hh_l1"]))

    wout = np.zeros((Hp, OUT_PAD), np.float32)
    wout[:H, :OUTPUT_DIM] = np.asarray(params["out_weight"], np.float32).T
    bout = np.zeros((1, OUT_PAD), np.float32)
    bout[0, :OUTPUT_DIM] = np.asarray(params["out_bias"], np.float32)

    return {"wih0": jnp.asarray(wih0), "whh0": jnp.asarray(whh0), "b0": jnp.asarray(b0),
            "w1": jnp.asarray(w1), "b1": jnp.asarray(b1),
            "wout": jnp.asarray(wout), "bout": jnp.asarray(bout)}


# ----------------------------------------------------------------------------
# Wrapper: reproduces RNN.forward(x, hidden_state, cell_state) semantics
# (the module passes None to nn.LSTM, so the provided states are ignored).
# Returns (val, h_n, c_n) with shapes (1, T, 10), (L, 1, H), (L, 1, H).
# ----------------------------------------------------------------------------
@jax.jit
def rnn_forward(x, packed):
    x2d = x.reshape(-1, INPUT_DIM).astype(jnp.float32)     # x.view(-1, 784)
    T = x2d.shape[0]

    vmem = pl.BlockSpec(memory_space=pltpu.MemorySpace.VMEM)
    hbm = pl.BlockSpec(memory_space=pl.ANY)

    out_shapes = (
        jax.ShapeDtypeStruct((T, OUT_PAD), jnp.float32),
        jax.ShapeDtypeStruct((LAYER_DIM, HIDDEN_PAD), jnp.float32),
        jax.ShapeDtypeStruct((LAYER_DIM, HIDDEN_PAD), jnp.float32),
    )
    val_p, hn_p, cn_p = pl.pallas_call(
        lstm_kernel,
        out_shape=out_shapes,
        in_specs=[vmem, vmem, vmem, vmem,      # x, wih0, whh0, b0 (auto-DMA, needed first)
                  hbm, hbm, hbm, hbm],         # w1, b1, wout, bout (manual async DMA)
        out_specs=(vmem, vmem, vmem),
        scratch_shapes=[
            pltpu.VMEM((T, GATES), jnp.float32),              # g_s : hoisted layer-0 proj
            pltpu.VMEM((T, HIDDEN_PAD), jnp.float32),         # h1_s: layer-1 outputs
            pltpu.VMEM((2 * HIDDEN_PAD, GATES), jnp.float32), # w1_s
            pltpu.VMEM((1, GATES), jnp.float32),              # b1_s
            pltpu.VMEM((HIDDEN_PAD, OUT_PAD), jnp.float32),   # wout_s
            pltpu.VMEM((1, OUT_PAD), jnp.float32),            # bout_s
            pltpu.SemaphoreType.DMA((4,)),
        ],
    )(x2d, packed["wih0"], packed["whh0"], packed["b0"],
      packed["w1"], packed["b1"], packed["wout"], packed["bout"])

    val = val_p[None, :, :OUTPUT_DIM]          # (1, T, OUT)  — batch_first, batch=1
    h_n = hn_p[:, None, :HIDDEN_DIM]           # (L, 1, H)
    c_n = cn_p[:, None, :HIDDEN_DIM]           # (L, 1, H)
    return val, h_n, c_n


# ----------------------------------------------------------------------------
# Pure-NumPy reference (mirrors PyTorch nn.LSTM + nn.Linear) for a sanity check.
# ----------------------------------------------------------------------------
def ref_forward(x, params):
    x2d = np.asarray(x, np.float32).reshape(-1, INPUT_DIM)
    T = x2d.shape[0]
    H = HIDDEN_DIM

    def sigmoid(z):
        return 1.0 / (1.0 + np.exp(-z))

    hs = [np.zeros((1, H), np.float32) for _ in range(LAYER_DIM)]
    cs = [np.zeros((1, H), np.float32) for _ in range(LAYER_DIM)]
    wout = np.asarray(params["out_weight"])
    bout = np.asarray(params["out_bias"])
    vals = []
    for t in range(T):
        inp = x2d[t:t + 1]
        for l in range(LAYER_DIM):
            wih = np.asarray(params[f"weight_ih_l{l}"])
            whh = np.asarray(params[f"weight_hh_l{l}"])
            b = np.asarray(params[f"bias_ih_l{l}"]) + np.asarray(params[f"bias_hh_l{l}"])
            gates = inp @ wih.T + hs[l] @ whh.T + b[None, :]
            i_g = sigmoid(gates[:, 0:H])
            f_g = sigmoid(gates[:, H:2 * H])
            g_g = np.tanh(gates[:, 2 * H:3 * H])
            o_g = sigmoid(gates[:, 3 * H:4 * H])
            cs[l] = f_g * cs[l] + i_g * g_g
            hs[l] = o_g * np.tanh(cs[l])
            inp = hs[l]
        vals.append(inp @ wout.T + bout[None, :])
    val = np.stack(vals, axis=0)[None, :, 0, :]              # (1, T, OUT)
    h_n = np.stack([h[0] for h in hs], axis=0)[:, None, :]   # (L, 1, H)
    c_n = np.stack([c[0] for c in cs], axis=0)[:, None, :]   # (L, 1, H)
    return val, h_n, c_n


if __name__ == "__main__":
    key = jax.random.PRNGKey(0)
    pkey, xkey = jax.random.split(key)
    params = init_params(pkey)
    packed = pack_params(params)           # one-time repack, outside jit path

    # Small MNIST-like batch: 8 images of shape (1, 28, 28) -> seq_len = 8.
    x = jax.random.normal(xkey, (8, 1, 28, 28), dtype=jnp.float32)
    hidden_state = jnp.zeros((LAYER_DIM, 1, HIDDEN_DIM), jnp.float32)  # unused (LSTM gets None)
    cell_state = jnp.zeros((LAYER_DIM, 1, HIDDEN_DIM), jnp.float32)    # unused (LSTM gets None)

    val, h_n, c_n = rnn_forward(x, packed)
    jax.block_until_ready((val, h_n, c_n))

    val_r, h_r, c_r = ref_forward(x, params)
    np.testing.assert_allclose(np.asarray(val), val_r, rtol=2e-3, atol=2e-3)
    np.testing.assert_allclose(np.asarray(h_n), h_r, rtol=2e-3, atol=2e-3)
    np.testing.assert_allclose(np.asarray(c_n), c_r, rtol=2e-3, atol=2e-3)

    assert val.shape == (1, 8, OUTPUT_DIM)
    assert h_n.shape == (LAYER_DIM, 1, HIDDEN_DIM)
    assert c_n.shape == (LAYER_DIM, 1, HIDDEN_DIM)
    print("KERNEL_OK")
</pallas_src>

<mosaic_0001>
module attributes {stable_mosaic.version = 11 : i64} {
  func.func @lstm_kernel(%arg0: memref<8x784xf32, #tpu.memory_space<vmem>>, %arg1: memref<784x512xf32, #tpu.memory_space<vmem>>, %arg2: memref<128x512xf32, #tpu.memory_space<vmem>>, %arg3: memref<1x512xf32, #tpu.memory_space<vmem>>, %arg4: memref<256x512xf32, #tpu.memory_space<any>>, %arg5: memref<1x512xf32, #tpu.memory_space<any>>, %arg6: memref<128x128xf32, #tpu.memory_space<any>>, %arg7: memref<1x128xf32, #tpu.memory_space<any>>, %arg8: memref<8x128xf32, #tpu.memory_space<vmem>>, %arg9: memref<2x128xf32, #tpu.memory_space<vmem>>, %arg10: memref<2x128xf32, #tpu.memory_space<vmem>>, %arg11: memref<8x512xf32, #tpu.memory_space<vmem>>, %arg12: memref<8x128xf32, #tpu.memory_space<vmem>>, %arg13: memref<256x512xf32, #tpu.memory_space<vmem>>, %arg14: memref<1x512xf32, #tpu.memory_space<vmem>>, %arg15: memref<128x128xf32, #tpu.memory_space<vmem>>, %arg16: memref<1x128xf32, #tpu.memory_space<vmem>>, %arg17: memref<4x!tpu.dma_semaphore, #tpu.memory_space<semaphore_mem>>) attributes {dimension_semantics = [], scalar_prefetch = 0 : i64, scratch_operands = 7 : i64, tpu.core_type = #tpu.core_type<tc>} {
    %c0_i32 = arith.constant 0 : i32
    %0 = tpu.memref_slice %arg17[%c0_i32] : memref<4x!tpu.dma_semaphore, #tpu.memory_space<semaphore_mem>> -> memref<1x!tpu.dma_semaphore, #tpu.memory_space<semaphore_mem>>
    %1 = tpu.memref_squeeze %0 : memref<1x!tpu.dma_semaphore, #tpu.memory_space<semaphore_mem>> -> memref<!tpu.dma_semaphore, #tpu.memory_space<semaphore_mem>>
    tpu.enqueue_dma source(%arg4 : memref<256x512xf32, #tpu.memory_space<any>>) target(%arg13 : memref<256x512xf32, #tpu.memory_space<vmem>>) target_semaphore(%1 : memref<!tpu.dma_semaphore, #tpu.memory_space<semaphore_mem>>)
    %c1_i32 = arith.constant 1 : i32
    %2 = tpu.memref_slice %arg17[%c1_i32] : memref<4x!tpu.dma_semaphore, #tpu.memory_space<semaphore_mem>> -> memref<1x!tpu.dma_semaphore, #tpu.memory_space<semaphore_mem>>
    %3 = tpu.memref_squeeze %2 : memref<1x!tpu.dma_semaphore, #tpu.memory_space<semaphore_mem>> -> memref<!tpu.dma_semaphore, #tpu.memory_space<semaphore_mem>>
    tpu.enqueue_dma source(%arg5 : memref<1x512xf32, #tpu.memory_space<any>>) target(%arg14 : memref<1x512xf32, #tpu.memory_space<vmem>>) target_semaphore(%3 : memref<!tpu.dma_semaphore, #tpu.memory_space<semaphore_mem>>)
    %c2_i32 = arith.constant 2 : i32
    %4 = tpu.memref_slice %arg17[%c2_i32] : memref<4x!tpu.dma_semaphore, #tpu.memory_space<semaphore_mem>> -> memref<1x!tpu.dma_semaphore, #tpu.memory_space<semaphore_mem>>
    %5 = tpu.memref_squeeze %4 : memref<1x!tpu.dma_semaphore, #tpu.memory_space<semaphore_mem>> -> memref<!tpu.dma_semaphore, #tpu.memory_space<semaphore_mem>>
    tpu.enqueue_dma source(%arg6 : memref<128x128xf32, #tpu.memory_space<any>>) target(%arg15 : memref<128x128xf32, #tpu.memory_space<vmem>>) target_semaphore(%5 : memref<!tpu.dma_semaphore, #tpu.memory_space<semaphore_mem>>)
    %c3_i32 = arith.constant 3 : i32
    %6 = tpu.memref_slice %arg17[%c3_i32] : memref<4x!tpu.dma_semaphore, #tpu.memory_space<semaphore_mem>> -> memref<1x!tpu.dma_semaphore, #tpu.memory_space<semaphore_mem>>
    %7 = tpu.memref_squeeze %6 : memref<1x!tpu.dma_semaphore, #tpu.memory_space<semaphore_mem>> -> memref<!tpu.dma_semaphore, #tpu.memory_space<semaphore_mem>>
    tpu.enqueue_dma source(%arg7 : memref<1x128xf32, #tpu.memory_space<any>>) target(%arg16 : memref<1x128xf32, #tpu.memory_space<vmem>>) target_semaphore(%7 : memref<!tpu.dma_semaphore, #tpu.memory_space<semaphore_mem>>)
    %c0 = arith.constant 0 : index
    %c0_0 = arith.constant 0 : index
    %8 = vector.load %arg0[%c0, %c0_0] : memref<8x784xf32, #tpu.memory_space<vmem>>, vector<8x784xf32>
    %c0_1 = arith.constant 0 : index
    %c0_2 = arith.constant 0 : index
    %9 = vector.load %arg1[%c0_1, %c0_2] : memref<784x512xf32, #tpu.memory_space<vmem>>, vector<784x512xf32>
    %cst = arith.constant dense<0.000000e+00> : vector<8x512xf32>
    %10 = tpu.matmul %8, %9, %cst {dimension_numbers = #tpu.dot_dimension_numbers<[1], [0], [0], [1], [0, 0, 1, 1], [], []>} : vector<8x784xf32>, vector<784x512xf32>, vector<8x512xf32> -> vector<8x512xf32>
    %c0_3 = arith.constant 0 : index
    %c0_4 = arith.constant 0 : index
    %11 = vector.load %arg3[%c0_3, %c0_4] : memref<1x512xf32, #tpu.memory_space<vmem>>, vector<1x512xf32>
    %12 = vector.broadcast %11 : vector<1x512xf32> to vector<8x512xf32>
    %13 = arith.addf %10, %12 : vector<8x512xf32>
    %c0_5 = arith.constant 0 : index
    %c0_6 = arith.constant 0 : index
    %14 = vector.load %arg11[%c0_5, %c0_6] : memref<8x512xf32, #tpu.memory_space<vmem>>, vector<8x512xf32>
    tpu.vector_store %arg11[%c0_5, %c0_6], %13 {strides = array<i32>} : memref<8x512xf32, #tpu.memory_space<vmem>>, vector<8x512xf32>,
    %cst_7 = arith.constant 0.000000e+00 : f32
    %15 = vector.broadcast %cst_7 : f32 to vector<1x128xf32>
    %cst_8 = arith.constant 0.000000e+00 : f32
    %16 = vector.broadcast %cst_8 : f32 to vector<1x128xf32>
    %cst_9 = arith.constant 0.000000e+00 : f32
    %17 = vector.broadcast %cst_9 : f32 to vector<1x128xf32>
    %cst_10 = arith.constant 0.000000e+00 : f32
    %18 = vector.broadcast %cst_10 : f32 to vector<1x128xf32>
    %c0_11 = arith.constant 0 : index
    %c0_12 = arith.constant 0 : index
    %19 = vector.load %arg11[%c0_11, %c0_12] : memref<8x512xf32, #tpu.memory_space<vmem>>, vector<1x512xf32>
    %c0_13 = arith.constant 0 : index
    %c0_14 = arith.constant 0 : index
    %20 = vector.load %arg2[%c0_13, %c0_14] : memref<128x512xf32, #tpu.memory_space<vmem>>, vector<128x512xf32>
    %cst_15 = arith.constant dense<0.000000e+00> : vector<1x512xf32>
    %21 = tpu.matmul %15, %20, %cst_15 {dimension_numbers = #tpu.dot_dimension_numbers<[1], [0], [0], [1], [0, 0, 1, 1], [], []>} : vector<1x128xf32>, vector<128x512xf32>, vector<1x512xf32> -> vector<1x512xf32>
    %22 = arith.addf %19, %21 : vector<1x512xf32>
    %23 = vector.extract_strided_slice %22 {offsets = [0, 0], sizes = [1, 128], strides = [1, 1]} : vector<1x512xf32> to vector<1x128xf32>
    %24 = arith.negf %23 : vector<1x128xf32>
    %25 = math.exp %24 : vector<1x128xf32>
    %cst_16 = arith.constant 1.000000e+00 : f32
    %26 = vector.broadcast %cst_16 : f32 to vector<1x128xf32>
    %27 = arith.addf %26, %25 : vector<1x128xf32>
    %28 = arith.divf %26, %27 : vector<1x128xf32>
    %29 = vector.extract_strided_slice %22 {offsets = [0, 128], sizes = [1, 128], strides = [1, 1]} : vector<1x512xf32> to vector<1x128xf32>
    %30 = arith.negf %29 : vector<1x128xf32>
    %31 = math.exp %30 : vector<1x128xf32>
    %cst_17 = arith.constant 1.000000e+00 : f32
    %32 = vector.broadcast %cst_17 : f32 to vector<1x128xf32>
    %33 = arith.addf %32, %31 : vector<1x128xf32>
    %34 = arith.divf %32, %33 : vector<1x128xf32>
    %35 = vector.extract_strided_slice %22 {offsets = [0, 256], sizes = [1, 128], strides = [1, 1]} : vector<1x512xf32> to vector<1x128xf32>
    %36 = math.tanh %35 : vector<1x128xf32>
    %37 = vector.extract_strided_slice %22 {offsets = [0, 384], sizes = [1, 128], strides = [1, 1]} : vector<1x512xf32> to vector<1x128xf32>
    %38 = arith.negf %37 : vector<1x128xf32>
    %39 = math.exp %38 : vector<1x128xf32>
    %cst_18 = arith.constant 1.000000e+00 : f32
    %40 = vector.broadcast %cst_18 : f32 to vector<1x128xf32>
    %41 = arith.addf %40, %39 : vector<1x128xf32>
    %42 = arith.divf %40, %41 : vector<1x128xf32>
    %43 = arith.mulf %34, %16 : vector<1x128xf32>
    %44 = arith.mulf %28, %36 : vector<1x128xf32>
    %45 = arith.addf %43, %44 : vector<1x128xf32>
    %46 = math.tanh %45 : vector<1x128xf32>
    %47 = arith.mulf %42, %46 : vector<1x128xf32>
    %c1 = arith.constant 1 : index
    %c0_19 = arith.constant 0 : index
    %48 = vector.load %arg11[%c1, %c0_19] : memref<8x512xf32, #tpu.memory_space<vmem>>, vector<1x512xf32>
    %c0_20 = arith.constant 0 : index
    %c0_21 = arith.constant 0 : index
    %49 = vector.load %arg2[%c0_20, %c0_21] : memref<128x512xf32, #tpu.memory_space<vmem>>, vector<128x512xf32>
    %cst_22 = arith.constant dense<0.000000e+00> : vector<1x512xf32>
    %50 = tpu.matmul %47, %49, %cst_22 {dimension_numbers = #tpu.dot_dimension_numbers<[1], [0], [0], [1], [0, 0, 1, 1], [], []>} : vector<1x128xf32>, vector<128x512xf32>, vector<1x512xf32> -> vector<1x512xf32>
    %51 = arith.addf %48, %50 : vector<1x512xf32>
    %52 = vector.extract_strided_slice %51 {offsets = [0, 0], sizes = [1, 128], strides = [1, 1]} : vector<1x512xf32> to vector<1x128xf32>
    %53 = arith.negf %52 : vector<1x128xf32>
    %54 = math.exp %53 : vector<1x128xf32>
    %cst_23 = arith.constant 1.000000e+00 : f32
    %55 = vector.broadcast %cst_23 : f32 to vector<1x128xf32>
    %56 = arith.addf %55, %54 : vector<1x128xf32>
    %57 = arith.divf %55, %56 : vector<1x128xf32>
    %58 = vector.extract_strided_slice %51 {offsets = [0, 128], sizes = [1, 128], strides = [1, 1]} : vector<1x512xf32> to vector<1x128xf32>
    %59 = arith.negf %58 : vector<1x128xf32>
    %60 = math.exp %59 : vector<1x128xf32>
    %cst_24 = arith.constant 1.000000e+00 : f32
    %61 = vector.broadcast %cst_24 : f32 to vector<1x128xf32>
    %62 = arith.addf %61, %60 : vector<1x128xf32>
    %63 = arith.divf %61, %62 : vector<1x128xf32>
    %64 = vector.extract_strided_slice %51 {offsets = [0, 256], sizes = [1, 128], strides = [1, 1]} : vector<1x512xf32> to vector<1x128xf32>
    %65 = math.tanh %64 : vector<1x128xf32>
    %66 = vector.extract_strided_slice %51 {offsets = [0, 384], sizes = [1, 128], strides = [1, 1]} : vector<1x512xf32> to vector<1x128xf32>
    %67 = arith.negf %66 : vector<1x128xf32>
    %68 = math.exp %67 : vector<1x128xf32>
    %cst_25 = arith.constant 1.000000e+00 : f32
    %69 = vector.broadcast %cst_25 : f32 to vector<1x128xf32>
    %70 = arith.addf %69, %68 : vector<1x128xf32>
    %71 = arith.divf %69, %70 : vector<1x128xf32>
    %72 = arith.mulf %63, %45 : vector<1x128xf32>
    %73 = arith.mulf %57, %65 : vector<1x128xf32>
    %74 = arith.addf %72, %73 : vector<1x128xf32>
    %75 = math.tanh %74 : vector<1x128xf32>
    %76 = arith.mulf %71, %75 : vector<1x128xf32>
    %c0_i32_26 = arith.constant 0 : i32
    %77 = tpu.memref_slice %arg17[%c0_i32_26] : memref<4x!tpu.dma_semaphore, #tpu.memory_space<semaphore_mem>> -> memref<1x!tpu.dma_semaphore, #tpu.memory_space<semaphore_mem>>
    %78 = tpu.memref_squeeze %77 : memref<1x!tpu.dma_semaphore, #tpu.memory_space<semaphore_mem>> -> memref<!tpu.dma_semaphore, #tpu.memory_space<semaphore_mem>>
    tpu.wait_dma2 semaphore(%78 : memref<!tpu.dma_semaphore, #tpu.memory_space<semaphore_mem>>) src(%arg4 : memref<256x512xf32, #tpu.memory_space<any>>) dst(%arg13 : memref<256x512xf32, #tpu.memory_space<vmem>>)
    %c1_i32_27 = arith.constant 1 : i32
    %79 = tpu.memref_slice %arg17[%c1_i32_27] : memref<4x!tpu.dma_semaphore, #tpu.memory_space<semaphore_mem>> -> memref<1x!tpu.dma_semaphore, #tpu.memory_space<semaphore_mem>>
    %80 = tpu.memref_squeeze %79 : memref<1x!tpu.dma_semaphore, #tpu.memory_space<semaphore_mem>> -> memref<!tpu.dma_semaphore, #tpu.memory_space<semaphore_mem>>
    tpu.wait_dma2 semaphore(%80 : memref<!tpu.dma_semaphore, #tpu.memory_space<semaphore_mem>>) src(%arg5 : memref<1x512xf32, #tpu.memory_space<any>>) dst(%arg14 : memref<1x512xf32, #tpu.memory_space<vmem>>)
    %81 = tpu.concatenate %47, %17 in 1 : vector<1x128xf32>, vector<1x128xf32> -> vector<1x256xf32>
    %c0_28 = arith.constant 0 : index
    %c0_29 = arith.constant 0 : index
    %82 = vector.load %arg13[%c0_28, %c0_29] : memref<256x512xf32, #tpu.memory_space<vmem>>, vector<256x512xf32>
    %cst_30 = arith.constant dense<0.000000e+00> : vector<1x512xf32>
    %83 = tpu.matmul %81, %82, %cst_30 {dimension_numbers = #tpu.dot_dimension_numbers<[1], [0], [0], [1], [0, 0, 1, 1], [], []>} : vector<1x256xf32>, vector<256x512xf32>, vector<1x512xf32> -> vector<1x512xf32>
    %c0_31 = arith.constant 0 : index
    %c0_32 = arith.constant 0 : index
    %84 = vector.load %arg14[%c0_31, %c0_32] : memref<1x512xf32, #tpu.memory_space<vmem>>, vector<1x512xf32>
    %85 = arith.addf %83, %84 : vector<1x512xf32>
    %86 = vector.extract_strided_slice %85 {offsets = [0, 0], sizes = [1, 128], strides = [1, 1]} : vector<1x512xf32> to vector<1x128xf32>
    %87 = arith.negf %86 : vector<1x128xf32>
    %88 = math.exp %87 : vector<1x128xf32>
    %cst_33 = arith.constant 1.000000e+00 : f32
    %89 = vector.broadcast %cst_33 : f32 to vector<1x128xf32>
    %90 = arith.addf %89, %88 : vector<1x128xf32>
    %91 = arith.divf %89, %90 : vector<1x128xf32>
    %92 = vector.extract_strided_slice %85 {offsets = [0, 128], sizes = [1, 128], strides = [1, 1]} : vector<1x512xf32> to vector<1x128xf32>
    %93 = arith.negf %92 : vector<1x128xf32>
    %94 = math.exp %93 : vector<1x128xf32>
    %cst_34 = arith.constant 1.000000e+00 : f32
    %95 = vector.broadcast %cst_34 : f32 to vector<1x128xf32>
    %96 = arith.addf %95, %94 : vector<1x128xf32>
    %97 = arith.divf %95, %96 : vector<1x128xf32>
    %98 = vector.extract_strided_slice %85 {offsets = [0, 256], sizes = [1, 128], strides = [1, 1]} : vector<1x512xf32> to vector<1x128xf32>
    %99 = math.tanh %98 : vector<1x128xf32>
    %100 = vector.extract_strided_slice %85 {offsets = [0, 384], sizes = [1, 128], strides = [1, 1]} : vector<1x512xf32> to vector<1x128xf32>
    %101 = arith.negf %100 : vector<1x128xf32>
    %102 = math.exp %101 : vector<1x128xf32>
    %cst_35 = arith.constant 1.000000e+00 : f32
    %103 = vector.broadcast %cst_35 : f32 to vector<1x128xf32>
    %104 = arith.addf %103, %102 : vector<1x128xf32>
    %105 = arith.divf %103, %104 : vector<1x128xf32>
    %106 = arith.mulf %97, %18 : vector<1x128xf32>
    %107 = arith.mulf %91, %99 : vector<1x128xf32>
    %108 = arith.addf %106, %107 : vector<1x128xf32>
    %109 = math.tanh %108 : vector<1x128xf32>
    %110 = arith.mulf %105, %109 : vector<1x128xf32>
    %c0_36 = arith.constant 0 : index
    %c0_37 = arith.constant 0 : index
    %111 = vector.load %arg12[%c0_36, %c0_37] : memref<8x128xf32, #tpu.memory_space<vmem>>, vector<1x128xf32>
    tpu.vector_store %arg12[%c0_36, %c0_37], %110 {strides = array<i32>} : memref<8x128xf32, #tpu.memory_space<vmem>>, vector<1x128xf32>,
    %c2 = arith.constant 2 : index
    %c0_38 = arith.constant 0 : index
    %112 = vector.load %arg11[%c2, %c0_38] : memref<8x512xf32, #tpu.memory_space<vmem>>, vector<1x512xf32>
    %c0_39 = arith.constant 0 : index
    %c0_40 = arith.constant 0 : index
    %113 = vector.load %arg2[%c0_39, %c0_40] : memref<128x512xf32, #tpu.memory_space<vmem>>, vector<128x512xf32>
    %cst_41 = arith.constant dense<0.000000e+00> : vector<1x512xf32>
    %114 = tpu.matmul %76, %113, %cst_41 {dimension_numbers = #tpu.dot_dimension_numbers<[1], [0], [0], [1], [0, 0, 1, 1], [], []>} : vector<1x128xf32>, vector<128x512xf32>, vector<1x512xf32> -> vector<1x512xf32>
    %115 = arith.addf %112, %114 : vector<1x512xf32>
    %116 = vector.extract_strided_slice %115 {offsets = [0, 0], sizes = [1, 128], strides = [1, 1]} : vector<1x512xf32> to vector<1x128xf32>
    %117 = arith.negf %116 : vector<1x128xf32>
    %118 = math.exp %117 : vector<1x128xf32>
    %cst_42 = arith.constant 1.000000e+00 : f32
    %119 = vector.broadcast %cst_42 : f32 to vector<1x128xf32>
    %120 = arith.addf %119, %118 : vector<1x128xf32>
    %121 = arith.divf %119, %120 : vector<1x128xf32>
    %122 = vector.extract_strided_slice %115 {offsets = [0, 128], sizes = [1, 128], strides = [1, 1]} : vector<1x512xf32> to vector<1x128xf32>
    %123 = arith.negf %122 : vector<1x128xf32>
    %124 = math.exp %123 : vector<1x128xf32>
    %cst_43 = arith.constant 1.000000e+00 : f32
    %125 = vector.broadcast %cst_43 : f32 to vector<1x128xf32>
    %126 = arith.addf %125, %124 : vector<1x128xf32>
    %127 = arith.divf %125, %126 : vector<1x128xf32>
    %128 = vector.extract_strided_slice %115 {offsets = [0, 256], sizes = [1, 128], strides = [1, 1]} : vector<1x512xf32> to vector<1x128xf32>
    %129 = math.tanh %128 : vector<1x128xf32>
    %130 = vector.extract_strided_slice %115 {offsets = [0, 384], sizes = [1, 128], strides = [1, 1]} : vector<1x512xf32> to vector<1x128xf32>
    %131 = arith.negf %130 : vector<1x128xf32>
    %132 = math.exp %131 : vector<1x128xf32>
    %cst_44 = arith.constant 1.000000e+00 : f32
    %133 = vector.broadcast %cst_44 : f32 to vector<1x128xf32>
    %134 = arith.addf %133, %132 : vector<1x128xf32>
    %135 = arith.divf %133, %134 : vector<1x128xf32>
    %136 = arith.mulf %127, %74 : vector<1x128xf32>
    %137 = arith.mulf %121, %129 : vector<1x128xf32>
    %138 = arith.addf %136, %137 : vector<1x128xf32>
    %139 = math.tanh %138 : vector<1x128xf32>
    %140 = arith.mulf %135, %139 : vector<1x128xf32>
    %141 = tpu.concatenate %76, %110 in 1 : vector<1x128xf32>, vector<1x128xf32> -> vector<1x256xf32>
    %c0_45 = arith.constant 0 : index
    %c0_46 = arith.constant 0 : index
    %142 = vector.load %arg13[%c0_45, %c0_46] : memref<256x512xf32, #tpu.memory_space<vmem>>, vector<256x512xf32>
    %cst_47 = arith.constant dense<0.000000e+00> : vector<1x512xf32>
    %143 = tpu.matmul %141, %142, %cst_47 {dimension_numbers = #tpu.dot_dimension_numbers<[1], [0], [0], [1], [0, 0, 1, 1], [], []>} : vector<1x256xf32>, vector<256x512xf32>, vector<1x512xf32> -> vector<1x512xf32>
    %c0_48 = arith.constant 0 : index
    %c0_49 = arith.constant 0 : index
    %144 = vector.load %arg14[%c0_48, %c0_49] : memref<1x512xf32, #tpu.memory_space<vmem>>, vector<1x512xf32>
    %145 = arith.addf %143, %144 : vector<1x512xf32>
    %146 = vector.extract_strided_slice %145 {offsets = [0, 0], sizes = [1, 128], strides = [1, 1]} : vector<1x512xf32> to vector<1x128xf32>
    %147 = arith.negf %146 : vector<1x128xf32>
    %148 = math.exp %147 : vector<1x128xf32>
    %cst_50 = arith.constant 1.000000e+00 : f32
    %149 = vector.broadcast %cst_50 : f32 to vector<1x128xf32>
    %150 = arith.addf %149, %148 : vector<1x128xf32>
    %151 = arith.divf %149, %150 : vector<1x128xf32>
    %152 = vector.extract_strided_slice %145 {offsets = [0, 128], sizes = [1, 128], strides = [1, 1]} : vector<1x512xf32> to vector<1x128xf32>
    %153 = arith.negf %152 : vector<1x128xf32>
    %154 = math.exp %153 : vector<1x128xf32>
    %cst_51 = arith.constant 1.000000e+00 : f32
    %155 = vector.broadcast %cst_51 : f32 to vector<1x128xf32>
    %156 = arith.addf %155, %154 : vector<1x128xf32>
    %157 = arith.divf %155, %156 : vector<1x128xf32>
    %158 = vector.extract_strided_slice %145 {offsets = [0, 256], sizes = [1, 128], strides = [1, 1]} : vector<1x512xf32> to vector<1x128xf32>
    %159 = math.tanh %158 : vector<1x128xf32>
    %160 = vector.extract_strided_slice %145 {offsets = [0, 384], sizes = [1, 128], strides = [1, 1]} : vector<1x512xf32> to vector<1x128xf32>
    %161 = arith.negf %160 : vector<1x128xf32>
    %162 = math.exp %161 : vector<1x128xf32>
    %cst_52 = arith.constant 1.000000e+00 : f32
    %163 = vector.broadcast %cst_52 : f32 to vector<1x128xf32>
    %164 = arith.addf %163, %162 : vector<1x128xf32>
    %165 = arith.divf %163, %164 : vector<1x128xf32>
    %166 = arith.mulf %157, %108 : vector<1x128xf32>
    %167 = arith.mulf %151, %159 : vector<1x128xf32>
    %168 = arith.addf %166, %167 : vector<1x128xf32>
    %169 = math.tanh %168 : vector<1x128xf32>
    %170 = arith.mulf %165, %169 : vector<1x128xf32>
    %c1_53 = arith.constant 1 : index
    %c0_54 = arith.constant 0 : index
    %171 = vector.load %arg12[%c1_53, %c0_54] : memref<8x128xf32, #tpu.memory_space<vmem>>, vector<1x128xf32>
    tpu.vector_store %arg12[%c1_53, %c0_54], %170 {strides = array<i32>} : memref<8x128xf32, #tpu.memory_space<vmem>>, vector<1x128xf32>,
    %c3 = arith.constant 3 : index
    %c0_55 = arith.constant 0 : index
    %172 = vector.load %arg11[%c3, %c0_55] : memref<8x512xf32, #tpu.memory_space<vmem>>, vector<1x512xf32>
    %c0_56 = arith.constant 0 : index
    %c0_57 = arith.constant 0 : index
    %173 = vector.load %arg2[%c0_56, %c0_57] : memref<128x512xf32, #tpu.memory_space<vmem>>, vector<128x512xf32>
    %cst_58 = arith.constant dense<0.000000e+00> : vector<1x512xf32>
    %174 = tpu.matmul %140, %173, %cst_58 {dimension_numbers = #tpu.dot_dimension_numbers<[1], [0], [0], [1], [0, 0, 1, 1], [], []>} : vector<1x128xf32>, vector<128x512xf32>, vector<1x512xf32> -> vector<1x512xf32>
    %175 = arith.addf %172, %174 : vector<1x512xf32>
    %176 = vector.extract_strided_slice %175 {offsets = [0, 0], sizes = [1, 128], strides = [1, 1]} : vector<1x512xf32> to vector<1x128xf32>
    %177 = arith.negf %176 : vector<1x128xf32>
    %178 = math.exp %177 : vector<1x128xf32>
    %cst_59 = arith.constant 1.000000e+00 : f32
    %179 = vector.broadcast %cst_59 : f32 to vector<1x128xf32>
    %180 = arith.addf %179, %178 : vector<1x128xf32>
    %181 = arith.divf %179, %180 : vector<1x128xf32>
    %182 = vector.extract_strided_slice %175 {offsets = [0, 128], sizes = [1, 128], strides = [1, 1]} : vector<1x512xf32> to vector<1x128xf32>
    %183 = arith.negf %182 : vector<1x128xf32>
    %184 = math.exp %183 : vector<1x128xf32>
    %cst_60 = arith.constant 1.000000e+00 : f32
    %185 = vector.broadcast %cst_60 : f32 to vector<1x128xf32>
    %186 = arith.addf %185, %184 : vector<1x128xf32>
    %187 = arith.divf %185, %186 : vector<1x128xf32>
    %188 = vector.extract_strided_slice %175 {offsets = [0, 256], sizes = [1, 128], strides = [1, 1]} : vector<1x512xf32> to vector<1x128xf32>
    %189 = math.tanh %188 : vector<1x128xf32>
    %190 = vector.extract_strided_slice %175 {offsets = [0, 384], sizes = [1, 128], strides = [1, 1]} : vector<1x512xf32> to vector<1x128xf32>
    %191 = arith.negf %190 : vector<1x128xf32>
    %192 = math.exp %191 : vector<1x128xf32>
    %cst_61 = arith.constant 1.000000e+00 : f32
    %193 = vector.broadcast %cst_61 : f32 to vector<1x128xf32>
    %194 = arith.addf %193, %192 : vector<1x128xf32>
    %195 = arith.divf %193, %194 : vector<1x128xf32>
    %196 = arith.mulf %187, %138 : vector<1x128xf32>
    %197 = arith.mulf %181, %189 : vector<1x128xf32>
    %198 = arith.addf %196, %197 : vector<1x128xf32>
    %199 = math.tanh %198 : vector<1x128xf32>
    %200 = arith.mulf %195, %199 : vector<1x128xf32>
    %201 = tpu.concatenate %140, %170 in 1 : vector<1x128xf32>, vector<1x128xf32> -> vector<1x256xf32>
    %c0_62 = arith.constant 0 : index
    %c0_63 = arith.constant 0 : index
    %202 = vector.load %arg13[%c0_62, %c0_63] : memref<256x512xf32, #tpu.memory_space<vmem>>, vector<256x512xf32>
    %cst_64 = arith.constant dense<0.000000e+00> : vector<1x512xf32>
    %203 = tpu.matmul %201, %202, %cst_64 {dimension_numbers = #tpu.dot_dimension_numbers<[1], [0], [0], [1], [0, 0, 1, 1], [], []>} : vector<1x256xf32>, vector<256x512xf32>, vector<1x512xf32> -> vector<1x512xf32>
    %c0_65 = arith.constant 0 : index
    %c0_66 = arith.constant 0 : index
    %204 = vector.load %arg14[%c0_65, %c0_66] : memref<1x512xf32, #tpu.memory_space<vmem>>, vector<1x512xf32>
    %205 = arith.addf %203, %204 : vector<1x512xf32>
    %206 = vector.extract_strided_slice %205 {offsets = [0, 0], sizes = [1, 128], strides = [1, 1]} : vector<1x512xf32> to vector<1x128xf32>
    %207 = arith.negf %206 : vector<1x128xf32>
    %208 = math.exp %207 : vector<1x128xf32>
    %cst_67 = arith.constant 1.000000e+00 : f32
    %209 = vector.broadcast %cst_67 : f32 to vector<1x128xf32>
    %210 = arith.addf %209, %208 : vector<1x128xf32>
    %211 = arith.divf %209, %210 : vector<1x128xf32>
    %212 = vector.extract_strided_slice %205 {offsets = [0, 128], sizes = [1, 128], strides = [1, 1]} : vector<1x512xf32> to vector<1x128xf32>
    %213 = arith.negf %212 : vector<1x128xf32>
    %214 = math.exp %213 : vector<1x128xf32>
    %cst_68 = arith.constant 1.000000e+00 : f32
    %215 = vector.broadcast %cst_68 : f32 to vector<1x128xf32>
    %216 = arith.addf %215, %214 : vector<1x128xf32>
    %217 = arith.divf %215, %216 : vector<1x128xf32>
    %218 = vector.extract_strided_slice %205 {offsets = [0, 256], sizes = [1, 128], strides = [1, 1]} : vector<1x512xf32> to vector<1x128xf32>
    %219 = math.tanh %218 : vector<1x128xf32>
    %220 = vector.extract_strided_slice %205 {offsets = [0, 384], sizes = [1, 128], strides = [1, 1]} : vector<1x512xf32> to vector<1x128xf32>
    %221 = arith.negf %220 : vector<1x128xf32>
    %222 = math.exp %221 : vector<1x128xf32>
    %cst_69 = arith.constant 1.000000e+00 : f32
    %223 = vector.broadcast %cst_69 : f32 to vector<1x128xf32>
    %224 = arith.addf %223, %222 : vector<1x128xf32>
    %225 = arith.divf %223, %224 : vector<1x128xf32>
    %226 = arith.mulf %217, %168 : vector<1x128xf32>
    %227 = arith.mulf %211, %219 : vector<1x128xf32>
    %228 = arith.addf %226, %227 : vector<1x128xf32>
    %229 = math.tanh %228 : vector<1x128xf32>
    %230 = arith.mulf %225, %229 : vector<1x128xf32>
    %c2_70 = arith.constant 2 : index
    %c0_71 = arith.constant 0 : index
    %231 = vector.load %arg12[%c2_70, %c0_71] : memref<8x128xf32, #tpu.memory_space<vmem>>, vector<1x128xf32>
    tpu.vector_store %arg12[%c2_70, %c0_71], %230 {strides = array<i32>} : memref<8x128xf32, #tpu.memory_space<vmem>>, vector<1x128xf32>,
    %c4 = arith.constant 4 : index
    %c0_72 = arith.constant 0 : index
    %232 = vector.load %arg11[%c4, %c0_72] : memref<8x512xf32, #tpu.memory_space<vmem>>, vector<1x512xf32>
    %c0_73 = arith.constant 0 : index
    %c0_74 = arith.constant 0 : index
    %233 = vector.load %arg2[%c0_73, %c0_74] : memref<128x512xf32, #tpu.memory_space<vmem>>, vector<128x512xf32>
    %cst_75 = arith.constant dense<0.000000e+00> : vector<1x512xf32>
    %234 = tpu.matmul %200, %233, %cst_75 {dimension_numbers = #tpu.dot_dimension_numbers<[1], [0], [0], [1], [0, 0, 1, 1], [], []>} : vector<1x128xf32>, vector<128x512xf32>, vector<1x512xf32> -> vector<1x512xf32>
    %235 = arith.addf %232, %234 : vector<1x512xf32>
    %236 = vector.extract_strided_slice %235 {offsets = [0, 0], sizes = [1, 128], strides = [1, 1]} : vector<1x512xf32> to vector<1x128xf32>
    %237 = arith.negf %236 : vector<1x128xf32>
    %238 = math.exp %237 : vector<1x128xf32>
    %cst_76 = arith.constant 1.000000e+00 : f32
    %239 = vector.broadcast %cst_76 : f32 to vector<1x128xf32>
    %240 = arith.addf %239, %238 : vector<1x128xf32>
    %241 = arith.divf %239, %240 : vector<1x128xf32>
    %242 = vector.extract_strided_slice %235 {offsets = [0, 128], sizes = [1, 128], strides = [1, 1]} : vector<1x512xf32> to vector<1x128xf32>
    %243 = arith.negf %242 : vector<1x128xf32>
    %244 = math.exp %243 : vector<1x128xf32>
    %cst_77 = arith.constant 1.000000e+00 : f32
    %245 = vector.broadcast %cst_77 : f32 to vector<1x128xf32>
    %246 = arith.addf %245, %244 : vector<1x128xf32>
    %247 = arith.divf %245, %246 : vector<1x128xf32>
    %248 = vector.extract_strided_slice %235 {offsets = [0, 256], sizes = [1, 128], strides = [1, 1]} : vector<1x512xf32> to vector<1x128xf32>
    %249 = math.tanh %248 : vector<1x128xf32>
    %250 = vector.extract_strided_slice %235 {offsets = [0, 384], sizes = [1, 128], strides = [1, 1]} : vector<1x512xf32> to vector<1x128xf32>
    %251 = arith.negf %250 : vector<1x128xf32>
    %252 = math.exp %251 : vector<1x128xf32>
    %cst_78 = arith.constant 1.000000e+00 : f32
    %253 = vector.broadcast %cst_78 : f32 to vector<1x128xf32>
    %254 = arith.addf %253, %252 : vector<1x128xf32>
    %255 = arith.divf %253, %254 : vector<1x128xf32>
    %256 = arith.mulf %247, %198 : vector<1x128xf32>
    %257 = arith.mulf %241, %249 : vector<1x128xf32>
    %258 = arith.addf %256, %257 : vector<1x128xf32>
    %259 = math.tanh %258 : vector<1x128xf32>
    %260 = arith.mulf %255, %259 : vector<1x128xf32>
    %261 = tpu.concatenate %200, %230 in 1 : vector<1x128xf32>, vector<1x128xf32> -> vector<1x256xf32>
    %c0_79 = arith.constant 0 : index
    %c0_80 = arith.constant 0 : index
    %262 = vector.load %arg13[%c0_79, %c0_80] : memref<256x512xf32, #tpu.memory_space<vmem>>, vector<256x512xf32>
    %cst_81 = arith.constant dense<0.000000e+00> : vector<1x512xf32>
    %263 = tpu.matmul %261, %262, %cst_81 {dimension_numbers = #tpu.dot_dimension_numbers<[1], [0], [0], [1], [0, 0, 1, 1], [], []>} : vector<1x256xf32>, vector<256x512xf32>, vector<1x512xf32> -> vector<1x512xf32>
    %c0_82 = arith.constant 0 : index
    %c0_83 = arith.constant 0 : index
    %264 = vector.load %arg14[%c0_82, %c0_83] : memref<1x512xf32, #tpu.memory_space<vmem>>, vector<1x512xf32>
    %265 = arith.addf %263, %264 : vector<1x512xf32>
    %266 = vector.extract_strided_slice %265 {offsets = [0, 0], sizes = [1, 128], strides = [1, 1]} : vector<1x512xf32> to vector<1x128xf32>
    %267 = arith.negf %266 : vector<1x128xf32>
    %268 = math.exp %267 : vector<1x128xf32>
    %cst_84 = arith.constant 1.000000e+00 : f32
    %269 = vector.broadcast %cst_84 : f32 to vector<1x128xf32>
    %270 = arith.addf %269, %268 : vector<1x128xf32>
    %271 = arith.divf %269, %270 : vector<1x128xf32>
    %272 = vector.extract_strided_slice %265 {offsets = [0, 128], sizes = [1, 128], strides = [1, 1]} : vector<1x512xf32> to vector<1x128xf32>
    %273 = arith.negf %272 : vector<1x128xf32>
    %274 = math.exp %273 : vector<1x128xf32>
    %cst_85 = arith.constant 1.000000e+00 : f32
    %275 = vector.broadcast %cst_85 : f32 to vector<1x128xf32>
    %276 = arith.addf %275, %274 : vector<1x128xf32>
    %277 = arith.divf %275, %276 : vector<1x128xf32>
    %278 = vector.extract_strided_slice %265 {offsets = [0, 256], sizes = [1, 128], strides = [1, 1]} : vector<1x512xf32> to vector<1x128xf32>
    %279 = math.tanh %278 : vector<1x128xf32>
    %280 = vector.extract_strided_slice %265 {offsets = [0, 384], sizes = [1, 128], strides = [1, 1]} : vector<1x512xf32> to vector<1x128xf32>
    %281 = arith.negf %280 : vector<1x128xf32>
    %282 = math.exp %281 : vector<1x128xf32>
    %cst_86 = arith.constant 1.000000e+00 : f32
    %283 = vector.broadcast %cst_86 : f32 to vector<1x128xf32>
    %284 = arith.addf %283, %282 : vector<1x128xf32>
    %285 = arith.divf %283, %284 : vector<1x128xf32>
    %286 = arith.mulf %277, %228 : vector<1x128xf32>
    %287 = arith.mulf %271, %279 : vector<1x128xf32>
    %288 = arith.addf %286, %287 : vector<1x128xf32>
    %289 = math.tanh %288 : vector<1x128xf32>
    %290 = arith.mulf %285, %289 : vector<1x128xf32>
    %c3_87 = arith.constant 3 : index
    %c0_88 = arith.constant 0 : index
    %291 = vector.load %arg12[%c3_87, %c0_88] : memref<8x128xf32, #tpu.memory_space<vmem>>, vector<1x128xf32>
    tpu.vector_store %arg12[%c3_87, %c0_88], %290 {strides = array<i32>} : memref<8x128xf32, #tpu.memory_space<vmem>>, vector<1x128xf32>,
    %c5 = arith.constant 5 : index
    %c0_89 = arith.constant 0 : index
    %292 = vector.load %arg11[%c5, %c0_89] : memref<8x512xf32, #tpu.memory_space<vmem>>, vector<1x512xf32>
    %c0_90 = arith.constant 0 : index
    %c0_91 = arith.constant 0 : index
    %293 = vector.load %arg2[%c0_90, %c0_91] : memref<128x512xf32, #tpu.memory_space<vmem>>, vector<128x512xf32>
    %cst_92 = arith.constant dense<0.000000e+00> : vector<1x512xf32>
    %294 = tpu.matmul %260, %293, %cst_92 {dimension_numbers = #tpu.dot_dimension_numbers<[1], [0], [0], [1], [0, 0, 1, 1], [], []>} : vector<1x128xf32>, vector<128x512xf32>, vector<1x512xf32> -> vector<1x512xf32>
    %295 = arith.addf %292, %294 : vector<1x512xf32>
    %296 = vector.extract_strided_slice %295 {offsets = [0, 0], sizes = [1, 128], strides = [1, 1]} : vector<1x512xf32> to vector<1x128xf32>
    %297 = arith.negf %296 : vector<1x128xf32>
    %298 = math.exp %297 : vector<1x128xf32>
    %cst_93 = arith.constant 1.000000e+00 : f32
    %299 = vector.broadcast %cst_93 : f32 to vector<1x128xf32>
    %300 = arith.addf %299, %298 : vector<1x128xf32>
    %301 = arith.divf %299, %300 : vector<1x128xf32>
    %302 = vector.extract_strided_slice %295 {offsets = [0, 128], sizes = [1, 128], strides = [1, 1]} : vector<1x512xf32> to vector<1x128xf32>
    %303 = arith.negf %302 : vector<1x128xf32>
    %304 = math.exp %303 : vector<1x128xf32>
    %cst_94 = arith.constant 1.000000e+00 : f32
    %305 = vector.broadcast %cst_94 : f32 to vector<1x128xf32>
    %306 = arith.addf %305, %304 : vector<1x128xf32>
    %307 = arith.divf %305, %306 : vector<1x128xf32>
    %308 = vector.extract_strided_slice %295 {offsets = [0, 256], sizes = [1, 128], strides = [1, 1]} : vector<1x512xf32> to vector<1x128xf32>
    %309 = math.tanh %308 : vector<1x128xf32>
    %310 = vector.extract_strided_slice %295 {offsets = [0, 384], sizes = [1, 128], strides = [1, 1]} : vector<1x512xf32> to vector<1x128xf32>
    %311 = arith.negf %310 : vector<1x128xf32>
    %312 = math.exp %311 : vector<1x128xf32>
    %cst_95 = arith.constant 1.000000e+00 : f32
    %313 = vector.broadcast %cst_95 : f32 to vector<1x128xf32>
    %314 = arith.addf %313, %312 : vector<1x128xf32>
    %315 = arith.divf %313, %314 : vector<1x128xf32>
    %316 = arith.mulf %307, %258 : vector<1x128xf32>
    %317 = arith.mulf %301, %309 : vector<1x128xf32>
    %318 = arith.addf %316, %317 : vector<1x128xf32>
    %319 = math.tanh %318 : vector<1x128xf32>
    %320 = arith.mulf %315, %319 : vector<1x128xf32>
    %321 = tpu.concatenate %260, %290 in 1 : vector<1x128xf32>, vector<1x128xf32> -> vector<1x256xf32>
    %c0_96 = arith.constant 0 : index
    %c0_97 = arith.constant 0 : index
    %322 = vector.load %arg13[%c0_96, %c0_97] : memref<256x512xf32, #tpu.memory_space<vmem>>, vector<256x512xf32>
    %cst_98 = arith.constant dense<0.000000e+00> : vector<1x512xf32>
    %323 = tpu.matmul %321, %322, %cst_98 {dimension_numbers = #tpu.dot_dimension_numbers<[1], [0], [0], [1], [0, 0, 1, 1], [], []>} : vector<1x256xf32>, vector<256x512xf32>, vector<1x512xf32> -> vector<1x512xf32>
    %c0_99 = arith.constant 0 : index
    %c0_100 = arith.constant 0 : index
    %324 = vector.load %arg14[%c0_99, %c0_100] : memref<1x512xf32, #tpu.memory_space<vmem>>, vector<1x512xf32>
    %325 = arith.addf %323, %324 : vector<1x512xf32>
    %326 = vector.extract_strided_slice %325 {offsets = [0, 0], sizes = [1, 128], strides = [1, 1]} : vector<1x512xf32> to vector<1x128xf32>
    %327 = arith.negf %326 : vector<1x128xf32>
    %328 = math.exp %327 : vector<1x128xf32>
    %cst_101 = arith.constant 1.000000e+00 : f32
    %329 = vector.broadcast %cst_101 : f32 to vector<1x128xf32>
    %330 = arith.addf %329, %328 : vector<1x128xf32>
    %331 = arith.divf %329, %330 : vector<1x128xf32>
    %332 = vector.extract_strided_slice %325 {offsets = [0, 128], sizes = [1, 128], strides = [1, 1]} : vector<1x512xf32> to vector<1x128xf32>
    %333 = arith.negf %332 : vector<1x128xf32>
    %334 = math.exp %333 : vector<1x128xf32>
    %cst_102 = arith.constant 1.000000e+00 : f32
    %335 = vector.broadcast %cst_102 : f32 to vector<1x128xf32>
    %336 = arith.addf %335, %334 : vector<1x128xf32>
    %337 = arith.divf %335, %336 : vector<1x128xf32>
    %338 = vector.extract_strided_slice %325 {offsets = [0, 256], sizes = [1, 128], strides = [1, 1]} : vector<1x512xf32> to vector<1x128xf32>
    %339 = math.tanh %338 : vector<1x128xf32>
    %340 = vector.extract_strided_slice %325 {offsets = [0, 384], sizes = [1, 128], strides = [1, 1]} : vector<1x512xf32> to vector<1x128xf32>
    %341 = arith.negf %340 : vector<1x128xf32>
    %342 = math.exp %341 : vector<1x128xf32>
    %cst_103 = arith.constant 1.000000e+00 : f32
    %343 = vector.broadcast %cst_103 : f32 to vector<1x128xf32>
    %344 = arith.addf %343, %342 : vector<1x128xf32>
    %345 = arith.divf %343, %344 : vector<1x128xf32>
    %346 = arith.mulf %337, %288 : vector<1x128xf32>
    %347 = arith.mulf %331, %339 : vector<1x128xf32>
    %348 = arith.addf %346, %347 : vector<1x128xf32>
    %349 = math.tanh %348 : vector<1x128xf32>
    %350 = arith.mulf %345, %349 : vector<1x128xf32>
    %c4_104 = arith.constant 4 : index
    %c0_105 = arith.constant 0 : index
    %351 = vector.load %arg12[%c4_104, %c0_105] : memref<8x128xf32, #tpu.memory_space<vmem>>, vector<1x128xf32>
    tpu.vector_store %arg12[%c4_104, %c0_105], %350 {strides = array<i32>} : memref<8x128xf32, #tpu.memory_space<vmem>>, vector<1x128xf32>,
    %c6 = arith.constant 6 : index
    %c0_106 = arith.constant 0 : index
    %352 = vector.load %arg11[%c6, %c0_106] : memref<8x512xf32, #tpu.memory_space<vmem>>, vector<1x512xf32>
    %c0_107 = arith.constant 0 : index
    %c0_108 = arith.constant 0 : index
    %353 = vector.load %arg2[%c0_107, %c0_108] : memref<128x512xf32, #tpu.memory_space<vmem>>, vector<128x512xf32>
    %cst_109 = arith.constant dense<0.000000e+00> : vector<1x512xf32>
    %354 = tpu.matmul %320, %353, %cst_109 {dimension_numbers = #tpu.dot_dimension_numbers<[1], [0], [0], [1], [0, 0, 1, 1], [], []>} : vector<1x128xf32>, vector<128x512xf32>, vector<1x512xf32> -> vector<1x512xf32>
    %355 = arith.addf %352, %354 : vector<1x512xf32>
    %356 = vector.extract_strided_slice %355 {offsets = [0, 0], sizes = [1, 128], strides = [1, 1]} : vector<1x512xf32> to vector<1x128xf32>
    %357 = arith.negf %356 : vector<1x128xf32>
    %358 = math.exp %357 : vector<1x128xf32>
    %cst_110 = arith.constant 1.000000e+00 : f32
    %359 = vector.broadcast %cst_110 : f32 to vector<1x128xf32>
    %360 = arith.addf %359, %358 : vector<1x128xf32>
    %361 = arith.divf %359, %360 : vector<1x128xf32>
    %362 = vector.extract_strided_slice %355 {offsets = [0, 128], sizes = [1, 128], strides = [1, 1]} : vector<1x512xf32> to vector<1x128xf32>
    %363 = arith.negf %362 : vector<1x128xf32>
    %364 = math.exp %363 : vector<1x128xf32>
    %cst_111 = arith.constant 1.000000e+00 : f32
    %365 = vector.broadcast %cst_111 : f32 to vector<1x128xf32>
    %366 = arith.addf %365, %364 : vector<1x128xf32>
    %367 = arith.divf %365, %366 : vector<1x128xf32>
    %368 = vector.extract_strided_slice %355 {offsets = [0, 256], sizes = [1, 128], strides = [1, 1]} : vector<1x512xf32> to vector<1x128xf32>
    %369 = math.tanh %368 : vector<1x128xf32>
    %370 = vector.extract_strided_slice %355 {offsets = [0, 384], sizes = [1, 128], strides = [1, 1]} : vector<1x512xf32> to vector<1x128xf32>
    %371 = arith.negf %370 : vector<1x128xf32>
    %372 = math.exp %371 : vector<1x128xf32>
    %cst_112 = arith.constant 1.000000e+00 : f32
    %373 = vector.broadcast %cst_112 : f32 to vector<1x128xf32>
    %374 = arith.addf %373, %372 : vector<1x128xf32>
    %375 = arith.divf %373, %374 : vector<1x128xf32>
    %376 = arith.mulf %367, %318 : vector<1x128xf32>
    %377 = arith.mulf %361, %369 : vector<1x128xf32>
    %378 = arith.addf %376, %377 : vector<1x128xf32>
    %379 = math.tanh %378 : vector<1x128xf32>
    %380 = arith.mulf %375, %379 : vector<1x128xf32>
    %381 = tpu.concatenate %320, %350 in 1 : vector<1x128xf32>, vector<1x128xf32> -> vector<1x256xf32>
    %c0_113 = arith.constant 0 : index
    %c0_114 = arith.constant 0 : index
    %382 = vector.load %arg13[%c0_113, %c0_114] : memref<256x512xf32, #tpu.memory_space<vmem>>, vector<256x512xf32>
    %cst_115 = arith.constant dense<0.000000e+00> : vector<1x512xf32>
    %383 = tpu.matmul %381, %382, %cst_115 {dimension_numbers = #tpu.dot_dimension_numbers<[1], [0], [0], [1], [0, 0, 1, 1], [], []>} : vector<1x256xf32>, vector<256x512xf32>, vector<1x512xf32> -> vector<1x512xf32>
    %c0_116 = arith.constant 0 : index
    %c0_117 = arith.constant 0 : index
    %384 = vector.load %arg14[%c0_116, %c0_117] : memref<1x512xf32, #tpu.memory_space<vmem>>, vector<1x512xf32>
    %385 = arith.addf %383, %384 : vector<1x512xf32>
    %386 = vector.extract_strided_slice %385 {offsets = [0, 0], sizes = [1, 128], strides = [1, 1]} : vector<1x512xf32> to vector<1x128xf32>
    %387 = arith.negf %386 : vector<1x128xf32>
    %388 = math.exp %387 : vector<1x128xf32>
    %cst_118 = arith.constant 1.000000e+00 : f32
    %389 = vector.broadcast %cst_118 : f32 to vector<1x128xf32>
    %390 = arith.addf %389, %388 : vector<1x128xf32>
    %391 = arith.divf %389, %390 : vector<1x128xf32>
    %392 = vector.extract_strided_slice %385 {offsets = [0, 128], sizes = [1, 128], strides = [1, 1]} : vector<1x512xf32> to vector<1x128xf32>
    %393 = arith.negf %392 : vector<1x128xf32>
    %394 = math.exp %393 : vector<1x128xf32>
    %cst_119 = arith.constant 1.000000e+00 : f32
    %395 = vector.broadcast %cst_119 : f32 to vector<1x128xf32>
    %396 = arith.addf %395, %394 : vector<1x128xf32>
    %397 = arith.divf %395, %396 : vector<1x128xf32>
    %398 = vector.extract_strided_slice %385 {offsets = [0, 256], sizes = [1, 128], strides = [1, 1]} : vector<1x512xf32> to vector<1x128xf32>
    %399 = math.tanh %398 : vector<1x128xf32>
    %400 = vector.extract_strided_slice %385 {offsets = [0, 384], sizes = [1, 128], strides = [1, 1]} : vector<1x512xf32> to vector<1x128xf32>
    %401 = arith.negf %400 : vector<1x128xf32>
    %402 = math.exp %401 : vector<1x128xf32>
    %cst_120 = arith.constant 1.000000e+00 : f32
    %403 = vector.broadcast %cst_120 : f32 to vector<1x128xf32>
    %404 = arith.addf %403, %402 : vector<1x128xf32>
    %405 = arith.divf %403, %404 : vector<1x128xf32>
    %406 = arith.mulf %397, %348 : vector<1x128xf32>
    %407 = arith.mulf %391, %399 : vector<1x128xf32>
    %408 = arith.addf %406, %407 : vector<1x128xf32>
    %409 = math.tanh %408 : vector<1x128xf32>
    %410 = arith.mulf %405, %409 : vector<1x128xf32>
    %c5_121 = arith.constant 5 : index
    %c0_122 = arith.constant 0 : index
    %411 = vector.load %arg12[%c5_121, %c0_122] : memref<8x128xf32, #tpu.memory_space<vmem>>, vector<1x128xf32>
    tpu.vector_store %arg12[%c5_121, %c0_122], %410 {strides = array<i32>} : memref<8x128xf32, #tpu.memory_space<vmem>>, vector<1x128xf32>,
    %c7 = arith.constant 7 : index
    %c0_123 = arith.constant 0 : index
    %412 = vector.load %arg11[%c7, %c0_123] : memref<8x512xf32, #tpu.memory_space<vmem>>, vector<1x512xf32>
    %c0_124 = arith.constant 0 : index
    %c0_125 = arith.constant 0 : index
    %413 = vector.load %arg2[%c0_124, %c0_125] : memref<128x512xf32, #tpu.memory_space<vmem>>, vector<128x512xf32>
    %cst_126 = arith.constant dense<0.000000e+00> : vector<1x512xf32>
    %414 = tpu.matmul %380, %413, %cst_126 {dimension_numbers = #tpu.dot_dimension_numbers<[1], [0], [0], [1], [0, 0, 1, 1], [], []>} : vector<1x128xf32>, vector<128x512xf32>, vector<1x512xf32> -> vector<1x512xf32>
    %415 = arith.addf %412, %414 : vector<1x512xf32>
    %416 = vector.extract_strided_slice %415 {offsets = [0, 0], sizes = [1, 128], strides = [1, 1]} : vector<1x512xf32> to vector<1x128xf32>
    %417 = arith.negf %416 : vector<1x128xf32>
    %418 = math.exp %417 : vector<1x128xf32>
    %cst_127 = arith.constant 1.000000e+00 : f32
    %419 = vector.broadcast %cst_127 : f32 to vector<1x128xf32>
    %420 = arith.addf %419, %418 : vector<1x128xf32>
    %421 = arith.divf %419, %420 : vector<1x128xf32>
    %422 = vector.extract_strided_slice %415 {offsets = [0, 128], sizes = [1, 128], strides = [1, 1]} : vector<1x512xf32> to vector<1x128xf32>
    %423 = arith.negf %422 : vector<1x128xf32>
    %424 = math.exp %423 : vector<1x128xf32>
    %cst_128 = arith.constant 1.000000e+00 : f32
    %425 = vector.broadcast %cst_128 : f32 to vector<1x128xf32>
    %426 = arith.addf %425, %424 : vector<1x128xf32>
    %427 = arith.divf %425, %426 : vector<1x128xf32>
    %428 = vector.extract_strided_slice %415 {offsets = [0, 256], sizes = [1, 128], strides = [1, 1]} : vector<1x512xf32> to vector<1x128xf32>
    %429 = math.tanh %428 : vector<1x128xf32>
    %430 = vector.extract_strided_slice %415 {offsets = [0, 384], sizes = [1, 128], strides = [1, 1]} : vector<1x512xf32> to vector<1x128xf32>
    %431 = arith.negf %430 : vector<1x128xf32>
    %432 = math.exp %431 : vector<1x128xf32>
    %cst_129 = arith.constant 1.000000e+00 : f32
    %433 = vector.broadcast %cst_129 : f32 to vector<1x128xf32>
    %434 = arith.addf %433, %432 : vector<1x128xf32>
    %435 = arith.divf %433, %434 : vector<1x128xf32>
    %436 = arith.mulf %427, %378 : vector<1x128xf32>
    %437 = arith.mulf %421, %429 : vector<1x128xf32>
    %438 = arith.addf %436, %437 : vector<1x128xf32>
    %439 = math.tanh %438 : vector<1x128xf32>
    %440 = arith.mulf %435, %439 : vector<1x128xf32>
    %441 = tpu.concatenate %380, %410 in 1 : vector<1x128xf32>, vector<1x128xf32> -> vector<1x256xf32>
    %c0_130 = arith.constant 0 : index
    %c0_131 = arith.constant 0 : index
    %442 = vector.load %arg13[%c0_130, %c0_131] : memref<256x512xf32, #tpu.memory_space<vmem>>, vector<256x512xf32>
    %cst_132 = arith.constant dense<0.000000e+00> : vector<1x512xf32>
    %443 = tpu.matmul %441, %442, %cst_132 {dimension_numbers = #tpu.dot_dimension_numbers<[1], [0], [0], [1], [0, 0, 1, 1], [], []>} : vector<1x256xf32>, vector<256x512xf32>, vector<1x512xf32> -> vector<1x512xf32>
    %c0_133 = arith.constant 0 : index
    %c0_134 = arith.constant 0 : index
    %444 = vector.load %arg14[%c0_133, %c0_134] : memref<1x512xf32, #tpu.memory_space<vmem>>, vector<1x512xf32>
    %445 = arith.addf %443, %444 : vector<1x512xf32>
    %446 = vector.extract_strided_slice %445 {offsets = [0, 0], sizes = [1, 128], strides = [1, 1]} : vector<1x512xf32> to vector<1x128xf32>
    %447 = arith.negf %446 : vector<1x128xf32>
    %448 = math.exp %447 : vector<1x128xf32>
    %cst_135 = arith.constant 1.000000e+00 : f32
    %449 = vector.broadcast %cst_135 : f32 to vector<1x128xf32>
    %450 = arith.addf %449, %448 : vector<1x128xf32>
    %451 = arith.divf %449, %450 : vector<1x128xf32>
    %452 = vector.extract_strided_slice %445 {offsets = [0, 128], sizes = [1, 128], strides = [1, 1]} : vector<1x512xf32> to vector<1x128xf32>
    %453 = arith.negf %452 : vector<1x128xf32>
    %454 = math.exp %453 : vector<1x128xf32>
    %cst_136 = arith.constant 1.000000e+00 : f32
    %455 = vector.broadcast %cst_136 : f32 to vector<1x128xf32>
    %456 = arith.addf %455, %454 : vector<1x128xf32>
    %457 = arith.divf %455, %456 : vector<1x128xf32>
    %458 = vector.extract_strided_slice %445 {offsets = [0, 256], sizes = [1, 128], strides = [1, 1]} : vector<1x512xf32> to vector<1x128xf32>
    %459 = math.tanh %458 : vector<1x128xf32>
    %460 = vector.extract_strided_slice %445 {offsets = [0, 384], sizes = [1, 128], strides = [1, 1]} : vector<1x512xf32> to vector<1x128xf32>
    %461 = arith.negf %460 : vector<1x128xf32>
    %462 = math.exp %461 : vector<1x128xf32>
    %cst_137 = arith.constant 1.000000e+00 : f32
    %463 = vector.broadcast %cst_137 : f32 to vector<1x128xf32>
    %464 = arith.addf %463, %462 : vector<1x128xf32>
    %465 = arith.divf %463, %464 : vector<1x128xf32>
    %466 = arith.mulf %457, %408 : vector<1x128xf32>
    %467 = arith.mulf %451, %459 : vector<1x128xf32>
    %468 = arith.addf %466, %467 : vector<1x128xf32>
    %469 = math.tanh %468 : vector<1x128xf32>
    %470 = arith.mulf %465, %469 : vector<1x128xf32>
    %c6_138 = arith.constant 6 : index
    %c0_139 = arith.constant 0 : index
    %471 = vector.load %arg12[%c6_138, %c0_139] : memref<8x128xf32, #tpu.memory_space<vmem>>, vector<1x128xf32>
    tpu.vector_store %arg12[%c6_138, %c0_139], %470 {strides = array<i32>} : memref<8x128xf32, #tpu.memory_space<vmem>>, vector<1x128xf32>,
    %472 = tpu.concatenate %440, %470 in 1 : vector<1x128xf32>, vector<1x128xf32> -> vector<1x256xf32>
    %c0_140 = arith.constant 0 : index
    %c0_141 = arith.constant 0 : index
    %473 = vector.load %arg13[%c0_140, %c0_141] : memref<256x512xf32, #tpu.memory_space<vmem>>, vector<256x512xf32>
    %cst_142 = arith.constant dense<0.000000e+00> : vector<1x512xf32>
    %474 = tpu.matmul %472, %473, %cst_142 {dimension_numbers = #tpu.dot_dimension_numbers<[1], [0], [0], [1], [0, 0, 1, 1], [], []>} : vector<1x256xf32>, vector<256x512xf32>, vector<1x512xf32> -> vector<1x512xf32>
    %c0_143 = arith.constant 0 : index
    %c0_144 = arith.constant 0 : index
    %475 = vector.load %arg14[%c0_143, %c0_144] : memref<1x512xf32, #tpu.memory_space<vmem>>, vector<1x512xf32>
    %476 = arith.addf %474, %475 : vector<1x512xf32>
    %477 = vector.extract_strided_slice %476 {offsets = [0, 0], sizes = [1, 128], strides = [1, 1]} : vector<1x512xf32> to vector<1x128xf32>
    %478 = arith.negf %477 : vector<1x128xf32>
    %479 = math.exp %478 : vector<1x128xf32>
    %cst_145 = arith.constant 1.000000e+00 : f32
    %480 = vector.broadcast %cst_145 : f32 to vector<1x128xf32>
    %481 = arith.addf %480, %479 : vector<1x128xf32>
    %482 = arith.divf %480, %481 : vector<1x128xf32>
    %483 = vector.extract_strided_slice %476 {offsets = [0, 128], sizes = [1, 128], strides = [1, 1]} : vector<1x512xf32> to vector<1x128xf32>
    %484 = arith.negf %483 : vector<1x128xf32>
    %485 = math.exp %484 : vector<1x128xf32>
    %cst_146 = arith.constant 1.000000e+00 : f32
    %486 = vector.broadcast %cst_146 : f32 to vector<1x128xf32>
    %487 = arith.addf %486, %485 : vector<1x128xf32>
    %488 = arith.divf %486, %487 : vector<1x128xf32>
    %489 = vector.extract_strided_slice %476 {offsets = [0, 256], sizes = [1, 128], strides = [1, 1]} : vector<1x512xf32> to vector<1x128xf32>
    %490 = math.tanh %489 : vector<1x128xf32>
    %491 = vector.extract_strided_slice %476 {offsets = [0, 384], sizes = [1, 128], strides = [1, 1]} : vector<1x512xf32> to vector<1x128xf32>
    %492 = arith.negf %491 : vector<1x128xf32>
    %493 = math.exp %492 : vector<1x128xf32>
    %cst_147 = arith.constant 1.000000e+00 : f32
    %494 = vector.broadcast %cst_147 : f32 to vector<1x128xf32>
    %495 = arith.addf %494, %493 : vector<1x128xf32>
    %496 = arith.divf %494, %495 : vector<1x128xf32>
    %497 = arith.mulf %488, %468 : vector<1x128xf32>
    %498 = arith.mulf %482, %490 : vector<1x128xf32>
    %499 = arith.addf %497, %498 : vector<1x128xf32>
    %500 = math.tanh %499 : vector<1x128xf32>
    %501 = arith.mulf %496, %500 : vector<1x128xf32>
    %c7_148 = arith.constant 7 : index
    %c0_149 = arith.constant 0 : index
    %502 = vector.load %arg12[%c7_148, %c0_149] : memref<8x128xf32, #tpu.memory_space<vmem>>, vector<1x128xf32>
    tpu.vector_store %arg12[%c7_148, %c0_149], %501 {strides = array<i32>} : memref<8x128xf32, #tpu.memory_space<vmem>>, vector<1x128xf32>,
    %c2_i32_150 = arith.constant 2 : i32
    %503 = tpu.memref_slice %arg17[%c2_i32_150] : memref<4x!tpu.dma_semaphore, #tpu.memory_space<semaphore_mem>> -> memref<1x!tpu.dma_semaphore, #tpu.memory_space<semaphore_mem>>
    %504 = tpu.memref_squeeze %503 : memref<1x!tpu.dma_semaphore, #tpu.memory_space<semaphore_mem>> -> memref<!tpu.dma_semaphore, #tpu.memory_space<semaphore_mem>>
    tpu.wait_dma2 semaphore(%504 : memref<!tpu.dma_semaphore, #tpu.memory_space<semaphore_mem>>) src(%arg6 : memref<128x128xf32, #tpu.memory_space<any>>) dst(%arg15 : memref<128x128xf32, #tpu.memory_space<vmem>>)
    %c3_i32_151 = arith.constant 3 : i32
    %505 = tpu.memref_slice %arg17[%c3_i32_151] : memref<4x!tpu.dma_semaphore, #tpu.memory_space<semaphore_mem>> -> memref<1x!tpu.dma_semaphore, #tpu.memory_space<semaphore_mem>>
    %506 = tpu.memref_squeeze %505 : memref<1x!tpu.dma_semaphore, #tpu.memory_space<semaphore_mem>> -> memref<!tpu.dma_semaphore, #tpu.memory_space<semaphore_mem>>
    tpu.wait_dma2 semaphore(%506 : memref<!tpu.dma_semaphore, #tpu.memory_space<semaphore_mem>>) src(%arg7 : memref<1x128xf32, #tpu.memory_space<any>>) dst(%arg16 : memref<1x128xf32, #tpu.memory_space<vmem>>)
    %c0_152 = arith.constant 0 : index
    %c0_153 = arith.constant 0 : index
    %507 = vector.load %arg12[%c0_152, %c0_153] : memref<8x128xf32, #tpu.memory_space<vmem>>, vector<8x128xf32>
    %c0_154 = arith.constant 0 : index
    %c0_155 = arith.constant 0 : index
    %508 = vector.load %arg15[%c0_154, %c0_155] : memref<128x128xf32, #tpu.memory_space<vmem>>, vector<128x128xf32>
    %cst_156 = arith.constant dense<0.000000e+00> : vector<8x128xf32>
    %509 = tpu.matmul %507, %508, %cst_156 {dimension_numbers = #tpu.dot_dimension_numbers<[1], [0], [0], [1], [0, 0, 1, 1], [], []>} : vector<8x128xf32>, vector<128x128xf32>, vector<8x128xf32> -> vector<8x128xf32>
    %c0_157 = arith.constant 0 : index
    %c0_158 = arith.constant 0 : index
    %510 = vector.load %arg16[%c0_157, %c0_158] : memref<1x128xf32, #tpu.memory_space<vmem>>, vector<1x128xf32>
    %511 = vector.broadcast %510 : vector<1x128xf32> to vector<8x128xf32>
    %512 = arith.addf %509, %511 : vector<8x128xf32>
    %c0_159 = arith.constant 0 : index
    %c0_160 = arith.constant 0 : index
    %513 = vector.load %arg8[%c0_159, %c0_160] : memref<8x128xf32, #tpu.memory_space<vmem>>, vector<8x128xf32>
    tpu.vector_store %arg8[%c0_159, %c0_160], %512 {strides = array<i32>} : memref<8x128xf32, #tpu.memory_space<vmem>>, vector<8x128xf32>,
    %c0_161 = arith.constant 0 : index
    %c0_162 = arith.constant 0 : index
    %514 = vector.load %arg9[%c0_161, %c0_162] : memref<2x128xf32, #tpu.memory_space<vmem>>, vector<1x128xf32>
    tpu.vector_store %arg9[%c0_161, %c0_162], %440 {strides = array<i32>} : memref<2x128xf32, #tpu.memory_space<vmem>>, vector<1x128xf32>,
    %c1_163 = arith.constant 1 : index
    %c0_164 = arith.constant 0 : index
    %515 = vector.load %arg9[%c1_163, %c0_164] : memref<2x128xf32, #tpu.memory_space<vmem>>, vector<1x128xf32>
    tpu.vector_store %arg9[%c1_163, %c0_164], %501 {strides = array<i32>} : memref<2x128xf32, #tpu.memory_space<vmem>>, vector<1x128xf32>,
    %c0_165 = arith.constant 0 : index
    %c0_166 = arith.constant 0 : index
    %516 = vector.load %arg10[%c0_165, %c0_166] : memref<2x128xf32, #tpu.memory_space<vmem>>, vector<1x128xf32>
    tpu.vector_store %arg10[%c0_165, %c0_166], %438 {strides = array<i32>} : memref<2x128xf32, #tpu.memory_space<vmem>>, vector<1x128xf32>,
    %c1_167 = arith.constant 1 : index
    %c0_168 = arith.constant 0 : index
    %517 = vector.load %arg10[%c1_167, %c0_168] : memref<2x128xf32, #tpu.memory_space<vmem>>, vector<1x128xf32>
    tpu.vector_store %arg10[%c1_167, %c0_168], %499 {strides = array<i32>} : memref<2x128xf32, #tpu.memory_space<vmem>>, vector<1x128xf32>,
    return
  }
}

</mosaic_0001>

<llo_original>
// kernel: rnn_forward.1
$region0: #{rnn_forward.1}
  #allocation0 [shape = 'u32[]', space=smem, size = 0x4, offset = 0x4, fixed_abs, tag = 'smem constant byte address 0x4 - core index']
  #allocation1 [shape = 'u32[144,128]{1,0:T(1,128)}', space=vmem, size = 0x12000, scoped, tag = 'internal scratch']
  #allocation2 [shape = 'f32[8,512]{1,0:T(8,128)}', space=vmem, size = 0x4000, scoped, tag = 'scratch operand']
  #allocation3 [shape = 'f32[8,128]{1,0:T(8,128)}', space=vmem, size = 0x1000, scoped, tag = 'scratch operand']
  #allocation4 [shape = 'f32[256,512]{1,0:T(8,128)}', space=vmem, size = 0x80000, scoped, tag = 'scratch operand']
  #allocation5 [shape = 'f32[1,512]{1,0:T(1,128)}', space=vmem, size = 0x800, scoped, tag = 'scratch operand']
  #allocation6 [shape = 'f32[128,128]{1,0:T(8,128)}', space=vmem, size = 0x10000, scoped, tag = 'scratch operand']
  #allocation7 [shape = 'f32[1,128]{1,0:T(1,128)}', space=vmem, size = 0x200, scoped, tag = 'scratch operand']
  #allocation8 [shape = 's32[4]{0}', space=sflag, size = 0x10, scoped, tag = 'scratch operand']
  #allocation18 [shape = 's32[]', space=sflag, size = 0x4, offset = 0, fixed_abs, tag = 'sflag constant byte address 0x0 - dummy sync flag']
  #allocation19 [shape = 's32[]', space=sflag, size = 0x4, offset = 0, fixed_abs, tag = 'sflag constant byte address 0x0 - dummy sync flag']
  #allocation20 [shape = 'u32[]', space=smem, size = 0x4, offset = 0x44, fixed_abs, tag = 'smem constant byte address 0x44 - assertion arg 0']
  #allocation21 [shape = 'u32[]', space=smem, size = 0x4, offset = 0x48, fixed_abs, tag = 'smem constant byte address 0x48 - assertion arg 1']
  #allocation22 [shape = 's32[]', space=sflag, size = 0x4, offset = 0, fixed_abs, tag = 'sflag constant byte address 0x0 - dummy sync flag']
  #allocation23 [shape = 's32[]', space=sflag, size = 0x4, offset = 0, fixed_abs, tag = 'sflag constant byte address 0x0 - dummy sync flag']
  #allocation24 [shape = 's32[]', space=sflag, size = 0x4, offset = 0, fixed_abs, tag = 'sflag constant byte address 0x0 - dummy sync flag']
  #allocation25 [shape = 's32[]', space=sflag, size = 0x4, offset = 0, fixed_abs, tag = 'sflag constant byte address 0x0 - dummy sync flag']
  #allocation26 [shape = 's32[]', space=sflag, size = 0x4, offset = 0, fixed_abs, tag = 'sflag constant byte address 0x0 - dummy sync flag']
  #allocation27 [shape = 's32[]', space=sflag, size = 0x4, offset = 0, fixed_abs, tag = 'sflag constant byte address 0x0 - dummy sync flag']
  %s0 = inlined_call_operand.vmem [shape: f32[8,784], index: 0, kind: input, shape index: {}]
  %s1 = inlined_call_operand.hbm [shape: f32[784,512], index: 1, kind: input, shape index: {}]
  %s2 = inlined_call_operand.hbm [shape: f32[128,512], index: 2, kind: input, shape index: {}]
  %s3 = inlined_call_operand.hbm [shape: f32[1,512], index: 3, kind: input, shape index: {}]
  %s4 = inlined_call_operand.hbm [shape: f32[256,512], index: 4, kind: input, shape index: {}]
  %s5 = inlined_call_operand.hbm [shape: f32[1,512], index: 5, kind: input, shape index: {}]
  %s6 = inlined_call_operand.hbm [shape: f32[128,128], index: 6, kind: input, shape index: {}]
  %s7 = inlined_call_operand.hbm [shape: f32[1,128], index: 7, kind: input, shape index: {}]
  %s8 = inlined_call_operand.vmem [shape: f32[8,128], index: 8, kind: output, shape index: {0}]
  %s9 = inlined_call_operand.hbm [shape: f32[2,128], index: 9, kind: output, shape index: {1}]
  %s10 = inlined_call_operand.hbm [shape: f32[2,128], index: 10, kind: output, shape index: {2}]
  %11 = xla_tuple %s8, %s9, %s10
  %s12 = sld [smem:[#allocation0]]
  $region70: #{rnn_forward.1} parent=0
    _
  %s14 = ssub.s32 1, %s12
  %s15 = scalar_select 0, %s14, %s12
  $region1: #{rnn_forward.1} parent=0
    #allocation9 [shape = 'u8[1605632]{0}', space=vmem, size = 0x188000, scoped, tag = 'input window, operand 1, single buffered']
    #allocation10 [shape = 's32[1]{0}', space=sflag, size = 0x4, scoped, tag = 'scoped memory for rnn_forward.1']
    #allocation11 [shape = 's32[1]{0}', space=sflag, size = 0x4, scoped, tag = 'scoped memory for rnn_forward.1']
    #allocation12 [shape = 'u8[262144]{0}', space=vmem, size = 0x40000, scoped, tag = 'input window, operand 2, single buffered']
    #allocation13 [shape = 's32[1]{0}', space=sflag, size = 0x4, scoped, tag = 'scoped memory for rnn_forward.1']
    #allocation14 [shape = 'u8[2048]{0}', space=vmem, size = 0x800, scoped, tag = 'input window, operand 3, single buffered']
    #allocation15 [shape = 'u8[1024]{0}', space=vmem, size = 0x400, scoped, tag = 'output window, operand 1, single buffered']
    #allocation16 [shape = 'u8[1024]{0}', space=vmem, size = 0x400, scoped, tag = 'output window, operand 2, single buffered']
    #allocation17 [shape = 's32[1]{0}', space=sflag, size = 0x4, scoped, tag = 'scoped memory for rnn_forward.1']
    %16 = vsyncpa [#allocation10], 0
    %17 = vsyncpa [#allocation13], 0
    %18 = vsyncpa [#allocation11], 0
    %19 = vsyncpa [#allocation17], 0
    // Predicated region
    $region2: #{rnn_forward.1} parent=1 // pred_check
      _
    $region3: #{rnn_forward.1} parent=1 // pred_check_branch
      %21 = sbr.rel (0) target = $region5
    $region4: #{rnn_forward.1} parent=1 // pred_region
      _
    $region5: #{rnn_forward.1} parent=1 // pred_fallthru
      _
    // Predicated region
    $region6: #{rnn_forward.1} parent=1 // pred_check
      _
    $region7: #{rnn_forward.1} parent=1 // pred_check_branch
      %23 = sbr.rel (0) target = $region9
    $region8: #{rnn_forward.1} parent=1 // pred_region
      %s25 = ssub.s32 50176, 50176
      %26 = vsyncadd [#allocation10], %s25
      %s27 = sshll.u32 [#allocation9], 4
      %s28 = int_to_ptr.vmem [resolvable:$true] %s27
      %33 = dma.hbm_to_vmem [thread:$0]  %s1, 50176, %s28, [#allocation10], 512, 512, 32
    $region9: #{rnn_forward.1} parent=1 // pred_fallthru
      _
    // Predicated region
    $region10: #{rnn_forward.1} parent=1 // pred_check
      _
    $region11: #{rnn_forward.1} parent=1 // pred_check_branch
      %35 = sbr.rel (0) target = $region13
    $region12: #{rnn_forward.1} parent=1 // pred_region
      %s37 = ssub.s32 8192, 8192
      %38 = vsyncadd [#allocation13], %s37
      %s39 = sshll.u32 [#allocation12], 4
      %s40 = int_to_ptr.vmem [resolvable:$true] %s39
      %45 = dma.hbm_to_vmem [thread:$0]  %s2, 8192, %s40, [#allocation13], 512, 512, 32
    $region13: #{rnn_forward.1} parent=1 // pred_fallthru
      _
    // Predicated region
    $region14: #{rnn_forward.1} parent=1 // pred_check
      _
    $region15: #{rnn_forward.1} parent=1 // pred_check_branch
      %47 = sbr.rel (0) target = $region17
    $region16: #{rnn_forward.1} parent=1 // pred_region
      %s49 = ssub.s32 64, 64
      %50 = vsyncadd [#allocation13], %s49
      %s52 = sshll.u32 [#allocation14], 4
      %s53 = int_to_ptr.vmem [resolvable:$true] %s52
      %55 = dma.hbm_to_vmem [thread:$0]  %s3, 64, %s53, [#allocation13]
    $region17: #{rnn_forward.1} parent=1 // pred_fallthru
      _
    // Predicated region
    $region18: #{rnn_forward.1} parent=1 // pred_check
      _
    $region19: #{rnn_forward.1} parent=1 // pred_check_branch
      %57 = sbr.rel (0) target = $region21
    $region20: #{rnn_forward.1} parent=1 // pred_region
      %58 = dma.done [#allocation10], 50176
    $region21: #{rnn_forward.1} parent=1 // pred_fallthru
      _
    // Predicated region
    $region22: #{rnn_forward.1} parent=1 // pred_check
      _
    $region23: #{rnn_forward.1} parent=1 // pred_check_branch
      %60 = sbr.rel (0) target = $region25
    $region24: #{rnn_forward.1} parent=1 // pred_region
      %61 = dma.done [#allocation13], 8192
    $region25: #{rnn_forward.1} parent=1 // pred_fallthru
      _
    // Predicated region
    $region26: #{rnn_forward.1} parent=1 // pred_check
      _
    $region27: #{rnn_forward.1} parent=1 // pred_check_branch
      %63 = sbr.rel (0) target = $region29
    $region28: #{rnn_forward.1} parent=1 // pred_region
      %64 = dma.done [#allocation13], 64
    $region29: #{rnn_forward.1} parent=1 // pred_fallthru
      _
    // Predicated region
    $region30: #{rnn_forward.1} parent=1 // pred_check
      _
    $region31: #{rnn_forward.1} parent=1 // pred_check_branch
      %66 = sbr.rel target = $region33
    $region32: #{rnn_forward.1} parent=1 // pred_region
      %67 = sst [smem:[#allocation20]] [#allocation19]
      %68 = sst [smem:[#allocation21]] [#allocation18]
    $region33: #{rnn_forward.1} parent=1 // pred_fallthru
      _
    %70 = shalt.err (0)
    %s72 = sshll.u32 [#allocation4], 4
    %s73 = int_to_ptr.vmem [resolvable:$true] %s72
    %75 = dma.hbm_to_vmem [thread:$0]  %s4, 16384, %s73, [#allocation8]
    %s76 = scalar_lea.sflag [#allocation8], 1
    // Predicated region
    $region34: #{rnn_forward.1} parent=1 // pred_check
      _
    $region35: #{rnn_forward.1} parent=1 // pred_check_branch
      %78 = sbr.rel target = $region37
    $region36: #{rnn_forward.1} parent=1 // pred_region
      %79 = sst [smem:[#allocation20]] [#allocation23]
      %80 = sst [smem:[#allocation21]] [#allocation22]
    $region37: #{rnn_forward.1} parent=1 // pred_fallthru
      _
    %82 = shalt.err (0)
    %s84 = sshll.u32 [#allocation5], 4
    %s85 = int_to_ptr.vmem [resolvable:$true] %s84
    %87 = dma.hbm_to_vmem [thread:$0]  %s5, 64, %s85, %s76
    %s88 = scalar_lea.sflag [#allocation8], 2
    // Predicated region
    $region38: #{rnn_forward.1} parent=1 // pred_check
      _
    $region39: #{rnn_forward.1} parent=1 // pred_check_branch
      %90 = sbr.rel target = $region41
    $region40: #{rnn_forward.1} parent=1 // pred_region
      %91 = sst [smem:[#allocation20]] [#allocation25]
      %92 = sst [smem:[#allocation21]] [#allocation24]
    $region41: #{rnn_forward.1} parent=1 // pred_fallthru
      _
    %94 = shalt.err (0)
    %s96 = sshll.u32 [#allocation6], 4
    %s97 = int_to_ptr.vmem [resolvable:$true] %s96
    %99 = dma.hbm_to_vmem [thread:$0]  %s6, 2048, %s97, %s88
    %s100 = scalar_lea.sflag [#allocation8], 3
    // Predicated region
    $region42: #{rnn_forward.1} parent=1 // pred_check
      _
    $region43: #{rnn_forward.1} parent=1 // pred_check_branch
      %102 = sbr.rel target = $region45
    $region44: #{rnn_forward.1} parent=1 // pred_region
      %103 = sst [smem:[#allocation20]] [#allocation27]
      %104 = sst [smem:[#allocation21]] [#allocation26]
    $region45: #{rnn_forward.1} parent=1 // pred_fallthru
      _
    %106 = shalt.err (0)
    %s108 = sshll.u32 [#allocation7], 4
    %s109 = int_to_ptr.vmem [resolvable:$true] %s108
    %111 = dma.hbm_to_vmem [thread:$0]  %s7, 16, %s109, %s100
    %v112 = vld [vmem:[%s0] sm:$0xff]
    %v113 = vld [vmem:[%s0 + $0x8] sm:$0xff]
    %v114 = vld [vmem:[%s0 + $0x10] sm:$0xff]
    %v115 = vld [vmem:[%s0 + $0x18] sm:$0xff]
    %v116 = vld [vmem:[%s0 + $0x20] sm:$0xff]
    %v117 = vld [vmem:[%s0 + $0x28] sm:$0xff]
    %v118 = vld [vmem:[%s0 + $0x30] sm:$0xff]
    %v119 = vld [vmem:[#allocation9] sm:$0xff]
    %v120 = vld [vmem:[#allocation9 + $0x8] sm:$0xff]
    %v121 = vld [vmem:[#allocation9 + $0x10] sm:$0xff]
    %v122 = vld [vmem:[#allocation9 + $0x18] sm:$0xff]
    %v123 = vld [vmem:[#allocation9 + $0x20] sm:$0xff]
    %v124 = vld [vmem:[#allocation9 + $0x28] sm:$0xff]
    %v125 = vld [vmem:[#allocation9 + $0x30] sm:$0xff]
    %v126 = vld [vmem:[#allocation9 + $0x38] sm:$0xff]
    %v127 = vld [vmem:[#allocation9 + $0x40] sm:$0xff]
    %v128 = vld [vmem:[#allocation9 + $0x48] sm:$0xff]
    %v129 = vld [vmem:[#allocation9 + $0x50] sm:$0xff]
    %v130 = vld [vmem:[#allocation9 + $0x58] sm:$0xff]
    %v131 = vld [vmem:[#allocation9 + $0x60] sm:$0xff]
    %v132 = vld [vmem:[#allocation9 + $0x68] sm:$0xff]
    %v133 = vld [vmem:[#allocation9 + $0x70] sm:$0xff]
    %v134 = vld [vmem:[#allocation9 + $0x78] sm:$0xff]
    %v135 = vld [vmem:[#allocation9 + $0x80] sm:$0xff]
    %v136 = vld [vmem:[#allocation9 + $0x88] sm:$0xff]
    %v137 = vld [vmem:[#allocation9 + $0x90] sm:$0xff]
    %v138 = vld [vmem:[#allocation9 + $0x98] sm:$0xff]
    %v139 = vld [vmem:[#allocation9 + $0xa0] sm:$0xff]
    %v140 = vld [vmem:[#allocation9 + $0xa8] sm:$0xff]
    %v141 = vld [vmem:[#allocation9 + $0xb0] sm:$0xff]
    %v142 = vld [vmem:[#allocation9 + $0xb8] sm:$0xff]
    %v143 = vld [vmem:[#allocation9 + $0xc0] sm:$0xff]
    %v144 = vld [vmem:[#allocation9 + $0xc8] sm:$0xff]
    %v145 = vld [vmem:[#allocation9 + $0xd0] sm:$0xff]
    %v146 = vld [vmem:[#allocation9 + $0xd8] sm:$0xff]
    %v147 = vld [vmem:[#allocation9 + $0xe0] sm:$0xff]
    %v148 = vld [vmem:[#allocation9 + $0xe8] sm:$0xff]
    %v149 = vld [vmem:[#allocation9 + $0xf0] sm:$0xff]
    %v150 = vld [vmem:[#allocation9 + $0xf8] sm:$0xff]
    %v151 = vld [vmem:[#allocation9 + $0x100] sm:$0xff]
    %v152 = vld [vmem:[#allocation9 + $0x108] sm:$0xff]
    %v153 = vld [vmem:[#allocation9 + $0x110] sm:$0xff]
    %v154 = vld [vmem:[#allocation9 + $0x118] sm:$0xff]
    %v155 = vld [vmem:[#allocation9 + $0x120] sm:$0xff]
    %v156 = vld [vmem:[#allocation9 + $0x128] sm:$0xff]
    %v157 = vld [vmem:[#allocation9 + $0x130] sm:$0xff]
    %v158 = vld [vmem:[#allocation9 + $0x138] sm:$0xff]
    %v159 = vld [vmem:[#allocation9 + $0x140] sm:$0xff]
    %v160 = vld [vmem:[#allocation9 + $0x148] sm:$0xff]
    %v161 = vld [vmem:[#allocation9 + $0x150] sm:$0xff]
    %v162 = vld [vmem:[#allocation9 + $0x158] sm:$0xff]
    %v163 = vld [vmem:[#allocation9 + $0x160] sm:$0xff]
    %v164 = vld [vmem:[#allocation9 + $0x168] sm:$0xff]
    %v165 = vld [vmem:[#allocation9 + $0x170] sm:$0xff]
    %v166 = vld [vmem:[#allocation9 + $0x178] sm:$0xff]
    %v167 = vld [vmem:[#allocation9 + $0x180] sm:$0xff]
    %v168 = vld [vmem:[#allocation9 + $0x188] sm:$0xff]
    %v169 = vld [vmem:[#allocation9 + $0x190] sm:$0xff]
    %v170 = vld [vmem:[#allocation9 + $0x198] sm:$0xff]
    %v171 = vld [vmem:[#allocation9 + $0x1a0] sm:$0xff]
    %v172 = vld [vmem:[#allocation9 + $0x1a8] sm:$0xff]
    %v173 = vld [vmem:[#allocation9 + $0x1b0] sm:$0xff]
    %v174 = vld [vmem:[#allocation9 + $0x1b8] sm:$0xff]
    %v175 = vld [vmem:[#allocation9 + $0x1c0] sm:$0xff]
    %v176 = vld [vmem:[#allocation9 + $0x1c8] sm:$0xff]
    %v177 = vld [vmem:[#allocation9 + $0x1d0] sm:$0xff]
    %v178 = vld [vmem:[#allocation9 + $0x1d8] sm:$0xff]
    %v179 = vld [vmem:[#allocation9 + $0x1e0] sm:$0xff]
    %v180 = vld [vmem:[#allocation9 + $0x1e8] sm:$0xff]
    %v181 = vld [vmem:[#allocation9 + $0x1f0] sm:$0xff]
    %v182 = vld [vmem:[#allocation9 + $0x1f8] sm:$0xff]
    %v183 = vld [vmem:[#allocation9 + $0x200] sm:$0xff]
    %v184 = vld [vmem:[#allocation9 + $0x208] sm:$0xff]
    %v185 = vld [vmem:[#allocation9 + $0x210] sm:$0xff]
    %v186 = vld [vmem:[#allocation9 + $0x218] sm:$0xff]
    %v187 = vld [vmem:[#allocation9 + $0x220] sm:$0xff]
    %v188 = vld [vmem:[#allocation9 + $0x228] sm:$0xff]
    %v189 = vld [vmem:[#allocation9 + $0x230] sm:$0xff]
    %v190 = vld [vmem:[#allocation9 + $0x238] sm:$0xff]
    %v191 = vld [vmem:[#allocation9 + $0x240] sm:$0xff]
    %v192 = vld [vmem:[#allocation9 + $0x248] sm:$0xff]
    %v193 = vld [vmem:[#allocation9 + $0x250] sm:$0xff]
    %v194 = vld [vmem:[#allocation9 + $0x258] sm:$0xff]
    %v195 = vld [vmem:[#allocation9 + $0x260] sm:$0xff]
    %v196 = vld [vmem:[#allocation9 + $0x268] sm:$0xff]
    %v197 = vld [vmem:[#allocation9 + $0x270] sm:$0xff]
    %v198 = vld [vmem:[#allocation9 + $0x278] sm:$0xff]
    %v199 = vld [vmem:[#allocation9 + $0x280] sm:$0xff]
    %v200 = vld [vmem:[#allocation9 + $0x288] sm:$0xff]
    %v201 = vld [vmem:[#allocation9 + $0x290] sm:$0xff]
    %v202 = vld [vmem:[#allocation9 + $0x298] sm:$0xff]
    %v203 = vld [vmem:[#allocation9 + $0x2a0] sm:$0xff]
    %v204 = vld [vmem:[#allocation9 + $0x2a8] sm:$0xff]
    %v205 = vld [vmem:[#allocation9 + $0x2b0] sm:$0xff]
    %v206 = vld [vmem:[#allocation9 + $0x2b8] sm:$0xff]
    %v207 = vld [vmem:[#allocation9 + $0x2c0] sm:$0xff]
    %v208 = vld [vmem:[#allocation9 + $0x2c8] sm:$0xff]
    %v209 = vld [vmem:[#allocation9 + $0x2d0] sm:$0xff]
    %v210 = vld [vmem:[#allocation9 + $0x2d8] sm:$0xff]
    %v211 = vld [vmem:[#allocation9 + $0x2e0] sm:$0xff]
    %v212 = vld [vmem:[#allocation9 + $0x2e8] sm:$0xff]
    %v213 = vld [vmem:[#allocation9 + $0x2f0] sm:$0xff]
    %v214 = vld [vmem:[#allocation9 + $0x2f8] sm:$0xff]
    %v215 = vld [vmem:[#allocation9 + $0x300] sm:$0xff]
    %v216 = vld [vmem:[#allocation9 + $0x308] sm:$0xff]
    %v217 = vld [vmem:[#allocation9 + $0x310] sm:$0xff]
    %v218 = vld [vmem:[#allocation9 + $0x318] sm:$0xff]
    %v219 = vld [vmem:[#allocation9 + $0x320] sm:$0xff]
    %v220 = vld [vmem:[#allocation9 + $0x328] sm:$0xff]
    %v221 = vld [vmem:[#allocation9 + $0x330] sm:$0xff]
    %v222 = vld [vmem:[#allocation9 + $0x338] sm:$0xff]
    %v223 = vld [vmem:[#allocation9 + $0x340] sm:$0xff]
    %v224 = vld [vmem:[#allocation9 + $0x348] sm:$0xff]
    %v225 = vld [vmem:[#allocation9 + $0x350] sm:$0xff]
    %v226 = vld [vmem:[#allocation9 + $0x358] sm:$0xff]
    %v227 = vld [vmem:[#allocation9 + $0x360] sm:$0xff]
    %v228 = vld [vmem:[#allocation9 + $0x368] sm:$0xff]
    %v229 = vld [vmem:[#allocation9 + $0x370] sm:$0xff]
    %v230 = vld [vmem:[#allocation9 + $0x378] sm:$0xff]
    %v231 = vld [vmem:[#allocation9 + $0x380] sm:$0xff]
    %v232 = vld [vmem:[#allocation9 + $0x388] sm:$0xff]
    %v233 = vld [vmem:[#allocation9 + $0x390] sm:$0xff]
    %v234 = vld [vmem:[#allocation9 + $0x398] sm:$0xff]
    %v235 = vld [vmem:[#allocation9 + $0x3a0] sm:$0xff]
    %v236 = vld [vmem:[#allocation9 + $0x3a8] sm:$0xff]
    %v237 = vld [vmem:[#allocation9 + $0x3b0] sm:$0xff]
    %v238 = vld [vmem:[#allocation9 + $0x3b8] sm:$0xff]
    %v239 = vld [vmem:[#allocation9 + $0x3c0] sm:$0xff]
    %v240 = vld [vmem:[#allocation9 + $0x3c8] sm:$0xff]
    %v241 = vld [vmem:[#allocation9 + $0x3d0] sm:$0xff]
    %v242 = vld [vmem:[#allocation9 + $0x3d8] sm:$0xff]
    %v243 = vld [vmem:[#allocation9 + $0x3e0] sm:$0xff]
    %v244 = vld [vmem:[#allocation9 + $0x3e8] sm:$0xff]
    %v245 = vld [vmem:[#allocation9 + $0x3f0] sm:$0xff]
    %v246 = vld [vmem:[#allocation9 + $0x3f8] sm:$0xff]
    %v247 = vld [vmem:[#allocation9 + $0x400] sm:$0xff]
    %v248 = vld [vmem:[#allocation9 + $0x408] sm:$0xff]
    %v249 = vld [vmem:[#allocation9 + $0x410] sm:$0xff]
    %v250 = vld [vmem:[#allocation9 + $0x418] sm:$0xff]
    %v251 = vld [vmem:[#allocation9 + $0x420] sm:$0xff]
    %v252 = vld [vmem:[#allocation9 + $0x428] sm:$0xff]
    %v253 = vld [vmem:[#allocation9 + $0x430] sm:$0xff]
    %v254 = vld [vmem:[#allocation9 + $0x438] sm:$0xff]
    %v255 = vld [vmem:[#allocation9 + $0x440] sm:$0xff]
    %v256 = vld [vmem:[#allocation9 + $0x448] sm:$0xff]
    %v257 = vld [vmem:[#allocation9 + $0x450] sm:$0xff]
    %v258 = vld [vmem:[#allocation9 + $0x458] sm:$0xff]
    %v259 = vld [vmem:[#allocation9 + $0x460] sm:$0xff]
    %v260 = vld [vmem:[#allocation9 + $0x468] sm:$0xff]
    %v261 = vld [vmem:[#allocation9 + $0x470] sm:$0xff]
    %v262 = vld [vmem:[#allocation9 + $0x478] sm:$0xff]
    %v263 = vld [vmem:[#allocation9 + $0x480] sm:$0xff]
    %v264 = vld [vmem:[#allocation9 + $0x488] sm:$0xff]
    %v265 = vld [vmem:[#allocation9 + $0x490] sm:$0xff]
    %v266 = vld [vmem:[#allocation9 + $0x498] sm:$0xff]
    %v267 = vld [vmem:[#allocation9 + $0x4a0] sm:$0xff]
    %v268 = vld [vmem:[#allocation9 + $0x4a8] sm:$0xff]
    %v269 = vld [vmem:[#allocation9 + $0x4b0] sm:$0xff]
    %v270 = vld [vmem:[#allocation9 + $0x4b8] sm:$0xff]
    %v271 = vld [vmem:[#allocation9 + $0x4c0] sm:$0xff]
    %v272 = vld [vmem:[#allocation9 + $0x4c8] sm:$0xff]
    %v273 = vld [vmem:[#allocation9 + $0x4d0] sm:$0xff]
    %v274 = vld [vmem:[#allocation9 + $0x4d8] sm:$0xff]
    %v275 = vld [vmem:[#allocation9 + $0x4e0] sm:$0xff]
    %v276 = vld [vmem:[#allocation9 + $0x4e8] sm:$0xff]
    %v277 = vld [vmem:[#allocation9 + $0x4f0] sm:$0xff]
    %v278 = vld [vmem:[#allocation9 + $0x4f8] sm:$0xff]
    %v279 = vld [vmem:[#allocation9 + $0x500] sm:$0xff]
    %v280 = vld [vmem:[#allocation9 + $0x508] sm:$0xff]
    %v281 = vld [vmem:[#allocation9 + $0x510] sm:$0xff]
    %v282 = vld [vmem:[#allocation9 + $0x518] sm:$0xff]
    %v283 = vld [vmem:[#allocation9 + $0x520] sm:$0xff]
    %v284 = vld [vmem:[#allocation9 + $0x528] sm:$0xff]
    %v285 = vld [vmem:[#allocation9 + $0x530] sm:$0xff]
    %v286 = vld [vmem:[#allocation9 + $0x538] sm:$0xff]
    %v287 = vld [vmem:[#allocation9 + $0x540] sm:$0xff]
    %v288 = vld [vmem:[#allocation9 + $0x548] sm:$0xff]
    %v289 = vld [vmem:[#allocation9 + $0x550] sm:$0xff]
    %v290 = vld [vmem:[#allocation9 + $0x558] sm:$0xff]
    %v291 = vld [vmem:[#allocation9 + $0x560] sm:$0xff]
    %v292 = vld [vmem:[#allocation9 + $0x568] sm:$0xff]
    %v293 = vld [vmem:[#allocation9 + $0x570] sm:$0xff]
    %v294 = vld [vmem:[#allocation9 + $0x578] sm:$0xff]
    %v295 = vld [vmem:[#allocation9 + $0x580] sm:$0xff]
    %v296 = vld [vmem:[#allocation9 + $0x588] sm:$0xff]
    %v297 = vld [vmem:[#allocation9 + $0x590] sm:$0xff]
    %v298 = vld [vmem:[#allocation9 + $0x598] sm:$0xff]
    %v299 = vld [vmem:[#allocation9 + $0x5a0] sm:$0xff]
    %v300 = vld [vmem:[#allocation9 + $0x5a8] sm:$0xff]
    %v301 = vld [vmem:[#allocation9 + $0x5b0] sm:$0xff]
    %v302 = vld [vmem:[#allocation9 + $0x5b8] sm:$0xff]
    %v303 = vld [vmem:[#allocation9 + $0x5c0] sm:$0xff]
    %v304 = vld [vmem:[#allocation9 + $0x5c8] sm:$0xff]
    %v305 = vld [vmem:[#allocation9 + $0x5d0] sm:$0xff]
    %v306 = vld [vmem:[#allocation9 + $0x5d8] sm:$0xff]
    %v307 = vld [vmem:[#allocation9 + $0x5e0] sm:$0xff]
    %v308 = vld [vmem:[#allocation9 + $0x5e8] sm:$0xff]
    %v309 = vld [vmem:[#allocation9 + $0x5f0] sm:$0xff]
    %v310 = vld [vmem:[#allocation9 + $0x5f8] sm:$0xff]
    %v311 = vld [vmem:[#allocation9 + $0x600] sm:$0xff]
    %v312 = vld [vmem:[#allocation9 + $0x608] sm:$0xff]
    %v313 = vld [vmem:[#allocation9 + $0x610] sm:$0xff]
    %v314 = vld [vmem:[#allocation9 + $0x618] sm:$0xff]
    %v315 = vld [vmem:[#allocation9 + $0x620] sm:$0xff]
    %v316 = vld [vmem:[#allocation9 + $0x628] sm:$0xff]
    %v317 = vld [vmem:[#allocation9 + $0x630] sm:$0xff]
    %v318 = vld [vmem:[#allocation9 + $0x638] sm:$0xff]
    %v319 = vld [vmem:[#allocation9 + $0x640] sm:$0xff]
    %v320 = vld [vmem:[#allocation9 + $0x648] sm:$0xff]
    %v321 = vld [vmem:[#allocation9 + $0x650] sm:$0xff]
    %v322 = vld [vmem:[#allocation9 + $0x658] sm:$0xff]
    %v323 = vld [vmem:[#allocation9 + $0x660] sm:$0xff]
    %v324 = vld [vmem:[#allocation9 + $0x668] sm:$0xff]
    %v325 = vld [vmem:[#allocation9 + $0x670] sm:$0xff]
    %v326 = vld [vmem:[#allocation9 + $0x678] sm:$0xff]
    %v327 = vld [vmem:[#allocation9 + $0x680] sm:$0xff]
    %v328 = vld [vmem:[#allocation9 + $0x688] sm:$0xff]
    %v329 = vld [vmem:[#allocation9 + $0x690] sm:$0xff]
    %v330 = vld [vmem:[#allocation9 + $0x698] sm:$0xff]
    %v331 = vld [vmem:[#allocation9 + $0x6a0] sm:$0xff]
    %v332 = vld [vmem:[#allocation9 + $0x6a8] sm:$0xff]
    %v333 = vld [vmem:[#allocation9 + $0x6b0] sm:$0xff]
    %v334 = vld [vmem:[#allocation9 + $0x6b8] sm:$0xff]
    %v335 = vld [vmem:[#allocation9 + $0x6c0] sm:$0xff]
    %v336 = vld [vmem:[#allocation9 + $0x6c8] sm:$0xff]
    %v337 = vld [vmem:[#allocation9 + $0x6d0] sm:$0xff]
    %v338 = vld [vmem:[#allocation9 + $0x6d8] sm:$0xff]
    %v339 = vld [vmem:[#allocation9 + $0x6e0] sm:$0xff]
    %v340 = vld [vmem:[#allocation9 + $0x6e8] sm:$0xff]
    %v341 = vld [vmem:[#allocation9 + $0x6f0] sm:$0xff]
    %v342 = vld [vmem:[#allocation9 + $0x6f8] sm:$0xff]
    %v343 = vld [vmem:[#allocation9 + $0x700] sm:$0xff]
    %v344 = vld [vmem:[#allocation9 + $0x708] sm:$0xff]
    %v345 = vld [vmem:[#allocation9 + $0x710] sm:$0xff]
    %v346 = vld [vmem:[#allocation9 + $0x718] sm:$0xff]
    %v347 = vld [vmem:[#allocation9 + $0x720] sm:$0xff]
    %v348 = vld [vmem:[#allocation9 + $0x728] sm:$0xff]
    %v349 = vld [vmem:[#allocation9 + $0x730] sm:$0xff]
    %v350 = vld [vmem:[#allocation9 + $0x738] sm:$0xff]
    %v351 = vld [vmem:[#allocation9 + $0x740] sm:$0xff]
    %v352 = vld [vmem:[#allocation9 + $0x748] sm:$0xff]
    %v353 = vld [vmem:[#allocation9 + $0x750] sm:$0xff]
    %v354 = vld [vmem:[#allocation9 + $0x758] sm:$0xff]
    %v355 = vld [vmem:[#allocation9 + $0x760] sm:$0xff]
    %v356 = vld [vmem:[#allocation9 + $0x768] sm:$0xff]
    %v357 = vld [vmem:[#allocation9 + $0x770] sm:$0xff]
    %v358 = vld [vmem:[#allocation9 + $0x778] sm:$0xff]
    %v359 = vld [vmem:[#allocation9 + $0x780] sm:$0xff]
    %v360 = vld [vmem:[#allocation9 + $0x788] sm:$0xff]
    %v361 = vld [vmem:[#allocation9 + $0x790] sm:$0xff]
    %v362 = vld [vmem:[#allocation9 + $0x798] sm:$0xff]
    %v363 = vld [vmem:[#allocation9 + $0x7a0] sm:$0xff]
    %v364 = vld [vmem:[#allocation9 + $0x7a8] sm:$0xff]
    %v365 = vld [vmem:[#allocation9 + $0x7b0] sm:$0xff]
    %v366 = vld [vmem:[#allocation9 + $0x7b8] sm:$0xff]
    %v367 = vld [vmem:[#allocation9 + $0x7c0] sm:$0xff]
    %v368 = vld [vmem:[#allocation9 + $0x7c8] sm:$0xff]
    %v369 = vld [vmem:[#allocation9 + $0x7d0] sm:$0xff]
    %v370 = vld [vmem:[#allocation9 + $0x7d8] sm:$0xff]
    %v371 = vld [vmem:[#allocation9 + $0x7e0] sm:$0xff]
    %v372 = vld [vmem:[#allocation9 + $0x7e8] sm:$0xff]
    %v373 = vld [vmem:[#allocation9 + $0x7f0] sm:$0xff]
    %v374 = vld [vmem:[#allocation9 + $0x7f8] sm:$0xff]
    %v375 = vld [vmem:[#allocation9 + $0x800] sm:$0xff]
    %v376 = vld [vmem:[#allocation9 + $0x808] sm:$0xff]
    %v377 = vld [vmem:[#allocation9 + $0x810] sm:$0xff]
    %v378 = vld [vmem:[#allocation9 + $0x818] sm:$0xff]
    %v379 = vld [vmem:[#allocation9 + $0x820] sm:$0xff]
    %v380 = vld [vmem:[#allocation9 + $0x828] sm:$0xff]
    %v381 = vld [vmem:[#allocation9 + $0x830] sm:$0xff]
    %v382 = vld [vmem:[#allocation9 + $0x838] sm:$0xff]
    %v383 = vld [vmem:[#allocation9 + $0x840] sm:$0xff]
    %v384 = vld [vmem:[#allocation9 + $0x848] sm:$0xff]
    %v385 = vld [vmem:[#allocation9 + $0x850] sm:$0xff]
    %v386 = vld [vmem:[#allocation9 + $0x858] sm:$0xff]
    %v387 = vld [vmem:[#allocation9 + $0x860] sm:$0xff]
    %v388 = vld [vmem:[#allocation9 + $0x868] sm:$0xff]
    %v389 = vld [vmem:[#allocation9 + $0x870] sm:$0xff]
    %v390 = vld [vmem:[#allocation9 + $0x878] sm:$0xff]
    %v391 = vld [vmem:[#allocation9 + $0x880] sm:$0xff]
    %v392 = vld [vmem:[#allocation9 + $0x888] sm:$0xff]
    %v393 = vld [vmem:[#allocation9 + $0x890] sm:$0xff]
    %v394 = vld [vmem:[#allocation9 + $0x898] sm:$0xff]
    %v395 = vld [vmem:[#allocation9 + $0x8a0] sm:$0xff]
    %v396 = vld [vmem:[#allocation9 + $0x8a8] sm:$0xff]
    %v397 = vld [vmem:[#allocation9 + $0x8b0] sm:$0xff]
    %v398 = vld [vmem:[#allocation9 + $0x8b8] sm:$0xff]
    %v399 = vld [vmem:[#allocation9 + $0x8c0] sm:$0xff]
    %v400 = vld [vmem:[#allocation9 + $0x8c8] sm:$0xff]
    %v401 = vld [vmem:[#allocation9 + $0x8d0] sm:$0xff]
    %v402 = vld [vmem:[#allocation9 + $0x8d8] sm:$0xff]
    %v403 = vld [vmem:[#allocation9 + $0x8e0] sm:$0xff]
    %v404 = vld [vmem:[#allocation9 + $0x8e8] sm:$0xff]
    %v405 = vld [vmem:[#allocation9 + $0x8f0] sm:$0xff]
    %v406 = vld [vmem:[#allocation9 + $0x8f8] sm:$0xff]
    %v407 = vld [vmem:[#allocation9 + $0x900] sm:$0xff]
    %v408 = vld [vmem:[#allocation9 + $0x908] sm:$0xff]
    %v409 = vld [vmem:[#allocation9 + $0x910] sm:$0xff]
    %v410 = vld [vmem:[#allocation9 + $0x918] sm:$0xff]
    %v411 = vld [vmem:[#allocation9 + $0x920] sm:$0xff]
    %v412 = vld [vmem:[#allocation9 + $0x928] sm:$0xff]
    %v413 = vld [vmem:[#allocation9 + $0x930] sm:$0xff]
    %v414 = vld [vmem:[#allocation9 + $0x938] sm:$0xff]
    %v415 = vld [vmem:[#allocation9 + $0x940] sm:$0xff]
    %v416 = vld [vmem:[#allocation9 + $0x948] sm:$0xff]
    %v417 = vld [vmem:[#allocation9 + $0x950] sm:$0xff]
    %v418 = vld [vmem:[#allocation9 + $0x958] sm:$0xff]
    %v419 = vld [vmem:[#allocation9 + $0x960] sm:$0xff]
    %v420 = vld [vmem:[#allocation9 + $0x968] sm:$0xff]
    %v421 = vld [vmem:[#allocation9 + $0x970] sm:$0xff]
    %v422 = vld [vmem:[#allocation9 + $0x978] sm:$0xff]
    %v423 = vld [vmem:[#allocation9 + $0x980] sm:$0xff]
    %v424 = vld [vmem:[#allocation9 + $0x988] sm:$0xff]
    %v425 = vld [vmem:[#allocation9 + $0x990] sm:$0xff]
    %v426 = vld [vmem:[#allocation9 + $0x998] sm:$0xff]
    %v427 = vld [vmem:[#allocation9 + $0x9a0] sm:$0xff]
    %v428 = vld [vmem:[#allocation9 + $0x9a8] sm:$0xff]
    %v429 = vld [vmem:[#allocation9 + $0x9b0] sm:$0xff]
    %v430 = vld [vmem:[#allocation9 + $0x9b8] sm:$0xff]
    %v431 = vld [vmem:[#allocation9 + $0x9c0] sm:$0xff]
    %v432 = vld [vmem:[#allocation9 + $0x9c8] sm:$0xff]
    %v433 = vld [vmem:[#allocation9 + $0x9d0] sm:$0xff]
    %v434 = vld [vmem:[#allocation9 + $0x9d8] sm:$0xff]
    %v435 = vld [vmem:[#allocation9 + $0x9e0] sm:$0xff]
    %v436 = vld [vmem:[#allocation9 + $0x9e8] sm:$0xff]
    %v437 = vld [vmem:[#allocation9 + $0x9f0] sm:$0xff]
    %v438 = vld [vmem:[#allocation9 + $0x9f8] sm:$0xff]
    %v439 = vld [vmem:[#allocation9 + $0xa00] sm:$0xff]
    %v440 = vld [vmem:[#allocation9 + $0xa08] sm:$0xff]
    %v441 = vld [vmem:[#allocation9 + $0xa10] sm:$0xff]
    %v442 = vld [vmem:[#allocation9 + $0xa18] sm:$0xff]
    %v443 = vld [vmem:[#allocation9 + $0xa20] sm:$0xff]
    %v444 = vld [vmem:[#allocation9 + $0xa28] sm:$0xff]
    %v445 = vld [vmem:[#allocation9 + $0xa30] sm:$0xff]
    %v446 = vld [vmem:[#allocation9 + $0xa38] sm:$0xff]
    %v447 = vld [vmem:[#allocation9 + $0xa40] sm:$0xff]
    %v448 = vld [vmem:[#allocation9 + $0xa48] sm:$0xff]
    %v449 = vld [vmem:[#allocation9 + $0xa50] sm:$0xff]
    %v450 = vld [vmem:[#allocation9 + $0xa58] sm:$0xff]
    %v451 = vld [vmem:[#allocation9 + $0xa60] sm:$0xff]
    %v452 = vld [vmem:[#allocation9 + $0xa68] sm:$0xff]
    %v453 = vld [vmem:[#allocation9 + $0xa70] sm:$0xff]
    %v454 = vld [vmem:[#allocation9 + $0xa78] sm:$0xff]
    %v455 = vld [vmem:[#allocation9 + $0xa80] sm:$0xff]
    %v456 = vld [vmem:[#allocation9 + $0xa88] sm:$0xff]
    %v457 = vld [vmem:[#allocation9 + $0xa90] sm:$0xff]
    %v458 = vld [vmem:[#allocation9 + $0xa98] sm:$0xff]
    %v459 = vld [vmem:[#allocation9 + $0xaa0] sm:$0xff]
    %v460 = vld [vmem:[#allocation9 + $0xaa8] sm:$0xff]
    %v461 = vld [vmem:[#allocation9 + $0xab0] sm:$0xff]
    %v462 = vld [vmem:[#allocation9 + $0xab8] sm:$0xff]
    %v463 = vld [vmem:[#allocation9 + $0xac0] sm:$0xff]
    %v464 = vld [vmem:[#allocation9 + $0xac8] sm:$0xff]
    %v465 = vld [vmem:[#allocation9 + $0xad0] sm:$0xff]
    %v466 = vld [vmem:[#allocation9 + $0xad8] sm:$0xff]
    %v467 = vld [vmem:[#allocation9 + $0xae0] sm:$0xff]
    %v468 = vld [vmem:[#allocation9 + $0xae8] sm:$0xff]
    %v469 = vld [vmem:[#allocation9 + $0xaf0] sm:$0xff]
    %v470 = vld [vmem:[#allocation9 + $0xaf8] sm:$0xff]
    %v471 = vld [vmem:[#allocation9 + $0xb00] sm:$0xff]
    %v472 = vld [vmem:[#allocation9 + $0xb08] sm:$0xff]
    %v473 = vld [vmem:[#allocation9 + $0xb10] sm:$0xff]
    %v474 = vld [vmem:[#allocation9 + $0xb18] sm:$0xff]
    %v475 = vld [vmem:[#allocation9 + $0xb20] sm:$0xff]
    %v476 = vld [vmem:[#allocation9 + $0xb28] sm:$0xff]
    %v477 = vld [vmem:[#allocation9 + $0xb30] sm:$0xff]
    %v478 = vld [vmem:[#allocation9 + $0xb38] sm:$0xff]
    %v479 = vld [vmem:[#allocation9 + $0xb40] sm:$0xff]
    %v480 = vld [vmem:[#allocation9 + $0xb48] sm:$0xff]
    %v481 = vld [vmem:[#allocation9 + $0xb50] sm:$0xff]
    %v482 = vld [vmem:[#allocation9 + $0xb58] sm:$0xff]
    %v483 = vld [vmem:[#allocation9 + $0xb60] sm:$0xff]
    %v484 = vld [vmem:[#allocation9 + $0xb68] sm:$0xff]
    %v485 = vld [vmem:[#allocation9 + $0xb70] sm:$0xff]
    %v486 = vld [vmem:[#allocation9 + $0xb78] sm:$0xff]
    %v487 = vld [vmem:[#allocation9 + $0xb80] sm:$0xff]
    %v488 = vld [vmem:[#allocation9 + $0xb88] sm:$0xff]
    %v489 = vld [vmem:[#allocation9 + $0xb90] sm:$0xff]
    %v490 = vld [vmem:[#allocation9 + $0xb98] sm:$0xff]
    %v491 = vld [vmem:[#allocation9 + $0xba0] sm:$0xff]
    %v492 = vld [vmem:[#allocation9 + $0xba8] sm:$0xff]
    %v493 = vld [vmem:[#allocation9 + $0xbb0] sm:$0xff]
    %v494 = vld [vmem:[#allocation9 + $0xbb8] sm:$0xff]
    %v495 = vld [vmem:[#allocation9 + $0xbc0] sm:$0xff]
    %v496 = vld [vmem:[#allocation9 + $0xbc8] sm:$0xff]
    %v497 = vld [vmem:[#allocation9 + $0xbd0] sm:$0xff]
    %v498 = vld [vmem:[#allocation9 + $0xbd8] sm:$0xff]
    %v499 = vld [vmem:[#allocation9 + $0xbe0] sm:$0xff]
    %v500 = vld [vmem:[#allocation9 + $0xbe8] sm:$0xff]
    %v501 = vld [vmem:[#allocation9 + $0xbf0] sm:$0xff]
    %v502 = vld [vmem:[#allocation9 + $0xbf8] sm:$0xff]
    %v503 = vld [vmem:[#allocation9 + $0xc00] sm:$0xff]
    %v504 = vld [vmem:[#allocation9 + $0xc08] sm:$0xff]
    %v505 = vld [vmem:[#allocation9 + $0xc10] sm:$0xff]
    %v506 = vld [vmem:[#allocation9 + $0xc18] sm:$0xff]
    %v507 = vld [vmem:[#allocation9 + $0xc20] sm:$0xff]
    %v508 = vld [vmem:[#allocation9 + $0xc28] sm:$0xff]
    %v509 = vld [vmem:[#allocation9 + $0xc30] sm:$0xff]
    %v510 = vld [vmem:[#allocation9 + $0xc38] sm:$0xff]
    %v511 = vld [vmem:[#allocation14] sm:$0xf]
    %v513 = vlaneseq
    %v514 = vshrl.u32 %v513, 7
    %v515 = vsub.s32 0, %v514
    %v516 = vrot.slane %v511, %v515
    %v517 = vlaneseq
    %v518 = vshrl.u32 %v517, 7
    %v519 = vsub.s32 1, %v518
    %v520 = vrot.slane %v511, %v519
    %v521 = vlaneseq
    %v522 = vshrl.u32 %v521, 7
    %v523 = vsub.s32 2, %v522
    %v524 = vrot.slane %v511, %v523
    %v525 = vlaneseq
    %v526 = vshrl.u32 %v525, 7
    %v527 = vsub.s32 3, %v526
    %v528 = vrot.slane %v511, %v527
    %vm533 = vcmask 130048
    %v535 = vsel %vm533, %v118, 0
    %537 = vmatprep.subr.mxu0 %v120
    %538 = vmatpush1.msra.mxu0 %v119
    %539 = vmatprep.subr.mxu0 %v124
    %540 = vmatpush1.msra.mxu0 %v123
    %541 = vmatprep.subr.mxu0 %v128
    %542 = vmatpush1.msra.mxu0 %v127
    %543 = vmatprep.subr.mxu0 %v132
    %544 = vmatpush1.msra.mxu0 %v131
    %545 = vmatprep.subr.mxu0 %v136
    %546 = vmatpush1.msra.mxu0 %v135
    %547 = vmatprep.subr.mxu0 %v140
    %548 = vmatpush1.msra.mxu0 %v139
    %549 = vmatprep.subr.mxu0 %v144
    %550 = vmatpush1.msra.mxu0 %v143
    %551 = vmatprep.subr.mxu0 %v148
    %552 = vmatpush1.msra.mxu0 %v147
    %553 = vmatprep.subr.mxu0 %v152
    %554 = vmatpush1.msra.mxu0 %v151
    %555 = vmatprep.subr.mxu0 %v156
    %556 = vmatpush1.msra.mxu0 %v155
    %557 = vmatprep.subr.mxu0 %v160
    %558 = vmatpush1.msra.mxu0 %v159
    %559 = vmatprep.subr.mxu0 %v164
    %560 = vmatpush1.msra.mxu0 %v163
    %561 = vmatprep.subr.mxu0 %v168
    %562 = vmatpush1.msra.mxu0 %v167
    %563 = vmatprep.subr.mxu0 %v172
    %564 = vmatpush1.msra.mxu0 %v171
    %565 = vmatprep.subr.mxu0 %v176
    %566 = vmatpush1.msra.mxu0 %v175
    %567 = vmatprep.subr.mxu0 %v180
    %568 = vmatpush1.msra.mxu0 %v179
    %569 = vmatprep.subr.mxu0 %v184
    %570 = vmatpush1.msra.mxu0 %v183
    %571 = vmatprep.subr.mxu0 %v188
    %572 = vmatpush1.msra.mxu0 %v187
    %573 = vmatprep.subr.mxu0 %v192
    %574 = vmatpush1.msra.mxu0 %v191
    %575 = vmatprep.subr.mxu0 %v196
    %576 = vmatpush1.msra.mxu0 %v195
    %577 = vmatprep.subr.mxu0 %v200
    %578 = vmatpush1.msra.mxu0 %v199
    %579 = vmatprep.subr.mxu0 %v204
    %580 = vmatpush1.msra.mxu0 %v203
    %581 = vmatprep.subr.mxu0 %v208
    %582 = vmatpush1.msra.mxu0 %v207
    %583 = vmatprep.subr.mxu0 %v212
    %584 = vmatpush1.msra.mxu0 %v211
    %585 = vmatprep.subr.mxu0 %v216
    %586 = vmatpush1.msra.mxu0 %v215
    %587 = vmatprep.subr.mxu0 %v220
    %588 = vmatpush1.msra.mxu0 %v219
    %589 = vmatprep.subr.mxu0 %v224
    %590 = vmatpush1.msra.mxu0 %v223
    %591 = vmatprep.subr.mxu0 %v228
    %592 = vmatpush1.msra.mxu0 %v227
    %593 = vmatprep.subr.mxu0 %v232
    %594 = vmatpush1.msra.mxu0 %v231
    %595 = vmatprep.subr.mxu0 %v236
    %596 = vmatpush1.msra.mxu0 %v235
    %597 = vmatprep.subr.mxu0 %v240
    %598 = vmatpush1.msra.mxu0 %v239
    %599 = vmatprep.subr.mxu0 %v244
    %600 = vmatpush1.msra.mxu0 %v243
    %601 = vmatprep.mubr.f32.mxu0 %v113
    %602 = vmatmul.mubr.f32.gmra.mrb[0].mxu0 %v112
    %v603 = vpop.f32.mrb[0].mxu0
    %v604 = vadd.f32 %v516, %v603
    %v605 = vpop.f32.mrb[0].mxu0
    %v606 = vadd.f32 %v520, %v605
    %607 = vdwg.mxu0
    %608 = vmatprep.subr.mxu0 %v248
    %609 = vmatpush1.msra.mxu0 %v247
    %610 = vmatprep.subr.mxu0 %v252
    %611 = vmatpush1.msra.mxu0 %v251
    %612 = vmatprep.subr.mxu0 %v256
    %613 = vmatpush1.msra.mxu0 %v255
    %614 = vmatprep.subr.mxu0 %v260
    %615 = vmatpush1.msra.mxu0 %v259
    %616 = vmatprep.subr.mxu0 %v264
    %617 = vmatpush1.msra.mxu0 %v263
    %618 = vmatprep.subr.mxu0 %v268
    %619 = vmatpush1.msra.mxu0 %v267
    %620 = vmatprep.subr.mxu0 %v272
    %621 = vmatpush1.msra.mxu0 %v271
    %622 = vmatprep.subr.mxu0 %v276
    %623 = vmatpush1.msra.mxu0 %v275
    %624 = vmatprep.subr.mxu0 %v280
    %625 = vmatpush1.msra.mxu0 %v279
    %626 = vmatprep.subr.mxu0 %v284
    %627 = vmatpush1.msra.mxu0 %v283
    %628 = vmatprep.subr.mxu0 %v288
    %629 = vmatpush1.msra.mxu0 %v287
    %630 = vmatprep.subr.mxu0 %v292
    %631 = vmatpush1.msra.mxu0 %v291
    %632 = vmatprep.subr.mxu0 %v296
    %633 = vmatpush1.msra.mxu0 %v295
    %634 = vmatprep.subr.mxu0 %v300
    %635 = vmatpush1.msra.mxu0 %v299
    %636 = vmatprep.subr.mxu0 %v304
    %637 = vmatpush1.msra.mxu0 %v303
    %638 = vmatprep.subr.mxu0 %v308
    %639 = vmatpush1.msra.mxu0 %v307
    %640 = vmatprep.subr.mxu0 %v312
    %641 = vmatpush1.msra.mxu0 %v311
    %642 = vmatprep.subr.mxu0 %v316
    %643 = vmatpush1.msra.mxu0 %v315
    %644 = vmatprep.subr.mxu0 %v320
    %645 = vmatpush1.msra.mxu0 %v319
    %646 = vmatprep.subr.mxu0 %v324
    %647 = vmatpush1.msra.mxu0 %v323
    %648 = vmatprep.subr.mxu0 %v328
    %649 = vmatpush1.msra.mxu0 %v327
    %650 = vmatprep.subr.mxu0 %v332
    %651 = vmatpush1.msra.mxu0 %v331
    %652 = vmatprep.subr.mxu0 %v336
    %653 = vmatpush1.msra.mxu0 %v335
    %654 = vmatprep.subr.mxu0 %v340
    %655 = vmatpush1.msra.mxu0 %v339
    %656 = vmatprep.subr.mxu0 %v344
    %657 = vmatpush1.msra.mxu0 %v343
    %658 = vmatprep.subr.mxu0 %v348
    %659 = vmatpush1.msra.mxu0 %v347
    %660 = vmatprep.subr.mxu0 %v352
    %661 = vmatpush1.msra.mxu0 %v351
    %662 = vmatprep.subr.mxu0 %v356
    %663 = vmatpush1.msra.mxu0 %v355
    %664 = vmatprep.subr.mxu0 %v360
    %665 = vmatpush1.msra.mxu0 %v359
    %666 = vmatprep.subr.mxu0 %v364
    %667 = vmatpush1.msra.mxu0 %v363
    %668 = vmatprep.subr.mxu0 %v368
    %669 = vmatpush1.msra.mxu0 %v367
    %670 = vmatprep.subr.mxu0 %v372
    %671 = vmatpush1.msra.mxu0 %v371
    %672 = vmatprep.mubr.f32.mxu0 %v115
    %673 = vmatmul.mubr.f32.gmra.mrb[0].mxu0 %v114
    %v674 = vpop.f32.mrb[0].mxu0
    %v675 = vadd.f32 %v604, %v674
    %v676 = vpop.f32.mrb[0].mxu0
    %v677 = vadd.f32 %v606, %v676
    %678 = vdwg.mxu0
    %679 = vmatprep.subr.mxu0 %v376
    %680 = vmatpush1.msra.mxu0 %v375
    %681 = vmatprep.subr.mxu0 %v380
    %682 = vmatpush1.msra.mxu0 %v379
    %683 = vmatprep.subr.mxu0 %v384
    %684 = vmatpush1.msra.mxu0 %v383
    %685 = vmatprep.subr.mxu0 %v388
    %686 = vmatpush1.msra.mxu0 %v387
    %687 = vmatprep.subr.mxu0 %v392
    %688 = vmatpush1.msra.mxu0 %v391
    %689 = vmatprep.subr.mxu0 %v396
    %690 = vmatpush1.msra.mxu0 %v395
    %691 = vmatprep.subr.mxu0 %v400
    %692 = vmatpush1.msra.mxu0 %v399
    %693 = vmatprep.subr.mxu0 %v404
    %694 = vmatpush1.msra.mxu0 %v403
    %695 = vmatprep.subr.mxu0 %v408
    %696 = vmatpush1.msra.mxu0 %v407
    %697 = vmatprep.subr.mxu0 %v412
    %698 = vmatpush1.msra.mxu0 %v411
    %699 = vmatprep.subr.mxu0 %v416
    %700 = vmatpush1.msra.mxu0 %v415
    %701 = vmatprep.subr.mxu0 %v420
    %702 = vmatpush1.msra.mxu0 %v419
    %703 = vmatprep.subr.mxu0 %v424
    %704 = vmatpush1.msra.mxu0 %v423
    %705 = vmatprep.subr.mxu0 %v428
    %706 = vmatpush1.msra.mxu0 %v427
    %707 = vmatprep.subr.mxu0 %v432
    %708 = vmatpush1.msra.mxu0 %v431
    %709 = vmatprep.subr.mxu0 %v436
    %710 = vmatpush1.msra.mxu0 %v435
    %711 = vmatprep.subr.mxu0 %v440
    %712 = vmatpush1.msra.mxu0 %v439
    %713 = vmatprep.subr.mxu0 %v444
    %714 = vmatpush1.msra.mxu0 %v443
    %715 = vmatprep.subr.mxu0 %v448
    %716 = vmatpush1.msra.mxu0 %v447
    %717 = vmatprep.subr.mxu0 %v452
    %718 = vmatpush1.msra.mxu0 %v451
    %719 = vmatprep.subr.mxu0 %v456
    %720 = vmatpush1.msra.mxu0 %v455
    %721 = vmatprep.subr.mxu0 %v460
    %722 = vmatpush1.msra.mxu0 %v459
    %723 = vmatprep.subr.mxu0 %v464
    %724 = vmatpush1.msra.mxu0 %v463
    %725 = vmatprep.subr.mxu0 %v468
    %726 = vmatpush1.msra.mxu0 %v467
    %727 = vmatprep.subr.mxu0 %v472
    %728 = vmatpush1.msra.mxu0 %v471
    %729 = vmatprep.subr.mxu0 %v476
    %730 = vmatpush1.msra.mxu0 %v475
    %731 = vmatprep.subr.mxu0 %v480
    %732 = vmatpush1.msra.mxu0 %v479
    %733 = vmatprep.subr.mxu0 %v484
    %734 = vmatpush1.msra.mxu0 %v483
    %735 = vmatprep.subr.mxu0 %v488
    %736 = vmatpush1.msra.mxu0 %v487
    %737 = vmatprep.subr.mxu0 %v492
    %738 = vmatpush1.msra.mxu0 %v491
    %739 = vmatprep.subr.mxu0 %v496
    %740 = vmatpush1.msra.mxu0 %v495
    %741 = vmatprep.subr.mxu0 %v500
    %742 = vmatpush1.msra.mxu0 %v499
    %743 = vmatprep.mubr.f32.mxu0 %v117
    %744 = vmatmul.mubr.f32.gmra.mrb[0].mxu0 %v116
    %v745 = vpop.f32.mrb[0].mxu0
    %v746 = vadd.f32 %v675, %v745
    %v747 = vpop.f32.mrb[0].mxu0
    %v748 = vadd.f32 %v677, %v747
    %749 = vdwg.mxu0
    %750 = vmatprep.subr.mxu0 %v504
    %751 = vmatpush1.msra.mxu0 %v503
    %752 = vmatprep.subr.mxu0 %v508
    %753 = vmatpush1.msra.mxu0 %v507
    %754 = vmatprep.subr.mxu0 0.0
    %755 = vmatpush1.msra.mxu0 0.0
    %756 = vmatprep.subr.mxu0 0.0
    %757 = vmatpush1.msra.mxu0 0.0
    %758 = vmatprep.subr.mxu0 0.0
    %759 = vmatpush1.msra.mxu0 0.0
    %760 = vmatprep.subr.mxu0 0.0
    %761 = vmatpush1.msra.mxu0 0.0
    %762 = vmatprep.subr.mxu0 0.0
    %763 = vmatpush1.msra.mxu0 0.0
    %764 = vmatprep.subr.mxu0 0.0
    %765 = vmatpush1.msra.mxu0 0.0
    %766 = vmatprep.subr.mxu0 0.0
    %767 = vmatpush1.msra.mxu0 0.0
    %768 = vmatprep.subr.mxu0 0.0
    %769 = vmatpush1.msra.mxu0 0.0
    %770 = vmatprep.subr.mxu0 0.0
    %771 = vmatpush1.msra.mxu0 0.0
    %772 = vmatprep.subr.mxu0 0.0
    %773 = vmatpush1.msra.mxu0 0.0
    %774 = vmatprep.subr.mxu0 0.0
    %775 = vmatpush1.msra.mxu0 0.0
    %776 = vmatprep.subr.mxu0 0.0
    %777 = vmatpush1.msra.mxu0 0.0
    %778 = vmatprep.subr.mxu0 0.0
    %779 = vmatpush1.msra.mxu0 0.0
    %780 = vmatprep.subr.mxu0 0.0
    %781 = vmatpush1.msra.mxu0 0.0
    %782 = vmatprep.subr.mxu0 0.0
    %783 = vmatpush1.msra.mxu0 0.0
    %784 = vmatprep.subr.mxu0 0.0
    %785 = vmatpush1.msra.mxu0 0.0
    %786 = vmatprep.subr.mxu0 0.0
    %787 = vmatpush1.msra.mxu0 0.0
    %788 = vmatprep.subr.mxu0 0.0
    %789 = vmatpush1.msra.mxu0 0.0
    %790 = vmatprep.subr.mxu0 0.0
    %791 = vmatpush1.msra.mxu0 0.0
    %792 = vmatprep.subr.mxu0 0.0
    %793 = vmatpush1.msra.mxu0 0.0
    %794 = vmatprep.subr.mxu0 0.0
    %795 = vmatpush1.msra.mxu0 0.0
    %796 = vmatprep.subr.mxu0 0.0
    %797 = vmatpush1.msra.mxu0 0.0
    %798 = vmatprep.subr.mxu0 0.0
    %799 = vmatpush1.msra.mxu0 0.0
    %800 = vmatprep.subr.mxu0 0.0
    %801 = vmatpush1.msra.mxu0 0.0
    %802 = vmatprep.subr.mxu0 0.0
    %803 = vmatpush1.msra.mxu0 0.0
    %804 = vmatprep.subr.mxu0 0.0
    %805 = vmatpush1.msra.mxu0 0.0
    %806 = vmatprep.subr.mxu0 0.0
    %807 = vmatpush1.msra.mxu0 0.0
    %808 = vmatprep.subr.mxu0 0.0
    %809 = vmatpush1.msra.mxu0 0.0
    %810 = vmatprep.subr.mxu0 0.0
    %811 = vmatpush1.msra.mxu0 0.0
    %812 = vmatprep.subr.mxu0 0.0
    %813 = vmatpush1.msra.mxu0 0.0
    %814 = vmatprep.mubr.f32.mxu0 0.0
    %815 = vmatmul.mubr.f32.gmra.mrb[0].mxu0 %v535
    %v816 = vpop.f32.mrb[0].mxu0
    %v817 = vadd.f32 %v746, %v816
    %v818 = vpop.f32.mrb[0].mxu0
    %v819 = vadd.f32 %v748, %v818
    %820 = vdwg.mxu0
    %821 = vmatprep.subr.mxu0 %v122
    %822 = vmatpush1.msra.mxu0 %v121
    %823 = vmatprep.subr.mxu0 %v126
    %824 = vmatpush1.msra.mxu0 %v125
    %825 = vmatprep.subr.mxu0 %v130
    %826 = vmatpush1.msra.mxu0 %v129
    %827 = vmatprep.subr.mxu0 %v134
    %828 = vmatpush1.msra.mxu0 %v133
    %829 = vmatprep.subr.mxu0 %v138
    %830 = vmatpush1.msra.mxu0 %v137
    %831 = vmatprep.subr.mxu0 %v142
    %832 = vmatpush1.msra.mxu0 %v141
    %833 = vmatprep.subr.mxu0 %v146
    %834 = vmatpush1.msra.mxu0 %v145
    %835 = vmatprep.subr.mxu0 %v150
    %836 = vmatpush1.msra.mxu0 %v149
    %837 = vmatprep.subr.mxu0 %v154
    %838 = vmatpush1.msra.mxu0 %v153
    %839 = vmatprep.subr.mxu0 %v158
    %840 = vmatpush1.msra.mxu0 %v157
    %841 = vmatprep.subr.mxu0 %v162
    %842 = vmatpush1.msra.mxu0 %v161
    %843 = vmatprep.subr.mxu0 %v166
    %844 = vmatpush1.msra.mxu0 %v165
    %845 = vmatprep.subr.mxu0 %v170
    %846 = vmatpush1.msra.mxu0 %v169
    %847 = vmatprep.subr.mxu0 %v174
    %848 = vmatpush1.msra.mxu0 %v173
    %849 = vmatprep.subr.mxu0 %v178
    %850 = vmatpush1.msra.mxu0 %v177
    %851 = vmatprep.subr.mxu0 %v182
    %852 = vmatpush1.msra.mxu0 %v181
    %853 = vmatprep.subr.mxu0 %v186
    %854 = vmatpush1.msra.mxu0 %v185
    %855 = vmatprep.subr.mxu0 %v190
    %856 = vmatpush1.msra.mxu0 %v189
    %857 = vmatprep.subr.mxu0 %v194
    %858 = vmatpush1.msra.mxu0 %v193
    %859 = vmatprep.subr.mxu0 %v198
    %860 = vmatpush1.msra.mxu0 %v197
    %861 = vmatprep.subr.mxu0 %v202
    %862 = vmatpush1.msra.mxu0 %v201
    %863 = vmatprep.subr.mxu0 %v206
    %864 = vmatpush1.msra.mxu0 %v205
    %865 = vmatprep.subr.mxu0 %v210
    %866 = vmatpush1.msra.mxu0 %v209
    %867 = vmatprep.subr.mxu0 %v214
    %868 = vmatpush1.msra.mxu0 %v213
    %869 = vmatprep.subr.mxu0 %v218
    %870 = vmatpush1.msra.mxu0 %v217
    %871 = vmatprep.subr.mxu0 %v222
    %872 = vmatpush1.msra.mxu0 %v221
    %873 = vmatprep.subr.mxu0 %v226
    %874 = vmatpush1.msra.mxu0 %v225
    %875 = vmatprep.subr.mxu0 %v230
    %876 = vmatpush1.msra.mxu0 %v229
    %877 = vmatprep.subr.mxu0 %v234
    %878 = vmatpush1.msra.mxu0 %v233
    %879 = vmatprep.subr.mxu0 %v238
    %880 = vmatpush1.msra.mxu0 %v237
    %881 = vmatprep.subr.mxu0 %v242
    %882 = vmatpush1.msra.mxu0 %v241
    %883 = vmatprep.subr.mxu0 %v246
    %884 = vmatpush1.msra.mxu0 %v245
    %885 = vmatprep.mubr.f32.mxu0 %v113
    %886 = vmatmul.mubr.f32.gmra.mrb[0].mxu0 %v112
    %v887 = vpop.f32.mrb[0].mxu0
    %v888 = vadd.f32 %v524, %v887
    %v889 = vpop.f32.mrb[0].mxu0
    %v890 = vadd.f32 %v528, %v889
    %891 = vdwg.mxu0
    %892 = vmatprep.subr.mxu0 %v250
    %893 = vmatpush1.msra.mxu0 %v249
    %894 = vmatprep.subr.mxu0 %v254
    %895 = vmatpush1.msra.mxu0 %v253
    %896 = vmatprep.subr.mxu0 %v258
    %897 = vmatpush1.msra.mxu0 %v257
    %898 = vmatprep.subr.mxu0 %v262
    %899 = vmatpush1.msra.mxu0 %v261
    %900 = vmatprep.subr.mxu0 %v266
    %901 = vmatpush1.msra.mxu0 %v265
    %902 = vmatprep.subr.mxu0 %v270
    %903 = vmatpush1.msra.mxu0 %v269
    %904 = vmatprep.subr.mxu0 %v274
    %905 = vmatpush1.msra.mxu0 %v273
    %906 = vmatprep.subr.mxu0 %v278
    %907 = vmatpush1.msra.mxu0 %v277
    %908 = vmatprep.subr.mxu0 %v282
    %909 = vmatpush1.msra.mxu0 %v281
    %910 = vmatprep.subr.mxu0 %v286
    %911 = vmatpush1.msra.mxu0 %v285
    %912 = vmatprep.subr.mxu0 %v290
    %913 = vmatpush1.msra.mxu0 %v289
    %914 = vmatprep.subr.mxu0 %v294
    %915 = vmatpush1.msra.mxu0 %v293
    %916 = vmatprep.subr.mxu0 %v298
    %917 = vmatpush1.msra.mxu0 %v297
    %918 = vmatprep.subr.mxu0 %v302
    %919 = vmatpush1.msra.mxu0 %v301
    %920 = vmatprep.subr.mxu0 %v306
    %921 = vmatpush1.msra.mxu0 %v305
    %922 = vmatprep.subr.mxu0 %v310
    %923 = vmatpush1.msra.mxu0 %v309
    %924 = vmatprep.subr.mxu0 %v314
    %925 = vmatpush1.msra.mxu0 %v313
    %926 = vmatprep.subr.mxu0 %v318
    %927 = vmatpush1.msra.mxu0 %v317
    %928 = vmatprep.subr.mxu0 %v322
    %929 = vmatpush1.msra.mxu0 %v321
    %930 = vmatprep.subr.mxu0 %v326
    %931 = vmatpush1.msra.mxu0 %v325
    %932 = vmatprep.subr.mxu0 %v330
    %933 = vmatpush1.msra.mxu0 %v329
    %934 = vmatprep.subr.mxu0 %v334
    %935 = vmatpush1.msra.mxu0 %v333
    %936 = vmatprep.subr.mxu0 %v338
    %937 = vmatpush1.msra.mxu0 %v337
    %938 = vmatprep.subr.mxu0 %v342
    %939 = vmatpush1.msra.mxu0 %v341
    %940 = vmatprep.subr.mxu0 %v346
    %941 = vmatpush1.msra.mxu0 %v345
    %942 = vmatprep.subr.mxu0 %v350
    %943 = vmatpush1.msra.mxu0 %v349
    %944 = vmatprep.subr.mxu0 %v354
    %945 = vmatpush1.msra.mxu0 %v353
    %946 = vmatprep.subr.mxu0 %v358
    %947 = vmatpush1.msra.mxu0 %v357
    %948 = vmatprep.subr.mxu0 %v362
    %949 = vmatpush1.msra.mxu0 %v361
    %950 = vmatprep.subr.mxu0 %v366
    %951 = vmatpush1.msra.mxu0 %v365
    %952 = vmatprep.subr.mxu0 %v370
    %953 = vmatpush1.msra.mxu0 %v369
    %954 = vmatprep.subr.mxu0 %v374
    %955 = vmatpush1.msra.mxu0 %v373
    %956 = vmatprep.mubr.f32.mxu0 %v115
    %957 = vmatmul.mubr.f32.gmra.mrb[0].mxu0 %v114
    %v958 = vpop.f32.mrb[0].mxu0
    %v959 = vadd.f32 %v888, %v958
    %v960 = vpop.f32.mrb[0].mxu0
    %v961 = vadd.f32 %v890, %v960
    %962 = vdwg.mxu0
    %963 = vmatprep.subr.mxu0 %v378
    %964 = vmatpush1.msra.mxu0 %v377
    %965 = vmatprep.subr.mxu0 %v382
    %966 = vmatpush1.msra.mxu0 %v381
    %967 = vmatprep.subr.mxu0 %v386
    %968 = vmatpush1.msra.mxu0 %v385
    %969 = vmatprep.subr.mxu0 %v390
    %970 = vmatpush1.msra.mxu0 %v389
    %971 = vmatprep.subr.mxu0 %v394
    %972 = vmatpush1.msra.mxu0 %v393
    %973 = vmatprep.subr.mxu0 %v398
    %974 = vmatpush1.msra.mxu0 %v397
    %975 = vmatprep.subr.mxu0 %v402
    %976 = vmatpush1.msra.mxu0 %v401
    %977 = vmatprep.subr.mxu0 %v406
    %978 = vmatpush1.msra.mxu0 %v405
    %979 = vmatprep.subr.mxu0 %v410
    %980 = vmatpush1.msra.mxu0 %v409
    %981 = vmatprep.subr.mxu0 %v414
    %982 = vmatpush1.msra.mxu0 %v413
    %983 = vmatprep.subr.mxu0 %v418
    %984 = vmatpush1.msra.mxu0 %v417
    %985 = vmatprep.subr.mxu0 %v422
    %986 = vmatpush1.msra.mxu0 %v421
    %987 = vmatprep.subr.mxu0 %v426
    %988 = vmatpush1.msra.mxu0 %v425
    %989 = vmatprep.subr.mxu0 %v430
    %990 = vmatpush1.msra.mxu0 %v429
    %991 = vmatprep.subr.mxu0 %v434
    %992 = vmatpush1.msra.mxu0 %v433
    %993 = vmatprep.subr.mxu0 %v438
    %994 = vmatpush1.msra.mxu0 %v437
    %995 = vmatprep.subr.mxu0 %v442
    %996 = vmatpush1.msra.mxu0 %v441
    %997 = vmatprep.subr.mxu0 %v446
    %998 = vmatpush1.msra.mxu0 %v445
    %999 = vmatprep.subr.mxu0 %v450
    %1000 = vmatpush1.msra.mxu0 %v449
    %1001 = vmatprep.subr.mxu0 %v454
    %1002 = vmatpush1.msra.mxu0 %v453
    %1003 = vmatprep.subr.mxu0 %v458
    %1004 = vmatpush1.msra.mxu0 %v457
    %1005 = vmatprep.subr.mxu0 %v462
    %1006 = vmatpush1.msra.mxu0 %v461
    %1007 = vmatprep.subr.mxu0 %v466
    %1008 = vmatpush1.msra.mxu0 %v465
    %1009 = vmatprep.subr.mxu0 %v470
    %1010 = vmatpush1.msra.mxu0 %v469
    %1011 = vmatprep.subr.mxu0 %v474
    %1012 = vmatpush1.msra.mxu0 %v473
    %1013 = vmatprep.subr.mxu0 %v478
    %1014 = vmatpush1.msra.mxu0 %v477
    %1015 = vmatprep.subr.mxu0 %v482
    %1016 = vmatpush1.msra.mxu0 %v481
    %1017 = vmatprep.subr.mxu0 %v486
    %1018 = vmatpush1.msra.mxu0 %v485
    %1019 = vmatprep.subr.mxu0 %v490
    %1020 = vmatpush1.msra.mxu0 %v489
    %1021 = vmatprep.subr.mxu0 %v494
    %1022 = vmatpush1.msra.mxu0 %v493
    %1023 = vmatprep.subr.mxu0 %v498
    %1024 = vmatpush1.msra.mxu0 %v497
    %1025 = vmatprep.subr.mxu0 %v502
    %1026 = vmatpush1.msra.mxu0 %v501
    %1027 = vmatprep.mubr.f32.mxu0 %v117
    %1028 = vmatmul.mubr.f32.gmra.mrb[0].mxu0 %v116
    %v1029 = vpop.f32.mrb[0].mxu0
    %v1030 = vadd.f32 %v959, %v1029
    %v1031 = vpop.f32.mrb[0].mxu0
    %v1032 = vadd.f32 %v961, %v1031
    %1033 = vdwg.mxu0
    %1034 = vmatprep.subr.mxu0 %v506
    %1035 = vmatpush1.msra.mxu0 %v505
    %1036 = vmatprep.subr.mxu0 %v510
    %1037 = vmatpush1.msra.mxu0 %v509
    %1038 = vmatprep.subr.mxu0 0.0
    %1039 = vmatpush1.msra.mxu0 0.0
    %1040 = vmatprep.subr.mxu0 0.0
    %1041 = vmatpush1.msra.mxu0 0.0
    %1042 = vmatprep.subr.mxu0 0.0
    %1043 = vmatpush1.msra.mxu0 0.0
    %1044 = vmatprep.subr.mxu0 0.0
    %1045 = vmatpush1.msra.mxu0 0.0
    %1046 = vmatprep.subr.mxu0 0.0
    %1047 = vmatpush1.msra.mxu0 0.0
    %1048 = vmatprep.subr.mxu0 0.0
    %1049 = vmatpush1.msra.mxu0 0.0
    %1050 = vmatprep.subr.mxu0 0.0
    %1051 = vmatpush1.msra.mxu0 0.0
    %1052 = vmatprep.subr.mxu0 0.0
    %1053 = vmatpush1.msra.mxu0 0.0
    %1054 = vmatprep.subr.mxu0 0.0
    %1055 = vmatpush1.msra.mxu0 0.0
    %1056 = vmatprep.subr.mxu0 0.0
    %1057 = vmatpush1.msra.mxu0 0.0
    %1058 = vmatprep.subr.mxu0 0.0
    %1059 = vmatpush1.msra.mxu0 0.0
    %1060 = vmatprep.subr.mxu0 0.0
    %1061 = vmatpush1.msra.mxu0 0.0
    %1062 = vmatprep.subr.mxu0 0.0
    %1063 = vmatpush1.msra.mxu0 0.0
    %1064 = vmatprep.subr.mxu0 0.0
    %1065 = vmatpush1.msra.mxu0 0.0
    %1066 = vmatprep.subr.mxu0 0.0
    %1067 = vmatpush1.msra.mxu0 0.0
    %1068 = vmatprep.subr.mxu0 0.0
    %1069 = vmatpush1.msra.mxu0 0.0
    %1070 = vmatprep.subr.mxu0 0.0
    %1071 = vmatpush1.msra.mxu0 0.0
    %1072 = vmatprep.subr.mxu0 0.0
    %1073 = vmatpush1.msra.mxu0 0.0
    %1074 = vmatprep.subr.mxu0 0.0
    %1075 = vmatpush1.msra.mxu0 0.0
    %1076 = vmatprep.subr.mxu0 0.0
    %1077 = vmatpush1.msra.mxu0 0.0
    %1078 = vmatprep.subr.mxu0 0.0
    %1079 = vmatpush1.msra.mxu0 0.0
    %1080 = vmatprep.subr.mxu0 0.0
    %1081 = vmatpush1.msra.mxu0 0.0
    %1082 = vmatprep.subr.mxu0 0.0
    %1083 = vmatpush1.msra.mxu0 0.0
    %1084 = vmatprep.subr.mxu0 0.0
    %1085 = vmatpush1.msra.mxu0 0.0
    %1086 = vmatprep.subr.mxu0 0.0
    %1087 = vmatpush1.msra.mxu0 0.0
    %1088 = vmatprep.subr.mxu0 0.0
    %1089 = vmatpush1.msra.mxu0 0.0
    %1090 = vmatprep.subr.mxu0 0.0
    %1091 = vmatpush1.msra.mxu0 0.0
    %1092 = vmatprep.subr.mxu0 0.0
    %1093 = vmatpush1.msra.mxu0 0.0
    %1094 = vmatprep.subr.mxu0 0.0
    %1095 = vmatpush1.msra.mxu0 0.0
    %1096 = vmatprep.subr.mxu0 0.0
    %1097 = vmatpush1.msra.mxu0 0.0
    %1098 = vmatprep.mubr.f32.mxu0 0.0
    %1099 = vmatmul.mubr.f32.gmra.mrb[0].mxu0 %v535
    %v1100 = vpop.f32.mrb[0].mxu0
    %v1101 = vadd.f32 %v1030, %v1100
    %v1102 = vpop.f32.mrb[0].mxu0
    %v1103 = vadd.f32 %v1032, %v1102
    %1104 = vdwg.mxu0
    %1105 = vst [vmem:[#allocation2] sm:$0xff] %v817
    %1106 = vst [vmem:[#allocation2 + $0x8] sm:$0xff] %v819
    %1107 = vst [vmem:[#allocation2 + $0x10] sm:$0xff] %v1101
    %1108 = vst [vmem:[#allocation2 + $0x18] sm:$0xff] %v1103
    %v1109 = vld [vmem:[#allocation2] ss:$8 sm:$0xf]
    %v1110 = vld [vmem:[#allocation12] sm:$0xff]
    %v1111 = vld [vmem:[#allocation12 + $0x8] sm:$0xff]
    %v1112 = vld [vmem:[#allocation12 + $0x10] sm:$0xff]
    %v1113 = vld [vmem:[#allocation12 + $0x18] sm:$0xff]
    %v1114 = vld [vmem:[#allocation12 + $0x20] sm:$0xff]
    %v1115 = vld [vmem:[#allocation12 + $0x28] sm:$0xff]
    %v1116 = vld [vmem:[#allocation12 + $0x30] sm:$0xff]
    %v1117 = vld [vmem:[#allocation12 + $0x38] sm:$0xff]
    %v1118 = vld [vmem:[#allocation12 + $0x40] sm:$0xff]
    %v1119 = vld [vmem:[#allocation12 + $0x48] sm:$0xff]
    %v1120 = vld [vmem:[#allocation12 + $0x50] sm:$0xff]
    %v1121 = vld [vmem:[#allocation12 + $0x58] sm:$0xff]
    %v1122 = vld [vmem:[#allocation12 + $0x60] sm:$0xff]
    %v1123 = vld [vmem:[#allocation12 + $0x68] sm:$0xff]
    %v1124 = vld [vmem:[#allocation12 + $0x70] sm:$0xff]
    %v1125 = vld [vmem:[#allocation12 + $0x78] sm:$0xff]
    %v1126 = vld [vmem:[#allocation12 + $0x80] sm:$0xff]
    %v1127 = vld [vmem:[#allocation12 + $0x88] sm:$0xff]
    %v1128 = vld [vmem:[#allocation12 + $0x90] sm:$0xff]
    %v1129 = vld [vmem:[#allocation12 + $0x98] sm:$0xff]
    %v1130 = vld [vmem:[#allocation12 + $0xa0] sm:$0xff]
    %v1131 = vld [vmem:[#allocation12 + $0xa8] sm:$0xff]
    %v1132 = vld [vmem:[#allocation12 + $0xb0] sm:$0xff]
    %v1133 = vld [vmem:[#allocation12 + $0xb8] sm:$0xff]
    %v1134 = vld [vmem:[#allocation12 + $0xc0] sm:$0xff]
    %v1135 = vld [vmem:[#allocation12 + $0xc8] sm:$0xff]
    %v1136 = vld [vmem:[#allocation12 + $0xd0] sm:$0xff]
    %v1137 = vld [vmem:[#allocation12 + $0xd8] sm:$0xff]
    %v1138 = vld [vmem:[#allocation12 + $0xe0] sm:$0xff]
    %v1139 = vld [vmem:[#allocation12 + $0xe8] sm:$0xff]
    %v1140 = vld [vmem:[#allocation12 + $0xf0] sm:$0xff]
    %v1141 = vld [vmem:[#allocation12 + $0xf8] sm:$0xff]
    %v1142 = vld [vmem:[#allocation12 + $0x100] sm:$0xff]
    %v1143 = vld [vmem:[#allocation12 + $0x108] sm:$0xff]
    %v1144 = vld [vmem:[#allocation12 + $0x110] sm:$0xff]
    %v1145 = vld [vmem:[#allocation12 + $0x118] sm:$0xff]
    %v1146 = vld [vmem:[#allocation12 + $0x120] sm:$0xff]
    %v1147 = vld [vmem:[#allocation12 + $0x128] sm:$0xff]
    %v1148 = vld [vmem:[#allocation12 + $0x130] sm:$0xff]
    %v1149 = vld [vmem:[#allocation12 + $0x138] sm:$0xff]
    %v1150 = vld [vmem:[#allocation12 + $0x140] sm:$0xff]
    %v1151 = vld [vmem:[#allocation12 + $0x148] sm:$0xff]
    %v1152 = vld [vmem:[#allocation12 + $0x150] sm:$0xff]
    %v1153 = vld [vmem:[#allocation12 + $0x158] sm:$0xff]
    %v1154 = vld [vmem:[#allocation12 + $0x160] sm:$0xff]
    %v1155 = vld [vmem:[#allocation12 + $0x168] sm:$0xff]
    %v1156 = vld [vmem:[#allocation12 + $0x170] sm:$0xff]
    %v1157 = vld [vmem:[#allocation12 + $0x178] sm:$0xff]
    %v1158 = vld [vmem:[#allocation12 + $0x180] sm:$0xff]
    %v1159 = vld [vmem:[#allocation12 + $0x188] sm:$0xff]
    %v1160 = vld [vmem:[#allocation12 + $0x190] sm:$0xff]
    %v1161 = vld [vmem:[#allocation12 + $0x198] sm:$0xff]
    %v1162 = vld [vmem:[#allocation12 + $0x1a0] sm:$0xff]
    %v1163 = vld [vmem:[#allocation12 + $0x1a8] sm:$0xff]
    %v1164 = vld [vmem:[#allocation12 + $0x1b0] sm:$0xff]
    %v1165 = vld [vmem:[#allocation12 + $0x1b8] sm:$0xff]
    %v1166 = vld [vmem:[#allocation12 + $0x1c0] sm:$0xff]
    %v1167 = vld [vmem:[#allocation12 + $0x1c8] sm:$0xff]
    %v1168 = vld [vmem:[#allocation12 + $0x1d0] sm:$0xff]
    %v1169 = vld [vmem:[#allocation12 + $0x1d8] sm:$0xff]
    %v1170 = vld [vmem:[#allocation12 + $0x1e0] sm:$0xff]
    %v1171 = vld [vmem:[#allocation12 + $0x1e8] sm:$0xff]
    %v1172 = vld [vmem:[#allocation12 + $0x1f0] sm:$0xff]
    %v1173 = vld [vmem:[#allocation12 + $0x1f8] sm:$0xff]
    %1174 = vmatprep.subr.mxu0 %v1111
    %1175 = vmatpush1.msra.mxu0 %v1110
    %1176 = vmatprep.subr.mxu0 %v1115
    %1177 = vmatpush1.msra.mxu0 %v1114
    %1178 = vmatprep.subr.mxu0 %v1119
    %1179 = vmatpush1.msra.mxu0 %v1118
    %1180 = vmatprep.subr.mxu0 %v1123
    %1181 = vmatpush1.msra.mxu0 %v1122
    %1182 = vmatprep.subr.mxu0 %v1127
    %1183 = vmatpush1.msra.mxu0 %v1126
    %1184 = vmatprep.subr.mxu0 %v1131
    %1185 = vmatpush1.msra.mxu0 %v1130
    %1186 = vmatprep.subr.mxu0 %v1135
    %1187 = vmatpush1.msra.mxu0 %v1134
    %1188 = vmatprep.subr.mxu0 %v1139
    %1189 = vmatpush1.msra.mxu0 %v1138
    %1190 = vmatprep.subr.mxu0 %v1143
    %1191 = vmatpush1.msra.mxu0 %v1142
    %1192 = vmatprep.subr.mxu0 %v1147
    %1193 = vmatpush1.msra.mxu0 %v1146
    %1194 = vmatprep.subr.mxu0 %v1151
    %1195 = vmatpush1.msra.mxu0 %v1150
    %1196 = vmatprep.subr.mxu0 %v1155
    %1197 = vmatpush1.msra.mxu0 %v1154
    %1198 = vmatprep.subr.mxu0 %v1159
    %1199 = vmatpush1.msra.mxu0 %v1158
    %1200 = vmatprep.subr.mxu0 %v1163
    %1201 = vmatpush1.msra.mxu0 %v1162
    %1202 = vmatprep.subr.mxu0 %v1167
    %1203 = vmatpush1.msra.mxu0 %v1166
    %1204 = vmatprep.subr.mxu0 %v1171
    %1205 = vmatpush1.msra.mxu0 %v1170
    %1206 = vmatprep.subr.mxu0 0.0
    %1207 = vmatpush1.msra.mxu0 0.0
    %1208 = vmatprep.subr.mxu0 0.0
    %1209 = vmatpush1.msra.mxu0 0.0
    %1210 = vmatprep.subr.mxu0 0.0
    %1211 = vmatpush1.msra.mxu0 0.0
    %1212 = vmatprep.subr.mxu0 0.0
    %1213 = vmatpush1.msra.mxu0 0.0
    %1214 = vmatprep.subr.mxu0 0.0
    %1215 = vmatpush1.msra.mxu0 0.0
    %1216 = vmatprep.subr.mxu0 0.0
    %1217 = vmatpush1.msra.mxu0 0.0
    %1218 = vmatprep.subr.mxu0 0.0
    %1219 = vmatpush1.msra.mxu0 0.0
    %1220 = vmatprep.subr.mxu0 0.0
    %1221 = vmatpush1.msra.mxu0 0.0
    %1222 = vmatprep.subr.mxu0 0.0
    %1223 = vmatpush1.msra.mxu0 0.0
    %1224 = vmatprep.subr.mxu0 0.0
    %1225 = vmatpush1.msra.mxu0 0.0
    %1226 = vmatprep.subr.mxu0 0.0
    %1227 = vmatpush1.msra.mxu0 0.0
    %1228 = vmatprep.subr.mxu0 0.0
    %1229 = vmatpush1.msra.mxu0 0.0
    %1230 = vmatprep.subr.mxu0 0.0
    %1231 = vmatpush1.msra.mxu0 0.0
    %1232 = vmatprep.subr.mxu0 0.0
    %1233 = vmatpush1.msra.mxu0 0.0
    %1234 = vmatprep.subr.mxu0 0.0
    %1235 = vmatpush1.msra.mxu0 0.0
    %1236 = vmatprep.subr.mxu0 0.0
    %1237 = vmatpush1.msra.mxu0 0.0
    %1238 = vmatprep.mubr.f32.mxu0 0.0
    %1239 = vmatmul.mubr.f32.gmra.mrb[0].mxu0 0.0
    %v1240 = vpop.f32.mrb[0].mxu0
    %v1241 = vadd.f32 0.0, %v1240
    %v1242 = vpop.f32.mrb[0].mxu0
    %v1243 = vadd.f32 0.0, %v1242
    %1244 = vdwg.mxu0
    %1245 = vmatprep.subr.mxu0 %v1113
    %1246 = vmatpush1.msra.mxu0 %v1112
    %1247 = vmatprep.subr.mxu0 %v1117
    %1248 = vmatpush1.msra.mxu0 %v1116
    %1249 = vmatprep.subr.mxu0 %v1121
    %1250 = vmatpush1.msra.mxu0 %v1120
    %1251 = vmatprep.subr.mxu0 %v1125
    %1252 = vmatpush1.msra.mxu0 %v1124
    %1253 = vmatprep.subr.mxu0 %v1129
    %1254 = vmatpush1.msra.mxu0 %v1128
    %1255 = vmatprep.subr.mxu0 %v1133
    %1256 = vmatpush1.msra.mxu0 %v1132
    %1257 = vmatprep.subr.mxu0 %v1137
    %1258 = vmatpush1.msra.mxu0 %v1136
    %1259 = vmatprep.subr.mxu0 %v1141
    %1260 = vmatpush1.msra.mxu0 %v1140
    %1261 = vmatprep.subr.mxu0 %v1145
    %1262 = vmatpush1.msra.mxu0 %v1144
    %1263 = vmatprep.subr.mxu0 %v1149
    %1264 = vmatpush1.msra.mxu0 %v1148
    %1265 = vmatprep.subr.mxu0 %v1153
    %1266 = vmatpush1.msra.mxu0 %v1152
    %1267 = vmatprep.subr.mxu0 %v1157
    %1268 = vmatpush1.msra.mxu0 %v1156
    %1269 = vmatprep.subr.mxu0 %v1161
    %1270 = vmatpush1.msra.mxu0 %v1160
    %1271 = vmatprep.subr.mxu0 %v1165
    %1272 = vmatpush1.msra.mxu0 %v1164
    %1273 = vmatprep.subr.mxu0 %v1169
    %1274 = vmatpush1.msra.mxu0 %v1168
    %1275 = vmatprep.subr.mxu0 %v1173
    %1276 = vmatpush1.msra.mxu0 %v1172
    %1277 = vmatprep.subr.mxu0 0.0
    %1278 = vmatpush1.msra.mxu0 0.0
    %1279 = vmatprep.subr.mxu0 0.0
    %1280 = vmatpush1.msra.mxu0 0.0
    %1281 = vmatprep.subr.mxu0 0.0
    %1282 = vmatpush1.msra.mxu0 0.0
    %1283 = vmatprep.subr.mxu0 0.0
    %1284 = vmatpush1.msra.mxu0 0.0
    %1285 = vmatprep.subr.mxu0 0.0
    %1286 = vmatpush1.msra.mxu0 0.0
    %1287 = vmatprep.subr.mxu0 0.0
    %1288 = vmatpush1.msra.mxu0 0.0
    %1289 = vmatprep.subr.mxu0 0.0
    %1290 = vmatpush1.msra.mxu0 0.0
    %1291 = vmatprep.subr.mxu0 0.0
    %1292 = vmatpush1.msra.mxu0 0.0
    %1293 = vmatprep.subr.mxu0 0.0
    %1294 = vmatpush1.msra.mxu0 0.0
    %1295 = vmatprep.subr.mxu0 0.0
    %1296 = vmatpush1.msra.mxu0 0.0
    %1297 = vmatprep.subr.mxu0 0.0
    %1298 = vmatpush1.msra.mxu0 0.0
    %1299 = vmatprep.subr.mxu0 0.0
    %1300 = vmatpush1.msra.mxu0 0.0
    %1301 = vmatprep.subr.mxu0 0.0
    %1302 = vmatpush1.msra.mxu0 0.0
    %1303 = vmatprep.subr.mxu0 0.0
    %1304 = vmatpush1.msra.mxu0 0.0
    %1305 = vmatprep.subr.mxu0 0.0
    %1306 = vmatpush1.msra.mxu0 0.0
    %1307 = vmatprep.subr.mxu0 0.0
    %1308 = vmatpush1.msra.mxu0 0.0
    %1309 = vmatprep.mubr.f32.mxu0 0.0
    %1310 = vmatmul.mubr.f32.gmra.mrb[0].mxu0 0.0
    %v1311 = vpop.f32.mrb[0].mxu0
    %v1312 = vadd.f32 0.0, %v1311
    %v1313 = vpop.f32.mrb[0].mxu0
    %v1314 = vadd.f32 0.0, %v1313
    %1315 = vdwg.mxu0
    %v1320 = vcombine.low %v1241, %v1243
    %v1321 = vcombine.low %v1312, %v1314
    %v1323 = vunpack.c.l.s4 1966171168
    %v1324 = vunpack.c.0.s8 %v1323
    %v1325 = vlaneseq
    %v1326 = vshrl.u32 %v1325, 7
    %v1327 = vsub.s32 %v1324, %v1326
    %v1328 = vrot.slane %v1320, %v1327
    %v1330 = vunpack.c.l.s4 1966171168
    %v1331 = vunpack.c.0.s8 %v1330
    %v1332 = vlaneseq
    %v1333 = vshrl.u32 %v1332, 7
    %v1334 = vsub.s32 %v1331, %v1333
    %v1335 = vrot.slane %v1321, %v1334
    %v1336 = vcombine.low %v1328, %v1335
    %v1338 = vunpack.c.l.s4 1966171168
    %v1339 = vunpack.c.0.s8 %v1338
    %v1340 = vlaneseq
    %v1341 = vshrl.u32 %v1340, 7
    %v1342 = vsub.s32 %v1339, %v1341
    %v1343 = vrot.slane %v1336, %v1342
    %v1345 = vadd.f32 %v1109, %v1343
    %v1346 = vxor.u32 %v1345, 2147483648
    %v1347 = vmul.f32 %v1346, 1.442695
    %v1348 = vpow.pop %v1347
    %v1349 = vadd.f32 %v1348, 1.0
    %v1350 = vrcp.pop %v1349
    %v1351 = vmul.f32 1.0, %v1350
    %v1353 = vrot.slane %v1345, 1
    %v1355 = vxor.u32 %v1353, 2147483648
    %v1356 = vmul.f32 %v1355, 1.442695
    %v1357 = vpow.pop %v1356
    %v1358 = vadd.f32 %v1357, 1.0
    %v1359 = vrcp.pop %v1358
    %v1360 = vmul.f32 1.0, %v1359
    %v1361 = vrot.slane %v1345, 2
    %v1363 = vtanh.pop %v1361
    %v1364 = vrot.slane %v1345, 3
    %v1366 = vxor.u32 %v1364, 2147483648
    %v1367 = vmul.f32 %v1366, 1.442695
    %v1368 = vpow.pop %v1367
    %v1369 = vadd.f32 %v1368, 1.0
    %v1370 = vrcp.pop %v1369
    %v1371 = vmul.f32 1.0, %v1370
    %v1372 = vmul.f32 %v1360, 0.0
    %v1373 = vmul.f32 %v1351, %v1363
    %v1374 = vadd.f32 %v1372, %v1373
    %v1375 = vtanh.pop %v1374
    %v1376 = vmul.f32 %v1371, %v1375
    %s1377 = scalar_lea.vmem [#allocation2], 1
    %v1378 = vld [vmem:[%s1377] ss:$8 sm:$0xf]
    %1379 = vmatprep.subr.mxu0 %v1111
    %1380 = vmatpush1.msra.mxu0 %v1110
    %1381 = vmatprep.subr.mxu0 %v1115
    %1382 = vmatpush1.msra.mxu0 %v1114
    %1383 = vmatprep.subr.mxu0 %v1119
    %1384 = vmatpush1.msra.mxu0 %v1118
    %1385 = vmatprep.subr.mxu0 %v1123
    %1386 = vmatpush1.msra.mxu0 %v1122
    %1387 = vmatprep.subr.mxu0 %v1127
    %1388 = vmatpush1.msra.mxu0 %v1126
    %1389 = vmatprep.subr.mxu0 %v1131
    %1390 = vmatpush1.msra.mxu0 %v1130
    %1391 = vmatprep.subr.mxu0 %v1135
    %1392 = vmatpush1.msra.mxu0 %v1134
    %1393 = vmatprep.subr.mxu0 %v1139
    %1394 = vmatpush1.msra.mxu0 %v1138
    %1395 = vmatprep.subr.mxu0 %v1143
    %1396 = vmatpush1.msra.mxu0 %v1142
    %1397 = vmatprep.subr.mxu0 %v1147
    %1398 = vmatpush1.msra.mxu0 %v1146
    %1399 = vmatprep.subr.mxu0 %v1151
    %1400 = vmatpush1.msra.mxu0 %v1150
    %1401 = vmatprep.subr.mxu0 %v1155
    %1402 = vmatpush1.msra.mxu0 %v1154
    %1403 = vmatprep.subr.mxu0 %v1159
    %1404 = vmatpush1.msra.mxu0 %v1158
    %1405 = vmatprep.subr.mxu0 %v1163
    %1406 = vmatpush1.msra.mxu0 %v1162
    %1407 = vmatprep.subr.mxu0 %v1167
    %1408 = vmatpush1.msra.mxu0 %v1166
    %1409 = vmatprep.subr.mxu0 %v1171
    %1410 = vmatpush1.msra.mxu0 %v1170
    %1411 = vmatprep.subr.mxu0 0.0
    %1412 = vmatpush1.msra.mxu0 0.0
    %1413 = vmatprep.subr.mxu0 0.0
    %1414 = vmatpush1.msra.mxu0 0.0
    %1415 = vmatprep.subr.mxu0 0.0
    %1416 = vmatpush1.msra.mxu0 0.0
    %1417 = vmatprep.subr.mxu0 0.0
    %1418 = vmatpush1.msra.mxu0 0.0
    %1419 = vmatprep.subr.mxu0 0.0
    %1420 = vmatpush1.msra.mxu0 0.0
    %1421 = vmatprep.subr.mxu0 0.0
    %1422 = vmatpush1.msra.mxu0 0.0
    %1423 = vmatprep.subr.mxu0 0.0
    %1424 = vmatpush1.msra.mxu0 0.0
    %1425 = vmatprep.subr.mxu0 0.0
    %1426 = vmatpush1.msra.mxu0 0.0
    %1427 = vmatprep.subr.mxu0 0.0
    %1428 = vmatpush1.msra.mxu0 0.0
    %1429 = vmatprep.subr.mxu0 0.0
    %1430 = vmatpush1.msra.mxu0 0.0
    %1431 = vmatprep.subr.mxu0 0.0
    %1432 = vmatpush1.msra.mxu0 0.0
    %1433 = vmatprep.subr.mxu0 0.0
    %1434 = vmatpush1.msra.mxu0 0.0
    %1435 = vmatprep.subr.mxu0 0.0
    %1436 = vmatpush1.msra.mxu0 0.0
    %1437 = vmatprep.subr.mxu0 0.0
    %1438 = vmatpush1.msra.mxu0 0.0
    %1439 = vmatprep.subr.mxu0 0.0
    %1440 = vmatpush1.msra.mxu0 0.0
    %1441 = vmatprep.subr.mxu0 0.0
    %1442 = vmatpush1.msra.mxu0 0.0
    %1443 = vmatprep.mubr.f32.mxu0 0.0
    %1444 = vmatmul.mubr.f32.gmra.mrb[0].mxu0 %v1376
    %v1445 = vpop.f32.mrb[0].mxu0
    %v1446 = vadd.f32 0.0, %v1445
    %v1447 = vpop.f32.mrb[0].mxu0
    %v1448 = vadd.f32 0.0, %v1447
    %1449 = vdwg.mxu0
    %1450 = vmatprep.subr.mxu0 %v1113
    %1451 = vmatpush1.msra.mxu0 %v1112
    %1452 = vmatprep.subr.mxu0 %v1117
    %1453 = vmatpush1.msra.mxu0 %v1116
    %1454 = vmatprep.subr.mxu0 %v1121
    %1455 = vmatpush1.msra.mxu0 %v1120
    %1456 = vmatprep.subr.mxu0 %v1125
    %1457 = vmatpush1.msra.mxu0 %v1124
    %1458 = vmatprep.subr.mxu0 %v1129
    %1459 = vmatpush1.msra.mxu0 %v1128
    %1460 = vmatprep.subr.mxu0 %v1133
    %1461 = vmatpush1.msra.mxu0 %v1132
    %1462 = vmatprep.subr.mxu0 %v1137
    %1463 = vmatpush1.msra.mxu0 %v1136
    %1464 = vmatprep.subr.mxu0 %v1141
    %1465 = vmatpush1.msra.mxu0 %v1140
    %1466 = vmatprep.subr.mxu0 %v1145
    %1467 = vmatpush1.msra.mxu0 %v1144
    %1468 = vmatprep.subr.mxu0 %v1149
    %1469 = vmatpush1.msra.mxu0 %v1148
    %1470 = vmatprep.subr.mxu0 %v1153
    %1471 = vmatpush1.msra.mxu0 %v1152
    %1472 = vmatprep.subr.mxu0 %v1157
    %1473 = vmatpush1.msra.mxu0 %v1156
    %1474 = vmatprep.subr.mxu0 %v1161
    %1475 = vmatpush1.msra.mxu0 %v1160
    %1476 = vmatprep.subr.mxu0 %v1165
    %1477 = vmatpush1.msra.mxu0 %v1164
    %1478 = vmatprep.subr.mxu0 %v1169
    %1479 = vmatpush1.msra.mxu0 %v1168
    %1480 = vmatprep.subr.mxu0 %v1173
    %1481 = vmatpush1.msra.mxu0 %v1172
    %1482 = vmatprep.subr.mxu0 0.0
    %1483 = vmatpush1.msra.mxu0 0.0
    %1484 = vmatprep.subr.mxu0 0.0
    %1485 = vmatpush1.msra.mxu0 0.0
    %1486 = vmatprep.subr.mxu0 0.0
    %1487 = vmatpush1.msra.mxu0 0.0
    %1488 = vmatprep.subr.mxu0 0.0
    %1489 = vmatpush1.msra.mxu0 0.0
    %1490 = vmatprep.subr.mxu0 0.0
    %1491 = vmatpush1.msra.mxu0 0.0
    %1492 = vmatprep.subr.mxu0 0.0
    %1493 = vmatpush1.msra.mxu0 0.0
    %1494 = vmatprep.subr.mxu0 0.0
    %1495 = vmatpush1.msra.mxu0 0.0
    %1496 = vmatprep.subr.mxu0 0.0
    %1497 = vmatpush1.msra.mxu0 0.0
    %1498 = vmatprep.subr.mxu0 0.0
    %1499 = vmatpush1.msra.mxu0 0.0
    %1500 = vmatprep.subr.mxu0 0.0
    %1501 = vmatpush1.msra.mxu0 0.0
    %1502 = vmatprep.subr.mxu0 0.0
    %1503 = vmatpush1.msra.mxu0 0.0
    %1504 = vmatprep.subr.mxu0 0.0
    %1505 = vmatpush1.msra.mxu0 0.0
    %1506 = vmatprep.subr.mxu0 0.0
    %1507 = vmatpush1.msra.mxu0 0.0
    %1508 = vmatprep.subr.mxu0 0.0
    %1509 = vmatpush1.msra.mxu0 0.0
    %1510 = vmatprep.subr.mxu0 0.0
    %1511 = vmatpush1.msra.mxu0 0.0
    %1512 = vmatprep.subr.mxu0 0.0
    %1513 = vmatpush1.msra.mxu0 0.0
    %1514 = vmatprep.mubr.f32.mxu0 0.0
    %1515 = vmatmul.mubr.f32.gmra.mrb[0].mxu0 %v1376
    %v1516 = vpop.f32.mrb[0].mxu0
    %v1517 = vadd.f32 0.0, %v1516
    %v1518 = vpop.f32.mrb[0].mxu0
    %v1519 = vadd.f32 0.0, %v1518
    %1520 = vdwg.mxu0
    %v1525 = vcombine.low %v1446, %v1448
    %v1526 = vcombine.low %v1517, %v1519
    %v1528 = vunpack.c.l.s4 1966171168
    %v1529 = vunpack.c.0.s8 %v1528
    %v1530 = vlaneseq
    %v1531 = vshrl.u32 %v1530, 7
    %v1532 = vsub.s32 %v1529, %v1531
    %v1533 = vrot.slane %v1525, %v1532
    %v1535 = vunpack.c.l.s4 1966171168
    %v1536 = vunpack.c.0.s8 %v1535
    %v1537 = vlaneseq
    %v1538 = vshrl.u32 %v1537, 7
    %v1539 = vsub.s32 %v1536, %v1538
    %v1540 = vrot.slane %v1526, %v1539
    %v1541 = vcombine.low %v1533, %v1540
    %v1543 = vunpack.c.l.s4 1966171168
    %v1544 = vunpack.c.0.s8 %v1543
    %v1545 = vlaneseq
    %v1546 = vshrl.u32 %v1545, 7
    %v1547 = vsub.s32 %v1544, %v1546
    %v1548 = vrot.slane %v1541, %v1547
    %v1550 = vadd.f32 %v1378, %v1548
    %v1551 = vxor.u32 %v1550, 2147483648
    %v1552 = vmul.f32 %v1551, 1.442695
    %v1553 = vpow.pop %v1552
    %v1554 = vadd.f32 %v1553, 1.0
    %v1555 = vrcp.pop %v1554
    %v1556 = vmul.f32 1.0, %v1555
    %v1558 = vrot.slane %v1550, 1
    %v1560 = vxor.u32 %v1558, 2147483648
    %v1561 = vmul.f32 %v1560, 1.442695
    %v1562 = vpow.pop %v1561
    %v1563 = vadd.f32 %v1562, 1.0
    %v1564 = vrcp.pop %v1563
    %v1565 = vmul.f32 1.0, %v1564
    %v1566 = vrot.slane %v1550, 2
    %v1568 = vtanh.pop %v1566
    %v1569 = vrot.slane %v1550, 3
    %v1571 = vxor.u32 %v1569, 2147483648
    %v1572 = vmul.f32 %v1571, 1.442695
    %v1573 = vpow.pop %v1572
    %v1574 = vadd.f32 %v1573, 1.0
    %v1575 = vrcp.pop %v1574
    %v1576 = vmul.f32 1.0, %v1575
    %v1577 = vmul.f32 %v1565, %v1374
    %v1578 = vmul.f32 %v1556, %v1568
    %v1579 = vadd.f32 %v1577, %v1578
    %v1580 = vtanh.pop %v1579
    %v1581 = vmul.f32 %v1576, %v1580
    %s1582 = smul.u32 8, 32
    %s1583 = smul.u32 %s1582, 4
    %s1584 = sshll.u32 %s1583, 4
    %1585 = dma.done [#allocation8], %s1584
    %s1586 = smul.u32 1, 4
    %s1587 = sshll.u32 %s1586, 4
    %1588 = dma.done %s76, %s1587
    %v1589 = vld [vmem:[#allocation4] sm:$0xff]
    %v1590 = vld [vmem:[#allocation4 + $0x8] sm:$0xff]
    %v1591 = vld [vmem:[#allocation4 + $0x10] sm:$0xff]
    %v1592 = vld [vmem:[#allocation4 + $0x18] sm:$0xff]
    %v1593 = vld [vmem:[#allocation4 + $0x20] sm:$0xff]
    %v1594 = vld [vmem:[#allocation4 + $0x28] sm:$0xff]
    %v1595 = vld [vmem:[#allocation4 + $0x30] sm:$0xff]
    %v1596 = vld [vmem:[#allocation4 + $0x38] sm:$0xff]
    %v1597 = vld [vmem:[#allocation4 + $0x40] sm:$0xff]
    %v1598 = vld [vmem:[#allocation4 + $0x48] sm:$0xff]
    %v1599 = vld [vmem:[#allocation4 + $0x50] sm:$0xff]
    %v1600 = vld [vmem:[#allocation4 + $0x58] sm:$0xff]
    %v1601 = vld [vmem:[#allocation4 + $0x60] sm:$0xff]
    %v1602 = vld [vmem:[#allocation4 + $0x68] sm:$0xff]
    %v1603 = vld [vmem:[#allocation4 + $0x70] sm:$0xff]
    %v1604 = vld [vmem:[#allocation4 + $0x78] sm:$0xff]
    %v1605 = vld [vmem:[#allocation4 + $0x80] sm:$0xff]
    %v1606 = vld [vmem:[#allocation4 + $0x88] sm:$0xff]
    %v1607 = vld [vmem:[#allocation4 + $0x90] sm:$0xff]
    %v1608 = vld [vmem:[#allocation4 + $0x98] sm:$0xff]
    %v1609 = vld [vmem:[#allocation4 + $0xa0] sm:$0xff]
    %v1610 = vld [vmem:[#allocation4 + $0xa8] sm:$0xff]
    %v1611 = vld [vmem:[#allocation4 + $0xb0] sm:$0xff]
    %v1612 = vld [vmem:[#allocation4 + $0xb8] sm:$0xff]
    %v1613 = vld [vmem:[#allocation4 + $0xc0] sm:$0xff]
    %v1614 = vld [vmem:[#allocation4 + $0xc8] sm:$0xff]
    %v1615 = vld [vmem:[#allocation4 + $0xd0] sm:$0xff]
    %v1616 = vld [vmem:[#allocation4 + $0xd8] sm:$0xff]
    %v1617 = vld [vmem:[#allocation4 + $0xe0] sm:$0xff]
    %v1618 = vld [vmem:[#allocation4 + $0xe8] sm:$0xff]
    %v1619 = vld [vmem:[#allocation4 + $0xf0] sm:$0xff]
    %v1620 = vld [vmem:[#allocation4 + $0xf8] sm:$0xff]
    %v1621 = vld [vmem:[#allocation4 + $0x100] sm:$0xff]
    %v1622 = vld [vmem:[#allocation4 + $0x108] sm:$0xff]
    %v1623 = vld [vmem:[#allocation4 + $0x110] sm:$0xff]
    %v1624 = vld [vmem:[#allocation4 + $0x118] sm:$0xff]
    %v1625 = vld [vmem:[#allocation4 + $0x120] sm:$0xff]
    %v1626 = vld [vmem:[#allocation4 + $0x128] sm:$0xff]
    %v1627 = vld [vmem:[#allocation4 + $0x130] sm:$0xff]
    %v1628 = vld [vmem:[#allocation4 + $0x138] sm:$0xff]
    %v1629 = vld [vmem:[#allocation4 + $0x140] sm:$0xff]
    %v1630 = vld [vmem:[#allocation4 + $0x148] sm:$0xff]
    %v1631 = vld [vmem:[#allocation4 + $0x150] sm:$0xff]
    %v1632 = vld [vmem:[#allocation4 + $0x158] sm:$0xff]
    %v1633 = vld [vmem:[#allocation4 + $0x160] sm:$0xff]
    %v1634 = vld [vmem:[#allocation4 + $0x168] sm:$0xff]
    %v1635 = vld [vmem:[#allocation4 + $0x170] sm:$0xff]
    %v1636 = vld [vmem:[#allocation4 + $0x178] sm:$0xff]
    %v1637 = vld [vmem:[#allocation4 + $0x180] sm:$0xff]
    %v1638 = vld [vmem:[#allocation4 + $0x188] sm:$0xff]
    %v1639 = vld [vmem:[#allocation4 + $0x190] sm:$0xff]
    %v1640 = vld [vmem:[#allocation4 + $0x198] sm:$0xff]
    %v1641 = vld [vmem:[#allocation4 + $0x1a0] sm:$0xff]
    %v1642 = vld [vmem:[#allocation4 + $0x1a8] sm:$0xff]
    %v1643 = vld [vmem:[#allocation4 + $0x1b0] sm:$0xff]
    %v1644 = vld [vmem:[#allocation4 + $0x1b8] sm:$0xff]
    %v1645 = vld [vmem:[#allocation4 + $0x1c0] sm:$0xff]
    %v1646 = vld [vmem:[#allocation4 + $0x1c8] sm:$0xff]
    %v1647 = vld [vmem:[#allocation4 + $0x1d0] sm:$0xff]
    %v1648 = vld [vmem:[#allocation4 + $0x1d8] sm:$0xff]
    %v1649 = vld [vmem:[#allocation4 + $0x1e0] sm:$0xff]
    %v1650 = vld [vmem:[#allocation4 + $0x1e8] sm:$0xff]
    %v1651 = vld [vmem:[#allocation4 + $0x1f0] sm:$0xff]
    %v1652 = vld [vmem:[#allocation4 + $0x1f8] sm:$0xff]
    %v1653 = vld [vmem:[#allocation4 + $0x200] sm:$0xff]
    %v1654 = vld [vmem:[#allocation4 + $0x208] sm:$0xff]
    %v1655 = vld [vmem:[#allocation4 + $0x210] sm:$0xff]
    %v1656 = vld [vmem:[#allocation4 + $0x218] sm:$0xff]
    %v1657 = vld [vmem:[#allocation4 + $0x220] sm:$0xff]
    %v1658 = vld [vmem:[#allocation4 + $0x228] sm:$0xff]
    %v1659 = vld [vmem:[#allocation4 + $0x230] sm:$0xff]
    %v1660 = vld [vmem:[#allocation4 + $0x238] sm:$0xff]
    %v1661 = vld [vmem:[#allocation4 + $0x240] sm:$0xff]
    %v1662 = vld [vmem:[#allocation4 + $0x248] sm:$0xff]
    %v1663 = vld [vmem:[#allocation4 + $0x250] sm:$0xff]
    %v1664 = vld [vmem:[#allocation4 + $0x258] sm:$0xff]
    %v1665 = vld [vmem:[#allocation4 + $0x260] sm:$0xff]
    %v1666 = vld [vmem:[#allocation4 + $0x268] sm:$0xff]
    %v1667 = vld [vmem:[#allocation4 + $0x270] sm:$0xff]
    %v1668 = vld [vmem:[#allocation4 + $0x278] sm:$0xff]
    %v1669 = vld [vmem:[#allocation4 + $0x280] sm:$0xff]
    %v1670 = vld [vmem:[#allocation4 + $0x288] sm:$0xff]
    %v1671 = vld [vmem:[#allocation4 + $0x290] sm:$0xff]
    %v1672 = vld [vmem:[#allocation4 + $0x298] sm:$0xff]
    %v1673 = vld [vmem:[#allocation4 + $0x2a0] sm:$0xff]
    %v1674 = vld [vmem:[#allocation4 + $0x2a8] sm:$0xff]
    %v1675 = vld [vmem:[#allocation4 + $0x2b0] sm:$0xff]
    %v1676 = vld [vmem:[#allocation4 + $0x2b8] sm:$0xff]
    %v1677 = vld [vmem:[#allocation4 + $0x2c0] sm:$0xff]
    %v1678 = vld [vmem:[#allocation4 + $0x2c8] sm:$0xff]
    %v1679 = vld [vmem:[#allocation4 + $0x2d0] sm:$0xff]
    %v1680 = vld [vmem:[#allocation4 + $0x2d8] sm:$0xff]
    %v1681 = vld [vmem:[#allocation4 + $0x2e0] sm:$0xff]
    %v1682 = vld [vmem:[#allocation4 + $0x2e8] sm:$0xff]
    %v1683 = vld [vmem:[#allocation4 + $0x2f0] sm:$0xff]
    %v1684 = vld [vmem:[#allocation4 + $0x2f8] sm:$0xff]
    %v1685 = vld [vmem:[#allocation4 + $0x300] sm:$0xff]
    %v1686 = vld [vmem:[#allocation4 + $0x308] sm:$0xff]
    %v1687 = vld [vmem:[#allocation4 + $0x310] sm:$0xff]
    %v1688 = vld [vmem:[#allocation4 + $0x318] sm:$0xff]
    %v1689 = vld [vmem:[#allocation4 + $0x320] sm:$0xff]
    %v1690 = vld [vmem:[#allocation4 + $0x328] sm:$0xff]
    %v1691 = vld [vmem:[#allocation4 + $0x330] sm:$0xff]
    %v1692 = vld [vmem:[#allocation4 + $0x338] sm:$0xff]
    %v1693 = vld [vmem:[#allocation4 + $0x340] sm:$0xff]
    %v1694 = vld [vmem:[#allocation4 + $0x348] sm:$0xff]
    %v1695 = vld [vmem:[#allocation4 + $0x350] sm:$0xff]
    %v1696 = vld [vmem:[#allocation4 + $0x358] sm:$0xff]
    %v1697 = vld [vmem:[#allocation4 + $0x360] sm:$0xff]
    %v1698 = vld [vmem:[#allocation4 + $0x368] sm:$0xff]
    %v1699 = vld [vmem:[#allocation4 + $0x370] sm:$0xff]
    %v1700 = vld [vmem:[#allocation4 + $0x378] sm:$0xff]
    %v1701 = vld [vmem:[#allocation4 + $0x380] sm:$0xff]
    %v1702 = vld [vmem:[#allocation4 + $0x388] sm:$0xff]
    %v1703 = vld [vmem:[#allocation4 + $0x390] sm:$0xff]
    %v1704 = vld [vmem:[#allocation4 + $0x398] sm:$0xff]
    %v1705 = vld [vmem:[#allocation4 + $0x3a0] sm:$0xff]
    %v1706 = vld [vmem:[#allocation4 + $0x3a8] sm:$0xff]
    %v1707 = vld [vmem:[#allocation4 + $0x3b0] sm:$0xff]
    %v1708 = vld [vmem:[#allocation4 + $0x3b8] sm:$0xff]
    %v1709 = vld [vmem:[#allocation4 + $0x3c0] sm:$0xff]
    %v1710 = vld [vmem:[#allocation4 + $0x3c8] sm:$0xff]
    %v1711 = vld [vmem:[#allocation4 + $0x3d0] sm:$0xff]
    %v1712 = vld [vmem:[#allocation4 + $0x3d8] sm:$0xff]
    %v1713 = vld [vmem:[#allocation4 + $0x3e0] sm:$0xff]
    %v1714 = vld [vmem:[#allocation4 + $0x3e8] sm:$0xff]
    %v1715 = vld [vmem:[#allocation4 + $0x3f0] sm:$0xff]
    %v1716 = vld [vmem:[#allocation4 + $0x3f8] sm:$0xff]
    %v1717 = vld [vmem:[#allocation5] sm:$0xf]
    %v1719 = vlaneseq
    %v1720 = vshrl.u32 %v1719, 7
    %v1721 = vsub.s32 0, %v1720
    %v1722 = vrot.slane %v1717, %v1721
    %v1723 = vlaneseq
    %v1724 = vshrl.u32 %v1723, 7
    %v1725 = vsub.s32 1, %v1724
    %v1726 = vrot.slane %v1717, %v1725
    %v1727 = vlaneseq
    %v1728 = vshrl.u32 %v1727, 7
    %v1729 = vsub.s32 2, %v1728
    %v1730 = vrot.slane %v1717, %v1729
    %v1731 = vlaneseq
    %v1732 = vshrl.u32 %v1731, 7
    %v1733 = vsub.s32 3, %v1732
    %v1734 = vrot.slane %v1717, %v1733
    %1739 = vmatprep.subr.mxu0 %v1590
    %1740 = vmatpush1.msra.mxu0 %v1589
    %1741 = vmatprep.subr.mxu0 %v1594
    %1742 = vmatpush1.msra.mxu0 %v1593
    %1743 = vmatprep.subr.mxu0 %v1598
    %1744 = vmatpush1.msra.mxu0 %v1597
    %1745 = vmatprep.subr.mxu0 %v1602
    %1746 = vmatpush1.msra.mxu0 %v1601
    %1747 = vmatprep.subr.mxu0 %v1606
    %1748 = vmatpush1.msra.mxu0 %v1605
    %1749 = vmatprep.subr.mxu0 %v1610
    %1750 = vmatpush1.msra.mxu0 %v1609
    %1751 = vmatprep.subr.mxu0 %v1614
    %1752 = vmatpush1.msra.mxu0 %v1613
    %1753 = vmatprep.subr.mxu0 %v1618
    %1754 = vmatpush1.msra.mxu0 %v1617
    %1755 = vmatprep.subr.mxu0 %v1622
    %1756 = vmatpush1.msra.mxu0 %v1621
    %1757 = vmatprep.subr.mxu0 %v1626
    %1758 = vmatpush1.msra.mxu0 %v1625
    %1759 = vmatprep.subr.mxu0 %v1630
    %1760 = vmatpush1.msra.mxu0 %v1629
    %1761 = vmatprep.subr.mxu0 %v1634
    %1762 = vmatpush1.msra.mxu0 %v1633
    %1763 = vmatprep.subr.mxu0 %v1638
    %1764 = vmatpush1.msra.mxu0 %v1637
    %1765 = vmatprep.subr.mxu0 %v1642
    %1766 = vmatpush1.msra.mxu0 %v1641
    %1767 = vmatprep.subr.mxu0 %v1646
    %1768 = vmatpush1.msra.mxu0 %v1645
    %1769 = vmatprep.subr.mxu0 %v1650
    %1770 = vmatpush1.msra.mxu0 %v1649
    %1771 = vmatprep.subr.mxu0 %v1654
    %1772 = vmatpush1.msra.mxu0 %v1653
    %1773 = vmatprep.subr.mxu0 %v1658
    %1774 = vmatpush1.msra.mxu0 %v1657
    %1775 = vmatprep.subr.mxu0 %v1662
    %1776 = vmatpush1.msra.mxu0 %v1661
    %1777 = vmatprep.subr.mxu0 %v1666
    %1778 = vmatpush1.msra.mxu0 %v1665
    %1779 = vmatprep.subr.mxu0 %v1670
    %1780 = vmatpush1.msra.mxu0 %v1669
    %1781 = vmatprep.subr.mxu0 %v1674
    %1782 = vmatpush1.msra.mxu0 %v1673
    %1783 = vmatprep.subr.mxu0 %v1678
    %1784 = vmatpush1.msra.mxu0 %v1677
    %1785 = vmatprep.subr.mxu0 %v1682
    %1786 = vmatpush1.msra.mxu0 %v1681
    %1787 = vmatprep.subr.mxu0 %v1686
    %1788 = vmatpush1.msra.mxu0 %v1685
    %1789 = vmatprep.subr.mxu0 %v1690
    %1790 = vmatpush1.msra.mxu0 %v1689
    %1791 = vmatprep.subr.mxu0 %v1694
    %1792 = vmatpush1.msra.mxu0 %v1693
    %1793 = vmatprep.subr.mxu0 %v1698
    %1794 = vmatpush1.msra.mxu0 %v1697
    %1795 = vmatprep.subr.mxu0 %v1702
    %1796 = vmatpush1.msra.mxu0 %v1701
    %1797 = vmatprep.subr.mxu0 %v1706
    %1798 = vmatpush1.msra.mxu0 %v1705
    %1799 = vmatprep.subr.mxu0 %v1710
    %1800 = vmatpush1.msra.mxu0 %v1709
    %1801 = vmatprep.subr.mxu0 %v1714
    %1802 = vmatpush1.msra.mxu0 %v1713
    %1803 = vmatprep.mubr.f32.mxu0 0.0
    %1804 = vmatmul.mubr.f32.gmra.mrb[0].mxu0 %v1376
    %v1805 = vpop.f32.mrb[0].mxu0
    %v1806 = vadd.f32 %v1722, %v1805
    %v1807 = vpop.f32.mrb[0].mxu0
    %v1808 = vadd.f32 %v1726, %v1807
    %1809 = vdwg.mxu0
    %1810 = vmatprep.subr.mxu0 %v1592
    %1811 = vmatpush1.msra.mxu0 %v1591
    %1812 = vmatprep.subr.mxu0 %v1596
    %1813 = vmatpush1.msra.mxu0 %v1595
    %1814 = vmatprep.subr.mxu0 %v1600
    %1815 = vmatpush1.msra.mxu0 %v1599
    %1816 = vmatprep.subr.mxu0 %v1604
    %1817 = vmatpush1.msra.mxu0 %v1603
    %1818 = vmatprep.subr.mxu0 %v1608
    %1819 = vmatpush1.msra.mxu0 %v1607
    %1820 = vmatprep.subr.mxu0 %v1612
    %1821 = vmatpush1.msra.mxu0 %v1611
    %1822 = vmatprep.subr.mxu0 %v1616
    %1823 = vmatpush1.msra.mxu0 %v1615
    %1824 = vmatprep.subr.mxu0 %v1620
    %1825 = vmatpush1.msra.mxu0 %v1619
    %1826 = vmatprep.subr.mxu0 %v1624
    %1827 = vmatpush1.msra.mxu0 %v1623
    %1828 = vmatprep.subr.mxu0 %v1628
    %1829 = vmatpush1.msra.mxu0 %v1627
    %1830 = vmatprep.subr.mxu0 %v1632
    %1831 = vmatpush1.msra.mxu0 %v1631
    %1832 = vmatprep.subr.mxu0 %v1636
    %1833 = vmatpush1.msra.mxu0 %v1635
    %1834 = vmatprep.subr.mxu0 %v1640
    %1835 = vmatpush1.msra.mxu0 %v1639
    %1836 = vmatprep.subr.mxu0 %v1644
    %1837 = vmatpush1.msra.mxu0 %v1643
    %1838 = vmatprep.subr.mxu0 %v1648
    %1839 = vmatpush1.msra.mxu0 %v1647
    %1840 = vmatprep.subr.mxu0 %v1652
    %1841 = vmatpush1.msra.mxu0 %v1651
    %1842 = vmatprep.subr.mxu0 %v1656
    %1843 = vmatpush1.msra.mxu0 %v1655
    %1844 = vmatprep.subr.mxu0 %v1660
    %1845 = vmatpush1.msra.mxu0 %v1659
    %1846 = vmatprep.subr.mxu0 %v1664
    %1847 = vmatpush1.msra.mxu0 %v1663
    %1848 = vmatprep.subr.mxu0 %v1668
    %1849 = vmatpush1.msra.mxu0 %v1667
    %1850 = vmatprep.subr.mxu0 %v1672
    %1851 = vmatpush1.msra.mxu0 %v1671
    %1852 = vmatprep.subr.mxu0 %v1676
    %1853 = vmatpush1.msra.mxu0 %v1675
    %1854 = vmatprep.subr.mxu0 %v1680
    %1855 = vmatpush1.msra.mxu0 %v1679
    %1856 = vmatprep.subr.mxu0 %v1684
    %1857 = vmatpush1.msra.mxu0 %v1683
    %1858 = vmatprep.subr.mxu0 %v1688
    %1859 = vmatpush1.msra.mxu0 %v1687
    %1860 = vmatprep.subr.mxu0 %v1692
    %1861 = vmatpush1.msra.mxu0 %v1691
    %1862 = vmatprep.subr.mxu0 %v1696
    %1863 = vmatpush1.msra.mxu0 %v1695
    %1864 = vmatprep.subr.mxu0 %v1700
    %1865 = vmatpush1.msra.mxu0 %v1699
    %1866 = vmatprep.subr.mxu0 %v1704
    %1867 = vmatpush1.msra.mxu0 %v1703
    %1868 = vmatprep.subr.mxu0 %v1708
    %1869 = vmatpush1.msra.mxu0 %v1707
    %1870 = vmatprep.subr.mxu0 %v1712
    %1871 = vmatpush1.msra.mxu0 %v1711
    %1872 = vmatprep.subr.mxu0 %v1716
    %1873 = vmatpush1.msra.mxu0 %v1715
    %1874 = vmatprep.mubr.f32.mxu0 0.0
    %1875 = vmatmul.mubr.f32.gmra.mrb[0].mxu0 %v1376
    %v1876 = vpop.f32.mrb[0].mxu0
    %v1877 = vadd.f32 %v1730, %v1876
    %v1878 = vpop.f32.mrb[0].mxu0
    %v1879 = vadd.f32 %v1734, %v1878
    %1880 = vdwg.mxu0
    %v1881 = vxor.u32 %v1806, 2147483648
    %v1882 = vmul.f32 %v1881, 1.442695
    %v1883 = vpow.pop %v1882
    %v1884 = vadd.f32 %v1883, 1.0
    %v1885 = vrcp.pop %v1884
    %v1886 = vmul.f32 1.0, %v1885
    %v1887 = vxor.u32 %v1808, 2147483648
    %v1888 = vmul.f32 %v1887, 1.442695
    %v1889 = vpow.pop %v1888
    %v1890 = vadd.f32 %v1889, 1.0
    %v1891 = vrcp.pop %v1890
    %v1892 = vmul.f32 1.0, %v1891
    %v1893 = vtanh.pop %v1877
    %v1894 = vxor.u32 %v1879, 2147483648
    %v1895 = vmul.f32 %v1894, 1.442695
    %v1896 = vpow.pop %v1895
    %v1897 = vadd.f32 %v1896, 1.0
    %v1898 = vrcp.pop %v1897
    %v1899 = vmul.f32 1.0, %v1898
    %v1900 = vmul.f32 %v1892, 0.0
    %v1901 = vmul.f32 %v1886, %v1893
    %v1902 = vadd.f32 %v1900, %v1901
    %v1903 = vtanh.pop %v1902
    %v1904 = vmul.f32 %v1899, %v1903
    %1905 = vst [vmem:[#allocation3] sm:$0x1] %v1904
    %s1906 = scalar_lea.vmem [#allocation2], 2
    %v1907 = vld [vmem:[%s1906] ss:$8 sm:$0xf]
    %v1908 = vld [vmem:[#allocation12] sm:$0xff]
    %v1909 = vld [vmem:[#allocation12 + $0x8] sm:$0xff]
    %v1910 = vld [vmem:[#allocation12 + $0x10] sm:$0xff]
    %v1911 = vld [vmem:[#allocation12 + $0x18] sm:$0xff]
    %v1912 = vld [vmem:[#allocation12 + $0x20] sm:$0xff]
    %v1913 = vld [vmem:[#allocation12 + $0x28] sm:$0xff]
    %v1914 = vld [vmem:[#allocation12 + $0x30] sm:$0xff]
    %v1915 = vld [vmem:[#allocation12 + $0x38] sm:$0xff]
    %v1916 = vld [vmem:[#allocation12 + $0x40] sm:$0xff]
    %v1917 = vld [vmem:[#allocation12 + $0x48] sm:$0xff]
    %v1918 = vld [vmem:[#allocation12 + $0x50] sm:$0xff]
    %v1919 = vld [vmem:[#allocation12 + $0x58] sm:$0xff]
    %v1920 = vld [vmem:[#allocation12 + $0x60] sm:$0xff]
    %v1921 = vld [vmem:[#allocation12 + $0x68] sm:$0xff]
    %v1922 = vld [vmem:[#allocation12 + $0x70] sm:$0xff]
    %v1923 = vld [vmem:[#allocation12 + $0x78] sm:$0xff]
    %v1924 = vld [vmem:[#allocation12 + $0x80] sm:$0xff]
    %v1925 = vld [vmem:[#allocation12 + $0x88] sm:$0xff]
    %v1926 = vld [vmem:[#allocation12 + $0x90] sm:$0xff]
    %v1927 = vld [vmem:[#allocation12 + $0x98] sm:$0xff]
    %v1928 = vld [vmem:[#allocation12 + $0xa0] sm:$0xff]
    %v1929 = vld [vmem:[#allocation12 + $0xa8] sm:$0xff]
    %v1930 = vld [vmem:[#allocation12 + $0xb0] sm:$0xff]
    %v1931 = vld [vmem:[#allocation12 + $0xb8] sm:$0xff]
    %v1932 = vld [vmem:[#allocation12 + $0xc0] sm:$0xff]
    %v1933 = vld [vmem:[#allocation12 + $0xc8] sm:$0xff]
    %v1934 = vld [vmem:[#allocation12 + $0xd0] sm:$0xff]
    %v1935 = vld [vmem:[#allocation12 + $0xd8] sm:$0xff]
    %v1936 = vld [vmem:[#allocation12 + $0xe0] sm:$0xff]
    %v1937 = vld [vmem:[#allocation12 + $0xe8] sm:$0xff]
    %v1938 = vld [vmem:[#allocation12 + $0xf0] sm:$0xff]
    %v1939 = vld [vmem:[#allocation12 + $0xf8] sm:$0xff]
    %v1940 = vld [vmem:[#allocation12 + $0x100] sm:$0xff]
    %v1941 = vld [vmem:[#allocation12 + $0x108] sm:$0xff]
    %v1942 = vld [vmem:[#allocation12 + $0x110] sm:$0xff]
    %v1943 = vld [vmem:[#allocation12 + $0x118] sm:$0xff]
    %v1944 = vld [vmem:[#allocation12 + $0x120] sm:$0xff]
    %v1945 = vld [vmem:[#allocation12 + $0x128] sm:$0xff]
    %v1946 = vld [vmem:[#allocation12 + $0x130] sm:$0xff]
    %v1947 = vld [vmem:[#allocation12 + $0x138] sm:$0xff]
    %v1948 = vld [vmem:[#allocation12 + $0x140] sm:$0xff]
    %v1949 = vld [vmem:[#allocation12 + $0x148] sm:$0xff]
    %v1950 = vld [vmem:[#allocation12 + $0x150] sm:$0xff]
    %v1951 = vld [vmem:[#allocation12 + $0x158] sm:$0xff]
    %v1952 = vld [vmem:[#allocation12 + $0x160] sm:$0xff]
    %v1953 = vld [vmem:[#allocation12 + $0x168] sm:$0xff]
    %v1954 = vld [vmem:[#allocation12 + $0x170] sm:$0xff]
    %v1955 = vld [vmem:[#allocation12 + $0x178] sm:$0xff]
    %v1956 = vld [vmem:[#allocation12 + $0x180] sm:$0xff]
    %v1957 = vld [vmem:[#allocation12 + $0x188] sm:$0xff]
    %v1958 = vld [vmem:[#allocation12 + $0x190] sm:$0xff]
    %v1959 = vld [vmem:[#allocation12 + $0x198] sm:$0xff]
    %v1960 = vld [vmem:[#allocation12 + $0x1a0] sm:$0xff]
    %v1961 = vld [vmem:[#allocation12 + $0x1a8] sm:$0xff]
    %v1962 = vld [vmem:[#allocation12 + $0x1b0] sm:$0xff]
    %v1963 = vld [vmem:[#allocation12 + $0x1b8] sm:$0xff]
    %v1964 = vld [vmem:[#allocation12 + $0x1c0] sm:$0xff]
    %v1965 = vld [vmem:[#allocation12 + $0x1c8] sm:$0xff]
    %v1966 = vld [vmem:[#allocation12 + $0x1d0] sm:$0xff]
    %v1967 = vld [vmem:[#allocation12 + $0x1d8] sm:$0xff]
    %v1968 = vld [vmem:[#allocation12 + $0x1e0] sm:$0xff]
    %v1969 = vld [vmem:[#allocation12 + $0x1e8] sm:$0xff]
    %v1970 = vld [vmem:[#allocation12 + $0x1f0] sm:$0xff]
    %v1971 = vld [vmem:[#allocation12 + $0x1f8] sm:$0xff]
    %1972 = vmatprep.subr.mxu0 %v1909
    %1973 = vmatpush1.msra.mxu0 %v1908
    %1974 = vmatprep.subr.mxu0 %v1913
    %1975 = vmatpush1.msra.mxu0 %v1912
    %1976 = vmatprep.subr.mxu0 %v1917
    %1977 = vmatpush1.msra.mxu0 %v1916
    %1978 = vmatprep.subr.mxu0 %v1921
    %1979 = vmatpush1.msra.mxu0 %v1920
    %1980 = vmatprep.subr.mxu0 %v1925
    %1981 = vmatpush1.msra.mxu0 %v1924
    %1982 = vmatprep.subr.mxu0 %v1929
    %1983 = vmatpush1.msra.mxu0 %v1928
    %1984 = vmatprep.subr.mxu0 %v1933
    %1985 = vmatpush1.msra.mxu0 %v1932
    %1986 = vmatprep.subr.mxu0 %v1937
    %1987 = vmatpush1.msra.mxu0 %v1936
    %1988 = vmatprep.subr.mxu0 %v1941
    %1989 = vmatpush1.msra.mxu0 %v1940
    %1990 = vmatprep.subr.mxu0 %v1945
    %1991 = vmatpush1.msra.mxu0 %v1944
    %1992 = vmatprep.subr.mxu0 %v1949
    %1993 = vmatpush1.msra.mxu0 %v1948
    %1994 = vmatprep.subr.mxu0 %v1953
    %1995 = vmatpush1.msra.mxu0 %v1952
    %1996 = vmatprep.subr.mxu0 %v1957
    %1997 = vmatpush1.msra.mxu0 %v1956
    %1998 = vmatprep.subr.mxu0 %v1961
    %1999 = vmatpush1.msra.mxu0 %v1960
    %2000 = vmatprep.subr.mxu0 %v1965
    %2001 = vmatpush1.msra.mxu0 %v1964
    %2002 = vmatprep.subr.mxu0 %v1969
    %2003 = vmatpush1.msra.mxu0 %v1968
    %2004 = vmatprep.subr.mxu0 0.0
    %2005 = vmatpush1.msra.mxu0 0.0
    %2006 = vmatprep.subr.mxu0 0.0
    %2007 = vmatpush1.msra.mxu0 0.0
    %2008 = vmatprep.subr.mxu0 0.0
    %2009 = vmatpush1.msra.mxu0 0.0
    %2010 = vmatprep.subr.mxu0 0.0
    %2011 = vmatpush1.msra.mxu0 0.0
    %2012 = vmatprep.subr.mxu0 0.0
    %2013 = vmatpush1.msra.mxu0 0.0
    %2014 = vmatprep.subr.mxu0 0.0
    %2015 = vmatpush1.msra.mxu0 0.0
    %2016 = vmatprep.subr.mxu0 0.0
    %2017 = vmatpush1.msra.mxu0 0.0
    %2018 = vmatprep.subr.mxu0 0.0
    %2019 = vmatpush1.msra.mxu0 0.0
    %2020 = vmatprep.subr.mxu0 0.0
    %2021 = vmatpush1.msra.mxu0 0.0
    %2022 = vmatprep.subr.mxu0 0.0
    %2023 = vmatpush1.msra.mxu0 0.0
    %2024 = vmatprep.subr.mxu0 0.0
    %2025 = vmatpush1.msra.mxu0 0.0
    %2026 = vmatprep.subr.mxu0 0.0
    %2027 = vmatpush1.msra.mxu0 0.0
    %2028 = vmatprep.subr.mxu0 0.0
    %2029 = vmatpush1.msra.mxu0 0.0
    %2030 = vmatprep.subr.mxu0 0.0
    %2031 = vmatpush1.msra.mxu0 0.0
    %2032 = vmatprep.subr.mxu0 0.0
    %2033 = vmatpush1.msra.mxu0 0.0
    %2034 = vmatprep.subr.mxu0 0.0
    %2035 = vmatpush1.msra.mxu0 0.0
    %2036 = vmatprep.mubr.f32.mxu0 0.0
    %2037 = vmatmul.mubr.f32.gmra.mrb[0].mxu0 %v1581
    %v2038 = vpop.f32.mrb[0].mxu0
    %v2039 = vadd.f32 0.0, %v2038
    %v2040 = vpop.f32.mrb[0].mxu0
    %v2041 = vadd.f32 0.0, %v2040
    %2042 = vdwg.mxu0
    %2043 = vmatprep.subr.mxu0 %v1911
    %2044 = vmatpush1.msra.mxu0 %v1910
    %2045 = vmatprep.subr.mxu0 %v1915
    %2046 = vmatpush1.msra.mxu0 %v1914
    %2047 = vmatprep.subr.mxu0 %v1919
    %2048 = vmatpush1.msra.mxu0 %v1918
    %2049 = vmatprep.subr.mxu0 %v1923
    %2050 = vmatpush1.msra.mxu0 %v1922
    %2051 = vmatprep.subr.mxu0 %v1927
    %2052 = vmatpush1.msra.mxu0 %v1926
    %2053 = vmatprep.subr.mxu0 %v1931
    %2054 = vmatpush1.msra.mxu0 %v1930
    %2055 = vmatprep.subr.mxu0 %v1935
    %2056 = vmatpush1.msra.mxu0 %v1934
    %2057 = vmatprep.subr.mxu0 %v1939
    %2058 = vmatpush1.msra.mxu0 %v1938
    %2059 = vmatprep.subr.mxu0 %v1943
    %2060 = vmatpush1.msra.mxu0 %v1942
    %2061 = vmatprep.subr.mxu0 %v1947
    %2062 = vmatpush1.msra.mxu0 %v1946
    %2063 = vmatprep.subr.mxu0 %v1951
    %2064 = vmatpush1.msra.mxu0 %v1950
    %2065 = vmatprep.subr.mxu0 %v1955
    %2066 = vmatpush1.msra.mxu0 %v1954
    %2067 = vmatprep.subr.mxu0 %v1959
    %2068 = vmatpush1.msra.mxu0 %v1958
    %2069 = vmatprep.subr.mxu0 %v1963
    %2070 = vmatpush1.msra.mxu0 %v1962
    %2071 = vmatprep.subr.mxu0 %v1967
    %2072 = vmatpush1.msra.mxu0 %v1966
    %2073 = vmatprep.subr.mxu0 %v1971
    %2074 = vmatpush1.msra.mxu0 %v1970
    %2075 = vmatprep.subr.mxu0 0.0
    %2076 = vmatpush1.msra.mxu0 0.0
    %2077 = vmatprep.subr.mxu0 0.0
    %2078 = vmatpush1.msra.mxu0 0.0
    %2079 = vmatprep.subr.mxu0 0.0
    %2080 = vmatpush1.msra.mxu0 0.0
    %2081 = vmatprep.subr.mxu0 0.0
    %2082 = vmatpush1.msra.mxu0 0.0
    %2083 = vmatprep.subr.mxu0 0.0
    %2084 = vmatpush1.msra.mxu0 0.0
    %2085 = vmatprep.subr.mxu0 0.0
    %2086 = vmatpush1.msra.mxu0 0.0
    %2087 = vmatprep.subr.mxu0 0.0
    %2088 = vmatpush1.msra.mxu0 0.0
    %2089 = vmatprep.subr.mxu0 0.0
    %2090 = vmatpush1.msra.mxu0 0.0
    %2091 = vmatprep.subr.mxu0 0.0
    %2092 = vmatpush1.msra.mxu0 0.0
    %2093 = vmatprep.subr.mxu0 0.0
    %2094 = vmatpush1.msra.mxu0 0.0
    %2095 = vmatprep.subr.mxu0 0.0
    %2096 = vmatpush1.msra.mxu0 0.0
    %2097 = vmatprep.subr.mxu0 0.0
    %2098 = vmatpush1.msra.mxu0 0.0
    %2099 = vmatprep.subr.mxu0 0.0
    %2100 = vmatpush1.msra.mxu0 0.0
    %2101 = vmatprep.subr.mxu0 0.0
    %2102 = vmatpush1.msra.mxu0 0.0
    %2103 = vmatprep.subr.mxu0 0.0
    %2104 = vmatpush1.msra.mxu0 0.0
    %2105 = vmatprep.subr.mxu0 0.0
    %2106 = vmatpush1.msra.mxu0 0.0
    %2107 = vmatprep.mubr.f32.mxu0 0.0
    %2108 = vmatmul.mubr.f32.gmra.mrb[0].mxu0 %v1581
    %v2109 = vpop.f32.mrb[0].mxu0
    %v2110 = vadd.f32 0.0, %v2109
    %v2111 = vpop.f32.mrb[0].mxu0
    %v2112 = vadd.f32 0.0, %v2111
    %2113 = vdwg.mxu0
    %v2118 = vcombine.low %v2039, %v2041
    %v2119 = vcombine.low %v2110, %v2112
    %v2121 = vunpack.c.l.s4 1966171168
    %v2122 = vunpack.c.0.s8 %v2121
    %v2123 = vlaneseq
    %v2124 = vshrl.u32 %v2123, 7
    %v2125 = vsub.s32 %v2122, %v2124
    %v2126 = vrot.slane %v2118, %v2125
    %v2128 = vunpack.c.l.s4 1966171168
    %v2129 = vunpack.c.0.s8 %v2128
    %v2130 = vlaneseq
    %v2131 = vshrl.u32 %v2130, 7
    %v2132 = vsub.s32 %v2129, %v2131
    %v2133 = vrot.slane %v2119, %v2132
    %v2134 = vcombine.low %v2126, %v2133
    %v2136 = vunpack.c.l.s4 1966171168
    %v2137 = vunpack.c.0.s8 %v2136
    %v2138 = vlaneseq
    %v2139 = vshrl.u32 %v2138, 7
    %v2140 = vsub.s32 %v2137, %v2139
    %v2141 = vrot.slane %v2134, %v2140
    %v2143 = vadd.f32 %v1907, %v2141
    %v2144 = vxor.u32 %v2143, 2147483648
    %v2145 = vmul.f32 %v2144, 1.442695
    %v2146 = vpow.pop %v2145
    %v2147 = vadd.f32 %v2146, 1.0
    %v2148 = vrcp.pop %v2147
    %v2149 = vmul.f32 1.0, %v2148
    %v2151 = vrot.slane %v2143, 1
    %v2153 = vxor.u32 %v2151, 2147483648
    %v2154 = vmul.f32 %v2153, 1.442695
    %v2155 = vpow.pop %v2154
    %v2156 = vadd.f32 %v2155, 1.0
    %v2157 = vrcp.pop %v2156
    %v2158 = vmul.f32 1.0, %v2157
    %v2159 = vrot.slane %v2143, 2
    %v2161 = vtanh.pop %v2159
    %v2162 = vrot.slane %v2143, 3
    %v2164 = vxor.u32 %v2162, 2147483648
    %v2165 = vmul.f32 %v2164, 1.442695
    %v2166 = vpow.pop %v2165
    %v2167 = vadd.f32 %v2166, 1.0
    %v2168 = vrcp.pop %v2167
    %v2169 = vmul.f32 1.0, %v2168
    %v2170 = vmul.f32 %v2158, %v1579
    %v2171 = vmul.f32 %v2149, %v2161
    %v2172 = vadd.f32 %v2170, %v2171
    %v2173 = vtanh.pop %v2172
    %v2174 = vmul.f32 %v2169, %v2173
    %v2175 = vld [vmem:[#allocation4] sm:$0xff]
    %v2176 = vld [vmem:[#allocation4 + $0x8] sm:$0xff]
    %v2177 = vld [vmem:[#allocation4 + $0x10] sm:$0xff]
    %v2178 = vld [vmem:[#allocation4 + $0x18] sm:$0xff]
    %v2179 = vld [vmem:[#allocation4 + $0x20] sm:$0xff]
    %v2180 = vld [vmem:[#allocation4 + $0x28] sm:$0xff]
    %v2181 = vld [vmem:[#allocation4 + $0x30] sm:$0xff]
    %v2182 = vld [vmem:[#allocation4 + $0x38] sm:$0xff]
    %v2183 = vld [vmem:[#allocation4 + $0x40] sm:$0xff]
    %v2184 = vld [vmem:[#allocation4 + $0x48] sm:$0xff]
    %v2185 = vld [vmem:[#allocation4 + $0x50] sm:$0xff]
    %v2186 = vld [vmem:[#allocation4 + $0x58] sm:$0xff]
    %v2187 = vld [vmem:[#allocation4 + $0x60] sm:$0xff]
    %v2188 = vld [vmem:[#allocation4 + $0x68] sm:$0xff]
    %v2189 = vld [vmem:[#allocation4 + $0x70] sm:$0xff]
    %v2190 = vld [vmem:[#allocation4 + $0x78] sm:$0xff]
    %v2191 = vld [vmem:[#allocation4 + $0x80] sm:$0xff]
    %v2192 = vld [vmem:[#allocation4 + $0x88] sm:$0xff]
    %v2193 = vld [vmem:[#allocation4 + $0x90] sm:$0xff]
    %v2194 = vld [vmem:[#allocation4 + $0x98] sm:$0xff]
    %v2195 = vld [vmem:[#allocation4 + $0xa0] sm:$0xff]
    %v2196 = vld [vmem:[#allocation4 + $0xa8] sm:$0xff]
    %v2197 = vld [vmem:[#allocation4 + $0xb0] sm:$0xff]
    %v2198 = vld [vmem:[#allocation4 + $0xb8] sm:$0xff]
    %v2199 = vld [vmem:[#allocation4 + $0xc0] sm:$0xff]
    %v2200 = vld [vmem:[#allocation4 + $0xc8] sm:$0xff]
    %v2201 = vld [vmem:[#allocation4 + $0xd0] sm:$0xff]
    %v2202 = vld [vmem:[#allocation4 + $0xd8] sm:$0xff]
    %v2203 = vld [vmem:[#allocation4 + $0xe0] sm:$0xff]
    %v2204 = vld [vmem:[#allocation4 + $0xe8] sm:$0xff]
    %v2205 = vld [vmem:[#allocation4 + $0xf0] sm:$0xff]
    %v2206 = vld [vmem:[#allocation4 + $0xf8] sm:$0xff]
    %v2207 = vld [vmem:[#allocation4 + $0x100] sm:$0xff]
    %v2208 = vld [vmem:[#allocation4 + $0x108] sm:$0xff]
    %v2209 = vld [vmem:[#allocation4 + $0x110] sm:$0xff]
    %v2210 = vld [vmem:[#allocation4 + $0x118] sm:$0xff]
    %v2211 = vld [vmem:[#allocation4 + $0x120] sm:$0xff]
    %v2212 = vld [vmem:[#allocation4 + $0x128] sm:$0xff]
    %v2213 = vld [vmem:[#allocation4 + $0x130] sm:$0xff]
    %v2214 = vld [vmem:[#allocation4 + $0x138] sm:$0xff]
    %v2215 = vld [vmem:[#allocation4 + $0x140] sm:$0xff]
    %v2216 = vld [vmem:[#allocation4 + $0x148] sm:$0xff]
    %v2217 = vld [vmem:[#allocation4 + $0x150] sm:$0xff]
    %v2218 = vld [vmem:[#allocation4 + $0x158] sm:$0xff]
    %v2219 = vld [vmem:[#allocation4 + $0x160] sm:$0xff]
    %v2220 = vld [vmem:[#allocation4 + $0x168] sm:$0xff]
    %v2221 = vld [vmem:[#allocation4 + $0x170] sm:$0xff]
    %v2222 = vld [vmem:[#allocation4 + $0x178] sm:$0xff]
    %v2223 = vld [vmem:[#allocation4 + $0x180] sm:$0xff]
    %v2224 = vld [vmem:[#allocation4 + $0x188] sm:$0xff]
    %v2225 = vld [vmem:[#allocation4 + $0x190] sm:$0xff]
    %v2226 = vld [vmem:[#allocation4 + $0x198] sm:$0xff]
    %v2227 = vld [vmem:[#allocation4 + $0x1a0] sm:$0xff]
    %v2228 = vld [vmem:[#allocation4 + $0x1a8] sm:$0xff]
    %v2229 = vld [vmem:[#allocation4 + $0x1b0] sm:$0xff]
    %v2230 = vld [vmem:[#allocation4 + $0x1b8] sm:$0xff]
    %v2231 = vld [vmem:[#allocation4 + $0x1c0] sm:$0xff]
    %v2232 = vld [vmem:[#allocation4 + $0x1c8] sm:$0xff]
    %v2233 = vld [vmem:[#allocation4 + $0x1d0] sm:$0xff]
    %v2234 = vld [vmem:[#allocation4 + $0x1d8] sm:$0xff]
    %v2235 = vld [vmem:[#allocation4 + $0x1e0] sm:$0xff]
    %v2236 = vld [vmem:[#allocation4 + $0x1e8] sm:$0xff]
    %v2237 = vld [vmem:[#allocation4 + $0x1f0] sm:$0xff]
    %v2238 = vld [vmem:[#allocation4 + $0x1f8] sm:$0xff]
    %v2239 = vld [vmem:[#allocation4 + $0x200] sm:$0xff]
    %v2240 = vld [vmem:[#allocation4 + $0x208] sm:$0xff]
    %v2241 = vld [vmem:[#allocation4 + $0x210] sm:$0xff]
    %v2242 = vld [vmem:[#allocation4 + $0x218] sm:$0xff]
    %v2243 = vld [vmem:[#allocation4 + $0x220] sm:$0xff]
    %v2244 = vld [vmem:[#allocation4 + $0x228] sm:$0xff]
    %v2245 = vld [vmem:[#allocation4 + $0x230] sm:$0xff]
    %v2246 = vld [vmem:[#allocation4 + $0x238] sm:$0xff]
    %v2247 = vld [vmem:[#allocation4 + $0x240] sm:$0xff]
    %v2248 = vld [vmem:[#allocation4 + $0x248] sm:$0xff]
    %v2249 = vld [vmem:[#allocation4 + $0x250] sm:$0xff]
    %v2250 = vld [vmem:[#allocation4 + $0x258] sm:$0xff]
    %v2251 = vld [vmem:[#allocation4 + $0x260] sm:$0xff]
    %v2252 = vld [vmem:[#allocation4 + $0x268] sm:$0xff]
    %v2253 = vld [vmem:[#allocation4 + $0x270] sm:$0xff]
    %v2254 = vld [vmem:[#allocation4 + $0x278] sm:$0xff]
    %v2255 = vld [vmem:[#allocation4 + $0x280] sm:$0xff]
    %v2256 = vld [vmem:[#allocation4 + $0x288] sm:$0xff]
    %v2257 = vld [vmem:[#allocation4 + $0x290] sm:$0xff]
    %v2258 = vld [vmem:[#allocation4 + $0x298] sm:$0xff]
    %v2259 = vld [vmem:[#allocation4 + $0x2a0] sm:$0xff]
    %v2260 = vld [vmem:[#allocation4 + $0x2a8] sm:$0xff]
    %v2261 = vld [vmem:[#allocation4 + $0x2b0] sm:$0xff]
    %v2262 = vld [vmem:[#allocation4 + $0x2b8] sm:$0xff]
    %v2263 = vld [vmem:[#allocation4 + $0x2c0] sm:$0xff]
    %v2264 = vld [vmem:[#allocation4 + $0x2c8] sm:$0xff]
    %v2265 = vld [vmem:[#allocation4 + $0x2d0] sm:$0xff]
    %v2266 = vld [vmem:[#allocation4 + $0x2d8] sm:$0xff]
    %v2267 = vld [vmem:[#allocation4 + $0x2e0] sm:$0xff]
    %v2268 = vld [vmem:[#allocation4 + $0x2e8] sm:$0xff]
    %v2269 = vld [vmem:[#allocation4 + $0x2f0] sm:$0xff]
    %v2270 = vld [vmem:[#allocation4 + $0x2f8] sm:$0xff]
    %v2271 = vld [vmem:[#allocation4 + $0x300] sm:$0xff]
    %v2272 = vld [vmem:[#allocation4 + $0x308] sm:$0xff]
    %v2273 = vld [vmem:[#allocation4 + $0x310] sm:$0xff]
    %v2274 = vld [vmem:[#allocation4 + $0x318] sm:$0xff]
    %v2275 = vld [vmem:[#allocation4 + $0x320] sm:$0xff]
    %v2276 = vld [vmem:[#allocation4 + $0x328] sm:$0xff]
    %v2277 = vld [vmem:[#allocation4 + $0x330] sm:$0xff]
    %v2278 = vld [vmem:[#allocation4 + $0x338] sm:$0xff]
    %v2279 = vld [vmem:[#allocation4 + $0x340] sm:$0xff]
    %v2280 = vld [vmem:[#allocation4 + $0x348] sm:$0xff]
    %v2281 = vld [vmem:[#allocation4 + $0x350] sm:$0xff]
    %v2282 = vld [vmem:[#allocation4 + $0x358] sm:$0xff]
    %v2283 = vld [vmem:[#allocation4 + $0x360] sm:$0xff]
    %v2284 = vld [vmem:[#allocation4 + $0x368] sm:$0xff]
    %v2285 = vld [vmem:[#allocation4 + $0x370] sm:$0xff]
    %v2286 = vld [vmem:[#allocation4 + $0x378] sm:$0xff]
    %v2287 = vld [vmem:[#allocation4 + $0x380] sm:$0xff]
    %v2288 = vld [vmem:[#allocation4 + $0x388] sm:$0xff]
    %v2289 = vld [vmem:[#allocation4 + $0x390] sm:$0xff]
    %v2290 = vld [vmem:[#allocation4 + $0x398] sm:$0xff]
    %v2291 = vld [vmem:[#allocation4 + $0x3a0] sm:$0xff]
    %v2292 = vld [vmem:[#allocation4 + $0x3a8] sm:$0xff]
    %v2293 = vld [vmem:[#allocation4 + $0x3b0] sm:$0xff]
    %v2294 = vld [vmem:[#allocation4 + $0x3b8] sm:$0xff]
    %v2295 = vld [vmem:[#allocation4 + $0x3c0] sm:$0xff]
    %v2296 = vld [vmem:[#allocation4 + $0x3c8] sm:$0xff]
    %v2297 = vld [vmem:[#allocation4 + $0x3d0] sm:$0xff]
    %v2298 = vld [vmem:[#allocation4 + $0x3d8] sm:$0xff]
    %v2299 = vld [vmem:[#allocation4 + $0x3e0] sm:$0xff]
    %v2300 = vld [vmem:[#allocation4 + $0x3e8] sm:$0xff]
    %v2301 = vld [vmem:[#allocation4 + $0x3f0] sm:$0xff]
    %v2302 = vld [vmem:[#allocation4 + $0x3f8] sm:$0xff]
    %v2303 = vld [vmem:[#allocation5] sm:$0xf]
    %v2305 = vlaneseq
    %v2306 = vshrl.u32 %v2305, 7
    %v2307 = vsub.s32 0, %v2306
    %v2308 = vrot.slane %v2303, %v2307
    %v2309 = vlaneseq
    %v2310 = vshrl.u32 %v2309, 7
    %v2311 = vsub.s32 1, %v2310
    %v2312 = vrot.slane %v2303, %v2311
    %v2313 = vlaneseq
    %v2314 = vshrl.u32 %v2313, 7
    %v2315 = vsub.s32 2, %v2314
    %v2316 = vrot.slane %v2303, %v2315
    %v2317 = vlaneseq
    %v2318 = vshrl.u32 %v2317, 7
    %v2319 = vsub.s32 3, %v2318
    %v2320 = vrot.slane %v2303, %v2319
    %2325 = vmatprep.subr.mxu0 %v2176
    %2326 = vmatpush1.msra.mxu0 %v2175
    %2327 = vmatprep.subr.mxu0 %v2180
    %2328 = vmatpush1.msra.mxu0 %v2179
    %2329 = vmatprep.subr.mxu0 %v2184
    %2330 = vmatpush1.msra.mxu0 %v2183
    %2331 = vmatprep.subr.mxu0 %v2188
    %2332 = vmatpush1.msra.mxu0 %v2187
    %2333 = vmatprep.subr.mxu0 %v2192
    %2334 = vmatpush1.msra.mxu0 %v2191
    %2335 = vmatprep.subr.mxu0 %v2196
    %2336 = vmatpush1.msra.mxu0 %v2195
    %2337 = vmatprep.subr.mxu0 %v2200
    %2338 = vmatpush1.msra.mxu0 %v2199
    %2339 = vmatprep.subr.mxu0 %v2204
    %2340 = vmatpush1.msra.mxu0 %v2203
    %2341 = vmatprep.subr.mxu0 %v2208
    %2342 = vmatpush1.msra.mxu0 %v2207
    %2343 = vmatprep.subr.mxu0 %v2212
    %2344 = vmatpush1.msra.mxu0 %v2211
    %2345 = vmatprep.subr.mxu0 %v2216
    %2346 = vmatpush1.msra.mxu0 %v2215
    %2347 = vmatprep.subr.mxu0 %v2220
    %2348 = vmatpush1.msra.mxu0 %v2219
    %2349 = vmatprep.subr.mxu0 %v2224
    %2350 = vmatpush1.msra.mxu0 %v2223
    %2351 = vmatprep.subr.mxu0 %v2228
    %2352 = vmatpush1.msra.mxu0 %v2227
    %2353 = vmatprep.subr.mxu0 %v2232
    %2354 = vmatpush1.msra.mxu0 %v2231
    %2355 = vmatprep.subr.mxu0 %v2236
    %2356 = vmatpush1.msra.mxu0 %v2235
    %2357 = vmatprep.subr.mxu0 %v2240
    %2358 = vmatpush1.msra.mxu0 %v2239
    %2359 = vmatprep.subr.mxu0 %v2244
    %2360 = vmatpush1.msra.mxu0 %v2243
    %2361 = vmatprep.subr.mxu0 %v2248
    %2362 = vmatpush1.msra.mxu0 %v2247
    %2363 = vmatprep.subr.mxu0 %v2252
    %2364 = vmatpush1.msra.mxu0 %v2251
    %2365 = vmatprep.subr.mxu0 %v2256
    %2366 = vmatpush1.msra.mxu0 %v2255
    %2367 = vmatprep.subr.mxu0 %v2260
    %2368 = vmatpush1.msra.mxu0 %v2259
    %2369 = vmatprep.subr.mxu0 %v2264
    %2370 = vmatpush1.msra.mxu0 %v2263
    %2371 = vmatprep.subr.mxu0 %v2268
    %2372 = vmatpush1.msra.mxu0 %v2267
    %2373 = vmatprep.subr.mxu0 %v2272
    %2374 = vmatpush1.msra.mxu0 %v2271
    %2375 = vmatprep.subr.mxu0 %v2276
    %2376 = vmatpush1.msra.mxu0 %v2275
    %2377 = vmatprep.subr.mxu0 %v2280
    %2378 = vmatpush1.msra.mxu0 %v2279
    %2379 = vmatprep.subr.mxu0 %v2284
    %2380 = vmatpush1.msra.mxu0 %v2283
    %2381 = vmatprep.subr.mxu0 %v2288
    %2382 = vmatpush1.msra.mxu0 %v2287
    %2383 = vmatprep.subr.mxu0 %v2292
    %2384 = vmatpush1.msra.mxu0 %v2291
    %2385 = vmatprep.subr.mxu0 %v2296
    %2386 = vmatpush1.msra.mxu0 %v2295
    %2387 = vmatprep.subr.mxu0 %v2300
    %2388 = vmatpush1.msra.mxu0 %v2299
    %2389 = vmatprep.mubr.f32.mxu0 %v1904
    %2390 = vmatmul.mubr.f32.gmra.mrb[0].mxu0 %v1581
    %v2391 = vpop.f32.mrb[0].mxu0
    %v2392 = vadd.f32 %v2308, %v2391
    %v2393 = vpop.f32.mrb[0].mxu0
    %v2394 = vadd.f32 %v2312, %v2393
    %2395 = vdwg.mxu0
    %2396 = vmatprep.subr.mxu0 %v2178
    %2397 = vmatpush1.msra.mxu0 %v2177
    %2398 = vmatprep.subr.mxu0 %v2182
    %2399 = vmatpush1.msra.mxu0 %v2181
    %2400 = vmatprep.subr.mxu0 %v2186
    %2401 = vmatpush1.msra.mxu0 %v2185
    %2402 = vmatprep.subr.mxu0 %v2190
    %2403 = vmatpush1.msra.mxu0 %v2189
    %2404 = vmatprep.subr.mxu0 %v2194
    %2405 = vmatpush1.msra.mxu0 %v2193
    %2406 = vmatprep.subr.mxu0 %v2198
    %2407 = vmatpush1.msra.mxu0 %v2197
    %2408 = vmatprep.subr.mxu0 %v2202
    %2409 = vmatpush1.msra.mxu0 %v2201
    %2410 = vmatprep.subr.mxu0 %v2206
    %2411 = vmatpush1.msra.mxu0 %v2205
    %2412 = vmatprep.subr.mxu0 %v2210
    %2413 = vmatpush1.msra.mxu0 %v2209
    %2414 = vmatprep.subr.mxu0 %v2214
    %2415 = vmatpush1.msra.mxu0 %v2213
    %2416 = vmatprep.subr.mxu0 %v2218
    %2417 = vmatpush1.msra.mxu0 %v2217
    %2418 = vmatprep.subr.mxu0 %v2222
    %2419 = vmatpush1.msra.mxu0 %v2221
    %2420 = vmatprep.subr.mxu0 %v2226
    %2421 = vmatpush1.msra.mxu0 %v2225
    %2422 = vmatprep.subr.mxu0 %v2230
    %2423 = vmatpush1.msra.mxu0 %v2229
    %2424 = vmatprep.subr.mxu0 %v2234
    %2425 = vmatpush1.msra.mxu0 %v2233
    %2426 = vmatprep.subr.mxu0 %v2238
    %2427 = vmatpush1.msra.mxu0 %v2237
    %2428 = vmatprep.subr.mxu0 %v2242
    %2429 = vmatpush1.msra.mxu0 %v2241
    %2430 = vmatprep.subr.mxu0 %v2246
    %2431 = vmatpush1.msra.mxu0 %v2245
    %2432 = vmatprep.subr.mxu0 %v2250
    %2433 = vmatpush1.msra.mxu0 %v2249
    %2434 = vmatprep.subr.mxu0 %v2254
    %2435 = vmatpush1.msra.mxu0 %v2253
    %2436 = vmatprep.subr.mxu0 %v2258
    %2437 = vmatpush1.msra.mxu0 %v2257
    %2438 = vmatprep.subr.mxu0 %v2262
    %2439 = vmatpush1.msra.mxu0 %v2261
    %2440 = vmatprep.subr.mxu0 %v2266
    %2441 = vmatpush1.msra.mxu0 %v2265
    %2442 = vmatprep.subr.mxu0 %v2270
    %2443 = vmatpush1.msra.mxu0 %v2269
    %2444 = vmatprep.subr.mxu0 %v2274
    %2445 = vmatpush1.msra.mxu0 %v2273
    %2446 = vmatprep.subr.mxu0 %v2278
    %2447 = vmatpush1.msra.mxu0 %v2277
    %2448 = vmatprep.subr.mxu0 %v2282
    %2449 = vmatpush1.msra.mxu0 %v2281
    %2450 = vmatprep.subr.mxu0 %v2286
    %2451 = vmatpush1.msra.mxu0 %v2285
    %2452 = vmatprep.subr.mxu0 %v2290
    %2453 = vmatpush1.msra.mxu0 %v2289
    %2454 = vmatprep.subr.mxu0 %v2294
    %2455 = vmatpush1.msra.mxu0 %v2293
    %2456 = vmatprep.subr.mxu0 %v2298
    %2457 = vmatpush1.msra.mxu0 %v2297
    %2458 = vmatprep.subr.mxu0 %v2302
    %2459 = vmatpush1.msra.mxu0 %v2301
    %2460 = vmatprep.mubr.f32.mxu0 %v1904
    %2461 = vmatmul.mubr.f32.gmra.mrb[0].mxu0 %v1581
    %v2462 = vpop.f32.mrb[0].mxu0
    %v2463 = vadd.f32 %v2316, %v2462
    %v2464 = vpop.f32.mrb[0].mxu0
    %v2465 = vadd.f32 %v2320, %v2464
    %2466 = vdwg.mxu0
    %v2467 = vxor.u32 %v2392, 2147483648
    %v2468 = vmul.f32 %v2467, 1.442695
    %v2469 = vpow.pop %v2468
    %v2470 = vadd.f32 %v2469, 1.0
    %v2471 = vrcp.pop %v2470
    %v2472 = vmul.f32 1.0, %v2471
    %v2473 = vxor.u32 %v2394, 2147483648
    %v2474 = vmul.f32 %v2473, 1.442695
    %v2475 = vpow.pop %v2474
    %v2476 = vadd.f32 %v2475, 1.0
    %v2477 = vrcp.pop %v2476
    %v2478 = vmul.f32 1.0, %v2477
    %v2479 = vtanh.pop %v2463
    %v2480 = vxor.u32 %v2465, 2147483648
    %v2481 = vmul.f32 %v2480, 1.442695
    %v2482 = vpow.pop %v2481
    %v2483 = vadd.f32 %v2482, 1.0
    %v2484 = vrcp.pop %v2483
    %v2485 = vmul.f32 1.0, %v2484
    %v2486 = vmul.f32 %v2478, %v1902
    %v2487 = vmul.f32 %v2472, %v2479
    %v2488 = vadd.f32 %v2486, %v2487
    %v2489 = vtanh.pop %v2488
    %v2490 = vmul.f32 %v2485, %v2489
    %2491 = vst [vmem:[#allocation3 + $0x1] sm:$0x1] %v2490
    %s2492 = scalar_lea.vmem [#allocation2], 3
    %v2493 = vld [vmem:[%s2492] ss:$8 sm:$0xf]
    %v2494 = vld [vmem:[#allocation12] sm:$0xff]
    %v2495 = vld [vmem:[#allocation12 + $0x8] sm:$0xff]
    %v2496 = vld [vmem:[#allocation12 + $0x10] sm:$0xff]
    %v2497 = vld [vmem:[#allocation12 + $0x18] sm:$0xff]
    %v2498 = vld [vmem:[#allocation12 + $0x20] sm:$0xff]
    %v2499 = vld [vmem:[#allocation12 + $0x28] sm:$0xff]
    %v2500 = vld [vmem:[#allocation12 + $0x30] sm:$0xff]
    %v2501 = vld [vmem:[#allocation12 + $0x38] sm:$0xff]
    %v2502 = vld [vmem:[#allocation12 + $0x40] sm:$0xff]
    %v2503 = vld [vmem:[#allocation12 + $0x48] sm:$0xff]
    %v2504 = vld [vmem:[#allocation12 + $0x50] sm:$0xff]
    %v2505 = vld [vmem:[#allocation12 + $0x58] sm:$0xff]
    %v2506 = vld [vmem:[#allocation12 + $0x60] sm:$0xff]
    %v2507 = vld [vmem:[#allocation12 + $0x68] sm:$0xff]
    %v2508 = vld [vmem:[#allocation12 + $0x70] sm:$0xff]
    %v2509 = vld [vmem:[#allocation12 + $0x78] sm:$0xff]
    %v2510 = vld [vmem:[#allocation12 + $0x80] sm:$0xff]
    %v2511 = vld [vmem:[#allocation12 + $0x88] sm:$0xff]
    %v2512 = vld [vmem:[#allocation12 + $0x90] sm:$0xff]
    %v2513 = vld [vmem:[#allocation12 + $0x98] sm:$0xff]
    %v2514 = vld [vmem:[#allocation12 + $0xa0] sm:$0xff]
    %v2515 = vld [vmem:[#allocation12 + $0xa8] sm:$0xff]
    %v2516 = vld [vmem:[#allocation12 + $0xb0] sm:$0xff]
    %v2517 = vld [vmem:[#allocation12 + $0xb8] sm:$0xff]
    %v2518 = vld [vmem:[#allocation12 + $0xc0] sm:$0xff]
    %v2519 = vld [vmem:[#allocation12 + $0xc8] sm:$0xff]
    %v2520 = vld [vmem:[#allocation12 + $0xd0] sm:$0xff]
    %v2521 = vld [vmem:[#allocation12 + $0xd8] sm:$0xff]
    %v2522 = vld [vmem:[#allocation12 + $0xe0] sm:$0xff]
    %v2523 = vld [vmem:[#allocation12 + $0xe8] sm:$0xff]
    %v2524 = vld [vmem:[#allocation12 + $0xf0] sm:$0xff]
    %v2525 = vld [vmem:[#allocation12 + $0xf8] sm:$0xff]
    %v2526 = vld [vmem:[#allocation12 + $0x100] sm:$0xff]
    %v2527 = vld [vmem:[#allocation12 + $0x108] sm:$0xff]
    %v2528 = vld [vmem:[#allocation12 + $0x110] sm:$0xff]
    %v2529 = vld [vmem:[#allocation12 + $0x118] sm:$0xff]
    %v2530 = vld [vmem:[#allocation12 + $0x120] sm:$0xff]
    %v2531 = vld [vmem:[#allocation12 + $0x128] sm:$0xff]
    %v2532 = vld [vmem:[#allocation12 + $0x130] sm:$0xff]
    %v2533 = vld [vmem:[#allocation12 + $0x138] sm:$0xff]
    %v2534 = vld [vmem:[#allocation12 + $0x140] sm:$0xff]
    %v2535 = vld [vmem:[#allocation12 + $0x148] sm:$0xff]
    %v2536 = vld [vmem:[#allocation12 + $0x150] sm:$0xff]
    %v2537 = vld [vmem:[#allocation12 + $0x158] sm:$0xff]
    %v2538 = vld [vmem:[#allocation12 + $0x160] sm:$0xff]
    %v2539 = vld [vmem:[#allocation12 + $0x168] sm:$0xff]
    %v2540 = vld [vmem:[#allocation12 + $0x170] sm:$0xff]
    %v2541 = vld [vmem:[#allocation12 + $0x178] sm:$0xff]
    %v2542 = vld [vmem:[#allocation12 + $0x180] sm:$0xff]
    %v2543 = vld [vmem:[#allocation12 + $0x188] sm:$0xff]
    %v2544 = vld [vmem:[#allocation12 + $0x190] sm:$0xff]
    %v2545 = vld [vmem:[#allocation12 + $0x198] sm:$0xff]
    %v2546 = vld [vmem:[#allocation12 + $0x1a0] sm:$0xff]
    %v2547 = vld [vmem:[#allocation12 + $0x1a8] sm:$0xff]
    %v2548 = vld [vmem:[#allocation12 + $0x1b0] sm:$0xff]
    %v2549 = vld [vmem:[#allocation12 + $0x1b8] sm:$0xff]
    %v2550 = vld [vmem:[#allocation12 + $0x1c0] sm:$0xff]
    %v2551 = vld [vmem:[#allocation12 + $0x1c8] sm:$0xff]
    %v2552 = vld [vmem:[#allocation12 + $0x1d0] sm:$0xff]
    %v2553 = vld [vmem:[#allocation12 + $0x1d8] sm:$0xff]
    %v2554 = vld [vmem:[#allocation12 + $0x1e0] sm:$0xff]
    %v2555 = vld [vmem:[#allocation12 + $0x1e8] sm:$0xff]
    %v2556 = vld [vmem:[#allocation12 + $0x1f0] sm:$0xff]
    %v2557 = vld [vmem:[#allocation12 + $0x1f8] sm:$0xff]
    %2558 = vmatprep.subr.mxu0 %v2495
    %2559 = vmatpush1.msra.mxu0 %v2494
    %2560 = vmatprep.subr.mxu0 %v2499
    %2561 = vmatpush1.msra.mxu0 %v2498
    %2562 = vmatprep.subr.mxu0 %v2503
    %2563 = vmatpush1.msra.mxu0 %v2502
    %2564 = vmatprep.subr.mxu0 %v2507
    %2565 = vmatpush1.msra.mxu0 %v2506
    %2566 = vmatprep.subr.mxu0 %v2511
    %2567 = vmatpush1.msra.mxu0 %v2510
    %2568 = vmatprep.subr.mxu0 %v2515
    %2569 = vmatpush1.msra.mxu0 %v2514
    %2570 = vmatprep.subr.mxu0 %v2519
    %2571 = vmatpush1.msra.mxu0 %v2518
    %2572 = vmatprep.subr.mxu0 %v2523
    %2573 = vmatpush1.msra.mxu0 %v2522
    %2574 = vmatprep.subr.mxu0 %v2527
    %2575 = vmatpush1.msra.mxu0 %v2526
    %2576 = vmatprep.subr.mxu0 %v2531
    %2577 = vmatpush1.msra.mxu0 %v2530
    %2578 = vmatprep.subr.mxu0 %v2535
    %2579 = vmatpush1.msra.mxu0 %v2534
    %2580 = vmatprep.subr.mxu0 %v2539
    %2581 = vmatpush1.msra.mxu0 %v2538
    %2582 = vmatprep.subr.mxu0 %v2543
    %2583 = vmatpush1.msra.mxu0 %v2542
    %2584 = vmatprep.subr.mxu0 %v2547
    %2585 = vmatpush1.msra.mxu0 %v2546
    %2586 = vmatprep.subr.mxu0 %v2551
    %2587 = vmatpush1.msra.mxu0 %v2550
    %2588 = vmatprep.subr.mxu0 %v2555
    %2589 = vmatpush1.msra.mxu0 %v2554
    %2590 = vmatprep.subr.mxu0 0.0
    %2591 = vmatpush1.msra.mxu0 0.0
    %2592 = vmatprep.subr.mxu0 0.0
    %2593 = vmatpush1.msra.mxu0 0.0
    %2594 = vmatprep.subr.mxu0 0.0
    %2595 = vmatpush1.msra.mxu0 0.0
    %2596 = vmatprep.subr.mxu0 0.0
    %2597 = vmatpush1.msra.mxu0 0.0
    %2598 = vmatprep.subr.mxu0 0.0
    %2599 = vmatpush1.msra.mxu0 0.0
    %2600 = vmatprep.subr.mxu0 0.0
    %2601 = vmatpush1.msra.mxu0 0.0
    %2602 = vmatprep.subr.mxu0 0.0
    %2603 = vmatpush1.msra.mxu0 0.0
    %2604 = vmatprep.subr.mxu0 0.0
    %2605 = vmatpush1.msra.mxu0 0.0
    %2606 = vmatprep.subr.mxu0 0.0
    %2607 = vmatpush1.msra.mxu0 0.0
    %2608 = vmatprep.subr.mxu0 0.0
    %2609 = vmatpush1.msra.mxu0 0.0
    %2610 = vmatprep.subr.mxu0 0.0
    %2611 = vmatpush1.msra.mxu0 0.0
    %2612 = vmatprep.subr.mxu0 0.0
    %2613 = vmatpush1.msra.mxu0 0.0
    %2614 = vmatprep.subr.mxu0 0.0
    %2615 = vmatpush1.msra.mxu0 0.0
    %2616 = vmatprep.subr.mxu0 0.0
    %2617 = vmatpush1.msra.mxu0 0.0
    %2618 = vmatprep.subr.mxu0 0.0
    %2619 = vmatpush1.msra.mxu0 0.0
    %2620 = vmatprep.subr.mxu0 0.0
    %2621 = vmatpush1.msra.mxu0 0.0
    %2622 = vmatprep.mubr.f32.mxu0 0.0
    %2623 = vmatmul.mubr.f32.gmra.mrb[0].mxu0 %v2174
    %v2624 = vpop.f32.mrb[0].mxu0
    %v2625 = vadd.f32 0.0, %v2624
    %v2626 = vpop.f32.mrb[0].mxu0
    %v2627 = vadd.f32 0.0, %v2626
    %2628 = vdwg.mxu0
    %2629 = vmatprep.subr.mxu0 %v2497
    %2630 = vmatpush1.msra.mxu0 %v2496
    %2631 = vmatprep.subr.mxu0 %v2501
    %2632 = vmatpush1.msra.mxu0 %v2500
    %2633 = vmatprep.subr.mxu0 %v2505
    %2634 = vmatpush1.msra.mxu0 %v2504
    %2635 = vmatprep.subr.mxu0 %v2509
    %2636 = vmatpush1.msra.mxu0 %v2508
    %2637 = vmatprep.subr.mxu0 %v2513
    %2638 = vmatpush1.msra.mxu0 %v2512
    %2639 = vmatprep.subr.mxu0 %v2517
    %2640 = vmatpush1.msra.mxu0 %v2516
    %2641 = vmatprep.subr.mxu0 %v2521
    %2642 = vmatpush1.msra.mxu0 %v2520
    %2643 = vmatprep.subr.mxu0 %v2525
    %2644 = vmatpush1.msra.mxu0 %v2524
    %2645 = vmatprep.subr.mxu0 %v2529
    %2646 = vmatpush1.msra.mxu0 %v2528
    %2647 = vmatprep.subr.mxu0 %v2533
    %2648 = vmatpush1.msra.mxu0 %v2532
    %2649 = vmatprep.subr.mxu0 %v2537
    %2650 = vmatpush1.msra.mxu0 %v2536
    %2651 = vmatprep.subr.mxu0 %v2541
    %2652 = vmatpush1.msra.mxu0 %v2540
    %2653 = vmatprep.subr.mxu0 %v2545
    %2654 = vmatpush1.msra.mxu0 %v2544
    %2655 = vmatprep.subr.mxu0 %v2549
    %2656 = vmatpush1.msra.mxu0 %v2548
    %2657 = vmatprep.subr.mxu0 %v2553
    %2658 = vmatpush1.msra.mxu0 %v2552
    %2659 = vmatprep.subr.mxu0 %v2557
    %2660 = vmatpush1.msra.mxu0 %v2556
    %2661 = vmatprep.subr.mxu0 0.0
    %2662 = vmatpush1.msra.mxu0 0.0
    %2663 = vmatprep.subr.mxu0 0.0
    %2664 = vmatpush1.msra.mxu0 0.0
    %2665 = vmatprep.subr.mxu0 0.0
    %2666 = vmatpush1.msra.mxu0 0.0
    %2667 = vmatprep.subr.mxu0 0.0
    %2668 = vmatpush1.msra.mxu0 0.0
    %2669 = vmatprep.subr.mxu0 0.0
    %2670 = vmatpush1.msra.mxu0 0.0
    %2671 = vmatprep.subr.mxu0 0.0
    %2672 = vmatpush1.msra.mxu0 0.0
    %2673 = vmatprep.subr.mxu0 0.0
    %2674 = vmatpush1.msra.mxu0 0.0
    %2675 = vmatprep.subr.mxu0 0.0
    %2676 = vmatpush1.msra.mxu0 0.0
    %2677 = vmatprep.subr.mxu0 0.0
    %2678 = vmatpush1.msra.mxu0 0.0
    %2679 = vmatprep.subr.mxu0 0.0
    %2680 = vmatpush1.msra.mxu0 0.0
    %2681 = vmatprep.subr.mxu0 0.0
    %2682 = vmatpush1.msra.mxu0 0.0
    %2683 = vmatprep.subr.mxu0 0.0
    %2684 = vmatpush1.msra.mxu0 0.0
    %2685 = vmatprep.subr.mxu0 0.0
    %2686 = vmatpush1.msra.mxu0 0.0
    %2687 = vmatprep.subr.mxu0 0.0
    %2688 = vmatpush1.msra.mxu0 0.0
    %2689 = vmatprep.subr.mxu0 0.0
    %2690 = vmatpush1.msra.mxu0 0.0
    %2691 = vmatprep.subr.mxu0 0.0
    %2692 = vmatpush1.msra.mxu0 0.0
    %2693 = vmatprep.mubr.f32.mxu0 0.0
    %2694 = vmatmul.mubr.f32.gmra.mrb[0].mxu0 %v2174
    %v2695 = vpop.f32.mrb[0].mxu0
    %v2696 = vadd.f32 0.0, %v2695
    %v2697 = vpop.f32.mrb[0].mxu0
    %v2698 = vadd.f32 0.0, %v2697
    %2699 = vdwg.mxu0
    %v2704 = vcombine.low %v2625, %v2627
    %v2705 = vcombine.low %v2696, %v2698
    %v2707 = vunpack.c.l.s4 1966171168
    %v2708 = vunpack.c.0.s8 %v2707
    %v2709 = vlaneseq
    %v2710 = vshrl.u32 %v2709, 7
    %v2711 = vsub.s32 %v2708, %v2710
    %v2712 = vrot.slane %v2704, %v2711
    %v2714 = vunpack.c.l.s4 1966171168
    %v2715 = vunpack.c.0.s8 %v2714
    %v2716 = vlaneseq
    %v2717 = vshrl.u32 %v2716, 7
    %v2718 = vsub.s32 %v2715, %v2717
    %v2719 = vrot.slane %v2705, %v2718
    %v2720 = vcombine.low %v2712, %v2719
    %v2722 = vunpack.c.l.s4 1966171168
    %v2723 = vunpack.c.0.s8 %v2722
    %v2724 = vlaneseq
    %v2725 = vshrl.u32 %v2724, 7
    %v2726 = vsub.s32 %v2723, %v2725
    %v2727 = vrot.slane %v2720, %v2726
    %v2729 = vadd.f32 %v2493, %v2727
    %v2730 = vxor.u32 %v2729, 2147483648
    %v2731 = vmul.f32 %v2730, 1.442695
    %v2732 = vpow.pop %v2731
    %v2733 = vadd.f32 %v2732, 1.0
    %v2734 = vrcp.pop %v2733
    %v2735 = vmul.f32 1.0, %v2734
    %v2737 = vrot.slane %v2729, 1
    %v2739 = vxor.u32 %v2737, 2147483648
    %v2740 = vmul.f32 %v2739, 1.442695
    %v2741 = vpow.pop %v2740
    %v2742 = vadd.f32 %v2741, 1.0
    %v2743 = vrcp.pop %v2742
    %v2744 = vmul.f32 1.0, %v2743
    %v2745 = vrot.slane %v2729, 2
    %v2747 = vtanh.pop %v2745
    %v2748 = vrot.slane %v2729, 3
    %v2750 = vxor.u32 %v2748, 2147483648
    %v2751 = vmul.f32 %v2750, 1.442695
    %v2752 = vpow.pop %v2751
    %v2753 = vadd.f32 %v2752, 1.0
    %v2754 = vrcp.pop %v2753
    %v2755 = vmul.f32 1.0, %v2754
    %v2756 = vmul.f32 %v2744, %v2172
    %v2757 = vmul.f32 %v2735, %v2747
    %v2758 = vadd.f32 %v2756, %v2757
    %v2759 = vtanh.pop %v2758
    %v2760 = vmul.f32 %v2755, %v2759
    %v2761 = vld [vmem:[#allocation4] sm:$0xff]
    %v2762 = vld [vmem:[#allocation4 + $0x8] sm:$0xff]
    %v2763 = vld [vmem:[#allocation4 + $0x10] sm:$0xff]
    %v2764 = vld [vmem:[#allocation4 + $0x18] sm:$0xff]
    %v2765 = vld [vmem:[#allocation4 + $0x20] sm:$0xff]
    %v2766 = vld [vmem:[#allocation4 + $0x28] sm:$0xff]
    %v2767 = vld [vmem:[#allocation4 + $0x30] sm:$0xff]
    %v2768 = vld [vmem:[#allocation4 + $0x38] sm:$0xff]
    %v2769 = vld [vmem:[#allocation4 + $0x40] sm:$0xff]
    %v2770 = vld [vmem:[#allocation4 + $0x48] sm:$0xff]
    %v2771 = vld [vmem:[#allocation4 + $0x50] sm:$0xff]
    %v2772 = vld [vmem:[#allocation4 + $0x58] sm:$0xff]
    %v2773 = vld [vmem:[#allocation4 + $0x60] sm:$0xff]
    %v2774 = vld [vmem:[#allocation4 + $0x68] sm:$0xff]
    %v2775 = vld [vmem:[#allocation4 + $0x70] sm:$0xff]
    %v2776 = vld [vmem:[#allocation4 + $0x78] sm:$0xff]
    %v2777 = vld [vmem:[#allocation4 + $0x80] sm:$0xff]
    %v2778 = vld [vmem:[#allocation4 + $0x88] sm:$0xff]
    %v2779 = vld [vmem:[#allocation4 + $0x90] sm:$0xff]
    %v2780 = vld [vmem:[#allocation4 + $0x98] sm:$0xff]
    %v2781 = vld [vmem:[#allocation4 + $0xa0] sm:$0xff]
    %v2782 = vld [vmem:[#allocation4 + $0xa8] sm:$0xff]
    %v2783 = vld [vmem:[#allocation4 + $0xb0] sm:$0xff]
    %v2784 = vld [vmem:[#allocation4 + $0xb8] sm:$0xff]
    %v2785 = vld [vmem:[#allocation4 + $0xc0] sm:$0xff]
    %v2786 = vld [vmem:[#allocation4 + $0xc8] sm:$0xff]
    %v2787 = vld [vmem:[#allocation4 + $0xd0] sm:$0xff]
    %v2788 = vld [vmem:[#allocation4 + $0xd8] sm:$0xff]
    %v2789 = vld [vmem:[#allocation4 + $0xe0] sm:$0xff]
    %v2790 = vld [vmem:[#allocation4 + $0xe8] sm:$0xff]
    %v2791 = vld [vmem:[#allocation4 + $0xf0] sm:$0xff]
    %v2792 = vld [vmem:[#allocation4 + $0xf8] sm:$0xff]
    %v2793 = vld [vmem:[#allocation4 + $0x100] sm:$0xff]
    %v2794 = vld [vmem:[#allocation4 + $0x108] sm:$0xff]
    %v2795 = vld [vmem:[#allocation4 + $0x110] sm:$0xff]
    %v2796 = vld [vmem:[#allocation4 + $0x118] sm:$0xff]
    %v2797 = vld [vmem:[#allocation4 + $0x120] sm:$0xff]
    %v2798 = vld [vmem:[#allocation4 + $0x128] sm:$0xff]
    %v2799 = vld [vmem:[#allocation4 + $0x130] sm:$0xff]
    %v2800 = vld [vmem:[#allocation4 + $0x138] sm:$0xff]
    %v2801 = vld [vmem:[#allocation4 + $0x140] sm:$0xff]
    %v2802 = vld [vmem:[#allocation4 + $0x148] sm:$0xff]
    %v2803 = vld [vmem:[#allocation4 + $0x150] sm:$0xff]
    %v2804 = vld [vmem:[#allocation4 + $0x158] sm:$0xff]
    %v2805 = vld [vmem:[#allocation4 + $0x160] sm:$0xff]
    %v2806 = vld [vmem:[#allocation4 + $0x168] sm:$0xff]
    %v2807 = vld [vmem:[#allocation4 + $0x170] sm:$0xff]
    %v2808 = vld [vmem:[#allocation4 + $0x178] sm:$0xff]
    %v2809 = vld [vmem:[#allocation4 + $0x180] sm:$0xff]
    %v2810 = vld [vmem:[#allocation4 + $0x188] sm:$0xff]
    %v2811 = vld [vmem:[#allocation4 + $0x190] sm:$0xff]
    %v2812 = vld [vmem:[#allocation4 + $0x198] sm:$0xff]
    %v2813 = vld [vmem:[#allocation4 + $0x1a0] sm:$0xff]
    %v2814 = vld [vmem:[#allocation4 + $0x1a8] sm:$0xff]
    %v2815 = vld [vmem:[#allocation4 + $0x1b0] sm:$0xff]
    %v2816 = vld [vmem:[#allocation4 + $0x1b8] sm:$0xff]
    %v2817 = vld [vmem:[#allocation4 + $0x1c0] sm:$0xff]
    %v2818 = vld [vmem:[#allocation4 + $0x1c8] sm:$0xff]
    %v2819 = vld [vmem:[#allocation4 + $0x1d0] sm:$0xff]
    %v2820 = vld [vmem:[#allocation4 + $0x1d8] sm:$0xff]
    %v2821 = vld [vmem:[#allocation4 + $0x1e0] sm:$0xff]
    %v2822 = vld [vmem:[#allocation4 + $0x1e8] sm:$0xff]
    %v2823 = vld [vmem:[#allocation4 + $0x1f0] sm:$0xff]
    %v2824 = vld [vmem:[#allocation4 + $0x1f8] sm:$0xff]
    %v2825 = vld [vmem:[#allocation4 + $0x200] sm:$0xff]
    %v2826 = vld [vmem:[#allocation4 + $0x208] sm:$0xff]
    %v2827 = vld [vmem:[#allocation4 + $0x210] sm:$0xff]
    %v2828 = vld [vmem:[#allocation4 + $0x218] sm:$0xff]
    %v2829 = vld [vmem:[#allocation4 + $0x220] sm:$0xff]
    %v2830 = vld [vmem:[#allocation4 + $0x228] sm:$0xff]
    %v2831 = vld [vmem:[#allocation4 + $0x230] sm:$0xff]
    %v2832 = vld [vmem:[#allocation4 + $0x238] sm:$0xff]
    %v2833 = vld [vmem:[#allocation4 + $0x240] sm:$0xff]
    %v2834 = vld [vmem:[#allocation4 + $0x248] sm:$0xff]
    %v2835 = vld [vmem:[#allocation4 + $0x250] sm:$0xff]
    %v2836 = vld [vmem:[#allocation4 + $0x258] sm:$0xff]
    %v2837 = vld [vmem:[#allocation4 + $0x260] sm:$0xff]
    %v2838 = vld [vmem:[#allocation4 + $0x268] sm:$0xff]
    %v2839 = vld [vmem:[#allocation4 + $0x270] sm:$0xff]
    %v2840 = vld [vmem:[#allocation4 + $0x278] sm:$0xff]
    %v2841 = vld [vmem:[#allocation4 + $0x280] sm:$0xff]
    %v2842 = vld [vmem:[#allocation4 + $0x288] sm:$0xff]
    %v2843 = vld [vmem:[#allocation4 + $0x290] sm:$0xff]
    %v2844 = vld [vmem:[#allocation4 + $0x298] sm:$0xff]
    %v2845 = vld [vmem:[#allocation4 + $0x2a0] sm:$0xff]
    %v2846 = vld [vmem:[#allocation4 + $0x2a8] sm:$0xff]
    %v2847 = vld [vmem:[#allocation4 + $0x2b0] sm:$0xff]
    %v2848 = vld [vmem:[#allocation4 + $0x2b8] sm:$0xff]
    %v2849 = vld [vmem:[#allocation4 + $0x2c0] sm:$0xff]
    %v2850 = vld [vmem:[#allocation4 + $0x2c8] sm:$0xff]
    %v2851 = vld [vmem:[#allocation4 + $0x2d0] sm:$0xff]
    %v2852 = vld [vmem:[#allocation4 + $0x2d8] sm:$0xff]
    %v2853 = vld [vmem:[#allocation4 + $0x2e0] sm:$0xff]
    %v2854 = vld [vmem:[#allocation4 + $0x2e8] sm:$0xff]
    %v2855 = vld [vmem:[#allocation4 + $0x2f0] sm:$0xff]
    %v2856 = vld [vmem:[#allocation4 + $0x2f8] sm:$0xff]
    %v2857 = vld [vmem:[#allocation4 + $0x300] sm:$0xff]
    %v2858 = vld [vmem:[#allocation4 + $0x308] sm:$0xff]
    %v2859 = vld [vmem:[#allocation4 + $0x310] sm:$0xff]
    %v2860 = vld [vmem:[#allocation4 + $0x318] sm:$0xff]
    %v2861 = vld [vmem:[#allocation4 + $0x320] sm:$0xff]
    %v2862 = vld [vmem:[#allocation4 + $0x328] sm:$0xff]
    %v2863 = vld [vmem:[#allocation4 + $0x330] sm:$0xff]
    %v2864 = vld [vmem:[#allocation4 + $0x338] sm:$0xff]
    %v2865 = vld [vmem:[#allocation4 + $0x340] sm:$0xff]
    %v2866 = vld [vmem:[#allocation4 + $0x348] sm:$0xff]
    %v2867 = vld [vmem:[#allocation4 + $0x350] sm:$0xff]
    %v2868 = vld [vmem:[#allocation4 + $0x358] sm:$0xff]
    %v2869 = vld [vmem:[#allocation4 + $0x360] sm:$0xff]
    %v2870 = vld [vmem:[#allocation4 + $0x368] sm:$0xff]
    %v2871 = vld [vmem:[#allocation4 + $0x370] sm:$0xff]
    %v2872 = vld [vmem:[#allocation4 + $0x378] sm:$0xff]
    %v2873 = vld [vmem:[#allocation4 + $0x380] sm:$0xff]
    %v2874 = vld [vmem:[#allocation4 + $0x388] sm:$0xff]
    %v2875 = vld [vmem:[#allocation4 + $0x390] sm:$0xff]
    %v2876 = vld [vmem:[#allocation4 + $0x398] sm:$0xff]
    %v2877 = vld [vmem:[#allocation4 + $0x3a0] sm:$0xff]
    %v2878 = vld [vmem:[#allocation4 + $0x3a8] sm:$0xff]
    %v2879 = vld [vmem:[#allocation4 + $0x3b0] sm:$0xff]
    %v2880 = vld [vmem:[#allocation4 + $0x3b8] sm:$0xff]
    %v2881 = vld [vmem:[#allocation4 + $0x3c0] sm:$0xff]
    %v2882 = vld [vmem:[#allocation4 + $0x3c8] sm:$0xff]
    %v2883 = vld [vmem:[#allocation4 + $0x3d0] sm:$0xff]
    %v2884 = vld [vmem:[#allocation4 + $0x3d8] sm:$0xff]
    %v2885 = vld [vmem:[#allocation4 + $0x3e0] sm:$0xff]
    %v2886 = vld [vmem:[#allocation4 + $0x3e8] sm:$0xff]
    %v2887 = vld [vmem:[#allocation4 + $0x3f0] sm:$0xff]
    %v2888 = vld [vmem:[#allocation4 + $0x3f8] sm:$0xff]
    %v2889 = vld [vmem:[#allocation5] sm:$0xf]
    %v2891 = vlaneseq
    %v2892 = vshrl.u32 %v2891, 7
    %v2893 = vsub.s32 0, %v2892
    %v2894 = vrot.slane %v2889, %v2893
    %v2895 = vlaneseq
    %v2896 = vshrl.u32 %v2895, 7
    %v2897 = vsub.s32 1, %v2896
    %v2898 = vrot.slane %v2889, %v2897
    %v2899 = vlaneseq
    %v2900 = vshrl.u32 %v2899, 7
    %v2901 = vsub.s32 2, %v2900
    %v2902 = vrot.slane %v2889, %v2901
    %v2903 = vlaneseq
    %v2904 = vshrl.u32 %v2903, 7
    %v2905 = vsub.s32 3, %v2904
    %v2906 = vrot.slane %v2889, %v2905
    %2911 = vmatprep.subr.mxu0 %v2762
    %2912 = vmatpush1.msra.mxu0 %v2761
    %2913 = vmatprep.subr.mxu0 %v2766
    %2914 = vmatpush1.msra.mxu0 %v2765
    %2915 = vmatprep.subr.mxu0 %v2770
    %2916 = vmatpush1.msra.mxu0 %v2769
    %2917 = vmatprep.subr.mxu0 %v2774
    %2918 = vmatpush1.msra.mxu0 %v2773
    %2919 = vmatprep.subr.mxu0 %v2778
    %2920 = vmatpush1.msra.mxu0 %v2777
    %2921 = vmatprep.subr.mxu0 %v2782
    %2922 = vmatpush1.msra.mxu0 %v2781
    %2923 = vmatprep.subr.mxu0 %v2786
    %2924 = vmatpush1.msra.mxu0 %v2785
    %2925 = vmatprep.subr.mxu0 %v2790
    %2926 = vmatpush1.msra.mxu0 %v2789
    %2927 = vmatprep.subr.mxu0 %v2794
    %2928 = vmatpush1.msra.mxu0 %v2793
    %2929 = vmatprep.subr.mxu0 %v2798
    %2930 = vmatpush1.msra.mxu0 %v2797
    %2931 = vmatprep.subr.mxu0 %v2802
    %2932 = vmatpush1.msra.mxu0 %v2801
    %2933 = vmatprep.subr.mxu0 %v2806
    %2934 = vmatpush1.msra.mxu0 %v2805
    %2935 = vmatprep.subr.mxu0 %v2810
    %2936 = vmatpush1.msra.mxu0 %v2809
    %2937 = vmatprep.subr.mxu0 %v2814
    %2938 = vmatpush1.msra.mxu0 %v2813
    %2939 = vmatprep.subr.mxu0 %v2818
    %2940 = vmatpush1.msra.mxu0 %v2817
    %2941 = vmatprep.subr.mxu0 %v2822
    %2942 = vmatpush1.msra.mxu0 %v2821
    %2943 = vmatprep.subr.mxu0 %v2826
    %2944 = vmatpush1.msra.mxu0 %v2825
    %2945 = vmatprep.subr.mxu0 %v2830
    %2946 = vmatpush1.msra.mxu0 %v2829
    %2947 = vmatprep.subr.mxu0 %v2834
    %2948 = vmatpush1.msra.mxu0 %v2833
    %2949 = vmatprep.subr.mxu0 %v2838
    %2950 = vmatpush1.msra.mxu0 %v2837
    %2951 = vmatprep.subr.mxu0 %v2842
    %2952 = vmatpush1.msra.mxu0 %v2841
    %2953 = vmatprep.subr.mxu0 %v2846
    %2954 = vmatpush1.msra.mxu0 %v2845
    %2955 = vmatprep.subr.mxu0 %v2850
    %2956 = vmatpush1.msra.mxu0 %v2849
    %2957 = vmatprep.subr.mxu0 %v2854
    %2958 = vmatpush1.msra.mxu0 %v2853
    %2959 = vmatprep.subr.mxu0 %v2858
    %2960 = vmatpush1.msra.mxu0 %v2857
    %2961 = vmatprep.subr.mxu0 %v2862
    %2962 = vmatpush1.msra.mxu0 %v2861
    %2963 = vmatprep.subr.mxu0 %v2866
    %2964 = vmatpush1.msra.mxu0 %v2865
    %2965 = vmatprep.subr.mxu0 %v2870
    %2966 = vmatpush1.msra.mxu0 %v2869
    %2967 = vmatprep.subr.mxu0 %v2874
    %2968 = vmatpush1.msra.mxu0 %v2873
    %2969 = vmatprep.subr.mxu0 %v2878
    %2970 = vmatpush1.msra.mxu0 %v2877
    %2971 = vmatprep.subr.mxu0 %v2882
    %2972 = vmatpush1.msra.mxu0 %v2881
    %2973 = vmatprep.subr.mxu0 %v2886
    %2974 = vmatpush1.msra.mxu0 %v2885
    %2975 = vmatprep.mubr.f32.mxu0 %v2490
    %2976 = vmatmul.mubr.f32.gmra.mrb[0].mxu0 %v2174
    %v2977 = vpop.f32.mrb[0].mxu0
    %v2978 = vadd.f32 %v2894, %v2977
    %v2979 = vpop.f32.mrb[0].mxu0
    %v2980 = vadd.f32 %v2898, %v2979
    %2981 = vdwg.mxu0
    %2982 = vmatprep.subr.mxu0 %v2764
    %2983 = vmatpush1.msra.mxu0 %v2763
    %2984 = vmatprep.subr.mxu0 %v2768
    %2985 = vmatpush1.msra.mxu0 %v2767
    %2986 = vmatprep.subr.mxu0 %v2772
    %2987 = vmatpush1.msra.mxu0 %v2771
    %2988 = vmatprep.subr.mxu0 %v2776
    %2989 = vmatpush1.msra.mxu0 %v2775
    %2990 = vmatprep.subr.mxu0 %v2780
    %2991 = vmatpush1.msra.mxu0 %v2779
    %2992 = vmatprep.subr.mxu0 %v2784
    %2993 = vmatpush1.msra.mxu0 %v2783
    %2994 = vmatprep.subr.mxu0 %v2788
    %2995 = vmatpush1.msra.mxu0 %v2787
    %2996 = vmatprep.subr.mxu0 %v2792
    %2997 = vmatpush1.msra.mxu0 %v2791
    %2998 = vmatprep.subr.mxu0 %v2796
    %2999 = vmatpush1.msra.mxu0 %v2795
    %3000 = vmatprep.subr.mxu0 %v2800
    %3001 = vmatpush1.msra.mxu0 %v2799
    %3002 = vmatprep.subr.mxu0 %v2804
    %3003 = vmatpush1.msra.mxu0 %v2803
    %3004 = vmatprep.subr.mxu0 %v2808
    %3005 = vmatpush1.msra.mxu0 %v2807
    %3006 = vmatprep.subr.mxu0 %v2812
    %3007 = vmatpush1.msra.mxu0 %v2811
    %3008 = vmatprep.subr.mxu0 %v2816
    %3009 = vmatpush1.msra.mxu0 %v2815
    %3010 = vmatprep.subr.mxu0 %v2820
    %3011 = vmatpush1.msra.mxu0 %v2819
    %3012 = vmatprep.subr.mxu0 %v2824
    %3013 = vmatpush1.msra.mxu0 %v2823
    %3014 = vmatprep.subr.mxu0 %v2828
    %3015 = vmatpush1.msra.mxu0 %v2827
    %3016 = vmatprep.subr.mxu0 %v2832
    %3017 = vmatpush1.msra.mxu0 %v2831
    %3018 = vmatprep.subr.mxu0 %v2836
    %3019 = vmatpush1.msra.mxu0 %v2835
    %3020 = vmatprep.subr.mxu0 %v2840
    %3021 = vmatpush1.msra.mxu0 %v2839
    %3022 = vmatprep.subr.mxu0 %v2844
    %3023 = vmatpush1.msra.mxu0 %v2843
    %3024 = vmatprep.subr.mxu0 %v2848
    %3025 = vmatpush1.msra.mxu0 %v2847
    %3026 = vmatprep.subr.mxu0 %v2852
    %3027 = vmatpush1.msra.mxu0 %v2851
    %3028 = vmatprep.subr.mxu0 %v2856
    %3029 = vmatpush1.msra.mxu0 %v2855
    %3030 = vmatprep.subr.mxu0 %v2860
    %3031 = vmatpush1.msra.mxu0 %v2859
    %3032 = vmatprep.subr.mxu0 %v2864
    %3033 = vmatpush1.msra.mxu0 %v2863
    %3034 = vmatprep.subr.mxu0 %v2868
    %3035 = vmatpush1.msra.mxu0 %v2867
    %3036 = vmatprep.subr.mxu0 %v2872
    %3037 = vmatpush1.msra.mxu0 %v2871
    %3038 = vmatprep.subr.mxu0 %v2876
    %3039 = vmatpush1.msra.mxu0 %v2875
    %3040 = vmatprep.subr.mxu0 %v2880
    %3041 = vmatpush1.msra.mxu0 %v2879
    %3042 = vmatprep.subr.mxu0 %v2884
    %3043 = vmatpush1.msra.mxu0 %v2883
    %3044 = vmatprep.subr.mxu0 %v2888
    %3045 = vmatpush1.msra.mxu0 %v2887
    %3046 = vmatprep.mubr.f32.mxu0 %v2490
    %3047 = vmatmul.mubr.f32.gmra.mrb[0].mxu0 %v2174
    %v3048 = vpop.f32.mrb[0].mxu0
    %v3049 = vadd.f32 %v2902, %v3048
    %v3050 = vpop.f32.mrb[0].mxu0
    %v3051 = vadd.f32 %v2906, %v3050
    %3052 = vdwg.mxu0
    %v3053 = vxor.u32 %v2978, 2147483648
    %v3054 = vmul.f32 %v3053, 1.442695
    %v3055 = vpow.pop %v3054
    %v3056 = vadd.f32 %v3055, 1.0
    %v3057 = vrcp.pop %v3056
    %v3058 = vmul.f32 1.0, %v3057
    %v3059 = vxor.u32 %v2980, 2147483648
    %v3060 = vmul.f32 %v3059, 1.442695
    %v3061 = vpow.pop %v3060
    %v3062 = vadd.f32 %v3061, 1.0
    %v3063 = vrcp.pop %v3062
    %v3064 = vmul.f32 1.0, %v3063
    %v3065 = vtanh.pop %v3049
    %v3066 = vxor.u32 %v3051, 2147483648
    %v3067 = vmul.f32 %v3066, 1.442695
    %v3068 = vpow.pop %v3067
    %v3069 = vadd.f32 %v3068, 1.0
    %v3070 = vrcp.pop %v3069
    %v3071 = vmul.f32 1.0, %v3070
    %v3072 = vmul.f32 %v3064, %v2488
    %v3073 = vmul.f32 %v3058, %v3065
    %v3074 = vadd.f32 %v3072, %v3073
    %v3075 = vtanh.pop %v3074
    %v3076 = vmul.f32 %v3071, %v3075
    %3077 = vst [vmem:[#allocation3 + $0x2] sm:$0x1] %v3076
    %s3078 = scalar_lea.vmem [#allocation2], 4
    %v3079 = vld [vmem:[%s3078] ss:$8 sm:$0xf]
    %v3080 = vld [vmem:[#allocation12] sm:$0xff]
    %v3081 = vld [vmem:[#allocation12 + $0x8] sm:$0xff]
    %v3082 = vld [vmem:[#allocation12 + $0x10] sm:$0xff]
    %v3083 = vld [vmem:[#allocation12 + $0x18] sm:$0xff]
    %v3084 = vld [vmem:[#allocation12 + $0x20] sm:$0xff]
    %v3085 = vld [vmem:[#allocation12 + $0x28] sm:$0xff]
    %v3086 = vld [vmem:[#allocation12 + $0x30] sm:$0xff]
    %v3087 = vld [vmem:[#allocation12 + $0x38] sm:$0xff]
    %v3088 = vld [vmem:[#allocation12 + $0x40] sm:$0xff]
    %v3089 = vld [vmem:[#allocation12 + $0x48] sm:$0xff]
    %v3090 = vld [vmem:[#allocation12 + $0x50] sm:$0xff]
    %v3091 = vld [vmem:[#allocation12 + $0x58] sm:$0xff]
    %v3092 = vld [vmem:[#allocation12 + $0x60] sm:$0xff]
    %v3093 = vld [vmem:[#allocation12 + $0x68] sm:$0xff]
    %v3094 = vld [vmem:[#allocation12 + $0x70] sm:$0xff]
    %v3095 = vld [vmem:[#allocation12 + $0x78] sm:$0xff]
    %v3096 = vld [vmem:[#allocation12 + $0x80] sm:$0xff]
    %v3097 = vld [vmem:[#allocation12 + $0x88] sm:$0xff]
    %v3098 = vld [vmem:[#allocation12 + $0x90] sm:$0xff]
    %v3099 = vld [vmem:[#allocation12 + $0x98] sm:$0xff]
    %v3100 = vld [vmem:[#allocation12 + $0xa0] sm:$0xff]
    %v3101 = vld [vmem:[#allocation12 + $0xa8] sm:$0xff]
    %v3102 = vld [vmem:[#allocation12 + $0xb0] sm:$0xff]
    %v3103 = vld [vmem:[#allocation12 + $0xb8] sm:$0xff]
    %v3104 = vld [vmem:[#allocation12 + $0xc0] sm:$0xff]
    %v3105 = vld [vmem:[#allocation12 + $0xc8] sm:$0xff]
    %v3106 = vld [vmem:[#allocation12 + $0xd0] sm:$0xff]
    %v3107 = vld [vmem:[#allocation12 + $0xd8] sm:$0xff]
    %v3108 = vld [vmem:[#allocation12 + $0xe0] sm:$0xff]
    %v3109 = vld [vmem:[#allocation12 + $0xe8] sm:$0xff]
    %v3110 = vld [vmem:[#allocation12 + $0xf0] sm:$0xff]
    %v3111 = vld [vmem:[#allocation12 + $0xf8] sm:$0xff]
    %v3112 = vld [vmem:[#allocation12 + $0x100] sm:$0xff]
    %v3113 = vld [vmem:[#allocation12 + $0x108] sm:$0xff]
    %v3114 = vld [vmem:[#allocation12 + $0x110] sm:$0xff]
    %v3115 = vld [vmem:[#allocation12 + $0x118] sm:$0xff]
    %v3116 = vld [vmem:[#allocation12 + $0x120] sm:$0xff]
    %v3117 = vld [vmem:[#allocation12 + $0x128] sm:$0xff]
    %v3118 = vld [vmem:[#allocation12 + $0x130] sm:$0xff]
    %v3119 = vld [vmem:[#allocation12 + $0x138] sm:$0xff]
    %v3120 = vld [vmem:[#allocation12 + $0x140] sm:$0xff]
    %v3121 = vld [vmem:[#allocation12 + $0x148] sm:$0xff]
    %v3122 = vld [vmem:[#allocation12 + $0x150] sm:$0xff]
    %v3123 = vld [vmem:[#allocation12 + $0x158] sm:$0xff]
    %v3124 = vld [vmem:[#allocation12 + $0x160] sm:$0xff]
    %v3125 = vld [vmem:[#allocation12 + $0x168] sm:$0xff]
    %v3126 = vld [vmem:[#allocation12 + $0x170] sm:$0xff]
    %v3127 = vld [vmem:[#allocation12 + $0x178] sm:$0xff]
    %v3128 = vld [vmem:[#allocation12 + $0x180] sm:$0xff]
    %v3129 = vld [vmem:[#allocation12 + $0x188] sm:$0xff]
    %v3130 = vld [vmem:[#allocation12 + $0x190] sm:$0xff]
    %v3131 = vld [vmem:[#allocation12 + $0x198] sm:$0xff]
    %v3132 = vld [vmem:[#allocation12 + $0x1a0] sm:$0xff]
    %v3133 = vld [vmem:[#allocation12 + $0x1a8] sm:$0xff]
    %v3134 = vld [vmem:[#allocation12 + $0x1b0] sm:$0xff]
    %v3135 = vld [vmem:[#allocation12 + $0x1b8] sm:$0xff]
    %v3136 = vld [vmem:[#allocation12 + $0x1c0] sm:$0xff]
    %v3137 = vld [vmem:[#allocation12 + $0x1c8] sm:$0xff]
    %v3138 = vld [vmem:[#allocation12 + $0x1d0] sm:$0xff]
    %v3139 = vld [vmem:[#allocation12 + $0x1d8] sm:$0xff]
    %v3140 = vld [vmem:[#allocation12 + $0x1e0] sm:$0xff]
    %v3141 = vld [vmem:[#allocation12 + $0x1e8] sm:$0xff]
    %v3142 = vld [vmem:[#allocation12 + $0x1f0] sm:$0xff]
    %v3143 = vld [vmem:[#allocation12 + $0x1f8] sm:$0xff]
    %3144 = vmatprep.subr.mxu0 %v3081
    %3145 = vmatpush1.msra.mxu0 %v3080
    %3146 = vmatprep.subr.mxu0 %v3085
    %3147 = vmatpush1.msra.mxu0 %v3084
    %3148 = vmatprep.subr.mxu0 %v3089
    %3149 = vmatpush1.msra.mxu0 %v3088
    %3150 = vmatprep.subr.mxu0 %v3093
    %3151 = vmatpush1.msra.mxu0 %v3092
    %3152 = vmatprep.subr.mxu0 %v3097
    %3153 = vmatpush1.msra.mxu0 %v3096
    %3154 = vmatprep.subr.mxu0 %v3101
    %3155 = vmatpush1.msra.mxu0 %v3100
    %3156 = vmatprep.subr.mxu0 %v3105
    %3157 = vmatpush1.msra.mxu0 %v3104
    %3158 = vmatprep.subr.mxu0 %v3109
    %3159 = vmatpush1.msra.mxu0 %v3108
    %3160 = vmatprep.subr.mxu0 %v3113
    %3161 = vmatpush1.msra.mxu0 %v3112
    %3162 = vmatprep.subr.mxu0 %v3117
    %3163 = vmatpush1.msra.mxu0 %v3116
    %3164 = vmatprep.subr.mxu0 %v3121
    %3165 = vmatpush1.msra.mxu0 %v3120
    %3166 = vmatprep.subr.mxu0 %v3125
    %3167 = vmatpush1.msra.mxu0 %v3124
    %3168 = vmatprep.subr.mxu0 %v3129
    %3169 = vmatpush1.msra.mxu0 %v3128
    %3170 = vmatprep.subr.mxu0 %v3133
    %3171 = vmatpush1.msra.mxu0 %v3132
    %3172 = vmatprep.subr.mxu0 %v3137
    %3173 = vmatpush1.msra.mxu0 %v3136
    %3174 = vmatprep.subr.mxu0 %v3141
    %3175 = vmatpush1.msra.mxu0 %v3140
    %3176 = vmatprep.subr.mxu0 0.0
    %3177 = vmatpush1.msra.mxu0 0.0
    %3178 = vmatprep.subr.mxu0 0.0
    %3179 = vmatpush1.msra.mxu0 0.0
    %3180 = vmatprep.subr.mxu0 0.0
    %3181 = vmatpush1.msra.mxu0 0.0
    %3182 = vmatprep.subr.mxu0 0.0
    %3183 = vmatpush1.msra.mxu0 0.0
    %3184 = vmatprep.subr.mxu0 0.0
    %3185 = vmatpush1.msra.mxu0 0.0
    %3186 = vmatprep.subr.mxu0 0.0
    %3187 = vmatpush1.msra.mxu0 0.0
    %3188 = vmatprep.subr.mxu0 0.0
    %3189 = vmatpush1.msra.mxu0 0.0
    %3190 = vmatprep.subr.mxu0 0.0
    %3191 = vmatpush1.msra.mxu0 0.0
    %3192 = vmatprep.subr.mxu0 0.0
    %3193 = vmatpush1.msra.mxu0 0.0
    %3194 = vmatprep.subr.mxu0 0.0
    %3195 = vmatpush1.msra.mxu0 0.0
    %3196 = vmatprep.subr.mxu0 0.0
    %3197 = vmatpush1.msra.mxu0 0.0
    %3198 = vmatprep.subr.mxu0 0.0
    %3199 = vmatpush1.msra.mxu0 0.0
    %3200 = vmatprep.subr.mxu0 0.0
    %3201 = vmatpush1.msra.mxu0 0.0
    %3202 = vmatprep.subr.mxu0 0.0
    %3203 = vmatpush1.msra.mxu0 0.0
    %3204 = vmatprep.subr.mxu0 0.0
    %3205 = vmatpush1.msra.mxu0 0.0
    %3206 = vmatprep.subr.mxu0 0.0
    %3207 = vmatpush1.msra.mxu0 0.0
    %3208 = vmatprep.mubr.f32.mxu0 0.0
    %3209 = vmatmul.mubr.f32.gmra.mrb[0].mxu0 %v2760
    %v3210 = vpop.f32.mrb[0].mxu0
    %v3211 = vadd.f32 0.0, %v3210
    %v3212 = vpop.f32.mrb[0].mxu0
    %v3213 = vadd.f32 0.0, %v3212
    %3214 = vdwg.mxu0
    %3215 = vmatprep.subr.mxu0 %v3083
    %3216 = vmatpush1.msra.mxu0 %v3082
    %3217 = vmatprep.subr.mxu0 %v3087
    %3218 = vmatpush1.msra.mxu0 %v3086
    %3219 = vmatprep.subr.mxu0 %v3091
    %3220 = vmatpush1.msra.mxu0 %v3090
    %3221 = vmatprep.subr.mxu0 %v3095
    %3222 = vmatpush1.msra.mxu0 %v3094
    %3223 = vmatprep.subr.mxu0 %v3099
    %3224 = vmatpush1.msra.mxu0 %v3098
    %3225 = vmatprep.subr.mxu0 %v3103
    %3226 = vmatpush1.msra.mxu0 %v3102
    %3227 = vmatprep.subr.mxu0 %v3107
    %3228 = vmatpush1.msra.mxu0 %v3106
    %3229 = vmatprep.subr.mxu0 %v3111
    %3230 = vmatpush1.msra.mxu0 %v3110
    %3231 = vmatprep.subr.mxu0 %v3115
    %3232 = vmatpush1.msra.mxu0 %v3114
    %3233 = vmatprep.subr.mxu0 %v3119
    %3234 = vmatpush1.msra.mxu0 %v3118
    %3235 = vmatprep.subr.mxu0 %v3123
    %3236 = vmatpush1.msra.mxu0 %v3122
    %3237 = vmatprep.subr.mxu0 %v3127
    %3238 = vmatpush1.msra.mxu0 %v3126
    %3239 = vmatprep.subr.mxu0 %v3131
    %3240 = vmatpush1.msra.mxu0 %v3130
    %3241 = vmatprep.subr.mxu0 %v3135
    %3242 = vmatpush1.msra.mxu0 %v3134
    %3243 = vmatprep.subr.mxu0 %v3139
    %3244 = vmatpush1.msra.mxu0 %v3138
    %3245 = vmatprep.subr.mxu0 %v3143
    %3246 = vmatpush1.msra.mxu0 %v3142
    %3247 = vmatprep.subr.mxu0 0.0
    %3248 = vmatpush1.msra.mxu0 0.0
    %3249 = vmatprep.subr.mxu0 0.0
    %3250 = vmatpush1.msra.mxu0 0.0
    %3251 = vmatprep.subr.mxu0 0.0
    %3252 = vmatpush1.msra.mxu0 0.0
    %3253 = vmatprep.subr.mxu0 0.0
    %3254 = vmatpush1.msra.mxu0 0.0
    %3255 = vmatprep.subr.mxu0 0.0
    %3256 = vmatpush1.msra.mxu0 0.0
    %3257 = vmatprep.subr.mxu0 0.0
    %3258 = vmatpush1.msra.mxu0 0.0
    %3259 = vmatprep.subr.mxu0 0.0
    %3260 = vmatpush1.msra.mxu0 0.0
    %3261 = vmatprep.subr.mxu0 0.0
    %3262 = vmatpush1.msra.mxu0 0.0
    %3263 = vmatprep.subr.mxu0 0.0
    %3264 = vmatpush1.msra.mxu0 0.0
    %3265 = vmatprep.subr.mxu0 0.0
    %3266 = vmatpush1.msra.mxu0 0.0
    %3267 = vmatprep.subr.mxu0 0.0
    %3268 = vmatpush1.msra.mxu0 0.0
    %3269 = vmatprep.subr.mxu0 0.0
    %3270 = vmatpush1.msra.mxu0 0.0
    %3271 = vmatprep.subr.mxu0 0.0
    %3272 = vmatpush1.msra.mxu0 0.0
    %3273 = vmatprep.subr.mxu0 0.0
    %3274 = vmatpush1.msra.mxu0 0.0
    %3275 = vmatprep.subr.mxu0 0.0
    %3276 = vmatpush1.msra.mxu0 0.0
    %3277 = vmatprep.subr.mxu0 0.0
    %3278 = vmatpush1.msra.mxu0 0.0
    %3279 = vmatprep.mubr.f32.mxu0 0.0
    %3280 = vmatmul.mubr.f32.gmra.mrb[0].mxu0 %v2760
    %v3281 = vpop.f32.mrb[0].mxu0
    %v3282 = vadd.f32 0.0, %v3281
    %v3283 = vpop.f32.mrb[0].mxu0
    %v3284 = vadd.f32 0.0, %v3283
    %3285 = vdwg.mxu0
    %v3290 = vcombine.low %v3211, %v3213
    %v3291 = vcombine.low %v3282, %v3284
    %v3293 = vunpack.c.l.s4 1966171168
    %v3294 = vunpack.c.0.s8 %v3293
    %v3295 = vlaneseq
    %v3296 = vshrl.u32 %v3295, 7
    %v3297 = vsub.s32 %v3294, %v3296
    %v3298 = vrot.slane %v3290, %v3297
    %v3300 = vunpack.c.l.s4 1966171168
    %v3301 = vunpack.c.0.s8 %v3300
    %v3302 = vlaneseq
    %v3303 = vshrl.u32 %v3302, 7
    %v3304 = vsub.s32 %v3301, %v3303
    %v3305 = vrot.slane %v3291, %v3304
    %v3306 = vcombine.low %v3298, %v3305
    %v3308 = vunpack.c.l.s4 1966171168
    %v3309 = vunpack.c.0.s8 %v3308
    %v3310 = vlaneseq
    %v3311 = vshrl.u32 %v3310, 7
    %v3312 = vsub.s32 %v3309, %v3311
    %v3313 = vrot.slane %v3306, %v3312
    %v3315 = vadd.f32 %v3079, %v3313
    %v3316 = vxor.u32 %v3315, 2147483648
    %v3317 = vmul.f32 %v3316, 1.442695
    %v3318 = vpow.pop %v3317
    %v3319 = vadd.f32 %v3318, 1.0
    %v3320 = vrcp.pop %v3319
    %v3321 = vmul.f32 1.0, %v3320
    %v3323 = vrot.slane %v3315, 1
    %v3325 = vxor.u32 %v3323, 2147483648
    %v3326 = vmul.f32 %v3325, 1.442695
    %v3327 = vpow.pop %v3326
    %v3328 = vadd.f32 %v3327, 1.0
    %v3329 = vrcp.pop %v3328
    %v3330 = vmul.f32 1.0, %v3329
    %v3331 = vrot.slane %v3315, 2
    %v3333 = vtanh.pop %v3331
    %v3334 = vrot.slane %v3315, 3
    %v3336 = vxor.u32 %v3334, 2147483648
    %v3337 = vmul.f32 %v3336, 1.442695
    %v3338 = vpow.pop %v3337
    %v3339 = vadd.f32 %v3338, 1.0
    %v3340 = vrcp.pop %v3339
    %v3341 = vmul.f32 1.0, %v3340
    %v3342 = vmul.f32 %v3330, %v2758
    %v3343 = vmul.f32 %v3321, %v3333
    %v3344 = vadd.f32 %v3342, %v3343
    %v3345 = vtanh.pop %v3344
    %v3346 = vmul.f32 %v3341, %v3345
    %v3347 = vld [vmem:[#allocation4] sm:$0xff]
    %v3348 = vld [vmem:[#allocation4 + $0x8] sm:$0xff]
    %v3349 = vld [vmem:[#allocation4 + $0x10] sm:$0xff]
    %v3350 = vld [vmem:[#allocation4 + $0x18] sm:$0xff]
    %v3351 = vld [vmem:[#allocation4 + $0x20] sm:$0xff]
    %v3352 = vld [vmem:[#allocation4 + $0x28] sm:$0xff]
    %v3353 = vld [vmem:[#allocation4 + $0x30] sm:$0xff]
    %v3354 = vld [vmem:[#allocation4 + $0x38] sm:$0xff]
    %v3355 = vld [vmem:[#allocation4 + $0x40] sm:$0xff]
    %v3356 = vld [vmem:[#allocation4 + $0x48] sm:$0xff]
    %v3357 = vld [vmem:[#allocation4 + $0x50] sm:$0xff]
    %v3358 = vld [vmem:[#allocation4 + $0x58] sm:$0xff]
    %v3359 = vld [vmem:[#allocation4 + $0x60] sm:$0xff]
    %v3360 = vld [vmem:[#allocation4 + $0x68] sm:$0xff]
    %v3361 = vld [vmem:[#allocation4 + $0x70] sm:$0xff]
    %v3362 = vld [vmem:[#allocation4 + $0x78] sm:$0xff]
    %v3363 = vld [vmem:[#allocation4 + $0x80] sm:$0xff]
    %v3364 = vld [vmem:[#allocation4 + $0x88] sm:$0xff]
    %v3365 = vld [vmem:[#allocation4 + $0x90] sm:$0xff]
    %v3366 = vld [vmem:[#allocation4 + $0x98] sm:$0xff]
    %v3367 = vld [vmem:[#allocation4 + $0xa0] sm:$0xff]
    %v3368 = vld [vmem:[#allocation4 + $0xa8] sm:$0xff]
    %v3369 = vld [vmem:[#allocation4 + $0xb0] sm:$0xff]
    %v3370 = vld [vmem:[#allocation4 + $0xb8] sm:$0xff]
    %v3371 = vld [vmem:[#allocation4 + $0xc0] sm:$0xff]
    %v3372 = vld [vmem:[#allocation4 + $0xc8] sm:$0xff]
    %v3373 = vld [vmem:[#allocation4 + $0xd0] sm:$0xff]
    %v3374 = vld [vmem:[#allocation4 + $0xd8] sm:$0xff]
    %v3375 = vld [vmem:[#allocation4 + $0xe0] sm:$0xff]
    %v3376 = vld [vmem:[#allocation4 + $0xe8] sm:$0xff]
    %v3377 = vld [vmem:[#allocation4 + $0xf0] sm:$0xff]
    %v3378 = vld [vmem:[#allocation4 + $0xf8] sm:$0xff]
    %v3379 = vld [vmem:[#allocation4 + $0x100] sm:$0xff]
    %v3380 = vld [vmem:[#allocation4 + $0x108] sm:$0xff]
    %v3381 = vld [vmem:[#allocation4 + $0x110] sm:$0xff]
    %v3382 = vld [vmem:[#allocation4 + $0x118] sm:$0xff]
    %v3383 = vld [vmem:[#allocation4 + $0x120] sm:$0xff]
    %v3384 = vld [vmem:[#allocation4 + $0x128] sm:$0xff]
    %v3385 = vld [vmem:[#allocation4 + $0x130] sm:$0xff]
    %v3386 = vld [vmem:[#allocation4 + $0x138] sm:$0xff]
    %v3387 = vld [vmem:[#allocation4 + $0x140] sm:$0xff]
    %v3388 = vld [vmem:[#allocation4 + $0x148] sm:$0xff]
    %v3389 = vld [vmem:[#allocation4 + $0x150] sm:$0xff]
    %v3390 = vld [vmem:[#allocation4 + $0x158] sm:$0xff]
    %v3391 = vld [vmem:[#allocation4 + $0x160] sm:$0xff]
    %v3392 = vld [vmem:[#allocation4 + $0x168] sm:$0xff]
    %v3393 = vld [vmem:[#allocation4 + $0x170] sm:$0xff]
    %v3394 = vld [vmem:[#allocation4 + $0x178] sm:$0xff]
    %v3395 = vld [vmem:[#allocation4 + $0x180] sm:$0xff]
    %v3396 = vld [vmem:[#allocation4 + $0x188] sm:$0xff]
    %v3397 = vld [vmem:[#allocation4 + $0x190] sm:$0xff]
    %v3398 = vld [vmem:[#allocation4 + $0x198] sm:$0xff]
    %v3399 = vld [vmem:[#allocation4 + $0x1a0] sm:$0xff]
    %v3400 = vld [vmem:[#allocation4 + $0x1a8] sm:$0xff]
    %v3401 = vld [vmem:[#allocation4 + $0x1b0] sm:$0xff]
    %v3402 = vld [vmem:[#allocation4 + $0x1b8] sm:$0xff]
    %v3403 = vld [vmem:[#allocation4 + $0x1c0] sm:$0xff]
    %v3404 = vld [vmem:[#allocation4 + $0x1c8] sm:$0xff]
    %v3405 = vld [vmem:[#allocation4 + $0x1d0] sm:$0xff]
    %v3406 = vld [vmem:[#allocation4 + $0x1d8] sm:$0xff]
    %v3407 = vld [vmem:[#allocation4 + $0x1e0] sm:$0xff]
    %v3408 = vld [vmem:[#allocation4 + $0x1e8] sm:$0xff]
    %v3409 = vld [vmem:[#allocation4 + $0x1f0] sm:$0xff]
    %v3410 = vld [vmem:[#allocation4 + $0x1f8] sm:$0xff]
    %v3411 = vld [vmem:[#allocation4 + $0x200] sm:$0xff]
    %v3412 = vld [vmem:[#allocation4 + $0x208] sm:$0xff]
    %v3413 = vld [vmem:[#allocation4 + $0x210] sm:$0xff]
    %v3414 = vld [vmem:[#allocation4 + $0x218] sm:$0xff]
    %v3415 = vld [vmem:[#allocation4 + $0x220] sm:$0xff]
    %v3416 = vld [vmem:[#allocation4 + $0x228] sm:$0xff]
    %v3417 = vld [vmem:[#allocation4 + $0x230] sm:$0xff]
    %v3418 = vld [vmem:[#allocation4 + $0x238] sm:$0xff]
    %v3419 = vld [vmem:[#allocation4 + $0x240] sm:$0xff]
    %v3420 = vld [vmem:[#allocation4 + $0x248] sm:$0xff]
    %v3421 = vld [vmem:[#allocation4 + $0x250] sm:$0xff]
    %v3422 = vld [vmem:[#allocation4 + $0x258] sm:$0xff]
    %v3423 = vld [vmem:[#allocation4 + $0x260] sm:$0xff]
    %v3424 = vld [vmem:[#allocation4 + $0x268] sm:$0xff]
    %v3425 = vld [vmem:[#allocation4 + $0x270] sm:$0xff]
    %v3426 = vld [vmem:[#allocation4 + $0x278] sm:$0xff]
    %v3427 = vld [vmem:[#allocation4 + $0x280] sm:$0xff]
    %v3428 = vld [vmem:[#allocation4 + $0x288] sm:$0xff]
    %v3429 = vld [vmem:[#allocation4 + $0x290] sm:$0xff]
    %v3430 = vld [vmem:[#allocation4 + $0x298] sm:$0xff]
    %v3431 = vld [vmem:[#allocation4 + $0x2a0] sm:$0xff]
    %v3432 = vld [vmem:[#allocation4 + $0x2a8] sm:$0xff]
    %v3433 = vld [vmem:[#allocation4 + $0x2b0] sm:$0xff]
    %v3434 = vld [vmem:[#allocation4 + $0x2b8] sm:$0xff]
    %v3435 = vld [vmem:[#allocation4 + $0x2c0] sm:$0xff]
    %v3436 = vld [vmem:[#allocation4 + $0x2c8] sm:$0xff]
    %v3437 = vld [vmem:[#allocation4 + $0x2d0] sm:$0xff]
    %v3438 = vld [vmem:[#allocation4 + $0x2d8] sm:$0xff]
    %v3439 = vld [vmem:[#allocation4 + $0x2e0] sm:$0xff]
    %v3440 = vld [vmem:[#allocation4 + $0x2e8] sm:$0xff]
    %v3441 = vld [vmem:[#allocation4 + $0x2f0] sm:$0xff]
    %v3442 = vld [vmem:[#allocation4 + $0x2f8] sm:$0xff]
    %v3443 = vld [vmem:[#allocation4 + $0x300] sm:$0xff]
    %v3444 = vld [vmem:[#allocation4 + $0x308] sm:$0xff]
    %v3445 = vld [vmem:[#allocation4 + $0x310] sm:$0xff]
    %v3446 = vld [vmem:[#allocation4 + $0x318] sm:$0xff]
    %v3447 = vld [vmem:[#allocation4 + $0x320] sm:$0xff]
    %v3448 = vld [vmem:[#allocation4 + $0x328] sm:$0xff]
    %v3449 = vld [vmem:[#allocation4 + $0x330] sm:$0xff]
    %v3450 = vld [vmem:[#allocation4 + $0x338] sm:$0xff]
    %v3451 = vld [vmem:[#allocation4 + $0x340] sm:$0xff]
    %v3452 = vld [vmem:[#allocation4 + $0x348] sm:$0xff]
    %v3453 = vld [vmem:[#allocation4 + $0x350] sm:$0xff]
    %v3454 = vld [vmem:[#allocation4 + $0x358] sm:$0xff]
    %v3455 = vld [vmem:[#allocation4 + $0x360] sm:$0xff]
    %v3456 = vld [vmem:[#allocation4 + $0x368] sm:$0xff]
    %v3457 = vld [vmem:[#allocation4 + $0x370] sm:$0xff]
    %v3458 = vld [vmem:[#allocation4 + $0x378] sm:$0xff]
    %v3459 = vld [vmem:[#allocation4 + $0x380] sm:$0xff]
    %v3460 = vld [vmem:[#allocation4 + $0x388] sm:$0xff]
    %v3461 = vld [vmem:[#allocation4 + $0x390] sm:$0xff]
    %v3462 = vld [vmem:[#allocation4 + $0x398] sm:$0xff]
    %v3463 = vld [vmem:[#allocation4 + $0x3a0] sm:$0xff]
    %v3464 = vld [vmem:[#allocation4 + $0x3a8] sm:$0xff]
    %v3465 = vld [vmem:[#allocation4 + $0x3b0] sm:$0xff]
    %v3466 = vld [vmem:[#allocation4 + $0x3b8] sm:$0xff]
    %v3467 = vld [vmem:[#allocation4 + $0x3c0] sm:$0xff]
    %v3468 = vld [vmem:[#allocation4 + $0x3c8] sm:$0xff]
    %v3469 = vld [vmem:[#allocation4 + $0x3d0] sm:$0xff]
    %v3470 = vld [vmem:[#allocation4 + $0x3d8] sm:$0xff]
    %v3471 = vld [vmem:[#allocation4 + $0x3e0] sm:$0xff]
    %v3472 = vld [vmem:[#allocation4 + $0x3e8] sm:$0xff]
    %v3473 = vld [vmem:[#allocation4 + $0x3f0] sm:$0xff]
    %v3474 = vld [vmem:[#allocation4 + $0x3f8] sm:$0xff]
    %v3475 = vld [vmem:[#allocation5] sm:$0xf]
    %v3477 = vlaneseq
    %v3478 = vshrl.u32 %v3477, 7
    %v3479 = vsub.s32 0, %v3478
    %v3480 = vrot.slane %v3475, %v3479
    %v3481 = vlaneseq
    %v3482 = vshrl.u32 %v3481, 7
    %v3483 = vsub.s32 1, %v3482
    %v3484 = vrot.slane %v3475, %v3483
    %v3485 = vlaneseq
    %v3486 = vshrl.u32 %v3485, 7
    %v3487 = vsub.s32 2, %v3486
    %v3488 = vrot.slane %v3475, %v3487
    %v3489 = vlaneseq
    %v3490 = vshrl.u32 %v3489, 7
    %v3491 = vsub.s32 3, %v3490
    %v3492 = vrot.slane %v3475, %v3491
    %3497 = vmatprep.subr.mxu0 %v3348
    %3498 = vmatpush1.msra.mxu0 %v3347
    %3499 = vmatprep.subr.mxu0 %v3352
    %3500 = vmatpush1.msra.mxu0 %v3351
    %3501 = vmatprep.subr.mxu0 %v3356
    %3502 = vmatpush1.msra.mxu0 %v3355
    %3503 = vmatprep.subr.mxu0 %v3360
    %3504 = vmatpush1.msra.mxu0 %v3359
    %3505 = vmatprep.subr.mxu0 %v3364
    %3506 = vmatpush1.msra.mxu0 %v3363
    %3507 = vmatprep.subr.mxu0 %v3368
    %3508 = vmatpush1.msra.mxu0 %v3367
    %3509 = vmatprep.subr.mxu0 %v3372
    %3510 = vmatpush1.msra.mxu0 %v3371
    %3511 = vmatprep.subr.mxu0 %v3376
    %3512 = vmatpush1.msra.mxu0 %v3375
    %3513 = vmatprep.subr.mxu0 %v3380
    %3514 = vmatpush1.msra.mxu0 %v3379
    %3515 = vmatprep.subr.mxu0 %v3384
    %3516 = vmatpush1.msra.mxu0 %v3383
    %3517 = vmatprep.subr.mxu0 %v3388
    %3518 = vmatpush1.msra.mxu0 %v3387
    %3519 = vmatprep.subr.mxu0 %v3392
    %3520 = vmatpush1.msra.mxu0 %v3391
    %3521 = vmatprep.subr.mxu0 %v3396
    %3522 = vmatpush1.msra.mxu0 %v3395
    %3523 = vmatprep.subr.mxu0 %v3400
    %3524 = vmatpush1.msra.mxu0 %v3399
    %3525 = vmatprep.subr.mxu0 %v3404
    %3526 = vmatpush1.msra.mxu0 %v3403
    %3527 = vmatprep.subr.mxu0 %v3408
    %3528 = vmatpush1.msra.mxu0 %v3407
    %3529 = vmatprep.subr.mxu0 %v3412
    %3530 = vmatpush1.msra.mxu0 %v3411
    %3531 = vmatprep.subr.mxu0 %v3416
    %3532 = vmatpush1.msra.mxu0 %v3415
    %3533 = vmatprep.subr.mxu0 %v3420
    %3534 = vmatpush1.msra.mxu0 %v3419
    %3535 = vmatprep.subr.mxu0 %v3424
    %3536 = vmatpush1.msra.mxu0 %v3423
    %3537 = vmatprep.subr.mxu0 %v3428
    %3538 = vmatpush1.msra.mxu0 %v3427
    %3539 = vmatprep.subr.mxu0 %v3432
    %3540 = vmatpush1.msra.mxu0 %v3431
    %3541 = vmatprep.subr.mxu0 %v3436
    %3542 = vmatpush1.msra.mxu0 %v3435
    %3543 = vmatprep.subr.mxu0 %v3440
    %3544 = vmatpush1.msra.mxu0 %v3439
    %3545 = vmatprep.subr.mxu0 %v3444
    %3546 = vmatpush1.msra.mxu0 %v3443
    %3547 = vmatprep.subr.mxu0 %v3448
    %3548 = vmatpush1.msra.mxu0 %v3447
    %3549 = vmatprep.subr.mxu0 %v3452
    %3550 = vmatpush1.msra.mxu0 %v3451
    %3551 = vmatprep.subr.mxu0 %v3456
    %3552 = vmatpush1.msra.mxu0 %v3455
    %3553 = vmatprep.subr.mxu0 %v3460
    %3554 = vmatpush1.msra.mxu0 %v3459
    %3555 = vmatprep.subr.mxu0 %v3464
    %3556 = vmatpush1.msra.mxu0 %v3463
    %3557 = vmatprep.subr.mxu0 %v3468
    %3558 = vmatpush1.msra.mxu0 %v3467
    %3559 = vmatprep.subr.mxu0 %v3472
    %3560 = vmatpush1.msra.mxu0 %v3471
    %3561 = vmatprep.mubr.f32.mxu0 %v3076
    %3562 = vmatmul.mubr.f32.gmra.mrb[0].mxu0 %v2760
    %v3563 = vpop.f32.mrb[0].mxu0
    %v3564 = vadd.f32 %v3480, %v3563
    %v3565 = vpop.f32.mrb[0].mxu0
    %v3566 = vadd.f32 %v3484, %v3565
    %3567 = vdwg.mxu0
    %3568 = vmatprep.subr.mxu0 %v3350
    %3569 = vmatpush1.msra.mxu0 %v3349
    %3570 = vmatprep.subr.mxu0 %v3354
    %3571 = vmatpush1.msra.mxu0 %v3353
    %3572 = vmatprep.subr.mxu0 %v3358
    %3573 = vmatpush1.msra.mxu0 %v3357
    %3574 = vmatprep.subr.mxu0 %v3362
    %3575 = vmatpush1.msra.mxu0 %v3361
    %3576 = vmatprep.subr.mxu0 %v3366
    %3577 = vmatpush1.msra.mxu0 %v3365
    %3578 = vmatprep.subr.mxu0 %v3370
    %3579 = vmatpush1.msra.mxu0 %v3369
    %3580 = vmatprep.subr.mxu0 %v3374
    %3581 = vmatpush1.msra.mxu0 %v3373
    %3582 = vmatprep.subr.mxu0 %v3378
    %3583 = vmatpush1.msra.mxu0 %v3377
    %3584 = vmatprep.subr.mxu0 %v3382
    %3585 = vmatpush1.msra.mxu0 %v3381
    %3586 = vmatprep.subr.mxu0 %v3386
    %3587 = vmatpush1.msra.mxu0 %v3385
    %3588 = vmatprep.subr.mxu0 %v3390
    %3589 = vmatpush1.msra.mxu0 %v3389
    %3590 = vmatprep.subr.mxu0 %v3394
    %3591 = vmatpush1.msra.mxu0 %v3393
    %3592 = vmatprep.subr.mxu0 %v3398
    %3593 = vmatpush1.msra.mxu0 %v3397
    %3594 = vmatprep.subr.mxu0 %v3402
    %3595 = vmatpush1.msra.mxu0 %v3401
    %3596 = vmatprep.subr.mxu0 %v3406
    %3597 = vmatpush1.msra.mxu0 %v3405
    %3598 = vmatprep.subr.mxu0 %v3410
    %3599 = vmatpush1.msra.mxu0 %v3409
    %3600 = vmatprep.subr.mxu0 %v3414
    %3601 = vmatpush1.msra.mxu0 %v3413
    %3602 = vmatprep.subr.mxu0 %v3418
    %3603 = vmatpush1.msra.mxu0 %v3417
    %3604 = vmatprep.subr.mxu0 %v3422
    %3605 = vmatpush1.msra.mxu0 %v3421
    %3606 = vmatprep.subr.mxu0 %v3426
    %3607 = vmatpush1.msra.mxu0 %v3425
    %3608 = vmatprep.subr.mxu0 %v3430
    %3609 = vmatpush1.msra.mxu0 %v3429
    %3610 = vmatprep.subr.mxu0 %v3434
    %3611 = vmatpush1.msra.mxu0 %v3433
    %3612 = vmatprep.subr.mxu0 %v3438
    %3613 = vmatpush1.msra.mxu0 %v3437
    %3614 = vmatprep.subr.mxu0 %v3442
    %3615 = vmatpush1.msra.mxu0 %v3441
    %3616 = vmatprep.subr.mxu0 %v3446
    %3617 = vmatpush1.msra.mxu0 %v3445
    %3618 = vmatprep.subr.mxu0 %v3450
    %3619 = vmatpush1.msra.mxu0 %v3449
    %3620 = vmatprep.subr.mxu0 %v3454
    %3621 = vmatpush1.msra.mxu0 %v3453
    %3622 = vmatprep.subr.mxu0 %v3458
    %3623 = vmatpush1.msra.mxu0 %v3457
    %3624 = vmatprep.subr.mxu0 %v3462
    %3625 = vmatpush1.msra.mxu0 %v3461
    %3626 = vmatprep.subr.mxu0 %v3466
    %3627 = vmatpush1.msra.mxu0 %v3465
    %3628 = vmatprep.subr.mxu0 %v3470
    %3629 = vmatpush1.msra.mxu0 %v3469
    %3630 = vmatprep.subr.mxu0 %v3474
    %3631 = vmatpush1.msra.mxu0 %v3473
    %3632 = vmatprep.mubr.f32.mxu0 %v3076
    %3633 = vmatmul.mubr.f32.gmra.mrb[0].mxu0 %v2760
    %v3634 = vpop.f32.mrb[0].mxu0
    %v3635 = vadd.f32 %v3488, %v3634
    %v3636 = vpop.f32.mrb[0].mxu0
    %v3637 = vadd.f32 %v3492, %v3636
    %3638 = vdwg.mxu0
    %v3639 = vxor.u32 %v3564, 2147483648
    %v3640 = vmul.f32 %v3639, 1.442695
    %v3641 = vpow.pop %v3640
    %v3642 = vadd.f32 %v3641, 1.0
    %v3643 = vrcp.pop %v3642
    %v3644 = vmul.f32 1.0, %v3643
    %v3645 = vxor.u32 %v3566, 2147483648
    %v3646 = vmul.f32 %v3645, 1.442695
    %v3647 = vpow.pop %v3646
    %v3648 = vadd.f32 %v3647, 1.0
    %v3649 = vrcp.pop %v3648
    %v3650 = vmul.f32 1.0, %v3649
    %v3651 = vtanh.pop %v3635
    %v3652 = vxor.u32 %v3637, 2147483648
    %v3653 = vmul.f32 %v3652, 1.442695
    %v3654 = vpow.pop %v3653
    %v3655 = vadd.f32 %v3654, 1.0
    %v3656 = vrcp.pop %v3655
    %v3657 = vmul.f32 1.0, %v3656
    %v3658 = vmul.f32 %v3650, %v3074
    %v3659 = vmul.f32 %v3644, %v3651
    %v3660 = vadd.f32 %v3658, %v3659
    %v3661 = vtanh.pop %v3660
    %v3662 = vmul.f32 %v3657, %v3661
    %3663 = vst [vmem:[#allocation3 + $0x3] sm:$0x1] %v3662
    %s3664 = scalar_lea.vmem [#allocation2], 5
    %v3665 = vld [vmem:[%s3664] ss:$8 sm:$0xf]
    %v3666 = vld [vmem:[#allocation12] sm:$0xff]
    %v3667 = vld [vmem:[#allocation12 + $0x8] sm:$0xff]
    %v3668 = vld [vmem:[#allocation12 + $0x10] sm:$0xff]
    %v3669 = vld [vmem:[#allocation12 + $0x18] sm:$0xff]
    %v3670 = vld [vmem:[#allocation12 + $0x20] sm:$0xff]
    %v3671 = vld [vmem:[#allocation12 + $0x28] sm:$0xff]
    %v3672 = vld [vmem:[#allocation12 + $0x30] sm:$0xff]
    %v3673 = vld [vmem:[#allocation12 + $0x38] sm:$0xff]
    %v3674 = vld [vmem:[#allocation12 + $0x40] sm:$0xff]
    %v3675 = vld [vmem:[#allocation12 + $0x48] sm:$0xff]
    %v3676 = vld [vmem:[#allocation12 + $0x50] sm:$0xff]
    %v3677 = vld [vmem:[#allocation12 + $0x58] sm:$0xff]
    %v3678 = vld [vmem:[#allocation12 + $0x60] sm:$0xff]
    %v3679 = vld [vmem:[#allocation12 + $0x68] sm:$0xff]
    %v3680 = vld [vmem:[#allocation12 + $0x70] sm:$0xff]
    %v3681 = vld [vmem:[#allocation12 + $0x78] sm:$0xff]
    %v3682 = vld [vmem:[#allocation12 + $0x80] sm:$0xff]
    %v3683 = vld [vmem:[#allocation12 + $0x88] sm:$0xff]
    %v3684 = vld [vmem:[#allocation12 + $0x90] sm:$0xff]
    %v3685 = vld [vmem:[#allocation12 + $0x98] sm:$0xff]
    %v3686 = vld [vmem:[#allocation12 + $0xa0] sm:$0xff]
    %v3687 = vld [vmem:[#allocation12 + $0xa8] sm:$0xff]
    %v3688 = vld [vmem:[#allocation12 + $0xb0] sm:$0xff]
    %v3689 = vld [vmem:[#allocation12 + $0xb8] sm:$0xff]
    %v3690 = vld [vmem:[#allocation12 + $0xc0] sm:$0xff]
    %v3691 = vld [vmem:[#allocation12 + $0xc8] sm:$0xff]
    %v3692 = vld [vmem:[#allocation12 + $0xd0] sm:$0xff]
    %v3693 = vld [vmem:[#allocation12 + $0xd8] sm:$0xff]
    %v3694 = vld [vmem:[#allocation12 + $0xe0] sm:$0xff]
    %v3695 = vld [vmem:[#allocation12 + $0xe8] sm:$0xff]
    %v3696 = vld [vmem:[#allocation12 + $0xf0] sm:$0xff]
    %v3697 = vld [vmem:[#allocation12 + $0xf8] sm:$0xff]
    %v3698 = vld [vmem:[#allocation12 + $0x100] sm:$0xff]
    %v3699 = vld [vmem:[#allocation12 + $0x108] sm:$0xff]
    %v3700 = vld [vmem:[#allocation12 + $0x110] sm:$0xff]
    %v3701 = vld [vmem:[#allocation12 + $0x118] sm:$0xff]
    %v3702 = vld [vmem:[#allocation12 + $0x120] sm:$0xff]
    %v3703 = vld [vmem:[#allocation12 + $0x128] sm:$0xff]
    %v3704 = vld [vmem:[#allocation12 + $0x130] sm:$0xff]
    %v3705 = vld [vmem:[#allocation12 + $0x138] sm:$0xff]
    %v3706 = vld [vmem:[#allocation12 + $0x140] sm:$0xff]
    %v3707 = vld [vmem:[#allocation12 + $0x148] sm:$0xff]
    %v3708 = vld [vmem:[#allocation12 + $0x150] sm:$0xff]
    %v3709 = vld [vmem:[#allocation12 + $0x158] sm:$0xff]
    %v3710 = vld [vmem:[#allocation12 + $0x160] sm:$0xff]
    %v3711 = vld [vmem:[#allocation12 + $0x168] sm:$0xff]
    %v3712 = vld [vmem:[#allocation12 + $0x170] sm:$0xff]
    %v3713 = vld [vmem:[#allocation12 + $0x178] sm:$0xff]
    %v3714 = vld [vmem:[#allocation12 + $0x180] sm:$0xff]
    %v3715 = vld [vmem:[#allocation12 + $0x188] sm:$0xff]
    %v3716 = vld [vmem:[#allocation12 + $0x190] sm:$0xff]
    %v3717 = vld [vmem:[#allocation12 + $0x198] sm:$0xff]
    %v3718 = vld [vmem:[#allocation12 + $0x1a0] sm:$0xff]
    %v3719 = vld [vmem:[#allocation12 + $0x1a8] sm:$0xff]
    %v3720 = vld [vmem:[#allocation12 + $0x1b0] sm:$0xff]
    %v3721 = vld [vmem:[#allocation12 + $0x1b8] sm:$0xff]
    %v3722 = vld [vmem:[#allocation12 + $0x1c0] sm:$0xff]
    %v3723 = vld [vmem:[#allocation12 + $0x1c8] sm:$0xff]
    %v3724 = vld [vmem:[#allocation12 + $0x1d0] sm:$0xff]
    %v3725 = vld [vmem:[#allocation12 + $0x1d8] sm:$0xff]
    %v3726 = vld [vmem:[#allocation12 + $0x1e0] sm:$0xff]
    %v3727 = vld [vmem:[#allocation12 + $0x1e8] sm:$0xff]
    %v3728 = vld [vmem:[#allocation12 + $0x1f0] sm:$0xff]
    %v3729 = vld [vmem:[#allocation12 + $0x1f8] sm:$0xff]
    %3730 = vmatprep.subr.mxu0 %v3667
    %3731 = vmatpush1.msra.mxu0 %v3666
    %3732 = vmatprep.subr.mxu0 %v3671
    %3733 = vmatpush1.msra.mxu0 %v3670
    %3734 = vmatprep.subr.mxu0 %v3675
    %3735 = vmatpush1.msra.mxu0 %v3674
    %3736 = vmatprep.subr.mxu0 %v3679
    %3737 = vmatpush1.msra.mxu0 %v3678
    %3738 = vmatprep.subr.mxu0 %v3683
    %3739 = vmatpush1.msra.mxu0 %v3682
    %3740 = vmatprep.subr.mxu0 %v3687
    %3741 = vmatpush1.msra.mxu0 %v3686
    %3742 = vmatprep.subr.mxu0 %v3691
    %3743 = vmatpush1.msra.mxu0 %v3690
    %3744 = vmatprep.subr.mxu0 %v3695
    %3745 = vmatpush1.msra.mxu0 %v3694
    %3746 = vmatprep.subr.mxu0 %v3699
    %3747 = vmatpush1.msra.mxu0 %v3698
    %3748 = vmatprep.subr.mxu0 %v3703
    %3749 = vmatpush1.msra.mxu0 %v3702
    %3750 = vmatprep.subr.mxu0 %v3707
    %3751 = vmatpush1.msra.mxu0 %v3706
    %3752 = vmatprep.subr.mxu0 %v3711
    %3753 = vmatpush1.msra.mxu0 %v3710
    %3754 = vmatprep.subr.mxu0 %v3715
    %3755 = vmatpush1.msra.mxu0 %v3714
    %3756 = vmatprep.subr.mxu0 %v3719
    %3757 = vmatpush1.msra.mxu0 %v3718
    %3758 = vmatprep.subr.mxu0 %v3723
    %3759 = vmatpush1.msra.mxu0 %v3722
    %3760 = vmatprep.subr.mxu0 %v3727
    %3761 = vmatpush1.msra.mxu0 %v3726
    %3762 = vmatprep.subr.mxu0 0.0
    %3763 = vmatpush1.msra.mxu0 0.0
    %3764 = vmatprep.subr.mxu0 0.0
    %3765 = vmatpush1.msra.mxu0 0.0
    %3766 = vmatprep.subr.mxu0 0.0
    %3767 = vmatpush1.msra.mxu0 0.0
    %3768 = vmatprep.subr.mxu0 0.0
    %3769 = vmatpush1.msra.mxu0 0.0
    %3770 = vmatprep.subr.mxu0 0.0
    %3771 = vmatpush1.msra.mxu0 0.0
    %3772 = vmatprep.subr.mxu0 0.0
    %3773 = vmatpush1.msra.mxu0 0.0
    %3774 = vmatprep.subr.mxu0 0.0
    %3775 = vmatpush1.msra.mxu0 0.0
    %3776 = vmatprep.subr.mxu0 0.0
    %3777 = vmatpush1.msra.mxu0 0.0
    %3778 = vmatprep.subr.mxu0 0.0
    %3779 = vmatpush1.msra.mxu0 0.0
    %3780 = vmatprep.subr.mxu0 0.0
    %3781 = vmatpush1.msra.mxu0 0.0
    %3782 = vmatprep.subr.mxu0 0.0
    %3783 = vmatpush1.msra.mxu0 0.0
    %3784 = vmatprep.subr.mxu0 0.0
    %3785 = vmatpush1.msra.mxu0 0.0
    %3786 = vmatprep.subr.mxu0 0.0
    %3787 = vmatpush1.msra.mxu0 0.0
    %3788 = vmatprep.subr.mxu0 0.0
    %3789 = vmatpush1.msra.mxu0 0.0
    %3790 = vmatprep.subr.mxu0 0.0
    %3791 = vmatpush1.msra.mxu0 0.0
    %3792 = vmatprep.subr.mxu0 0.0
    %3793 = vmatpush1.msra.mxu0 0.0
    %3794 = vmatprep.mubr.f32.mxu0 0.0
    %3795 = vmatmul.mubr.f32.gmra.mrb[0].mxu0 %v3346
    %v3796 = vpop.f32.mrb[0].mxu0
    %v3797 = vadd.f32 0.0, %v3796
    %v3798 = vpop.f32.mrb[0].mxu0
    %v3799 = vadd.f32 0.0, %v3798
    %3800 = vdwg.mxu0
    %3801 = vmatprep.subr.mxu0 %v3669
    %3802 = vmatpush1.msra.mxu0 %v3668
    %3803 = vmatprep.subr.mxu0 %v3673
    %3804 = vmatpush1.msra.mxu0 %v3672
    %3805 = vmatprep.subr.mxu0 %v3677
    %3806 = vmatpush1.msra.mxu0 %v3676
    %3807 = vmatprep.subr.mxu0 %v3681
    %3808 = vmatpush1.msra.mxu0 %v3680
    %3809 = vmatprep.subr.mxu0 %v3685
    %3810 = vmatpush1.msra.mxu0 %v3684
    %3811 = vmatprep.subr.mxu0 %v3689
    %3812 = vmatpush1.msra.mxu0 %v3688
    %3813 = vmatprep.subr.mxu0 %v3693
    %3814 = vmatpush1.msra.mxu0 %v3692
    %3815 = vmatprep.subr.mxu0 %v3697
    %3816 = vmatpush1.msra.mxu0 %v3696
    %3817 = vmatprep.subr.mxu0 %v3701
    %3818 = vmatpush1.msra.mxu0 %v3700
    %3819 = vmatprep.subr.mxu0 %v3705
    %3820 = vmatpush1.msra.mxu0 %v3704
    %3821 = vmatprep.subr.mxu0 %v3709
    %3822 = vmatpush1.msra.mxu0 %v3708
    %3823 = vmatprep.subr.mxu0 %v3713
    %3824 = vmatpush1.msra.mxu0 %v3712
    %3825 = vmatprep.subr.mxu0 %v3717
    %3826 = vmatpush1.msra.mxu0 %v3716
    %3827 = vmatprep.subr.mxu0 %v3721
    %3828 = vmatpush1.msra.mxu0 %v3720
    %3829 = vmatprep.subr.mxu0 %v3725
    %3830 = vmatpush1.msra.mxu0 %v3724
    %3831 = vmatprep.subr.mxu0 %v3729
    %3832 = vmatpush1.msra.mxu0 %v3728
    %3833 = vmatprep.subr.mxu0 0.0
    %3834 = vmatpush1.msra.mxu0 0.0
    %3835 = vmatprep.subr.mxu0 0.0
    %3836 = vmatpush1.msra.mxu0 0.0
    %3837 = vmatprep.subr.mxu0 0.0
    %3838 = vmatpush1.msra.mxu0 0.0
    %3839 = vmatprep.subr.mxu0 0.0
    %3840 = vmatpush1.msra.mxu0 0.0
    %3841 = vmatprep.subr.mxu0 0.0
    %3842 = vmatpush1.msra.mxu0 0.0
    %3843 = vmatprep.subr.mxu0 0.0
    %3844 = vmatpush1.msra.mxu0 0.0
    %3845 = vmatprep.subr.mxu0 0.0
    %3846 = vmatpush1.msra.mxu0 0.0
    %3847 = vmatprep.subr.mxu0 0.0
    %3848 = vmatpush1.msra.mxu0 0.0
    %3849 = vmatprep.subr.mxu0 0.0
    %3850 = vmatpush1.msra.mxu0 0.0
    %3851 = vmatprep.subr.mxu0 0.0
    %3852 = vmatpush1.msra.mxu0 0.0
    %3853 = vmatprep.subr.mxu0 0.0
    %3854 = vmatpush1.msra.mxu0 0.0
    %3855 = vmatprep.subr.mxu0 0.0
    %3856 = vmatpush1.msra.mxu0 0.0
    %3857 = vmatprep.subr.mxu0 0.0
    %3858 = vmatpush1.msra.mxu0 0.0
    %3859 = vmatprep.subr.mxu0 0.0
    %3860 = vmatpush1.msra.mxu0 0.0
    %3861 = vmatprep.subr.mxu0 0.0
    %3862 = vmatpush1.msra.mxu0 0.0
    %3863 = vmatprep.subr.mxu0 0.0
    %3864 = vmatpush1.msra.mxu0 0.0
    %3865 = vmatprep.mubr.f32.mxu0 0.0
    %3866 = vmatmul.mubr.f32.gmra.mrb[0].mxu0 %v3346
    %v3867 = vpop.f32.mrb[0].mxu0
    %v3868 = vadd.f32 0.0, %v3867
    %v3869 = vpop.f32.mrb[0].mxu0
    %v3870 = vadd.f32 0.0, %v3869
    %3871 = vdwg.mxu0
    %v3876 = vcombine.low %v3797, %v3799
    %v3877 = vcombine.low %v3868, %v3870
    %v3879 = vunpack.c.l.s4 1966171168
    %v3880 = vunpack.c.0.s8 %v3879
    %v3881 = vlaneseq
    %v3882 = vshrl.u32 %v3881, 7
    %v3883 = vsub.s32 %v3880, %v3882
    %v3884 = vrot.slane %v3876, %v3883
    %v3886 = vunpack.c.l.s4 1966171168
    %v3887 = vunpack.c.0.s8 %v3886
    %v3888 = vlaneseq
    %v3889 = vshrl.u32 %v3888, 7
    %v3890 = vsub.s32 %v3887, %v3889
    %v3891 = vrot.slane %v3877, %v3890
    %v3892 = vcombine.low %v3884, %v3891
    %v3894 = vunpack.c.l.s4 1966171168
    %v3895 = vunpack.c.0.s8 %v3894
    %v3896 = vlaneseq
    %v3897 = vshrl.u32 %v3896, 7
    %v3898 = vsub.s32 %v3895, %v3897
    %v3899 = vrot.slane %v3892, %v3898
    %v3901 = vadd.f32 %v3665, %v3899
    %v3902 = vxor.u32 %v3901, 2147483648
    %v3903 = vmul.f32 %v3902, 1.442695
    %v3904 = vpow.pop %v3903
    %v3905 = vadd.f32 %v3904, 1.0
    %v3906 = vrcp.pop %v3905
    %v3907 = vmul.f32 1.0, %v3906
    %v3909 = vrot.slane %v3901, 1
    %v3911 = vxor.u32 %v3909, 2147483648
    %v3912 = vmul.f32 %v3911, 1.442695
    %v3913 = vpow.pop %v3912
    %v3914 = vadd.f32 %v3913, 1.0
    %v3915 = vrcp.pop %v3914
    %v3916 = vmul.f32 1.0, %v3915
    %v3917 = vrot.slane %v3901, 2
    %v3919 = vtanh.pop %v3917
    %v3920 = vrot.slane %v3901, 3
    %v3922 = vxor.u32 %v3920, 2147483648
    %v3923 = vmul.f32 %v3922, 1.442695
    %v3924 = vpow.pop %v3923
    %v3925 = vadd.f32 %v3924, 1.0
    %v3926 = vrcp.pop %v3925
    %v3927 = vmul.f32 1.0, %v3926
    %v3928 = vmul.f32 %v3916, %v3344
    %v3929 = vmul.f32 %v3907, %v3919
    %v3930 = vadd.f32 %v3928, %v3929
    %v3931 = vtanh.pop %v3930
    %v3932 = vmul.f32 %v3927, %v3931
    %v3933 = vld [vmem:[#allocation4] sm:$0xff]
    %v3934 = vld [vmem:[#allocation4 + $0x8] sm:$0xff]
    %v3935 = vld [vmem:[#allocation4 + $0x10] sm:$0xff]
    %v3936 = vld [vmem:[#allocation4 + $0x18] sm:$0xff]
    %v3937 = vld [vmem:[#allocation4 + $0x20] sm:$0xff]
    %v3938 = vld [vmem:[#allocation4 + $0x28] sm:$0xff]
    %v3939 = vld [vmem:[#allocation4 + $0x30] sm:$0xff]
    %v3940 = vld [vmem:[#allocation4 + $0x38] sm:$0xff]
    %v3941 = vld [vmem:[#allocation4 + $0x40] sm:$0xff]
    %v3942 = vld [vmem:[#allocation4 + $0x48] sm:$0xff]
    %v3943 = vld [vmem:[#allocation4 + $0x50] sm:$0xff]
    %v3944 = vld [vmem:[#allocation4 + $0x58] sm:$0xff]
    %v3945 = vld [vmem:[#allocation4 + $0x60] sm:$0xff]
    %v3946 = vld [vmem:[#allocation4 + $0x68] sm:$0xff]
    %v3947 = vld [vmem:[#allocation4 + $0x70] sm:$0xff]
    %v3948 = vld [vmem:[#allocation4 + $0x78] sm:$0xff]
    %v3949 = vld [vmem:[#allocation4 + $0x80] sm:$0xff]
    %v3950 = vld [vmem:[#allocation4 + $0x88] sm:$0xff]
    %v3951 = vld [vmem:[#allocation4 + $0x90] sm:$0xff]
    %v3952 = vld [vmem:[#allocation4 + $0x98] sm:$0xff]
    %v3953 = vld [vmem:[#allocation4 + $0xa0] sm:$0xff]
    %v3954 = vld [vmem:[#allocation4 + $0xa8] sm:$0xff]
    %v3955 = vld [vmem:[#allocation4 + $0xb0] sm:$0xff]
    %v3956 = vld [vmem:[#allocation4 + $0xb8] sm:$0xff]
    %v3957 = vld [vmem:[#allocation4 + $0xc0] sm:$0xff]
    %v3958 = vld [vmem:[#allocation4 + $0xc8] sm:$0xff]
    %v3959 = vld [vmem:[#allocation4 + $0xd0] sm:$0xff]
    %v3960 = vld [vmem:[#allocation4 + $0xd8] sm:$0xff]
    %v3961 = vld [vmem:[#allocation4 + $0xe0] sm:$0xff]
    %v3962 = vld [vmem:[#allocation4 + $0xe8] sm:$0xff]
    %v3963 = vld [vmem:[#allocation4 + $0xf0] sm:$0xff]
    %v3964 = vld [vmem:[#allocation4 + $0xf8] sm:$0xff]
    %v3965 = vld [vmem:[#allocation4 + $0x100] sm:$0xff]
    %v3966 = vld [vmem:[#allocation4 + $0x108] sm:$0xff]
    %v3967 = vld [vmem:[#allocation4 + $0x110] sm:$0xff]
    %v3968 = vld [vmem:[#allocation4 + $0x118] sm:$0xff]
    %v3969 = vld [vmem:[#allocation4 + $0x120] sm:$0xff]
    %v3970 = vld [vmem:[#allocation4 + $0x128] sm:$0xff]
    %v3971 = vld [vmem:[#allocation4 + $0x130] sm:$0xff]
    %v3972 = vld [vmem:[#allocation4 + $0x138] sm:$0xff]
    %v3973 = vld [vmem:[#allocation4 + $0x140] sm:$0xff]
    %v3974 = vld [vmem:[#allocation4 + $0x148] sm:$0xff]
    %v3975 = vld [vmem:[#allocation4 + $0x150] sm:$0xff]
    %v3976 = vld [vmem:[#allocation4 + $0x158] sm:$0xff]
    %v3977 = vld [vmem:[#allocation4 + $0x160] sm:$0xff]
    %v3978 = vld [vmem:[#allocation4 + $0x168] sm:$0xff]
    %v3979 = vld [vmem:[#allocation4 + $0x170] sm:$0xff]
    %v3980 = vld [vmem:[#allocation4 + $0x178] sm:$0xff]
    %v3981 = vld [vmem:[#allocation4 + $0x180] sm:$0xff]
    %v3982 = vld [vmem:[#allocation4 + $0x188] sm:$0xff]
    %v3983 = vld [vmem:[#allocation4 + $0x190] sm:$0xff]
    %v3984 = vld [vmem:[#allocation4 + $0x198] sm:$0xff]
    %v3985 = vld [vmem:[#allocation4 + $0x1a0] sm:$0xff]
    %v3986 = vld [vmem:[#allocation4 + $0x1a8] sm:$0xff]
    %v3987 = vld [vmem:[#allocation4 + $0x1b0] sm:$0xff]
    %v3988 = vld [vmem:[#allocation4 + $0x1b8] sm:$0xff]
    %v3989 = vld [vmem:[#allocation4 + $0x1c0] sm:$0xff]
    %v3990 = vld [vmem:[#allocation4 + $0x1c8] sm:$0xff]
    %v3991 = vld [vmem:[#allocation4 + $0x1d0] sm:$0xff]
    %v3992 = vld [vmem:[#allocation4 + $0x1d8] sm:$0xff]
    %v3993 = vld [vmem:[#allocation4 + $0x1e0] sm:$0xff]
    %v3994 = vld [vmem:[#allocation4 + $0x1e8] sm:$0xff]
    %v3995 = vld [vmem:[#allocation4 + $0x1f0] sm:$0xff]
    %v3996 = vld [vmem:[#allocation4 + $0x1f8] sm:$0xff]
    %v3997 = vld [vmem:[#allocation4 + $0x200] sm:$0xff]
    %v3998 = vld [vmem:[#allocation4 + $0x208] sm:$0xff]
    %v3999 = vld [vmem:[#allocation4 + $0x210] sm:$0xff]
    %v4000 = vld [vmem:[#allocation4 + $0x218] sm:$0xff]
    %v4001 = vld [vmem:[#allocation4 + $0x220] sm:$0xff]
    %v4002 = vld [vmem:[#allocation4 + $0x228] sm:$0xff]
    %v4003 = vld [vmem:[#allocation4 + $0x230] sm:$0xff]
    %v4004 = vld [vmem:[#allocation4 + $0x238] sm:$0xff]
    %v4005 = vld [vmem:[#allocation4 + $0x240] sm:$0xff]
    %v4006 = vld [vmem:[#allocation4 + $0x248] sm:$0xff]
    %v4007 = vld [vmem:[#allocation4 + $0x250] sm:$0xff]
    %v4008 = vld [vmem:[#allocation4 + $0x258] sm:$0xff]
    %v4009 = vld [vmem:[#allocation4 + $0x260] sm:$0xff]
    %v4010 = vld [vmem:[#allocation4 + $0x268] sm:$0xff]
    %v4011 = vld [vmem:[#allocation4 + $0x270] sm:$0xff]
    %v4012 = vld [vmem:[#allocation4 + $0x278] sm:$0xff]
    %v4013 = vld [vmem:[#allocation4 + $0x280] sm:$0xff]
    %v4014 = vld [vmem:[#allocation4 + $0x288] sm:$0xff]
    %v4015 = vld [vmem:[#allocation4 + $0x290] sm:$0xff]
    %v4016 = vld [vmem:[#allocation4 + $0x298] sm:$0xff]
    %v4017 = vld [vmem:[#allocation4 + $0x2a0] sm:$0xff]
    %v4018 = vld [vmem:[#allocation4 + $0x2a8] sm:$0xff]
    %v4019 = vld [vmem:[#allocation4 + $0x2b0] sm:$0xff]
    %v4020 = vld [vmem:[#allocation4 + $0x2b8] sm:$0xff]
    %v4021 = vld [vmem:[#allocation4 + $0x2c0] sm:$0xff]
    %v4022 = vld [vmem:[#allocation4 + $0x2c8] sm:$0xff]
    %v4023 = vld [vmem:[#allocation4 + $0x2d0] sm:$0xff]
    %v4024 = vld [vmem:[#allocation4 + $0x2d8] sm:$0xff]
    %v4025 = vld [vmem:[#allocation4 + $0x2e0] sm:$0xff]
    %v4026 = vld [vmem:[#allocation4 + $0x2e8] sm:$0xff]
    %v4027 = vld [vmem:[#allocation4 + $0x2f0] sm:$0xff]
    %v4028 = vld [vmem:[#allocation4 + $0x2f8] sm:$0xff]
    %v4029 = vld [vmem:[#allocation4 + $0x300] sm:$0xff]
    %v4030 = vld [vmem:[#allocation4 + $0x308] sm:$0xff]
    %v4031 = vld [vmem:[#allocation4 + $0x310] sm:$0xff]
    %v4032 = vld [vmem:[#allocation4 + $0x318] sm:$0xff]
    %v4033 = vld [vmem:[#allocation4 + $0x320] sm:$0xff]
    %v4034 = vld [vmem:[#allocation4 + $0x328] sm:$0xff]
    %v4035 = vld [vmem:[#allocation4 + $0x330] sm:$0xff]
    %v4036 = vld [vmem:[#allocation4 + $0x338] sm:$0xff]
    %v4037 = vld [vmem:[#allocation4 + $0x340] sm:$0xff]
    %v4038 = vld [vmem:[#allocation4 + $0x348] sm:$0xff]
    %v4039 = vld [vmem:[#allocation4 + $0x350] sm:$0xff]
    %v4040 = vld [vmem:[#allocation4 + $0x358] sm:$0xff]
    %v4041 = vld [vmem:[#allocation4 + $0x360] sm:$0xff]
    %v4042 = vld [vmem:[#allocation4 + $0x368] sm:$0xff]
    %v4043 = vld [vmem:[#allocation4 + $0x370] sm:$0xff]
    %v4044 = vld [vmem:[#allocation4 + $0x378] sm:$0xff]
    %v4045 = vld [vmem:[#allocation4 + $0x380] sm:$0xff]
    %v4046 = vld [vmem:[#allocation4 + $0x388] sm:$0xff]
    %v4047 = vld [vmem:[#allocation4 + $0x390] sm:$0xff]
    %v4048 = vld [vmem:[#allocation4 + $0x398] sm:$0xff]
    %v4049 = vld [vmem:[#allocation4 + $0x3a0] sm:$0xff]
    %v4050 = vld [vmem:[#allocation4 + $0x3a8] sm:$0xff]
    %v4051 = vld [vmem:[#allocation4 + $0x3b0] sm:$0xff]
    %v4052 = vld [vmem:[#allocation4 + $0x3b8] sm:$0xff]
    %v4053 = vld [vmem:[#allocation4 + $0x3c0] sm:$0xff]
    %v4054 = vld [vmem:[#allocation4 + $0x3c8] sm:$0xff]
    %v4055 = vld [vmem:[#allocation4 + $0x3d0] sm:$0xff]
    %v4056 = vld [vmem:[#allocation4 + $0x3d8] sm:$0xff]
    %v4057 = vld [vmem:[#allocation4 + $0x3e0] sm:$0xff]
    %v4058 = vld [vmem:[#allocation4 + $0x3e8] sm:$0xff]
    %v4059 = vld [vmem:[#allocation4 + $0x3f0] sm:$0xff]
    %v4060 = vld [vmem:[#allocation4 + $0x3f8] sm:$0xff]
    %v4061 = vld [vmem:[#allocation5] sm:$0xf]
    %v4063 = vlaneseq
    %v4064 = vshrl.u32 %v4063, 7
    %v4065 = vsub.s32 0, %v4064
    %v4066 = vrot.slane %v4061, %v4065
    %v4067 = vlaneseq
    %v4068 = vshrl.u32 %v4067, 7
    %v4069 = vsub.s32 1, %v4068
    %v4070 = vrot.slane %v4061, %v4069
    %v4071 = vlaneseq
    %v4072 = vshrl.u32 %v4071, 7
    %v4073 = vsub.s32 2, %v4072
    %v4074 = vrot.slane %v4061, %v4073
    %v4075 = vlaneseq
    %v4076 = vshrl.u32 %v4075, 7
    %v4077 = vsub.s32 3, %v4076
    %v4078 = vrot.slane %v4061, %v4077
    %4083 = vmatprep.subr.mxu0 %v3934
    %4084 = vmatpush1.msra.mxu0 %v3933
    %4085 = vmatprep.subr.mxu0 %v3938
    %4086 = vmatpush1.msra.mxu0 %v3937
    %4087 = vmatprep.subr.mxu0 %v3942
    %4088 = vmatpush1.msra.mxu0 %v3941
    %4089 = vmatprep.subr.mxu0 %v3946
    %4090 = vmatpush1.msra.mxu0 %v3945
    %4091 = vmatprep.subr.mxu0 %v3950
    %4092 = vmatpush1.msra.mxu0 %v3949
    %4093 = vmatprep.subr.mxu0 %v3954
    %4094 = vmatpush1.msra.mxu0 %v3953
    %4095 = vmatprep.subr.mxu0 %v3958
    %4096 = vmatpush1.msra.mxu0 %v3957
    %4097 = vmatprep.subr.mxu0 %v3962
    %4098 = vmatpush1.msra.mxu0 %v3961
    %4099 = vmatprep.subr.mxu0 %v3966
    %4100 = vmatpush1.msra.mxu0 %v3965
    %4101 = vmatprep.subr.mxu0 %v3970
    %4102 = vmatpush1.msra.mxu0 %v3969
    %4103 = vmatprep.subr.mxu0 %v3974
    %4104 = vmatpush1.msra.mxu0 %v3973
    %4105 = vmatprep.subr.mxu0 %v3978
    %4106 = vmatpush1.msra.mxu0 %v3977
    %4107 = vmatprep.subr.mxu0 %v3982
    %4108 = vmatpush1.msra.mxu0 %v3981
    %4109 = vmatprep.subr.mxu0 %v3986
    %4110 = vmatpush1.msra.mxu0 %v3985
    %4111 = vmatprep.subr.mxu0 %v3990
    %4112 = vmatpush1.msra.mxu0 %v3989
    %4113 = vmatprep.subr.mxu0 %v3994
    %4114 = vmatpush1.msra.mxu0 %v3993
    %4115 = vmatprep.subr.mxu0 %v3998
    %4116 = vmatpush1.msra.mxu0 %v3997
    %4117 = vmatprep.subr.mxu0 %v4002
    %4118 = vmatpush1.msra.mxu0 %v4001
    %4119 = vmatprep.subr.mxu0 %v4006
    %4120 = vmatpush1.msra.mxu0 %v4005
    %4121 = vmatprep.subr.mxu0 %v4010
    %4122 = vmatpush1.msra.mxu0 %v4009
    %4123 = vmatprep.subr.mxu0 %v4014
    %4124 = vmatpush1.msra.mxu0 %v4013
    %4125 = vmatprep.subr.mxu0 %v4018
    %4126 = vmatpush1.msra.mxu0 %v4017
    %4127 = vmatprep.subr.mxu0 %v4022
    %4128 = vmatpush1.msra.mxu0 %v4021
    %4129 = vmatprep.subr.mxu0 %v4026
    %4130 = vmatpush1.msra.mxu0 %v4025
    %4131 = vmatprep.subr.mxu0 %v4030
    %4132 = vmatpush1.msra.mxu0 %v4029
    %4133 = vmatprep.subr.mxu0 %v4034
    %4134 = vmatpush1.msra.mxu0 %v4033
    %4135 = vmatprep.subr.mxu0 %v4038
    %4136 = vmatpush1.msra.mxu0 %v4037
    %4137 = vmatprep.subr.mxu0 %v4042
    %4138 = vmatpush1.msra.mxu0 %v4041
    %4139 = vmatprep.subr.mxu0 %v4046
    %4140 = vmatpush1.msra.mxu0 %v4045
    %4141 = vmatprep.subr.mxu0 %v4050
    %4142 = vmatpush1.msra.mxu0 %v4049
    %4143 = vmatprep.subr.mxu0 %v4054
    %4144 = vmatpush1.msra.mxu0 %v4053
    %4145 = vmatprep.subr.mxu0 %v4058
    %4146 = vmatpush1.msra.mxu0 %v4057
    %4147 = vmatprep.mubr.f32.mxu0 %v3662
    %4148 = vmatmul.mubr.f32.gmra.mrb[0].mxu0 %v3346
    %v4149 = vpop.f32.mrb[0].mxu0
    %v4150 = vadd.f32 %v4066, %v4149
    %v4151 = vpop.f32.mrb[0].mxu0
    %v4152 = vadd.f32 %v4070, %v4151
    %4153 = vdwg.mxu0
    %4154 = vmatprep.subr.mxu0 %v3936
    %4155 = vmatpush1.msra.mxu0 %v3935
    %4156 = vmatprep.subr.mxu0 %v3940
    %4157 = vmatpush1.msra.mxu0 %v3939
    %4158 = vmatprep.subr.mxu0 %v3944
    %4159 = vmatpush1.msra.mxu0 %v3943
    %4160 = vmatprep.subr.mxu0 %v3948
    %4161 = vmatpush1.msra.mxu0 %v3947
    %4162 = vmatprep.subr.mxu0 %v3952
    %4163 = vmatpush1.msra.mxu0 %v3951
    %4164 = vmatprep.subr.mxu0 %v3956
    %4165 = vmatpush1.msra.mxu0 %v3955
    %4166 = vmatprep.subr.mxu0 %v3960
    %4167 = vmatpush1.msra.mxu0 %v3959
    %4168 = vmatprep.subr.mxu0 %v3964
    %4169 = vmatpush1.msra.mxu0 %v3963
    %4170 = vmatprep.subr.mxu0 %v3968
    %4171 = vmatpush1.msra.mxu0 %v3967
    %4172 = vmatprep.subr.mxu0 %v3972
    %4173 = vmatpush1.msra.mxu0 %v3971
    %4174 = vmatprep.subr.mxu0 %v3976
    %4175 = vmatpush1.msra.mxu0 %v3975
    %4176 = vmatprep.subr.mxu0 %v3980
    %4177 = vmatpush1.msra.mxu0 %v3979
    %4178 = vmatprep.subr.mxu0 %v3984
    %4179 = vmatpush1.msra.mxu0 %v3983
    %4180 = vmatprep.subr.mxu0 %v3988
    %4181 = vmatpush1.msra.mxu0 %v3987
    %4182 = vmatprep.subr.mxu0 %v3992
    %4183 = vmatpush1.msra.mxu0 %v3991
    %4184 = vmatprep.subr.mxu0 %v3996
    %4185 = vmatpush1.msra.mxu0 %v3995
    %4186 = vmatprep.subr.mxu0 %v4000
    %4187 = vmatpush1.msra.mxu0 %v3999
    %4188 = vmatprep.subr.mxu0 %v4004
    %4189 = vmatpush1.msra.mxu0 %v4003
    %4190 = vmatprep.subr.mxu0 %v4008
    %4191 = vmatpush1.msra.mxu0 %v4007
    %4192 = vmatprep.subr.mxu0 %v4012
    %4193 = vmatpush1.msra.mxu0 %v4011
    %4194 = vmatprep.subr.mxu0 %v4016
    %4195 = vmatpush1.msra.mxu0 %v4015
    %4196 = vmatprep.subr.mxu0 %v4020
    %4197 = vmatpush1.msra.mxu0 %v4019
    %4198 = vmatprep.subr.mxu0 %v4024
    %4199 = vmatpush1.msra.mxu0 %v4023
    %4200 = vmatprep.subr.mxu0 %v4028
    %4201 = vmatpush1.msra.mxu0 %v4027
    %4202 = vmatprep.subr.mxu0 %v4032
    %4203 = vmatpush1.msra.mxu0 %v4031
    %4204 = vmatprep.subr.mxu0 %v4036
    %4205 = vmatpush1.msra.mxu0 %v4035
    %4206 = vmatprep.subr.mxu0 %v4040
    %4207 = vmatpush1.msra.mxu0 %v4039
    %4208 = vmatprep.subr.mxu0 %v4044
    %4209 = vmatpush1.msra.mxu0 %v4043
    %4210 = vmatprep.subr.mxu0 %v4048
    %4211 = vmatpush1.msra.mxu0 %v4047
    %4212 = vmatprep.subr.mxu0 %v4052
    %4213 = vmatpush1.msra.mxu0 %v4051
    %4214 = vmatprep.subr.mxu0 %v4056
    %4215 = vmatpush1.msra.mxu0 %v4055
    %4216 = vmatprep.subr.mxu0 %v4060
    %4217 = vmatpush1.msra.mxu0 %v4059
    %4218 = vmatprep.mubr.f32.mxu0 %v3662
    %4219 = vmatmul.mubr.f32.gmra.mrb[0].mxu0 %v3346
    %v4220 = vpop.f32.mrb[0].mxu0
    %v4221 = vadd.f32 %v4074, %v4220
    %v4222 = vpop.f32.mrb[0].mxu0
    %v4223 = vadd.f32 %v4078, %v4222
    %4224 = vdwg.mxu0
    %v4225 = vxor.u32 %v4150, 2147483648
    %v4226 = vmul.f32 %v4225, 1.442695
    %v4227 = vpow.pop %v4226
    %v4228 = vadd.f32 %v4227, 1.0
    %v4229 = vrcp.pop %v4228
    %v4230 = vmul.f32 1.0, %v4229
    %v4231 = vxor.u32 %v4152, 2147483648
    %v4232 = vmul.f32 %v4231, 1.442695
    %v4233 = vpow.pop %v4232
    %v4234 = vadd.f32 %v4233, 1.0
    %v4235 = vrcp.pop %v4234
    %v4236 = vmul.f32 1.0, %v4235
    %v4237 = vtanh.pop %v4221
    %v4238 = vxor.u32 %v4223, 2147483648
    %v4239 = vmul.f32 %v4238, 1.442695
    %v4240 = vpow.pop %v4239
    %v4241 = vadd.f32 %v4240, 1.0
    %v4242 = vrcp.pop %v4241
    %v4243 = vmul.f32 1.0, %v4242
    %v4244 = vmul.f32 %v4236, %v3660
    %v4245 = vmul.f32 %v4230, %v4237
    %v4246 = vadd.f32 %v4244, %v4245
    %v4247 = vtanh.pop %v4246
    %v4248 = vmul.f32 %v4243, %v4247
    %4249 = vst [vmem:[#allocation3 + $0x4] sm:$0x1] %v4248
    %s4250 = scalar_lea.vmem [#allocation2], 6
    %v4251 = vld [vmem:[%s4250] ss:$8 sm:$0xf]
    %v4252 = vld [vmem:[#allocation12] sm:$0xff]
    %v4253 = vld [vmem:[#allocation12 + $0x8] sm:$0xff]
    %v4254 = vld [vmem:[#allocation12 + $0x10] sm:$0xff]
    %v4255 = vld [vmem:[#allocation12 + $0x18] sm:$0xff]
    %v4256 = vld [vmem:[#allocation12 + $0x20] sm:$0xff]
    %v4257 = vld [vmem:[#allocation12 + $0x28] sm:$0xff]
    %v4258 = vld [vmem:[#allocation12 + $0x30] sm:$0xff]
    %v4259 = vld [vmem:[#allocation12 + $0x38] sm:$0xff]
    %v4260 = vld [vmem:[#allocation12 + $0x40] sm:$0xff]
    %v4261 = vld [vmem:[#allocation12 + $0x48] sm:$0xff]
    %v4262 = vld [vmem:[#allocation12 + $0x50] sm:$0xff]
    %v4263 = vld [vmem:[#allocation12 + $0x58] sm:$0xff]
    %v4264 = vld [vmem:[#allocation12 + $0x60] sm:$0xff]
    %v4265 = vld [vmem:[#allocation12 + $0x68] sm:$0xff]
    %v4266 = vld [vmem:[#allocation12 + $0x70] sm:$0xff]
    %v4267 = vld [vmem:[#allocation12 + $0x78] sm:$0xff]
    %v4268 = vld [vmem:[#allocation12 + $0x80] sm:$0xff]
    %v4269 = vld [vmem:[#allocation12 + $0x88] sm:$0xff]
    %v4270 = vld [vmem:[#allocation12 + $0x90] sm:$0xff]
    %v4271 = vld [vmem:[#allocation12 + $0x98] sm:$0xff]
    %v4272 = vld [vmem:[#allocation12 + $0xa0] sm:$0xff]
    %v4273 = vld [vmem:[#allocation12 + $0xa8] sm:$0xff]
    %v4274 = vld [vmem:[#allocation12 + $0xb0] sm:$0xff]
    %v4275 = vld [vmem:[#allocation12 + $0xb8] sm:$0xff]
    %v4276 = vld [vmem:[#allocation12 + $0xc0] sm:$0xff]
    %v4277 = vld [vmem:[#allocation12 + $0xc8] sm:$0xff]
    %v4278 = vld [vmem:[#allocation12 + $0xd0] sm:$0xff]
    %v4279 = vld [vmem:[#allocation12 + $0xd8] sm:$0xff]
    %v4280 = vld [vmem:[#allocation12 + $0xe0] sm:$0xff]
    %v4281 = vld [vmem:[#allocation12 + $0xe8] sm:$0xff]
    %v4282 = vld [vmem:[#allocation12 + $0xf0] sm:$0xff]
    %v4283 = vld [vmem:[#allocation12 + $0xf8] sm:$0xff]
    %v4284 = vld [vmem:[#allocation12 + $0x100] sm:$0xff]
    %v4285 = vld [vmem:[#allocation12 + $0x108] sm:$0xff]
    %v4286 = vld [vmem:[#allocation12 + $0x110] sm:$0xff]
    %v4287 = vld [vmem:[#allocation12 + $0x118] sm:$0xff]
    %v4288 = vld [vmem:[#allocation12 + $0x120] sm:$0xff]
    %v4289 = vld [vmem:[#allocation12 + $0x128] sm:$0xff]
    %v4290 = vld [vmem:[#allocation12 + $0x130] sm:$0xff]
    %v4291 = vld [vmem:[#allocation12 + $0x138] sm:$0xff]
    %v4292 = vld [vmem:[#allocation12 + $0x140] sm:$0xff]
    %v4293 = vld [vmem:[#allocation12 + $0x148] sm:$0xff]
    %v4294 = vld [vmem:[#allocation12 + $0x150] sm:$0xff]
    %v4295 = vld [vmem:[#allocation12 + $0x158] sm:$0xff]
    %v4296 = vld [vmem:[#allocation12 + $0x160] sm:$0xff]
    %v4297 = vld [vmem:[#allocation12 + $0x168] sm:$0xff]
    %v4298 = vld [vmem:[#allocation12 + $0x170] sm:$0xff]
    %v4299 = vld [vmem:[#allocation12 + $0x178] sm:$0xff]
    %v4300 = vld [vmem:[#allocation12 + $0x180] sm:$0xff]
    %v4301 = vld [vmem:[#allocation12 + $0x188] sm:$0xff]
    %v4302 = vld [vmem:[#allocation12 + $0x190] sm:$0xff]
    %v4303 = vld [vmem:[#allocation12 + $0x198] sm:$0xff]
    %v4304 = vld [vmem:[#allocation12 + $0x1a0] sm:$0xff]
    %v4305 = vld [vmem:[#allocation12 + $0x1a8] sm:$0xff]
    %v4306 = vld [vmem:[#allocation12 + $0x1b0] sm:$0xff]
    %v4307 = vld [vmem:[#allocation12 + $0x1b8] sm:$0xff]
    %v4308 = vld [vmem:[#allocation12 + $0x1c0] sm:$0xff]
    %v4309 = vld [vmem:[#allocation12 + $0x1c8] sm:$0xff]
    %v4310 = vld [vmem:[#allocation12 + $0x1d0] sm:$0xff]
    %v4311 = vld [vmem:[#allocation12 + $0x1d8] sm:$0xff]
    %v4312 = vld [vmem:[#allocation12 + $0x1e0] sm:$0xff]
    %v4313 = vld [vmem:[#allocation12 + $0x1e8] sm:$0xff]
    %v4314 = vld [vmem:[#allocation12 + $0x1f0] sm:$0xff]
    %v4315 = vld [vmem:[#allocation12 + $0x1f8] sm:$0xff]
    %4316 = vmatprep.subr.mxu0 %v4253
    %4317 = vmatpush1.msra.mxu0 %v4252
    %4318 = vmatprep.subr.mxu0 %v4257
    %4319 = vmatpush1.msra.mxu0 %v4256
    %4320 = vmatprep.subr.mxu0 %v4261
    %4321 = vmatpush1.msra.mxu0 %v4260
    %4322 = vmatprep.subr.mxu0 %v4265
    %4323 = vmatpush1.msra.mxu0 %v4264
    %4324 = vmatprep.subr.mxu0 %v4269
    %4325 = vmatpush1.msra.mxu0 %v4268
    %4326 = vmatprep.subr.mxu0 %v4273
    %4327 = vmatpush1.msra.mxu0 %v4272
    %4328 = vmatprep.subr.mxu0 %v4277
    %4329 = vmatpush1.msra.mxu0 %v4276
    %4330 = vmatprep.subr.mxu0 %v4281
    %4331 = vmatpush1.msra.mxu0 %v4280
    %4332 = vmatprep.subr.mxu0 %v4285
    %4333 = vmatpush1.msra.mxu0 %v4284
    %4334 = vmatprep.subr.mxu0 %v4289
    %4335 = vmatpush1.msra.mxu0 %v4288
    %4336 = vmatprep.subr.mxu0 %v4293
    %4337 = vmatpush1.msra.mxu0 %v4292
    %4338 = vmatprep.subr.mxu0 %v4297
    %4339 = vmatpush1.msra.mxu0 %v4296
    %4340 = vmatprep.subr.mxu0 %v4301
    %4341 = vmatpush1.msra.mxu0 %v4300
    %4342 = vmatprep.subr.mxu0 %v4305
    %4343 = vmatpush1.msra.mxu0 %v4304
    %4344 = vmatprep.subr.mxu0 %v4309
    %4345 = vmatpush1.msra.mxu0 %v4308
    %4346 = vmatprep.subr.mxu0 %v4313
    %4347 = vmatpush1.msra.mxu0 %v4312
    %4348 = vmatprep.subr.mxu0 0.0
    %4349 = vmatpush1.msra.mxu0 0.0
    %4350 = vmatprep.subr.mxu0 0.0
    %4351 = vmatpush1.msra.mxu0 0.0
    %4352 = vmatprep.subr.mxu0 0.0
    %4353 = vmatpush1.msra.mxu0 0.0
    %4354 = vmatprep.subr.mxu0 0.0
    %4355 = vmatpush1.msra.mxu0 0.0
    %4356 = vmatprep.subr.mxu0 0.0
    %4357 = vmatpush1.msra.mxu0 0.0
    %4358 = vmatprep.subr.mxu0 0.0
    %4359 = vmatpush1.msra.mxu0 0.0
    %4360 = vmatprep.subr.mxu0 0.0
    %4361 = vmatpush1.msra.mxu0 0.0
    %4362 = vmatprep.subr.mxu0 0.0
    %4363 = vmatpush1.msra.mxu0 0.0
    %4364 = vmatprep.subr.mxu0 0.0
    %4365 = vmatpush1.msra.mxu0 0.0
    %4366 = vmatprep.subr.mxu0 0.0
    %4367 = vmatpush1.msra.mxu0 0.0
    %4368 = vmatprep.subr.mxu0 0.0
    %4369 = vmatpush1.msra.mxu0 0.0
    %4370 = vmatprep.subr.mxu0 0.0
    %4371 = vmatpush1.msra.mxu0 0.0
    %4372 = vmatprep.subr.mxu0 0.0
    %4373 = vmatpush1.msra.mxu0 0.0
    %4374 = vmatprep.subr.mxu0 0.0
    %4375 = vmatpush1.msra.mxu0 0.0
    %4376 = vmatprep.subr.mxu0 0.0
    %4377 = vmatpush1.msra.mxu0 0.0
    %4378 = vmatprep.subr.mxu0 0.0
    %4379 = vmatpush1.msra.mxu0 0.0
    %4380 = vmatprep.mubr.f32.mxu0 0.0
    %4381 = vmatmul.mubr.f32.gmra.mrb[0].mxu0 %v3932
    %v4382 = vpop.f32.mrb[0].mxu0
    %v4383 = vadd.f32 0.0, %v4382
    %v4384 = vpop.f32.mrb[0].mxu0
    %v4385 = vadd.f32 0.0, %v4384
    %4386 = vdwg.mxu0
    %4387 = vmatprep.subr.mxu0 %v4255
    %4388 = vmatpush1.msra.mxu0 %v4254
    %4389 = vmatprep.subr.mxu0 %v4259
    %4390 = vmatpush1.msra.mxu0 %v4258
    %4391 = vmatprep.subr.mxu0 %v4263
    %4392 = vmatpush1.msra.mxu0 %v4262
    %4393 = vmatprep.subr.mxu0 %v4267
    %4394 = vmatpush1.msra.mxu0 %v4266
    %4395 = vmatprep.subr.mxu0 %v4271
    %4396 = vmatpush1.msra.mxu0 %v4270
    %4397 = vmatprep.subr.mxu0 %v4275
    %4398 = vmatpush1.msra.mxu0 %v4274
    %4399 = vmatprep.subr.mxu0 %v4279
    %4400 = vmatpush1.msra.mxu0 %v4278
    %4401 = vmatprep.subr.mxu0 %v4283
    %4402 = vmatpush1.msra.mxu0 %v4282
    %4403 = vmatprep.subr.mxu0 %v4287
    %4404 = vmatpush1.msra.mxu0 %v4286
    %4405 = vmatprep.subr.mxu0 %v4291
    %4406 = vmatpush1.msra.mxu0 %v4290
    %4407 = vmatprep.subr.mxu0 %v4295
    %4408 = vmatpush1.msra.mxu0 %v4294
    %4409 = vmatprep.subr.mxu0 %v4299
    %4410 = vmatpush1.msra.mxu0 %v4298
    %4411 = vmatprep.subr.mxu0 %v4303
    %4412 = vmatpush1.msra.mxu0 %v4302
    %4413 = vmatprep.subr.mxu0 %v4307
    %4414 = vmatpush1.msra.mxu0 %v4306
    %4415 = vmatprep.subr.mxu0 %v4311
    %4416 = vmatpush1.msra.mxu0 %v4310
    %4417 = vmatprep.subr.mxu0 %v4315
    %4418 = vmatpush1.msra.mxu0 %v4314
    %4419 = vmatprep.subr.mxu0 0.0
    %4420 = vmatpush1.msra.mxu0 0.0
    %4421 = vmatprep.subr.mxu0 0.0
    %4422 = vmatpush1.msra.mxu0 0.0
    %4423 = vmatprep.subr.mxu0 0.0
    %4424 = vmatpush1.msra.mxu0 0.0
    %4425 = vmatprep.subr.mxu0 0.0
    %4426 = vmatpush1.msra.mxu0 0.0
    %4427 = vmatprep.subr.mxu0 0.0
    %4428 = vmatpush1.msra.mxu0 0.0
    %4429 = vmatprep.subr.mxu0 0.0
    %4430 = vmatpush1.msra.mxu0 0.0
    %4431 = vmatprep.subr.mxu0 0.0
    %4432 = vmatpush1.msra.mxu0 0.0
    %4433 = vmatprep.subr.mxu0 0.0
    %4434 = vmatpush1.msra.mxu0 0.0
    %4435 = vmatprep.subr.mxu0 0.0
    %4436 = vmatpush1.msra.mxu0 0.0
    %4437 = vmatprep.subr.mxu0 0.0
    %4438 = vmatpush1.msra.mxu0 0.0
    %4439 = vmatprep.subr.mxu0 0.0
    %4440 = vmatpush1.msra.mxu0 0.0
    %4441 = vmatprep.subr.mxu0 0.0
    %4442 = vmatpush1.msra.mxu0 0.0
    %4443 = vmatprep.subr.mxu0 0.0
    %4444 = vmatpush1.msra.mxu0 0.0
    %4445 = vmatprep.subr.mxu0 0.0
    %4446 = vmatpush1.msra.mxu0 0.0
    %4447 = vmatprep.subr.mxu0 0.0
    %4448 = vmatpush1.msra.mxu0 0.0
    %4449 = vmatprep.subr.mxu0 0.0
    %4450 = vmatpush1.msra.mxu0 0.0
    %4451 = vmatprep.mubr.f32.mxu0 0.0
    %4452 = vmatmul.mubr.f32.gmra.mrb[0].mxu0 %v3932
    %v4453 = vpop.f32.mrb[0].mxu0
    %v4454 = vadd.f32 0.0, %v4453
    %v4455 = vpop.f32.mrb[0].mxu0
    %v4456 = vadd.f32 0.0, %v4455
    %4457 = vdwg.mxu0
    %v4462 = vcombine.low %v4383, %v4385
    %v4463 = vcombine.low %v4454, %v4456
    %v4465 = vunpack.c.l.s4 1966171168
    %v4466 = vunpack.c.0.s8 %v4465
    %v4467 = vlaneseq
    %v4468 = vshrl.u32 %v4467, 7
    %v4469 = vsub.s32 %v4466, %v4468
    %v4470 = vrot.slane %v4462, %v4469
    %v4472 = vunpack.c.l.s4 1966171168
    %v4473 = vunpack.c.0.s8 %v4472
    %v4474 = vlaneseq
    %v4475 = vshrl.u32 %v4474, 7
    %v4476 = vsub.s32 %v4473, %v4475
    %v4477 = vrot.slane %v4463, %v4476
    %v4478 = vcombine.low %v4470, %v4477
    %v4480 = vunpack.c.l.s4 1966171168
    %v4481 = vunpack.c.0.s8 %v4480
    %v4482 = vlaneseq
    %v4483 = vshrl.u32 %v4482, 7
    %v4484 = vsub.s32 %v4481, %v4483
    %v4485 = vrot.slane %v4478, %v4484
    %v4487 = vadd.f32 %v4251, %v4485
    %v4488 = vxor.u32 %v4487, 2147483648
    %v4489 = vmul.f32 %v4488, 1.442695
    %v4490 = vpow.pop %v4489
    %v4491 = vadd.f32 %v4490, 1.0
    %v4492 = vrcp.pop %v4491
    %v4493 = vmul.f32 1.0, %v4492
    %v4495 = vrot.slane %v4487, 1
    %v4497 = vxor.u32 %v4495, 2147483648
    %v4498 = vmul.f32 %v4497, 1.442695
    %v4499 = vpow.pop %v4498
    %v4500 = vadd.f32 %v4499, 1.0
    %v4501 = vrcp.pop %v4500
    %v4502 = vmul.f32 1.0, %v4501
    %v4503 = vrot.slane %v4487, 2
    %v4505 = vtanh.pop %v4503
    %v4506 = vrot.slane %v4487, 3
    %v4508 = vxor.u32 %v4506, 2147483648
    %v4509 = vmul.f32 %v4508, 1.442695
    %v4510 = vpow.pop %v4509
    %v4511 = vadd.f32 %v4510, 1.0
    %v4512 = vrcp.pop %v4511
    %v4513 = vmul.f32 1.0, %v4512
    %v4514 = vmul.f32 %v4502, %v3930
    %v4515 = vmul.f32 %v4493, %v4505
    %v4516 = vadd.f32 %v4514, %v4515
    %v4517 = vtanh.pop %v4516
    %v4518 = vmul.f32 %v4513, %v4517
    %v4519 = vld [vmem:[#allocation4] sm:$0xff]
    %v4520 = vld [vmem:[#allocation4 + $0x8] sm:$0xff]
    %v4521 = vld [vmem:[#allocation4 + $0x10] sm:$0xff]
    %v4522 = vld [vmem:[#allocation4 + $0x18] sm:$0xff]
    %v4523 = vld [vmem:[#allocation4 + $0x20] sm:$0xff]
    %v4524 = vld [vmem:[#allocation4 + $0x28] sm:$0xff]
    %v4525 = vld [vmem:[#allocation4 + $0x30] sm:$0xff]
    %v4526 = vld [vmem:[#allocation4 + $0x38] sm:$0xff]
    %v4527 = vld [vmem:[#allocation4 + $0x40] sm:$0xff]
    %v4528 = vld [vmem:[#allocation4 + $0x48] sm:$0xff]
    %v4529 = vld [vmem:[#allocation4 + $0x50] sm:$0xff]
    %v4530 = vld [vmem:[#allocation4 + $0x58] sm:$0xff]
    %v4531 = vld [vmem:[#allocation4 + $0x60] sm:$0xff]
    %v4532 = vld [vmem:[#allocation4 + $0x68] sm:$0xff]
    %v4533 = vld [vmem:[#allocation4 + $0x70] sm:$0xff]
    %v4534 = vld [vmem:[#allocation4 + $0x78] sm:$0xff]
    %v4535 = vld [vmem:[#allocation4 + $0x80] sm:$0xff]
    %v4536 = vld [vmem:[#allocation4 + $0x88] sm:$0xff]
    %v4537 = vld [vmem:[#allocation4 + $0x90] sm:$0xff]
    %v4538 = vld [vmem:[#allocation4 + $0x98] sm:$0xff]
    %v4539 = vld [vmem:[#allocation4 + $0xa0] sm:$0xff]
    %v4540 = vld [vmem:[#allocation4 + $0xa8] sm:$0xff]
    %v4541 = vld [vmem:[#allocation4 + $0xb0] sm:$0xff]
    %v4542 = vld [vmem:[#allocation4 + $0xb8] sm:$0xff]
    %v4543 = vld [vmem:[#allocation4 + $0xc0] sm:$0xff]
    %v4544 = vld [vmem:[#allocation4 + $0xc8] sm:$0xff]
    %v4545 = vld [vmem:[#allocation4 + $0xd0] sm:$0xff]
    %v4546 = vld [vmem:[#allocation4 + $0xd8] sm:$0xff]
    %v4547 = vld [vmem:[#allocation4 + $0xe0] sm:$0xff]
    %v4548 = vld [vmem:[#allocation4 + $0xe8] sm:$0xff]
    %v4549 = vld [vmem:[#allocation4 + $0xf0] sm:$0xff]
    %v4550 = vld [vmem:[#allocation4 + $0xf8] sm:$0xff]
    %v4551 = vld [vmem:[#allocation4 + $0x100] sm:$0xff]
    %v4552 = vld [vmem:[#allocation4 + $0x108] sm:$0xff]
    %v4553 = vld [vmem:[#allocation4 + $0x110] sm:$0xff]
    %v4554 = vld [vmem:[#allocation4 + $0x118] sm:$0xff]
    %v4555 = vld [vmem:[#allocation4 + $0x120] sm:$0xff]
    %v4556 = vld [vmem:[#allocation4 + $0x128] sm:$0xff]
    %v4557 = vld [vmem:[#allocation4 + $0x130] sm:$0xff]
    %v4558 = vld [vmem:[#allocation4 + $0x138] sm:$0xff]
    %v4559 = vld [vmem:[#allocation4 + $0x140] sm:$0xff]
    %v4560 = vld [vmem:[#allocation4 + $0x148] sm:$0xff]
    %v4561 = vld [vmem:[#allocation4 + $0x150] sm:$0xff]
    %v4562 = vld [vmem:[#allocation4 + $0x158] sm:$0xff]
    %v4563 = vld [vmem:[#allocation4 + $0x160] sm:$0xff]
    %v4564 = vld [vmem:[#allocation4 + $0x168] sm:$0xff]
    %v4565 = vld [vmem:[#allocation4 + $0x170] sm:$0xff]
    %v4566 = vld [vmem:[#allocation4 + $0x178] sm:$0xff]
    %v4567 = vld [vmem:[#allocation4 + $0x180] sm:$0xff]
    %v4568 = vld [vmem:[#allocation4 + $0x188] sm:$0xff]
    %v4569 = vld [vmem:[#allocation4 + $0x190] sm:$0xff]
    %v4570 = vld [vmem:[#allocation4 + $0x198] sm:$0xff]
    %v4571 = vld [vmem:[#allocation4 + $0x1a0] sm:$0xff]
    %v4572 = vld [vmem:[#allocation4 + $0x1a8] sm:$0xff]
    %v4573 = vld [vmem:[#allocation4 + $0x1b0] sm:$0xff]
    %v4574 = vld [vmem:[#allocation4 + $0x1b8] sm:$0xff]
    %v4575 = vld [vmem:[#allocation4 + $0x1c0] sm:$0xff]
    %v4576 = vld [vmem:[#allocation4 + $0x1c8] sm:$0xff]
    %v4577 = vld [vmem:[#allocation4 + $0x1d0] sm:$0xff]
    %v4578 = vld [vmem:[#allocation4 + $0x1d8] sm:$0xff]
    %v4579 = vld [vmem:[#allocation4 + $0x1e0] sm:$0xff]
    %v4580 = vld [vmem:[#allocation4 + $0x1e8] sm:$0xff]
    %v4581 = vld [vmem:[#allocation4 + $0x1f0] sm:$0xff]
    %v4582 = vld [vmem:[#allocation4 + $0x1f8] sm:$0xff]
    %v4583 = vld [vmem:[#allocation4 + $0x200] sm:$0xff]
    %v4584 = vld [vmem:[#allocation4 + $0x208] sm:$0xff]
    %v4585 = vld [vmem:[#allocation4 + $0x210] sm:$0xff]
    %v4586 = vld [vmem:[#allocation4 + $0x218] sm:$0xff]
    %v4587 = vld [vmem:[#allocation4 + $0x220] sm:$0xff]
    %v4588 = vld [vmem:[#allocation4 + $0x228] sm:$0xff]
    %v4589 = vld [vmem:[#allocation4 + $0x230] sm:$0xff]
    %v4590 = vld [vmem:[#allocation4 + $0x238] sm:$0xff]
    %v4591 = vld [vmem:[#allocation4 + $0x240] sm:$0xff]
    %v4592 = vld [vmem:[#allocation4 + $0x248] sm:$0xff]
    %v4593 = vld [vmem:[#allocation4 + $0x250] sm:$0xff]
    %v4594 = vld [vmem:[#allocation4 + $0x258] sm:$0xff]
    %v4595 = vld [vmem:[#allocation4 + $0x260] sm:$0xff]
    %v4596 = vld [vmem:[#allocation4 + $0x268] sm:$0xff]
    %v4597 = vld [vmem:[#allocation4 + $0x270] sm:$0xff]
    %v4598 = vld [vmem:[#allocation4 + $0x278] sm:$0xff]
    %v4599 = vld [vmem:[#allocation4 + $0x280] sm:$0xff]
    %v4600 = vld [vmem:[#allocation4 + $0x288] sm:$0xff]
    %v4601 = vld [vmem:[#allocation4 + $0x290] sm:$0xff]
    %v4602 = vld [vmem:[#allocation4 + $0x298] sm:$0xff]
    %v4603 = vld [vmem:[#allocation4 + $0x2a0] sm:$0xff]
    %v4604 = vld [vmem:[#allocation4 + $0x2a8] sm:$0xff]
    %v4605 = vld [vmem:[#allocation4 + $0x2b0] sm:$0xff]
    %v4606 = vld [vmem:[#allocation4 + $0x2b8] sm:$0xff]
    %v4607 = vld [vmem:[#allocation4 + $0x2c0] sm:$0xff]
    %v4608 = vld [vmem:[#allocation4 + $0x2c8] sm:$0xff]
    %v4609 = vld [vmem:[#allocation4 + $0x2d0] sm:$0xff]
    %v4610 = vld [vmem:[#allocation4 + $0x2d8] sm:$0xff]
    %v4611 = vld [vmem:[#allocation4 + $0x2e0] sm:$0xff]
    %v4612 = vld [vmem:[#allocation4 + $0x2e8] sm:$0xff]
    %v4613 = vld [vmem:[#allocation4 + $0x2f0] sm:$0xff]
    %v4614 = vld [vmem:[#allocation4 + $0x2f8] sm:$0xff]
    %v4615 = vld [vmem:[#allocation4 + $0x300] sm:$0xff]
    %v4616 = vld [vmem:[#allocation4 + $0x308] sm:$0xff]
    %v4617 = vld [vmem:[#allocation4 + $0x310] sm:$0xff]
    %v4618 = vld [vmem:[#allocation4 + $0x318] sm:$0xff]
    %v4619 = vld [vmem:[#allocation4 + $0x320] sm:$0xff]
    %v4620 = vld [vmem:[#allocation4 + $0x328] sm:$0xff]
    %v4621 = vld [vmem:[#allocation4 + $0x330] sm:$0xff]
    %v4622 = vld [vmem:[#allocation4 + $0x338] sm:$0xff]
    %v4623 = vld [vmem:[#allocation4 + $0x340] sm:$0xff]
    %v4624 = vld [vmem:[#allocation4 + $0x348] sm:$0xff]
    %v4625 = vld [vmem:[#allocation4 + $0x350] sm:$0xff]
    %v4626 = vld [vmem:[#allocation4 + $0x358] sm:$0xff]
    %v4627 = vld [vmem:[#allocation4 + $0x360] sm:$0xff]
    %v4628 = vld [vmem:[#allocation4 + $0x368] sm:$0xff]
    %v4629 = vld [vmem:[#allocation4 + $0x370] sm:$0xff]
    %v4630 = vld [vmem:[#allocation4 + $0x378] sm:$0xff]
    %v4631 = vld [vmem:[#allocation4 + $0x380] sm:$0xff]
    %v4632 = vld [vmem:[#allocation4 + $0x388] sm:$0xff]
    %v4633 = vld [vmem:[#allocation4 + $0x390] sm:$0xff]
    %v4634 = vld [vmem:[#allocation4 + $0x398] sm:$0xff]
    %v4635 = vld [vmem:[#allocation4 + $0x3a0] sm:$0xff]
    %v4636 = vld [vmem:[#allocation4 + $0x3a8] sm:$0xff]
    %v4637 = vld [vmem:[#allocation4 + $0x3b0] sm:$0xff]
    %v4638 = vld [vmem:[#allocation4 + $0x3b8] sm:$0xff]
    %v4639 = vld [vmem:[#allocation4 + $0x3c0] sm:$0xff]
    %v4640 = vld [vmem:[#allocation4 + $0x3c8] sm:$0xff]
    %v4641 = vld [vmem:[#allocation4 + $0x3d0] sm:$0xff]
    %v4642 = vld [vmem:[#allocation4 + $0x3d8] sm:$0xff]
    %v4643 = vld [vmem:[#allocation4 + $0x3e0] sm:$0xff]
    %v4644 = vld [vmem:[#allocation4 + $0x3e8] sm:$0xff]
    %v4645 = vld [vmem:[#allocation4 + $0x3f0] sm:$0xff]
    %v4646 = vld [vmem:[#allocation4 + $0x3f8] sm:$0xff]
    %v4647 = vld [vmem:[#allocation5] sm:$0xf]
    %v4649 = vlaneseq
    %v4650 = vshrl.u32 %v4649, 7
    %v4651 = vsub.s32 0, %v4650
    %v4652 = vrot.slane %v4647, %v4651
    %v4653 = vlaneseq
    %v4654 = vshrl.u32 %v4653, 7
    %v4655 = vsub.s32 1, %v4654
    %v4656 = vrot.slane %v4647, %v4655
    %v4657 = vlaneseq
    %v4658 = vshrl.u32 %v4657, 7
    %v4659 = vsub.s32 2, %v4658
    %v4660 = vrot.slane %v4647, %v4659
    %v4661 = vlaneseq
    %v4662 = vshrl.u32 %v4661, 7
    %v4663 = vsub.s32 3, %v4662
    %v4664 = vrot.slane %v4647, %v4663
    %4669 = vmatprep.subr.mxu0 %v4520
    %4670 = vmatpush1.msra.mxu0 %v4519
    %4671 = vmatprep.subr.mxu0 %v4524
    %4672 = vmatpush1.msra.mxu0 %v4523
    %4673 = vmatprep.subr.mxu0 %v4528
    %4674 = vmatpush1.msra.mxu0 %v4527
    %4675 = vmatprep.subr.mxu0 %v4532
    %4676 = vmatpush1.msra.mxu0 %v4531
    %4677 = vmatprep.subr.mxu0 %v4536
    %4678 = vmatpush1.msra.mxu0 %v4535
    %4679 = vmatprep.subr.mxu0 %v4540
    %4680 = vmatpush1.msra.mxu0 %v4539
    %4681 = vmatprep.subr.mxu0 %v4544
    %4682 = vmatpush1.msra.mxu0 %v4543
    %4683 = vmatprep.subr.mxu0 %v4548
    %4684 = vmatpush1.msra.mxu0 %v4547
    %4685 = vmatprep.subr.mxu0 %v4552
    %4686 = vmatpush1.msra.mxu0 %v4551
    %4687 = vmatprep.subr.mxu0 %v4556
    %4688 = vmatpush1.msra.mxu0 %v4555
    %4689 = vmatprep.subr.mxu0 %v4560
    %4690 = vmatpush1.msra.mxu0 %v4559
    %4691 = vmatprep.subr.mxu0 %v4564
    %4692 = vmatpush1.msra.mxu0 %v4563
    %4693 = vmatprep.subr.mxu0 %v4568
    %4694 = vmatpush1.msra.mxu0 %v4567
    %4695 = vmatprep.subr.mxu0 %v4572
    %4696 = vmatpush1.msra.mxu0 %v4571
    %4697 = vmatprep.subr.mxu0 %v4576
    %4698 = vmatpush1.msra.mxu0 %v4575
    %4699 = vmatprep.subr.mxu0 %v4580
    %4700 = vmatpush1.msra.mxu0 %v4579
    %4701 = vmatprep.subr.mxu0 %v4584
    %4702 = vmatpush1.msra.mxu0 %v4583
    %4703 = vmatprep.subr.mxu0 %v4588
    %4704 = vmatpush1.msra.mxu0 %v4587
    %4705 = vmatprep.subr.mxu0 %v4592
    %4706 = vmatpush1.msra.mxu0 %v4591
    %4707 = vmatprep.subr.mxu0 %v4596
    %4708 = vmatpush1.msra.mxu0 %v4595
    %4709 = vmatprep.subr.mxu0 %v4600
    %4710 = vmatpush1.msra.mxu0 %v4599
    %4711 = vmatprep.subr.mxu0 %v4604
    %4712 = vmatpush1.msra.mxu0 %v4603
    %4713 = vmatprep.subr.mxu0 %v4608
    %4714 = vmatpush1.msra.mxu0 %v4607
    %4715 = vmatprep.subr.mxu0 %v4612
    %4716 = vmatpush1.msra.mxu0 %v4611
    %4717 = vmatprep.subr.mxu0 %v4616
    %4718 = vmatpush1.msra.mxu0 %v4615
    %4719 = vmatprep.subr.mxu0 %v4620
    %4720 = vmatpush1.msra.mxu0 %v4619
    %4721 = vmatprep.subr.mxu0 %v4624
    %4722 = vmatpush1.msra.mxu0 %v4623
    %4723 = vmatprep.subr.mxu0 %v4628
    %4724 = vmatpush1.msra.mxu0 %v4627
    %4725 = vmatprep.subr.mxu0 %v4632
    %4726 = vmatpush1.msra.mxu0 %v4631
    %4727 = vmatprep.subr.mxu0 %v4636
    %4728 = vmatpush1.msra.mxu0 %v4635
    %4729 = vmatprep.subr.mxu0 %v4640
    %4730 = vmatpush1.msra.mxu0 %v4639
    %4731 = vmatprep.subr.mxu0 %v4644
    %4732 = vmatpush1.msra.mxu0 %v4643
    %4733 = vmatprep.mubr.f32.mxu0 %v4248
    %4734 = vmatmul.mubr.f32.gmra.mrb[0].mxu0 %v3932
    %v4735 = vpop.f32.mrb[0].mxu0
    %v4736 = vadd.f32 %v4652, %v4735
    %v4737 = vpop.f32.mrb[0].mxu0
    %v4738 = vadd.f32 %v4656, %v4737
    %4739 = vdwg.mxu0
    %4740 = vmatprep.subr.mxu0 %v4522
    %4741 = vmatpush1.msra.mxu0 %v4521
    %4742 = vmatprep.subr.mxu0 %v4526
    %4743 = vmatpush1.msra.mxu0 %v4525
    %4744 = vmatprep.subr.mxu0 %v4530
    %4745 = vmatpush1.msra.mxu0 %v4529
    %4746 = vmatprep.subr.mxu0 %v4534
    %4747 = vmatpush1.msra.mxu0 %v4533
    %4748 = vmatprep.subr.mxu0 %v4538
    %4749 = vmatpush1.msra.mxu0 %v4537
    %4750 = vmatprep.subr.mxu0 %v4542
    %4751 = vmatpush1.msra.mxu0 %v4541
    %4752 = vmatprep.subr.mxu0 %v4546
    %4753 = vmatpush1.msra.mxu0 %v4545
    %4754 = vmatprep.subr.mxu0 %v4550
    %4755 = vmatpush1.msra.mxu0 %v4549
    %4756 = vmatprep.subr.mxu0 %v4554
    %4757 = vmatpush1.msra.mxu0 %v4553
    %4758 = vmatprep.subr.mxu0 %v4558
    %4759 = vmatpush1.msra.mxu0 %v4557
    %4760 = vmatprep.subr.mxu0 %v4562
    %4761 = vmatpush1.msra.mxu0 %v4561
    %4762 = vmatprep.subr.mxu0 %v4566
    %4763 = vmatpush1.msra.mxu0 %v4565
    %4764 = vmatprep.subr.mxu0 %v4570
    %4765 = vmatpush1.msra.mxu0 %v4569
    %4766 = vmatprep.subr.mxu0 %v4574
    %4767 = vmatpush1.msra.mxu0 %v4573
    %4768 = vmatprep.subr.mxu0 %v4578
    %4769 = vmatpush1.msra.mxu0 %v4577
    %4770 = vmatprep.subr.mxu0 %v4582
    %4771 = vmatpush1.msra.mxu0 %v4581
    %4772 = vmatprep.subr.mxu0 %v4586
    %4773 = vmatpush1.msra.mxu0 %v4585
    %4774 = vmatprep.subr.mxu0 %v4590
    %4775 = vmatpush1.msra.mxu0 %v4589
    %4776 = vmatprep.subr.mxu0 %v4594
    %4777 = vmatpush1.msra.mxu0 %v4593
    %4778 = vmatprep.subr.mxu0 %v4598
    %4779 = vmatpush1.msra.mxu0 %v4597
    %4780 = vmatprep.subr.mxu0 %v4602
    %4781 = vmatpush1.msra.mxu0 %v4601
    %4782 = vmatprep.subr.mxu0 %v4606
    %4783 = vmatpush1.msra.mxu0 %v4605
    %4784 = vmatprep.subr.mxu0 %v4610
    %4785 = vmatpush1.msra.mxu0 %v4609
    %4786 = vmatprep.subr.mxu0 %v4614
    %4787 = vmatpush1.msra.mxu0 %v4613
    %4788 = vmatprep.subr.mxu0 %v4618
    %4789 = vmatpush1.msra.mxu0 %v4617
    %4790 = vmatprep.subr.mxu0 %v4622
    %4791 = vmatpush1.msra.mxu0 %v4621
    %4792 = vmatprep.subr.mxu0 %v4626
    %4793 = vmatpush1.msra.mxu0 %v4625
    %4794 = vmatprep.subr.mxu0 %v4630
    %4795 = vmatpush1.msra.mxu0 %v4629
    %4796 = vmatprep.subr.mxu0 %v4634
    %4797 = vmatpush1.msra.mxu0 %v4633
    %4798 = vmatprep.subr.mxu0 %v4638
    %4799 = vmatpush1.msra.mxu0 %v4637
    %4800 = vmatprep.subr.mxu0 %v4642
    %4801 = vmatpush1.msra.mxu0 %v4641
    %4802 = vmatprep.subr.mxu0 %v4646
    %4803 = vmatpush1.msra.mxu0 %v4645
    %4804 = vmatprep.mubr.f32.mxu0 %v4248
    %4805 = vmatmul.mubr.f32.gmra.mrb[0].mxu0 %v3932
    %v4806 = vpop.f32.mrb[0].mxu0
    %v4807 = vadd.f32 %v4660, %v4806
    %v4808 = vpop.f32.mrb[0].mxu0
    %v4809 = vadd.f32 %v4664, %v4808
    %4810 = vdwg.mxu0
    %v4811 = vxor.u32 %v4736, 2147483648
    %v4812 = vmul.f32 %v4811, 1.442695
    %v4813 = vpow.pop %v4812
    %v4814 = vadd.f32 %v4813, 1.0
    %v4815 = vrcp.pop %v4814
    %v4816 = vmul.f32 1.0, %v4815
    %v4817 = vxor.u32 %v4738, 2147483648
    %v4818 = vmul.f32 %v4817, 1.442695
    %v4819 = vpow.pop %v4818
    %v4820 = vadd.f32 %v4819, 1.0
    %v4821 = vrcp.pop %v4820
    %v4822 = vmul.f32 1.0, %v4821
    %v4823 = vtanh.pop %v4807
    %v4824 = vxor.u32 %v4809, 2147483648
    %v4825 = vmul.f32 %v4824, 1.442695
    %v4826 = vpow.pop %v4825
    %v4827 = vadd.f32 %v4826, 1.0
    %v4828 = vrcp.pop %v4827
    %v4829 = vmul.f32 1.0, %v4828
    %v4830 = vmul.f32 %v4822, %v4246
    %v4831 = vmul.f32 %v4816, %v4823
    %v4832 = vadd.f32 %v4830, %v4831
    %v4833 = vtanh.pop %v4832
    %v4834 = vmul.f32 %v4829, %v4833
    %4835 = vst [vmem:[#allocation3 + $0x5] sm:$0x1] %v4834
    %s4836 = scalar_lea.vmem [#allocation2], 7
    %v4837 = vld [vmem:[%s4836] ss:$8 sm:$0xf]
    %v4838 = vld [vmem:[#allocation12] sm:$0xff]
    %v4839 = vld [vmem:[#allocation12 + $0x8] sm:$0xff]
    %v4840 = vld [vmem:[#allocation12 + $0x10] sm:$0xff]
    %v4841 = vld [vmem:[#allocation12 + $0x18] sm:$0xff]
    %v4842 = vld [vmem:[#allocation12 + $0x20] sm:$0xff]
    %v4843 = vld [vmem:[#allocation12 + $0x28] sm:$0xff]
    %v4844 = vld [vmem:[#allocation12 + $0x30] sm:$0xff]
    %v4845 = vld [vmem:[#allocation12 + $0x38] sm:$0xff]
    %v4846 = vld [vmem:[#allocation12 + $0x40] sm:$0xff]
    %v4847 = vld [vmem:[#allocation12 + $0x48] sm:$0xff]
    %v4848 = vld [vmem:[#allocation12 + $0x50] sm:$0xff]
    %v4849 = vld [vmem:[#allocation12 + $0x58] sm:$0xff]
    %v4850 = vld [vmem:[#allocation12 + $0x60] sm:$0xff]
    %v4851 = vld [vmem:[#allocation12 + $0x68] sm:$0xff]
    %v4852 = vld [vmem:[#allocation12 + $0x70] sm:$0xff]
    %v4853 = vld [vmem:[#allocation12 + $0x78] sm:$0xff]
    %v4854 = vld [vmem:[#allocation12 + $0x80] sm:$0xff]
    %v4855 = vld [vmem:[#allocation12 + $0x88] sm:$0xff]
    %v4856 = vld [vmem:[#allocation12 + $0x90] sm:$0xff]
    %v4857 = vld [vmem:[#allocation12 + $0x98] sm:$0xff]
    %v4858 = vld [vmem:[#allocation12 + $0xa0] sm:$0xff]
    %v4859 = vld [vmem:[#allocation12 + $0xa8] sm:$0xff]
    %v4860 = vld [vmem:[#allocation12 + $0xb0] sm:$0xff]
    %v4861 = vld [vmem:[#allocation12 + $0xb8] sm:$0xff]
    %v4862 = vld [vmem:[#allocation12 + $0xc0] sm:$0xff]
    %v4863 = vld [vmem:[#allocation12 + $0xc8] sm:$0xff]
    %v4864 = vld [vmem:[#allocation12 + $0xd0] sm:$0xff]
    %v4865 = vld [vmem:[#allocation12 + $0xd8] sm:$0xff]
    %v4866 = vld [vmem:[#allocation12 + $0xe0] sm:$0xff]
    %v4867 = vld [vmem:[#allocation12 + $0xe8] sm:$0xff]
    %v4868 = vld [vmem:[#allocation12 + $0xf0] sm:$0xff]
    %v4869 = vld [vmem:[#allocation12 + $0xf8] sm:$0xff]
    %v4870 = vld [vmem:[#allocation12 + $0x100] sm:$0xff]
    %v4871 = vld [vmem:[#allocation12 + $0x108] sm:$0xff]
    %v4872 = vld [vmem:[#allocation12 + $0x110] sm:$0xff]
    %v4873 = vld [vmem:[#allocation12 + $0x118] sm:$0xff]
    %v4874 = vld [vmem:[#allocation12 + $0x120] sm:$0xff]
    %v4875 = vld [vmem:[#allocation12 + $0x128] sm:$0xff]
    %v4876 = vld [vmem:[#allocation12 + $0x130] sm:$0xff]
    %v4877 = vld [vmem:[#allocation12 + $0x138] sm:$0xff]
    %v4878 = vld [vmem:[#allocation12 + $0x140] sm:$0xff]
    %v4879 = vld [vmem:[#allocation12 + $0x148] sm:$0xff]
    %v4880 = vld [vmem:[#allocation12 + $0x150] sm:$0xff]
    %v4881 = vld [vmem:[#allocation12 + $0x158] sm:$0xff]
    %v4882 = vld [vmem:[#allocation12 + $0x160] sm:$0xff]
    %v4883 = vld [vmem:[#allocation12 + $0x168] sm:$0xff]
    %v4884 = vld [vmem:[#allocation12 + $0x170] sm:$0xff]
    %v4885 = vld [vmem:[#allocation12 + $0x178] sm:$0xff]
    %v4886 = vld [vmem:[#allocation12 + $0x180] sm:$0xff]
    %v4887 = vld [vmem:[#allocation12 + $0x188] sm:$0xff]
    %v4888 = vld [vmem:[#allocation12 + $0x190] sm:$0xff]
    %v4889 = vld [vmem:[#allocation12 + $0x198] sm:$0xff]
    %v4890 = vld [vmem:[#allocation12 + $0x1a0] sm:$0xff]
    %v4891 = vld [vmem:[#allocation12 + $0x1a8] sm:$0xff]
    %v4892 = vld [vmem:[#allocation12 + $0x1b0] sm:$0xff]
    %v4893 = vld [vmem:[#allocation12 + $0x1b8] sm:$0xff]
    %v4894 = vld [vmem:[#allocation12 + $0x1c0] sm:$0xff]
    %v4895 = vld [vmem:[#allocation12 + $0x1c8] sm:$0xff]
    %v4896 = vld [vmem:[#allocation12 + $0x1d0] sm:$0xff]
    %v4897 = vld [vmem:[#allocation12 + $0x1d8] sm:$0xff]
    %v4898 = vld [vmem:[#allocation12 + $0x1e0] sm:$0xff]
    %v4899 = vld [vmem:[#allocation12 + $0x1e8] sm:$0xff]
    %v4900 = vld [vmem:[#allocation12 + $0x1f0] sm:$0xff]
    %v4901 = vld [vmem:[#allocation12 + $0x1f8] sm:$0xff]
    %4902 = vmatprep.subr.mxu0 %v4839
    %4903 = vmatpush1.msra.mxu0 %v4838
    %4904 = vmatprep.subr.mxu0 %v4843
    %4905 = vmatpush1.msra.mxu0 %v4842
    %4906 = vmatprep.subr.mxu0 %v4847
    %4907 = vmatpush1.msra.mxu0 %v4846
    %4908 = vmatprep.subr.mxu0 %v4851
    %4909 = vmatpush1.msra.mxu0 %v4850
    %4910 = vmatprep.subr.mxu0 %v4855
    %4911 = vmatpush1.msra.mxu0 %v4854
    %4912 = vmatprep.subr.mxu0 %v4859
    %4913 = vmatpush1.msra.mxu0 %v4858
    %4914 = vmatprep.subr.mxu0 %v4863
    %4915 = vmatpush1.msra.mxu0 %v4862
    %4916 = vmatprep.subr.mxu0 %v4867
    %4917 = vmatpush1.msra.mxu0 %v4866
    %4918 = vmatprep.subr.mxu0 %v4871
    %4919 = vmatpush1.msra.mxu0 %v4870
    %4920 = vmatprep.subr.mxu0 %v4875
    %4921 = vmatpush1.msra.mxu0 %v4874
    %4922 = vmatprep.subr.mxu0 %v4879
    %4923 = vmatpush1.msra.mxu0 %v4878
    %4924 = vmatprep.subr.mxu0 %v4883
    %4925 = vmatpush1.msra.mxu0 %v4882
    %4926 = vmatprep.subr.mxu0 %v4887
    %4927 = vmatpush1.msra.mxu0 %v4886
    %4928 = vmatprep.subr.mxu0 %v4891
    %4929 = vmatpush1.msra.mxu0 %v4890
    %4930 = vmatprep.subr.mxu0 %v4895
    %4931 = vmatpush1.msra.mxu0 %v4894
    %4932 = vmatprep.subr.mxu0 %v4899
    %4933 = vmatpush1.msra.mxu0 %v4898
    %4934 = vmatprep.subr.mxu0 0.0
    %4935 = vmatpush1.msra.mxu0 0.0
    %4936 = vmatprep.subr.mxu0 0.0
    %4937 = vmatpush1.msra.mxu0 0.0
    %4938 = vmatprep.subr.mxu0 0.0
    %4939 = vmatpush1.msra.mxu0 0.0
    %4940 = vmatprep.subr.mxu0 0.0
    %4941 = vmatpush1.msra.mxu0 0.0
    %4942 = vmatprep.subr.mxu0 0.0
    %4943 = vmatpush1.msra.mxu0 0.0
    %4944 = vmatprep.subr.mxu0 0.0
    %4945 = vmatpush1.msra.mxu0 0.0
    %4946 = vmatprep.subr.mxu0 0.0
    %4947 = vmatpush1.msra.mxu0 0.0
    %4948 = vmatprep.subr.mxu0 0.0
    %4949 = vmatpush1.msra.mxu0 0.0
    %4950 = vmatprep.subr.mxu0 0.0
    %4951 = vmatpush1.msra.mxu0 0.0
    %4952 = vmatprep.subr.mxu0 0.0
    %4953 = vmatpush1.msra.mxu0 0.0
    %4954 = vmatprep.subr.mxu0 0.0
    %4955 = vmatpush1.msra.mxu0 0.0
    %4956 = vmatprep.subr.mxu0 0.0
    %4957 = vmatpush1.msra.mxu0 0.0
    %4958 = vmatprep.subr.mxu0 0.0
    %4959 = vmatpush1.msra.mxu0 0.0
    %4960 = vmatprep.subr.mxu0 0.0
    %4961 = vmatpush1.msra.mxu0 0.0
    %4962 = vmatprep.subr.mxu0 0.0
    %4963 = vmatpush1.msra.mxu0 0.0
    %4964 = vmatprep.subr.mxu0 0.0
    %4965 = vmatpush1.msra.mxu0 0.0
    %4966 = vmatprep.mubr.f32.mxu0 0.0
    %4967 = vmatmul.mubr.f32.gmra.mrb[0].mxu0 %v4518
    %v4968 = vpop.f32.mrb[0].mxu0
    %v4969 = vadd.f32 0.0, %v4968
    %v4970 = vpop.f32.mrb[0].mxu0
    %v4971 = vadd.f32 0.0, %v4970
    %4972 = vdwg.mxu0
    %4973 = vmatprep.subr.mxu0 %v4841
    %4974 = vmatpush1.msra.mxu0 %v4840
    %4975 = vmatprep.subr.mxu0 %v4845
    %4976 = vmatpush1.msra.mxu0 %v4844
    %4977 = vmatprep.subr.mxu0 %v4849
    %4978 = vmatpush1.msra.mxu0 %v4848
    %4979 = vmatprep.subr.mxu0 %v4853
    %4980 = vmatpush1.msra.mxu0 %v4852
    %4981 = vmatprep.subr.mxu0 %v4857
    %4982 = vmatpush1.msra.mxu0 %v4856
    %4983 = vmatprep.subr.mxu0 %v4861
    %4984 = vmatpush1.msra.mxu0 %v4860
    %4985 = vmatprep.subr.mxu0 %v4865
    %4986 = vmatpush1.msra.mxu0 %v4864
    %4987 = vmatprep.subr.mxu0 %v4869
    %4988 = vmatpush1.msra.mxu0 %v4868
    %4989 = vmatprep.subr.mxu0 %v4873
    %4990 = vmatpush1.msra.mxu0 %v4872
    %4991 = vmatprep.subr.mxu0 %v4877
    %4992 = vmatpush1.msra.mxu0 %v4876
    %4993 = vmatprep.subr.mxu0 %v4881
    %4994 = vmatpush1.msra.mxu0 %v4880
    %4995 = vmatprep.subr.mxu0 %v4885
    %4996 = vmatpush1.msra.mxu0 %v4884
    %4997 = vmatprep.subr.mxu0 %v4889
    %4998 = vmatpush1.msra.mxu0 %v4888
    %4999 = vmatprep.subr.mxu0 %v4893
    %5000 = vmatpush1.msra.mxu0 %v4892
    %5001 = vmatprep.subr.mxu0 %v4897
    %5002 = vmatpush1.msra.mxu0 %v4896
    %5003 = vmatprep.subr.mxu0 %v4901
    %5004 = vmatpush1.msra.mxu0 %v4900
    %5005 = vmatprep.subr.mxu0 0.0
    %5006 = vmatpush1.msra.mxu0 0.0
    %5007 = vmatprep.subr.mxu0 0.0
    %5008 = vmatpush1.msra.mxu0 0.0
    %5009 = vmatprep.subr.mxu0 0.0
    %5010 = vmatpush1.msra.mxu0 0.0
    %5011 = vmatprep.subr.mxu0 0.0
    %5012 = vmatpush1.msra.mxu0 0.0
    %5013 = vmatprep.subr.mxu0 0.0
    %5014 = vmatpush1.msra.mxu0 0.0
    %5015 = vmatprep.subr.mxu0 0.0
    %5016 = vmatpush1.msra.mxu0 0.0
    %5017 = vmatprep.subr.mxu0 0.0
    %5018 = vmatpush1.msra.mxu0 0.0
    %5019 = vmatprep.subr.mxu0 0.0
    %5020 = vmatpush1.msra.mxu0 0.0
    %5021 = vmatprep.subr.mxu0 0.0
    %5022 = vmatpush1.msra.mxu0 0.0
    %5023 = vmatprep.subr.mxu0 0.0
    %5024 = vmatpush1.msra.mxu0 0.0
    %5025 = vmatprep.subr.mxu0 0.0
    %5026 = vmatpush1.msra.mxu0 0.0
    %5027 = vmatprep.subr.mxu0 0.0
    %5028 = vmatpush1.msra.mxu0 0.0
    %5029 = vmatprep.subr.mxu0 0.0
    %5030 = vmatpush1.msra.mxu0 0.0
    %5031 = vmatprep.subr.mxu0 0.0
    %5032 = vmatpush1.msra.mxu0 0.0
    %5033 = vmatprep.subr.mxu0 0.0
    %5034 = vmatpush1.msra.mxu0 0.0
    %5035 = vmatprep.subr.mxu0 0.0
    %5036 = vmatpush1.msra.mxu0 0.0
    %5037 = vmatprep.mubr.f32.mxu0 0.0
    %5038 = vmatmul.mubr.f32.gmra.mrb[0].mxu0 %v4518
    %v5039 = vpop.f32.mrb[0].mxu0
    %v5040 = vadd.f32 0.0, %v5039
    %v5041 = vpop.f32.mrb[0].mxu0
    %v5042 = vadd.f32 0.0, %v5041
    %5043 = vdwg.mxu0
    %v5048 = vcombine.low %v4969, %v4971
    %v5049 = vcombine.low %v5040, %v5042
    %v5051 = vunpack.c.l.s4 1966171168
    %v5052 = vunpack.c.0.s8 %v5051
    %v5053 = vlaneseq
    %v5054 = vshrl.u32 %v5053, 7
    %v5055 = vsub.s32 %v5052, %v5054
    %v5056 = vrot.slane %v5048, %v5055
    %v5058 = vunpack.c.l.s4 1966171168
    %v5059 = vunpack.c.0.s8 %v5058
    %v5060 = vlaneseq
    %v5061 = vshrl.u32 %v5060, 7
    %v5062 = vsub.s32 %v5059, %v5061
    %v5063 = vrot.slane %v5049, %v5062
    %v5064 = vcombine.low %v5056, %v5063
    %v5066 = vunpack.c.l.s4 1966171168
    %v5067 = vunpack.c.0.s8 %v5066
    %v5068 = vlaneseq
    %v5069 = vshrl.u32 %v5068, 7
    %v5070 = vsub.s32 %v5067, %v5069
    %v5071 = vrot.slane %v5064, %v5070
    %v5073 = vadd.f32 %v4837, %v5071
    %v5074 = vxor.u32 %v5073, 2147483648
    %v5075 = vmul.f32 %v5074, 1.442695
    %v5076 = vpow.pop %v5075
    %v5077 = vadd.f32 %v5076, 1.0
    %v5078 = vrcp.pop %v5077
    %v5079 = vmul.f32 1.0, %v5078
    %v5081 = vrot.slane %v5073, 1
    %v5083 = vxor.u32 %v5081, 2147483648
    %v5084 = vmul.f32 %v5083, 1.442695
    %v5085 = vpow.pop %v5084
    %v5086 = vadd.f32 %v5085, 1.0
    %v5087 = vrcp.pop %v5086
    %v5088 = vmul.f32 1.0, %v5087
    %v5089 = vrot.slane %v5073, 2
    %v5091 = vtanh.pop %v5089
    %v5092 = vrot.slane %v5073, 3
    %v5094 = vxor.u32 %v5092, 2147483648
    %v5095 = vmul.f32 %v5094, 1.442695
    %v5096 = vpow.pop %v5095
    %v5097 = vadd.f32 %v5096, 1.0
    %v5098 = vrcp.pop %v5097
    %v5099 = vmul.f32 1.0, %v5098
    %v5100 = vmul.f32 %v5088, %v4516
    %v5101 = vmul.f32 %v5079, %v5091
    %v5102 = vadd.f32 %v5100, %v5101
    %v5103 = vtanh.pop %v5102
    %v5104 = vmul.f32 %v5099, %v5103
    %v5105 = vld [vmem:[#allocation4] sm:$0xff]
    %v5106 = vld [vmem:[#allocation4 + $0x8] sm:$0xff]
    %v5107 = vld [vmem:[#allocation4 + $0x10] sm:$0xff]
    %v5108 = vld [vmem:[#allocation4 + $0x18] sm:$0xff]
    %v5109 = vld [vmem:[#allocation4 + $0x20] sm:$0xff]
    %v5110 = vld [vmem:[#allocation4 + $0x28] sm:$0xff]
    %v5111 = vld [vmem:[#allocation4 + $0x30] sm:$0xff]
    %v5112 = vld [vmem:[#allocation4 + $0x38] sm:$0xff]
    %v5113 = vld [vmem:[#allocation4 + $0x40] sm:$0xff]
    %v5114 = vld [vmem:[#allocation4 + $0x48] sm:$0xff]
    %v5115 = vld [vmem:[#allocation4 + $0x50] sm:$0xff]
    %v5116 = vld [vmem:[#allocation4 + $0x58] sm:$0xff]
    %v5117 = vld [vmem:[#allocation4 + $0x60] sm:$0xff]
    %v5118 = vld [vmem:[#allocation4 + $0x68] sm:$0xff]
    %v5119 = vld [vmem:[#allocation4 + $0x70] sm:$0xff]
    %v5120 = vld [vmem:[#allocation4 + $0x78] sm:$0xff]
    %v5121 = vld [vmem:[#allocation4 + $0x80] sm:$0xff]
    %v5122 = vld [vmem:[#allocation4 + $0x88] sm:$0xff]
    %v5123 = vld [vmem:[#allocation4 + $0x90] sm:$0xff]
    %v5124 = vld [vmem:[#allocation4 + $0x98] sm:$0xff]
    %v5125 = vld [vmem:[#allocation4 + $0xa0] sm:$0xff]
    %v5126 = vld [vmem:[#allocation4 + $0xa8] sm:$0xff]
    %v5127 = vld [vmem:[#allocation4 + $0xb0] sm:$0xff]
    %v5128 = vld [vmem:[#allocation4 + $0xb8] sm:$0xff]
    %v5129 = vld [vmem:[#allocation4 + $0xc0] sm:$0xff]
    %v5130 = vld [vmem:[#allocation4 + $0xc8] sm:$0xff]
    %v5131 = vld [vmem:[#allocation4 + $0xd0] sm:$0xff]
    %v5132 = vld [vmem:[#allocation4 + $0xd8] sm:$0xff]
    %v5133 = vld [vmem:[#allocation4 + $0xe0] sm:$0xff]
    %v5134 = vld [vmem:[#allocation4 + $0xe8] sm:$0xff]
    %v5135 = vld [vmem:[#allocation4 + $0xf0] sm:$0xff]
    %v5136 = vld [vmem:[#allocation4 + $0xf8] sm:$0xff]
    %v5137 = vld [vmem:[#allocation4 + $0x100] sm:$0xff]
    %v5138 = vld [vmem:[#allocation4 + $0x108] sm:$0xff]
    %v5139 = vld [vmem:[#allocation4 + $0x110] sm:$0xff]
    %v5140 = vld [vmem:[#allocation4 + $0x118] sm:$0xff]
    %v5141 = vld [vmem:[#allocation4 + $0x120] sm:$0xff]
    %v5142 = vld [vmem:[#allocation4 + $0x128] sm:$0xff]
    %v5143 = vld [vmem:[#allocation4 + $0x130] sm:$0xff]
    %v5144 = vld [vmem:[#allocation4 + $0x138] sm:$0xff]
    %v5145 = vld [vmem:[#allocation4 + $0x140] sm:$0xff]
    %v5146 = vld [vmem:[#allocation4 + $0x148] sm:$0xff]
    %v5147 = vld [vmem:[#allocation4 + $0x150] sm:$0xff]
    %v5148 = vld [vmem:[#allocation4 + $0x158] sm:$0xff]
    %v5149 = vld [vmem:[#allocation4 + $0x160] sm:$0xff]
    %v5150 = vld [vmem:[#allocation4 + $0x168] sm:$0xff]
    %v5151 = vld [vmem:[#allocation4 + $0x170] sm:$0xff]
    %v5152 = vld [vmem:[#allocation4 + $0x178] sm:$0xff]
    %v5153 = vld [vmem:[#allocation4 + $0x180] sm:$0xff]
    %v5154 = vld [vmem:[#allocation4 + $0x188] sm:$0xff]
    %v5155 = vld [vmem:[#allocation4 + $0x190] sm:$0xff]
    %v5156 = vld [vmem:[#allocation4 + $0x198] sm:$0xff]
    %v5157 = vld [vmem:[#allocation4 + $0x1a0] sm:$0xff]
    %v5158 = vld [vmem:[#allocation4 + $0x1a8] sm:$0xff]
    %v5159 = vld [vmem:[#allocation4 + $0x1b0] sm:$0xff]
    %v5160 = vld [vmem:[#allocation4 + $0x1b8] sm:$0xff]
    %v5161 = vld [vmem:[#allocation4 + $0x1c0] sm:$0xff]
    %v5162 = vld [vmem:[#allocation4 + $0x1c8] sm:$0xff]
    %v5163 = vld [vmem:[#allocation4 + $0x1d0] sm:$0xff]
    %v5164 = vld [vmem:[#allocation4 + $0x1d8] sm:$0xff]
    %v5165 = vld [vmem:[#allocation4 + $0x1e0] sm:$0xff]
    %v5166 = vld [vmem:[#allocation4 + $0x1e8] sm:$0xff]
    %v5167 = vld [vmem:[#allocation4 + $0x1f0] sm:$0xff]
    %v5168 = vld [vmem:[#allocation4 + $0x1f8] sm:$0xff]
    %v5169 = vld [vmem:[#allocation4 + $0x200] sm:$0xff]
    %v5170 = vld [vmem:[#allocation4 + $0x208] sm:$0xff]
    %v5171 = vld [vmem:[#allocation4 + $0x210] sm:$0xff]
    %v5172 = vld [vmem:[#allocation4 + $0x218] sm:$0xff]
    %v5173 = vld [vmem:[#allocation4 + $0x220] sm:$0xff]
    %v5174 = vld [vmem:[#allocation4 + $0x228] sm:$0xff]
    %v5175 = vld [vmem:[#allocation4 + $0x230] sm:$0xff]
    %v5176 = vld [vmem:[#allocation4 + $0x238] sm:$0xff]
    %v5177 = vld [vmem:[#allocation4 + $0x240] sm:$0xff]
    %v5178 = vld [vmem:[#allocation4 + $0x248] sm:$0xff]
    %v5179 = vld [vmem:[#allocation4 + $0x250] sm:$0xff]
    %v5180 = vld [vmem:[#allocation4 + $0x258] sm:$0xff]
    %v5181 = vld [vmem:[#allocation4 + $0x260] sm:$0xff]
    %v5182 = vld [vmem:[#allocation4 + $0x268] sm:$0xff]
    %v5183 = vld [vmem:[#allocation4 + $0x270] sm:$0xff]
    %v5184 = vld [vmem:[#allocation4 + $0x278] sm:$0xff]
    %v5185 = vld [vmem:[#allocation4 + $0x280] sm:$0xff]
    %v5186 = vld [vmem:[#allocation4 + $0x288] sm:$0xff]
    %v5187 = vld [vmem:[#allocation4 + $0x290] sm:$0xff]
    %v5188 = vld [vmem:[#allocation4 + $0x298] sm:$0xff]
    %v5189 = vld [vmem:[#allocation4 + $0x2a0] sm:$0xff]
    %v5190 = vld [vmem:[#allocation4 + $0x2a8] sm:$0xff]
    %v5191 = vld [vmem:[#allocation4 + $0x2b0] sm:$0xff]
    %v5192 = vld [vmem:[#allocation4 + $0x2b8] sm:$0xff]
    %v5193 = vld [vmem:[#allocation4 + $0x2c0] sm:$0xff]
    %v5194 = vld [vmem:[#allocation4 + $0x2c8] sm:$0xff]
    %v5195 = vld [vmem:[#allocation4 + $0x2d0] sm:$0xff]
    %v5196 = vld [vmem:[#allocation4 + $0x2d8] sm:$0xff]
    %v5197 = vld [vmem:[#allocation4 + $0x2e0] sm:$0xff]
    %v5198 = vld [vmem:[#allocation4 + $0x2e8] sm:$0xff]
    %v5199 = vld [vmem:[#allocation4 + $0x2f0] sm:$0xff]
    %v5200 = vld [vmem:[#allocation4 + $0x2f8] sm:$0xff]
    %v5201 = vld [vmem:[#allocation4 + $0x300] sm:$0xff]
    %v5202 = vld [vmem:[#allocation4 + $0x308] sm:$0xff]
    %v5203 = vld [vmem:[#allocation4 + $0x310] sm:$0xff]
    %v5204 = vld [vmem:[#allocation4 + $0x318] sm:$0xff]
    %v5205 = vld [vmem:[#allocation4 + $0x320] sm:$0xff]
    %v5206 = vld [vmem:[#allocation4 + $0x328] sm:$0xff]
    %v5207 = vld [vmem:[#allocation4 + $0x330] sm:$0xff]
    %v5208 = vld [vmem:[#allocation4 + $0x338] sm:$0xff]
    %v5209 = vld [vmem:[#allocation4 + $0x340] sm:$0xff]
    %v5210 = vld [vmem:[#allocation4 + $0x348] sm:$0xff]
    %v5211 = vld [vmem:[#allocation4 + $0x350] sm:$0xff]
    %v5212 = vld [vmem:[#allocation4 + $0x358] sm:$0xff]
    %v5213 = vld [vmem:[#allocation4 + $0x360] sm:$0xff]
    %v5214 = vld [vmem:[#allocation4 + $0x368] sm:$0xff]
    %v5215 = vld [vmem:[#allocation4 + $0x370] sm:$0xff]
    %v5216 = vld [vmem:[#allocation4 + $0x378] sm:$0xff]
    %v5217 = vld [vmem:[#allocation4 + $0x380] sm:$0xff]
    %v5218 = vld [vmem:[#allocation4 + $0x388] sm:$0xff]
    %v5219 = vld [vmem:[#allocation4 + $0x390] sm:$0xff]
    %v5220 = vld [vmem:[#allocation4 + $0x398] sm:$0xff]
    %v5221 = vld [vmem:[#allocation4 + $0x3a0] sm:$0xff]
    %v5222 = vld [vmem:[#allocation4 + $0x3a8] sm:$0xff]
    %v5223 = vld [vmem:[#allocation4 + $0x3b0] sm:$0xff]
    %v5224 = vld [vmem:[#allocation4 + $0x3b8] sm:$0xff]
    %v5225 = vld [vmem:[#allocation4 + $0x3c0] sm:$0xff]
    %v5226 = vld [vmem:[#allocation4 + $0x3c8] sm:$0xff]
    %v5227 = vld [vmem:[#allocation4 + $0x3d0] sm:$0xff]
    %v5228 = vld [vmem:[#allocation4 + $0x3d8] sm:$0xff]
    %v5229 = vld [vmem:[#allocation4 + $0x3e0] sm:$0xff]
    %v5230 = vld [vmem:[#allocation4 + $0x3e8] sm:$0xff]
    %v5231 = vld [vmem:[#allocation4 + $0x3f0] sm:$0xff]
    %v5232 = vld [vmem:[#allocation4 + $0x3f8] sm:$0xff]
    %v5233 = vld [vmem:[#allocation5] sm:$0xf]
    %v5235 = vlaneseq
    %v5236 = vshrl.u32 %v5235, 7
    %v5237 = vsub.s32 0, %v5236
    %v5238 = vrot.slane %v5233, %v5237
    %v5239 = vlaneseq
    %v5240 = vshrl.u32 %v5239, 7
    %v5241 = vsub.s32 1, %v5240
    %v5242 = vrot.slane %v5233, %v5241
    %v5243 = vlaneseq
    %v5244 = vshrl.u32 %v5243, 7
    %v5245 = vsub.s32 2, %v5244
    %v5246 = vrot.slane %v5233, %v5245
    %v5247 = vlaneseq
    %v5248 = vshrl.u32 %v5247, 7
    %v5249 = vsub.s32 3, %v5248
    %v5250 = vrot.slane %v5233, %v5249
    %5255 = vmatprep.subr.mxu0 %v5106
    %5256 = vmatpush1.msra.mxu0 %v5105
    %5257 = vmatprep.subr.mxu0 %v5110
    %5258 = vmatpush1.msra.mxu0 %v5109
    %5259 = vmatprep.subr.mxu0 %v5114
    %5260 = vmatpush1.msra.mxu0 %v5113
    %5261 = vmatprep.subr.mxu0 %v5118
    %5262 = vmatpush1.msra.mxu0 %v5117
    %5263 = vmatprep.subr.mxu0 %v5122
    %5264 = vmatpush1.msra.mxu0 %v5121
    %5265 = vmatprep.subr.mxu0 %v5126
    %5266 = vmatpush1.msra.mxu0 %v5125
    %5267 = vmatprep.subr.mxu0 %v5130
    %5268 = vmatpush1.msra.mxu0 %v5129
    %5269 = vmatprep.subr.mxu0 %v5134
    %5270 = vmatpush1.msra.mxu0 %v5133
    %5271 = vmatprep.subr.mxu0 %v5138
    %5272 = vmatpush1.msra.mxu0 %v5137
    %5273 = vmatprep.subr.mxu0 %v5142
    %5274 = vmatpush1.msra.mxu0 %v5141
    %5275 = vmatprep.subr.mxu0 %v5146
    %5276 = vmatpush1.msra.mxu0 %v5145
    %5277 = vmatprep.subr.mxu0 %v5150
    %5278 = vmatpush1.msra.mxu0 %v5149
    %5279 = vmatprep.subr.mxu0 %v5154
    %5280 = vmatpush1.msra.mxu0 %v5153
    %5281 = vmatprep.subr.mxu0 %v5158
    %5282 = vmatpush1.msra.mxu0 %v5157
    %5283 = vmatprep.subr.mxu0 %v5162
    %5284 = vmatpush1.msra.mxu0 %v5161
    %5285 = vmatprep.subr.mxu0 %v5166
    %5286 = vmatpush1.msra.mxu0 %v5165
    %5287 = vmatprep.subr.mxu0 %v5170
    %5288 = vmatpush1.msra.mxu0 %v5169
    %5289 = vmatprep.subr.mxu0 %v5174
    %5290 = vmatpush1.msra.mxu0 %v5173
    %5291 = vmatprep.subr.mxu0 %v5178
    %5292 = vmatpush1.msra.mxu0 %v5177
    %5293 = vmatprep.subr.mxu0 %v5182
    %5294 = vmatpush1.msra.mxu0 %v5181
    %5295 = vmatprep.subr.mxu0 %v5186
    %5296 = vmatpush1.msra.mxu0 %v5185
    %5297 = vmatprep.subr.mxu0 %v5190
    %5298 = vmatpush1.msra.mxu0 %v5189
    %5299 = vmatprep.subr.mxu0 %v5194
    %5300 = vmatpush1.msra.mxu0 %v5193
    %5301 = vmatprep.subr.mxu0 %v5198
    %5302 = vmatpush1.msra.mxu0 %v5197
    %5303 = vmatprep.subr.mxu0 %v5202
    %5304 = vmatpush1.msra.mxu0 %v5201
    %5305 = vmatprep.subr.mxu0 %v5206
    %5306 = vmatpush1.msra.mxu0 %v5205
    %5307 = vmatprep.subr.mxu0 %v5210
    %5308 = vmatpush1.msra.mxu0 %v5209
    %5309 = vmatprep.subr.mxu0 %v5214
    %5310 = vmatpush1.msra.mxu0 %v5213
    %5311 = vmatprep.subr.mxu0 %v5218
    %5312 = vmatpush1.msra.mxu0 %v5217
    %5313 = vmatprep.subr.mxu0 %v5222
    %5314 = vmatpush1.msra.mxu0 %v5221
    %5315 = vmatprep.subr.mxu0 %v5226
    %5316 = vmatpush1.msra.mxu0 %v5225
    %5317 = vmatprep.subr.mxu0 %v5230
    %5318 = vmatpush1.msra.mxu0 %v5229
    %5319 = vmatprep.mubr.f32.mxu0 %v4834
    %5320 = vmatmul.mubr.f32.gmra.mrb[0].mxu0 %v4518
    %v5321 = vpop.f32.mrb[0].mxu0
    %v5322 = vadd.f32 %v5238, %v5321
    %v5323 = vpop.f32.mrb[0].mxu0
    %v5324 = vadd.f32 %v5242, %v5323
    %5325 = vdwg.mxu0
    %5326 = vmatprep.subr.mxu0 %v5108
    %5327 = vmatpush1.msra.mxu0 %v5107
    %5328 = vmatprep.subr.mxu0 %v5112
    %5329 = vmatpush1.msra.mxu0 %v5111
    %5330 = vmatprep.subr.mxu0 %v5116
    %5331 = vmatpush1.msra.mxu0 %v5115
    %5332 = vmatprep.subr.mxu0 %v5120
    %5333 = vmatpush1.msra.mxu0 %v5119
    %5334 = vmatprep.subr.mxu0 %v5124
    %5335 = vmatpush1.msra.mxu0 %v5123
    %5336 = vmatprep.subr.mxu0 %v5128
    %5337 = vmatpush1.msra.mxu0 %v5127
    %5338 = vmatprep.subr.mxu0 %v5132
    %5339 = vmatpush1.msra.mxu0 %v5131
    %5340 = vmatprep.subr.mxu0 %v5136
    %5341 = vmatpush1.msra.mxu0 %v5135
    %5342 = vmatprep.subr.mxu0 %v5140
    %5343 = vmatpush1.msra.mxu0 %v5139
    %5344 = vmatprep.subr.mxu0 %v5144
    %5345 = vmatpush1.msra.mxu0 %v5143
    %5346 = vmatprep.subr.mxu0 %v5148
    %5347 = vmatpush1.msra.mxu0 %v5147
    %5348 = vmatprep.subr.mxu0 %v5152
    %5349 = vmatpush1.msra.mxu0 %v5151
    %5350 = vmatprep.subr.mxu0 %v5156
    %5351 = vmatpush1.msra.mxu0 %v5155
    %5352 = vmatprep.subr.mxu0 %v5160
    %5353 = vmatpush1.msra.mxu0 %v5159
    %5354 = vmatprep.subr.mxu0 %v5164
    %5355 = vmatpush1.msra.mxu0 %v5163
    %5356 = vmatprep.subr.mxu0 %v5168
    %5357 = vmatpush1.msra.mxu0 %v5167
    %5358 = vmatprep.subr.mxu0 %v5172
    %5359 = vmatpush1.msra.mxu0 %v5171
    %5360 = vmatprep.subr.mxu0 %v5176
    %5361 = vmatpush1.msra.mxu0 %v5175
    %5362 = vmatprep.subr.mxu0 %v5180
    %5363 = vmatpush1.msra.mxu0 %v5179
    %5364 = vmatprep.subr.mxu0 %v5184
    %5365 = vmatpush1.msra.mxu0 %v5183
    %5366 = vmatprep.subr.mxu0 %v5188
    %5367 = vmatpush1.msra.mxu0 %v5187
    %5368 = vmatprep.subr.mxu0 %v5192
    %5369 = vmatpush1.msra.mxu0 %v5191
    %5370 = vmatprep.subr.mxu0 %v5196
    %5371 = vmatpush1.msra.mxu0 %v5195
    %5372 = vmatprep.subr.mxu0 %v5200
    %5373 = vmatpush1.msra.mxu0 %v5199
    %5374 = vmatprep.subr.mxu0 %v5204
    %5375 = vmatpush1.msra.mxu0 %v5203
    %5376 = vmatprep.subr.mxu0 %v5208
    %5377 = vmatpush1.msra.mxu0 %v5207
    %5378 = vmatprep.subr.mxu0 %v5212
    %5379 = vmatpush1.msra.mxu0 %v5211
    %5380 = vmatprep.subr.mxu0 %v5216
    %5381 = vmatpush1.msra.mxu0 %v5215
    %5382 = vmatprep.subr.mxu0 %v5220
    %5383 = vmatpush1.msra.mxu0 %v5219
    %5384 = vmatprep.subr.mxu0 %v5224
    %5385 = vmatpush1.msra.mxu0 %v5223
    %5386 = vmatprep.subr.mxu0 %v5228
    %5387 = vmatpush1.msra.mxu0 %v5227
    %5388 = vmatprep.subr.mxu0 %v5232
    %5389 = vmatpush1.msra.mxu0 %v5231
    %5390 = vmatprep.mubr.f32.mxu0 %v4834
    %5391 = vmatmul.mubr.f32.gmra.mrb[0].mxu0 %v4518
    %v5392 = vpop.f32.mrb[0].mxu0
    %v5393 = vadd.f32 %v5246, %v5392
    %v5394 = vpop.f32.mrb[0].mxu0
    %v5395 = vadd.f32 %v5250, %v5394
    %5396 = vdwg.mxu0
    %v5397 = vxor.u32 %v5322, 2147483648
    %v5398 = vmul.f32 %v5397, 1.442695
    %v5399 = vpow.pop %v5398
    %v5400 = vadd.f32 %v5399, 1.0
    %v5401 = vrcp.pop %v5400
    %v5402 = vmul.f32 1.0, %v5401
    %v5403 = vxor.u32 %v5324, 2147483648
    %v5404 = vmul.f32 %v5403, 1.442695
    %v5405 = vpow.pop %v5404
    %v5406 = vadd.f32 %v5405, 1.0
    %v5407 = vrcp.pop %v5406
    %v5408 = vmul.f32 1.0, %v5407
    %v5409 = vtanh.pop %v5393
    %v5410 = vxor.u32 %v5395, 2147483648
    %v5411 = vmul.f32 %v5410, 1.442695
    %v5412 = vpow.pop %v5411
    %v5413 = vadd.f32 %v5412, 1.0
    %v5414 = vrcp.pop %v5413
    %v5415 = vmul.f32 1.0, %v5414
    %v5416 = vmul.f32 %v5408, %v4832
    %v5417 = vmul.f32 %v5402, %v5409
    %v5418 = vadd.f32 %v5416, %v5417
    %v5419 = vtanh.pop %v5418
    %v5420 = vmul.f32 %v5415, %v5419
    %5421 = vst [vmem:[#allocation3 + $0x6] sm:$0x1] %v5420
    %v5422 = vld [vmem:[#allocation4] sm:$0xff]
    %v5423 = vld [vmem:[#allocation4 + $0x8] sm:$0xff]
    %v5424 = vld [vmem:[#allocation4 + $0x10] sm:$0xff]
    %v5425 = vld [vmem:[#allocation4 + $0x18] sm:$0xff]
    %v5426 = vld [vmem:[#allocation4 + $0x20] sm:$0xff]
    %v5427 = vld [vmem:[#allocation4 + $0x28] sm:$0xff]
    %v5428 = vld [vmem:[#allocation4 + $0x30] sm:$0xff]
    %v5429 = vld [vmem:[#allocation4 + $0x38] sm:$0xff]
    %v5430 = vld [vmem:[#allocation4 + $0x40] sm:$0xff]
    %v5431 = vld [vmem:[#allocation4 + $0x48] sm:$0xff]
    %v5432 = vld [vmem:[#allocation4 + $0x50] sm:$0xff]
    %v5433 = vld [vmem:[#allocation4 + $0x58] sm:$0xff]
    %v5434 = vld [vmem:[#allocation4 + $0x60] sm:$0xff]
    %v5435 = vld [vmem:[#allocation4 + $0x68] sm:$0xff]
    %v5436 = vld [vmem:[#allocation4 + $0x70] sm:$0xff]
    %v5437 = vld [vmem:[#allocation4 + $0x78] sm:$0xff]
    %v5438 = vld [vmem:[#allocation4 + $0x80] sm:$0xff]
    %v5439 = vld [vmem:[#allocation4 + $0x88] sm:$0xff]
    %v5440 = vld [vmem:[#allocation4 + $0x90] sm:$0xff]
    %v5441 = vld [vmem:[#allocation4 + $0x98] sm:$0xff]
    %v5442 = vld [vmem:[#allocation4 + $0xa0] sm:$0xff]
    %v5443 = vld [vmem:[#allocation4 + $0xa8] sm:$0xff]
    %v5444 = vld [vmem:[#allocation4 + $0xb0] sm:$0xff]
    %v5445 = vld [vmem:[#allocation4 + $0xb8] sm:$0xff]
    %v5446 = vld [vmem:[#allocation4 + $0xc0] sm:$0xff]
    %v5447 = vld [vmem:[#allocation4 + $0xc8] sm:$0xff]
    %v5448 = vld [vmem:[#allocation4 + $0xd0] sm:$0xff]
    %v5449 = vld [vmem:[#allocation4 + $0xd8] sm:$0xff]
    %v5450 = vld [vmem:[#allocation4 + $0xe0] sm:$0xff]
    %v5451 = vld [vmem:[#allocation4 + $0xe8] sm:$0xff]
    %v5452 = vld [vmem:[#allocation4 + $0xf0] sm:$0xff]
    %v5453 = vld [vmem:[#allocation4 + $0xf8] sm:$0xff]
    %v5454 = vld [vmem:[#allocation4 + $0x100] sm:$0xff]
    %v5455 = vld [vmem:[#allocation4 + $0x108] sm:$0xff]
    %v5456 = vld [vmem:[#allocation4 + $0x110] sm:$0xff]
    %v5457 = vld [vmem:[#allocation4 + $0x118] sm:$0xff]
    %v5458 = vld [vmem:[#allocation4 + $0x120] sm:$0xff]
    %v5459 = vld [vmem:[#allocation4 + $0x128] sm:$0xff]
    %v5460 = vld [vmem:[#allocation4 + $0x130] sm:$0xff]
    %v5461 = vld [vmem:[#allocation4 + $0x138] sm:$0xff]
    %v5462 = vld [vmem:[#allocation4 + $0x140] sm:$0xff]
    %v5463 = vld [vmem:[#allocation4 + $0x148] sm:$0xff]
    %v5464 = vld [vmem:[#allocation4 + $0x150] sm:$0xff]
    %v5465 = vld [vmem:[#allocation4 + $0x158] sm:$0xff]
    %v5466 = vld [vmem:[#allocation4 + $0x160] sm:$0xff]
    %v5467 = vld [vmem:[#allocation4 + $0x168] sm:$0xff]
    %v5468 = vld [vmem:[#allocation4 + $0x170] sm:$0xff]
    %v5469 = vld [vmem:[#allocation4 + $0x178] sm:$0xff]
    %v5470 = vld [vmem:[#allocation4 + $0x180] sm:$0xff]
    %v5471 = vld [vmem:[#allocation4 + $0x188] sm:$0xff]
    %v5472 = vld [vmem:[#allocation4 + $0x190] sm:$0xff]
    %v5473 = vld [vmem:[#allocation4 + $0x198] sm:$0xff]
    %v5474 = vld [vmem:[#allocation4 + $0x1a0] sm:$0xff]
    %v5475 = vld [vmem:[#allocation4 + $0x1a8] sm:$0xff]
    %v5476 = vld [vmem:[#allocation4 + $0x1b0] sm:$0xff]
    %v5477 = vld [vmem:[#allocation4 + $0x1b8] sm:$0xff]
    %v5478 = vld [vmem:[#allocation4 + $0x1c0] sm:$0xff]
    %v5479 = vld [vmem:[#allocation4 + $0x1c8] sm:$0xff]
    %v5480 = vld [vmem:[#allocation4 + $0x1d0] sm:$0xff]
    %v5481 = vld [vmem:[#allocation4 + $0x1d8] sm:$0xff]
    %v5482 = vld [vmem:[#allocation4 + $0x1e0] sm:$0xff]
    %v5483 = vld [vmem:[#allocation4 + $0x1e8] sm:$0xff]
    %v5484 = vld [vmem:[#allocation4 + $0x1f0] sm:$0xff]
    %v5485 = vld [vmem:[#allocation4 + $0x1f8] sm:$0xff]
    %v5486 = vld [vmem:[#allocation4 + $0x200] sm:$0xff]
    %v5487 = vld [vmem:[#allocation4 + $0x208] sm:$0xff]
    %v5488 = vld [vmem:[#allocation4 + $0x210] sm:$0xff]
    %v5489 = vld [vmem:[#allocation4 + $0x218] sm:$0xff]
    %v5490 = vld [vmem:[#allocation4 + $0x220] sm:$0xff]
    %v5491 = vld [vmem:[#allocation4 + $0x228] sm:$0xff]
    %v5492 = vld [vmem:[#allocation4 + $0x230] sm:$0xff]
    %v5493 = vld [vmem:[#allocation4 + $0x238] sm:$0xff]
    %v5494 = vld [vmem:[#allocation4 + $0x240] sm:$0xff]
    %v5495 = vld [vmem:[#allocation4 + $0x248] sm:$0xff]
    %v5496 = vld [vmem:[#allocation4 + $0x250] sm:$0xff]
    %v5497 = vld [vmem:[#allocation4 + $0x258] sm:$0xff]
    %v5498 = vld [vmem:[#allocation4 + $0x260] sm:$0xff]
    %v5499 = vld [vmem:[#allocation4 + $0x268] sm:$0xff]
    %v5500 = vld [vmem:[#allocation4 + $0x270] sm:$0xff]
    %v5501 = vld [vmem:[#allocation4 + $0x278] sm:$0xff]
    %v5502 = vld [vmem:[#allocation4 + $0x280] sm:$0xff]
    %v5503 = vld [vmem:[#allocation4 + $0x288] sm:$0xff]
    %v5504 = vld [vmem:[#allocation4 + $0x290] sm:$0xff]
    %v5505 = vld [vmem:[#allocation4 + $0x298] sm:$0xff]
    %v5506 = vld [vmem:[#allocation4 + $0x2a0] sm:$0xff]
    %v5507 = vld [vmem:[#allocation4 + $0x2a8] sm:$0xff]
    %v5508 = vld [vmem:[#allocation4 + $0x2b0] sm:$0xff]
    %v5509 = vld [vmem:[#allocation4 + $0x2b8] sm:$0xff]
    %v5510 = vld [vmem:[#allocation4 + $0x2c0] sm:$0xff]
    %v5511 = vld [vmem:[#allocation4 + $0x2c8] sm:$0xff]
    %v5512 = vld [vmem:[#allocation4 + $0x2d0] sm:$0xff]
    %v5513 = vld [vmem:[#allocation4 + $0x2d8] sm:$0xff]
    %v5514 = vld [vmem:[#allocation4 + $0x2e0] sm:$0xff]
    %v5515 = vld [vmem:[#allocation4 + $0x2e8] sm:$0xff]
    %v5516 = vld [vmem:[#allocation4 + $0x2f0] sm:$0xff]
    %v5517 = vld [vmem:[#allocation4 + $0x2f8] sm:$0xff]
    %v5518 = vld [vmem:[#allocation4 + $0x300] sm:$0xff]
    %v5519 = vld [vmem:[#allocation4 + $0x308] sm:$0xff]
    %v5520 = vld [vmem:[#allocation4 + $0x310] sm:$0xff]
    %v5521 = vld [vmem:[#allocation4 + $0x318] sm:$0xff]
    %v5522 = vld [vmem:[#allocation4 + $0x320] sm:$0xff]
    %v5523 = vld [vmem:[#allocation4 + $0x328] sm:$0xff]
    %v5524 = vld [vmem:[#allocation4 + $0x330] sm:$0xff]
    %v5525 = vld [vmem:[#allocation4 + $0x338] sm:$0xff]
    %v5526 = vld [vmem:[#allocation4 + $0x340] sm:$0xff]
    %v5527 = vld [vmem:[#allocation4 + $0x348] sm:$0xff]
    %v5528 = vld [vmem:[#allocation4 + $0x350] sm:$0xff]
    %v5529 = vld [vmem:[#allocation4 + $0x358] sm:$0xff]
    %v5530 = vld [vmem:[#allocation4 + $0x360] sm:$0xff]
    %v5531 = vld [vmem:[#allocation4 + $0x368] sm:$0xff]
    %v5532 = vld [vmem:[#allocation4 + $0x370] sm:$0xff]
    %v5533 = vld [vmem:[#allocation4 + $0x378] sm:$0xff]
    %v5534 = vld [vmem:[#allocation4 + $0x380] sm:$0xff]
    %v5535 = vld [vmem:[#allocation4 + $0x388] sm:$0xff]
    %v5536 = vld [vmem:[#allocation4 + $0x390] sm:$0xff]
    %v5537 = vld [vmem:[#allocation4 + $0x398] sm:$0xff]
    %v5538 = vld [vmem:[#allocation4 + $0x3a0] sm:$0xff]
    %v5539 = vld [vmem:[#allocation4 + $0x3a8] sm:$0xff]
    %v5540 = vld [vmem:[#allocation4 + $0x3b0] sm:$0xff]
    %v5541 = vld [vmem:[#allocation4 + $0x3b8] sm:$0xff]
    %v5542 = vld [vmem:[#allocation4 + $0x3c0] sm:$0xff]
    %v5543 = vld [vmem:[#allocation4 + $0x3c8] sm:$0xff]
    %v5544 = vld [vmem:[#allocation4 + $0x3d0] sm:$0xff]
    %v5545 = vld [vmem:[#allocation4 + $0x3d8] sm:$0xff]
    %v5546 = vld [vmem:[#allocation4 + $0x3e0] sm:$0xff]
    %v5547 = vld [vmem:[#allocation4 + $0x3e8] sm:$0xff]
    %v5548 = vld [vmem:[#allocation4 + $0x3f0] sm:$0xff]
    %v5549 = vld [vmem:[#allocation4 + $0x3f8] sm:$0xff]
    %v5550 = vld [vmem:[#allocation5] sm:$0xf]
    %v5552 = vlaneseq
    %v5553 = vshrl.u32 %v5552, 7
    %v5554 = vsub.s32 0, %v5553
    %v5555 = vrot.slane %v5550, %v5554
    %v5556 = vlaneseq
    %v5557 = vshrl.u32 %v5556, 7
    %v5558 = vsub.s32 1, %v5557
    %v5559 = vrot.slane %v5550, %v5558
    %v5560 = vlaneseq
    %v5561 = vshrl.u32 %v5560, 7
    %v5562 = vsub.s32 2, %v5561
    %v5563 = vrot.slane %v5550, %v5562
    %v5564 = vlaneseq
    %v5565 = vshrl.u32 %v5564, 7
    %v5566 = vsub.s32 3, %v5565
    %v5567 = vrot.slane %v5550, %v5566
    %5572 = vmatprep.subr.mxu0 %v5423
    %5573 = vmatpush1.msra.mxu0 %v5422
    %5574 = vmatprep.subr.mxu0 %v5427
    %5575 = vmatpush1.msra.mxu0 %v5426
    %5576 = vmatprep.subr.mxu0 %v5431
    %5577 = vmatpush1.msra.mxu0 %v5430
    %5578 = vmatprep.subr.mxu0 %v5435
    %5579 = vmatpush1.msra.mxu0 %v5434
    %5580 = vmatprep.subr.mxu0 %v5439
    %5581 = vmatpush1.msra.mxu0 %v5438
    %5582 = vmatprep.subr.mxu0 %v5443
    %5583 = vmatpush1.msra.mxu0 %v5442
    %5584 = vmatprep.subr.mxu0 %v5447
    %5585 = vmatpush1.msra.mxu0 %v5446
    %5586 = vmatprep.subr.mxu0 %v5451
    %5587 = vmatpush1.msra.mxu0 %v5450
    %5588 = vmatprep.subr.mxu0 %v5455
    %5589 = vmatpush1.msra.mxu0 %v5454
    %5590 = vmatprep.subr.mxu0 %v5459
    %5591 = vmatpush1.msra.mxu0 %v5458
    %5592 = vmatprep.subr.mxu0 %v5463
    %5593 = vmatpush1.msra.mxu0 %v5462
    %5594 = vmatprep.subr.mxu0 %v5467
    %5595 = vmatpush1.msra.mxu0 %v5466
    %5596 = vmatprep.subr.mxu0 %v5471
    %5597 = vmatpush1.msra.mxu0 %v5470
    %5598 = vmatprep.subr.mxu0 %v5475
    %5599 = vmatpush1.msra.mxu0 %v5474
    %5600 = vmatprep.subr.mxu0 %v5479
    %5601 = vmatpush1.msra.mxu0 %v5478
    %5602 = vmatprep.subr.mxu0 %v5483
    %5603 = vmatpush1.msra.mxu0 %v5482
    %5604 = vmatprep.subr.mxu0 %v5487
    %5605 = vmatpush1.msra.mxu0 %v5486
    %5606 = vmatprep.subr.mxu0 %v5491
    %5607 = vmatpush1.msra.mxu0 %v5490
    %5608 = vmatprep.subr.mxu0 %v5495
    %5609 = vmatpush1.msra.mxu0 %v5494
    %5610 = vmatprep.subr.mxu0 %v5499
    %5611 = vmatpush1.msra.mxu0 %v5498
    %5612 = vmatprep.subr.mxu0 %v5503
    %5613 = vmatpush1.msra.mxu0 %v5502
    %5614 = vmatprep.subr.mxu0 %v5507
    %5615 = vmatpush1.msra.mxu0 %v5506
    %5616 = vmatprep.subr.mxu0 %v5511
    %5617 = vmatpush1.msra.mxu0 %v5510
    %5618 = vmatprep.subr.mxu0 %v5515
    %5619 = vmatpush1.msra.mxu0 %v5514
    %5620 = vmatprep.subr.mxu0 %v5519
    %5621 = vmatpush1.msra.mxu0 %v5518
    %5622 = vmatprep.subr.mxu0 %v5523
    %5623 = vmatpush1.msra.mxu0 %v5522
    %5624 = vmatprep.subr.mxu0 %v5527
    %5625 = vmatpush1.msra.mxu0 %v5526
    %5626 = vmatprep.subr.mxu0 %v5531
    %5627 = vmatpush1.msra.mxu0 %v5530
    %5628 = vmatprep.subr.mxu0 %v5535
    %5629 = vmatpush1.msra.mxu0 %v5534
    %5630 = vmatprep.subr.mxu0 %v5539
    %5631 = vmatpush1.msra.mxu0 %v5538
    %5632 = vmatprep.subr.mxu0 %v5543
    %5633 = vmatpush1.msra.mxu0 %v5542
    %5634 = vmatprep.subr.mxu0 %v5547
    %5635 = vmatpush1.msra.mxu0 %v5546
    %5636 = vmatprep.mubr.f32.mxu0 %v5420
    %5637 = vmatmul.mubr.f32.gmra.mrb[0].mxu0 %v5104
    %v5638 = vpop.f32.mrb[0].mxu0
    %v5639 = vadd.f32 %v5555, %v5638
    %v5640 = vpop.f32.mrb[0].mxu0
    %v5641 = vadd.f32 %v5559, %v5640
    %5642 = vdwg.mxu0
    %5643 = vmatprep.subr.mxu0 %v5425
    %5644 = vmatpush1.msra.mxu0 %v5424
    %5645 = vmatprep.subr.mxu0 %v5429
    %5646 = vmatpush1.msra.mxu0 %v5428
    %5647 = vmatprep.subr.mxu0 %v5433
    %5648 = vmatpush1.msra.mxu0 %v5432
    %5649 = vmatprep.subr.mxu0 %v5437
    %5650 = vmatpush1.msra.mxu0 %v5436
    %5651 = vmatprep.subr.mxu0 %v5441
    %5652 = vmatpush1.msra.mxu0 %v5440
    %5653 = vmatprep.subr.mxu0 %v5445
    %5654 = vmatpush1.msra.mxu0 %v5444
    %5655 = vmatprep.subr.mxu0 %v5449
    %5656 = vmatpush1.msra.mxu0 %v5448
    %5657 = vmatprep.subr.mxu0 %v5453
    %5658 = vmatpush1.msra.mxu0 %v5452
    %5659 = vmatprep.subr.mxu0 %v5457
    %5660 = vmatpush1.msra.mxu0 %v5456
    %5661 = vmatprep.subr.mxu0 %v5461
    %5662 = vmatpush1.msra.mxu0 %v5460
    %5663 = vmatprep.subr.mxu0 %v5465
    %5664 = vmatpush1.msra.mxu0 %v5464
    %5665 = vmatprep.subr.mxu0 %v5469
    %5666 = vmatpush1.msra.mxu0 %v5468
    %5667 = vmatprep.subr.mxu0 %v5473
    %5668 = vmatpush1.msra.mxu0 %v5472
    %5669 = vmatprep.subr.mxu0 %v5477
    %5670 = vmatpush1.msra.mxu0 %v5476
    %5671 = vmatprep.subr.mxu0 %v5481
    %5672 = vmatpush1.msra.mxu0 %v5480
    %5673 = vmatprep.subr.mxu0 %v5485
    %5674 = vmatpush1.msra.mxu0 %v5484
    %5675 = vmatprep.subr.mxu0 %v5489
    %5676 = vmatpush1.msra.mxu0 %v5488
    %5677 = vmatprep.subr.mxu0 %v5493
    %5678 = vmatpush1.msra.mxu0 %v5492
    %5679 = vmatprep.subr.mxu0 %v5497
    %5680 = vmatpush1.msra.mxu0 %v5496
    %5681 = vmatprep.subr.mxu0 %v5501
    %5682 = vmatpush1.msra.mxu0 %v5500
    %5683 = vmatprep.subr.mxu0 %v5505
    %5684 = vmatpush1.msra.mxu0 %v5504
    %5685 = vmatprep.subr.mxu0 %v5509
    %5686 = vmatpush1.msra.mxu0 %v5508
    %5687 = vmatprep.subr.mxu0 %v5513
    %5688 = vmatpush1.msra.mxu0 %v5512
    %5689 = vmatprep.subr.mxu0 %v5517
    %5690 = vmatpush1.msra.mxu0 %v5516
    %5691 = vmatprep.subr.mxu0 %v5521
    %5692 = vmatpush1.msra.mxu0 %v5520
    %5693 = vmatprep.subr.mxu0 %v5525
    %5694 = vmatpush1.msra.mxu0 %v5524
    %5695 = vmatprep.subr.mxu0 %v5529
    %5696 = vmatpush1.msra.mxu0 %v5528
    %5697 = vmatprep.subr.mxu0 %v5533
    %5698 = vmatpush1.msra.mxu0 %v5532
    %5699 = vmatprep.subr.mxu0 %v5537
    %5700 = vmatpush1.msra.mxu0 %v5536
    %5701 = vmatprep.subr.mxu0 %v5541
    %5702 = vmatpush1.msra.mxu0 %v5540
    %5703 = vmatprep.subr.mxu0 %v5545
    %5704 = vmatpush1.msra.mxu0 %v5544
    %5705 = vmatprep.subr.mxu0 %v5549
    %5706 = vmatpush1.msra.mxu0 %v5548
    %5707 = vmatprep.mubr.f32.mxu0 %v5420
    %5708 = vmatmul.mubr.f32.gmra.mrb[0].mxu0 %v5104
    %v5709 = vpop.f32.mrb[0].mxu0
    %v5710 = vadd.f32 %v5563, %v5709
    %v5711 = vpop.f32.mrb[0].mxu0
    %v5712 = vadd.f32 %v5567, %v5711
    %5713 = vdwg.mxu0
    %v5714 = vxor.u32 %v5639, 2147483648
    %v5715 = vmul.f32 %v5714, 1.442695
    %v5716 = vpow.pop %v5715
    %v5717 = vadd.f32 %v5716, 1.0
    %v5718 = vrcp.pop %v5717
    %v5719 = vmul.f32 1.0, %v5718
    %v5720 = vxor.u32 %v5641, 2147483648
    %v5721 = vmul.f32 %v5720, 1.442695
    %v5722 = vpow.pop %v5721
    %v5723 = vadd.f32 %v5722, 1.0
    %v5724 = vrcp.pop %v5723
    %v5725 = vmul.f32 1.0, %v5724
    %v5726 = vtanh.pop %v5710
    %v5727 = vxor.u32 %v5712, 2147483648
    %v5728 = vmul.f32 %v5727, 1.442695
    %v5729 = vpow.pop %v5728
    %v5730 = vadd.f32 %v5729, 1.0
    %v5731 = vrcp.pop %v5730
    %v5732 = vmul.f32 1.0, %v5731
    %v5733 = vmul.f32 %v5725, %v5418
    %v5734 = vmul.f32 %v5719, %v5726
    %v5735 = vadd.f32 %v5733, %v5734
    %v5736 = vtanh.pop %v5735
    %v5737 = vmul.f32 %v5732, %v5736
    %5738 = vst [vmem:[#allocation3 + $0x7] sm:$0x1] %v5737
    %s5739 = smul.u32 128, 1
    %s5740 = sshll.u32 %s5739, 4
    %5741 = dma.done %s88, %s5740
    %s5742 = smul.u32 1, 1
    %s5743 = sshll.u32 %s5742, 4
    %5744 = dma.done %s100, %s5743
    %v5745 = vld [vmem:[#allocation3] sm:$0xff]
    %v5746 = vld [vmem:[#allocation6] sm:$0xff]
    %v5747 = vld [vmem:[#allocation6 + $0x8] sm:$0xff]
    %v5748 = vld [vmem:[#allocation6 + $0x10] sm:$0xff]
    %v5749 = vld [vmem:[#allocation6 + $0x18] sm:$0xff]
    %v5750 = vld [vmem:[#allocation6 + $0x20] sm:$0xff]
    %v5751 = vld [vmem:[#allocation6 + $0x28] sm:$0xff]
    %v5752 = vld [vmem:[#allocation6 + $0x30] sm:$0xff]
    %v5753 = vld [vmem:[#allocation6 + $0x38] sm:$0xff]
    %v5754 = vld [vmem:[#allocation6 + $0x40] sm:$0xff]
    %v5755 = vld [vmem:[#allocation6 + $0x48] sm:$0xff]
    %v5756 = vld [vmem:[#allocation6 + $0x50] sm:$0xff]
    %v5757 = vld [vmem:[#allocation6 + $0x58] sm:$0xff]
    %v5758 = vld [vmem:[#allocation6 + $0x60] sm:$0xff]
    %v5759 = vld [vmem:[#allocation6 + $0x68] sm:$0xff]
    %v5760 = vld [vmem:[#allocation6 + $0x70] sm:$0xff]
    %v5761 = vld [vmem:[#allocation6 + $0x78] sm:$0xff]
    %v5762 = vld [vmem:[#allocation7] sm:$0x1]
    %v5764 = vlaneseq
    %v5765 = vshrl.u32 %v5764, 7
    %v5766 = vsub.s32 0, %v5765
    %v5767 = vrot.slane %v5762, %v5766
    %5769 = vmatprep.subr.mxu0 0.0
    %5770 = vmatpush1.msra.mxu0 %v5746
    %5771 = vmatprep.subr.mxu0 0.0
    %5772 = vmatpush1.msra.mxu0 %v5747
    %5773 = vmatprep.subr.mxu0 0.0
    %5774 = vmatpush1.msra.mxu0 %v5748
    %5775 = vmatprep.subr.mxu0 0.0
    %5776 = vmatpush1.msra.mxu0 %v5749
    %5777 = vmatprep.subr.mxu0 0.0
    %5778 = vmatpush1.msra.mxu0 %v5750
    %5779 = vmatprep.subr.mxu0 0.0
    %5780 = vmatpush1.msra.mxu0 %v5751
    %5781 = vmatprep.subr.mxu0 0.0
    %5782 = vmatpush1.msra.mxu0 %v5752
    %5783 = vmatprep.subr.mxu0 0.0
    %5784 = vmatpush1.msra.mxu0 %v5753
    %5785 = vmatprep.subr.mxu0 0.0
    %5786 = vmatpush1.msra.mxu0 %v5754
    %5787 = vmatprep.subr.mxu0 0.0
    %5788 = vmatpush1.msra.mxu0 %v5755
    %5789 = vmatprep.subr.mxu0 0.0
    %5790 = vmatpush1.msra.mxu0 %v5756
    %5791 = vmatprep.subr.mxu0 0.0
    %5792 = vmatpush1.msra.mxu0 %v5757
    %5793 = vmatprep.subr.mxu0 0.0
    %5794 = vmatpush1.msra.mxu0 %v5758
    %5795 = vmatprep.subr.mxu0 0.0
    %5796 = vmatpush1.msra.mxu0 %v5759
    %5797 = vmatprep.subr.mxu0 0.0
    %5798 = vmatpush1.msra.mxu0 %v5760
    %5799 = vmatprep.subr.mxu0 0.0
    %5800 = vmatpush1.msra.mxu0 %v5761
    %5801 = vmatprep.subr.mxu0 0.0
    %5802 = vmatpush1.msra.mxu0 0.0
    %5803 = vmatprep.subr.mxu0 0.0
    %5804 = vmatpush1.msra.mxu0 0.0
    %5805 = vmatprep.subr.mxu0 0.0
    %5806 = vmatpush1.msra.mxu0 0.0
    %5807 = vmatprep.subr.mxu0 0.0
    %5808 = vmatpush1.msra.mxu0 0.0
    %5809 = vmatprep.subr.mxu0 0.0
    %5810 = vmatpush1.msra.mxu0 0.0
    %5811 = vmatprep.subr.mxu0 0.0
    %5812 = vmatpush1.msra.mxu0 0.0
    %5813 = vmatprep.subr.mxu0 0.0
    %5814 = vmatpush1.msra.mxu0 0.0
    %5815 = vmatprep.subr.mxu0 0.0
    %5816 = vmatpush1.msra.mxu0 0.0
    %5817 = vmatprep.subr.mxu0 0.0
    %5818 = vmatpush1.msra.mxu0 0.0
    %5819 = vmatprep.subr.mxu0 0.0
    %5820 = vmatpush1.msra.mxu0 0.0
    %5821 = vmatprep.subr.mxu0 0.0
    %5822 = vmatpush1.msra.mxu0 0.0
    %5823 = vmatprep.subr.mxu0 0.0
    %5824 = vmatpush1.msra.mxu0 0.0
    %5825 = vmatprep.subr.mxu0 0.0
    %5826 = vmatpush1.msra.mxu0 0.0
    %5827 = vmatprep.subr.mxu0 0.0
    %5828 = vmatpush1.msra.mxu0 0.0
    %5829 = vmatprep.subr.mxu0 0.0
    %5830 = vmatpush1.msra.mxu0 0.0
    %5831 = vmatprep.subr.mxu0 0.0
    %5832 = vmatpush1.msra.mxu0 0.0
    %5833 = vmatprep.mubr.f32.mxu0 0.0
    %5834 = vmatmul.mubr.f32.gmra.mrb[0].mxu0 %v5745
    %v5835 = vpop.f32.mrb[0].mxu0
    %v5836 = vadd.f32 %v5767, %v5835
    %v5837 = vpop.f32.mrb[0].mxu0
    %5838 = vdwg.mxu0
    %5839 = vst [vmem:[%s8] sm:$0xff] %v5836
    %5840 = vst [vmem:[#allocation15] sm:$0x1] %v5104
    %5841 = vst [vmem:[#allocation15 + $0x1] sm:$0x1] %v5737
    %5842 = vst [vmem:[#allocation16] sm:$0x1] %v5102
    %5843 = vst [vmem:[#allocation16 + $0x1] sm:$0x1] %v5735
    // Predicated region
    $region46: #{rnn_forward.1} parent=1 // pred_check
      _
    $region47: #{rnn_forward.1} parent=1 // pred_check_branch
      %5845 = sbr.rel (0) target = $region49
    $region48: #{rnn_forward.1} parent=1 // pred_region
      _
    $region49: #{rnn_forward.1} parent=1 // pred_fallthru
      _
    // Predicated region
    $region50: #{rnn_forward.1} parent=1 // pred_check
      _
    $region51: #{rnn_forward.1} parent=1 // pred_check_branch
      %5847 = sbr.rel (0) target = $region53
    $region52: #{rnn_forward.1} parent=1 // pred_region
      %s5849 = ssub.s32 32, 32
      %5850 = vsyncadd [#allocation11], %s5849
      %s5852 = sshll.u32 [#allocation15], 4
      %s5853 = int_to_ptr.vmem [resolvable:$true] %s5852
      %5855 = dma.vmem_to_hbm [thread:$0]  %s5853, 32, %s9, [#allocation11]
    $region53: #{rnn_forward.1} parent=1 // pred_fallthru
      _
    // Predicated region
    $region54: #{rnn_forward.1} parent=1 // pred_check
      _
    $region55: #{rnn_forward.1} parent=1 // pred_check_branch
      %5857 = sbr.rel (0) target = $region57
    $region56: #{rnn_forward.1} parent=1 // pred_region
      %s5859 = ssub.s32 32, 32
      %5860 = vsyncadd [#allocation17], %s5859
      %s5862 = sshll.u32 [#allocation16], 4
      %s5863 = int_to_ptr.vmem [resolvable:$true] %s5862
      %5865 = dma.vmem_to_hbm [thread:$0]  %s5863, 32, %s10, [#allocation17]
    $region57: #{rnn_forward.1} parent=1 // pred_fallthru
      _
    // Predicated region
    $region58: #{rnn_forward.1} parent=1 // pred_check
      _
    $region59: #{rnn_forward.1} parent=1 // pred_check_branch
      %5867 = sbr.rel (0) target = $region61
    $region60: #{rnn_forward.1} parent=1 // pred_region
      _
    $region61: #{rnn_forward.1} parent=1 // pred_fallthru
      _
    // Predicated region
    $region62: #{rnn_forward.1} parent=1 // pred_check
      _
    $region63: #{rnn_forward.1} parent=1 // pred_check_branch
      %5869 = sbr.rel (0) target = $region65
    $region64: #{rnn_forward.1} parent=1 // pred_region
      %5870 = dma.done [#allocation11], 32
    $region65: #{rnn_forward.1} parent=1 // pred_fallthru
      _
    // Predicated region
    $region66: #{rnn_forward.1} parent=1 // pred_check
      _
    $region67: #{rnn_forward.1} parent=1 // pred_check_branch
      %5872 = sbr.rel (0) target = $region69
    $region68: #{rnn_forward.1} parent=1 // pred_region
      %5873 = dma.done [#allocation17], 32
    $region69: #{rnn_forward.1} parent=1 // pred_fallthru
      _
    %5874 = vsyncpa [#allocation10], 1
    %5875 = vsyncpa [#allocation13], 1
    %5876 = vsyncpa [#allocation11], 1
    %5877 = vsyncpa [#allocation17], 1
  %5878 = vsyncmov [#allocation8]
  %s5879 = vpop.sfrf %5878
  %p5880 = scmp.eq.s32.totalorder %s5879, 0
  %p5881 = pneg %p5880
  %5883 = shalt.err (%p5881)
  %s5884 = scalar_lea.sflag [#allocation8], 1
  %5885 = vsyncmov %s5884
  %s5886 = vpop.sfrf %5885
  %p5887 = scmp.eq.s32.totalorder %s5886, 0
  %p5888 = pneg %p5887
  %5890 = shalt.err (%p5888)
  %s5891 = scalar_lea.sflag [#allocation8], 2
  %5892 = vsyncmov %s5891
  %s5893 = vpop.sfrf %5892
  %p5894 = scmp.eq.s32.totalorder %s5893, 0
  %p5895 = pneg %p5894
  %5897 = shalt.err (%p5895)
  %s5898 = scalar_lea.sflag [#allocation8], 3
  %5899 = vsyncmov %s5898
  %s5900 = vpop.sfrf %5899
  %p5901 = scmp.eq.s32.totalorder %s5900, 0
  %p5902 = pneg %p5901
  %5904 = shalt.err (%p5902)

</llo_original>
